<compile_context>
chip_gen: v6e
topology: v6e:2x2x1
jax: 0.10.0
libtpu: 0.0.40
codegen_flags: <defaults>
</compile_context>

<pallas_src>
import functools

import jax
import jax.numpy as jnp
from jax.experimental import pallas as pl
from jax.experimental.pallas import tpu as pltpu


def _round_up(x, m):
    return ((x + m - 1) // m) * m


# ----------------------------------------------------------------------------
# Exact (erf-based) GELU.  Inlines XLA's f32 rational approximation of erf;
# the division is moved to the EUP slot via pl.reciprocal (review item).
# ----------------------------------------------------------------------------
_ERF_ALPHA = (0.00022905065861350646, 0.0034082910107109506,
              0.050955695062380861, 0.18520832239976145, 1.128379143519084)
_ERF_BETA = (-1.1791602954361697e-7, 0.000023547966471313185,
             0.0010179625278914885, 0.014070470171167667,
             0.11098505178285362, 0.49746925110067538, 1.0)


def _erf_f32(x):
    x = jnp.clip(x, -4.0, 4.0)
    x2 = x * x
    p = jnp.float32(_ERF_ALPHA[0])
    for c in _ERF_ALPHA[1:]:
        p = p * x2 + jnp.float32(c)
    q = jnp.float32(_ERF_BETA[0])
    for c in _ERF_BETA[1:]:
        q = q * x2 + jnp.float32(c)
    return x * p * pl.reciprocal(q, approx=True)   # divide -> EUP


def _gelu_exact(x):
    return 0.5 * x * (1.0 + _erf_f32(x * jnp.float32(0.7071067811865476)))


# ----------------------------------------------------------------------------
# Kernel 1: Conv2d(3x3,pad=1) + bias + GELU + MaxPool(2,2) + BN stat partials.
# One grid step = one image.
# ----------------------------------------------------------------------------
def _conv_pool_kernel(planes_ref, w4_ref, b4_ref, mask_ref,
                      pooled_ref, ssum_ref, ssq_ref, patch_ref,
                      *, cp, cout, wq, mq, tm):
    """planes_ref: (1, 4, cp, m_in)  spatial-parity planes of the zero-padded
                   image (channels padded to cp, spatial flattened over the
                   (Hq=Ho+1, Wq=Wo+1) parity grid, lane-padded to m_in).
       w4_ref:     (4*cout, 16*cp)   conv weights scattered so one matmul
                   yields all 4 pool-window positions for all 9 taps.
       b4_ref:     (4*cout, 1)       bias replicated per pool position.
       mask_ref:   (1, mq)           1.0 on valid pooled pixels (xo < Wo).
       pooled_ref: (1, cout, mq)     pooled GELU'd conv output (pre-BN).
       ssum_ref/ssq_ref: (1, cout, 1) per-image BN partial sums / sums-of-sq.
       patch_ref:  (16*cp, tm)       VMEM scratch with the im2col patch rows.
    """
    w4 = w4_ref[...]
    b4 = b4_ref[...]
    s1 = jnp.zeros((cout, 1), jnp.float32)
    s2 = jnp.zeros((cout, 1), jnp.float32)
    # In-kernel tiling of the pooled-pixel axis keeps VMEM bounded for large f.
    for t0 in range(0, mq, tm):
        tl = min(tm, mq - t0)
        # --- im2col in VMEM: 16 shifted lane-slices of the parity planes ----
        for p in range(4):            # parity plane index p = 2*py + px
            for a in range(2):        # row offset inside the parity grid
                for b in range(2):    # col offset inside the parity grid
                    s = p * 4 + a * 2 + b
                    off = t0 + a * wq + b
                    patch_ref[s * cp:(s + 1) * cp, :tl] = (
                        planes_ref[0, p, :, off:off + tl])
        # --- single fused matmul: 9 taps x 4 pool positions -----------------
        z = jnp.dot(w4, patch_ref[:, :tl],
                    preferred_element_type=jnp.float32) + b4
        z = _gelu_exact(z)                       # lane-dense (4*cout, tl)
        # --- 2x2 max-pool = max over the 4 pool-position row groups ---------
        pooled = jnp.maximum(
            jnp.maximum(z[0:cout], z[cout:2 * cout]),
            jnp.maximum(z[2 * cout:3 * cout], z[3 * cout:4 * cout]))
        pooled_ref[0, :, t0:t0 + tl] = pooled
        # --- one-pass BatchNorm partial statistics (masked: skip pad col) ---
        mv = mask_ref[0:1, t0:t0 + tl]
        s1 = s1 + jnp.sum(pooled * mv, axis=1, keepdims=True)
        s2 = s2 + jnp.sum(pooled * pooled * mv, axis=1, keepdims=True)
    ssum_ref[0] = s1
    ssq_ref[0] = s2


# ----------------------------------------------------------------------------
# Kernel 2: BatchNorm application (per-channel affine), second pass.
# ----------------------------------------------------------------------------
def _affine_kernel(x_ref, scale_ref, shift_ref, o_ref):
    o_ref[0] = x_ref[0] * scale_ref[...] + shift_ref[...]


# ----------------------------------------------------------------------------
# JAX-side glue (cheap layout work only, ~1x activation bytes).
# ----------------------------------------------------------------------------
def _prep_planes(act, cp, m_in):
    """(N, C, H, W) -> (N, 4, cp, m_in) spatial-parity planes of the
    zero-padded image, channel-padded and spatially flattened."""
    n, c, h, w = act.shape
    hq, wq = h // 2 + 1, w // 2 + 1
    xp = jnp.pad(act, ((0, 0), (0, 0), (1, 1), (1, 1)))
    planes = jnp.stack([xp[:, :, py::2, px::2]
                        for py in (0, 1) for px in (0, 1)], axis=1)
    planes = jnp.pad(planes, ((0, 0), (0, 0), (0, cp - c), (0, 0), (0, 0)))
    planes = planes.reshape(n, 4, cp, hq * wq)
    return jnp.pad(planes, ((0, 0), (0, 0), (0, 0), (0, m_in - hq * wq)))


def _build_w4(w, cp):
    """torch Conv2d weight (Cout, Cin, 3, 3) -> (4*Cout, 16*cp): row
    (pool_pos*Cout + co) dot the in-kernel patch == conv at that position."""
    w = w.astype(jnp.float32)
    cout, cin = w.shape[0], w.shape[1]
    w4 = jnp.zeros((4 * cout, 16 * cp), jnp.float32)
    for dy in range(2):
        for dx in range(2):
            r0 = (dy * 2 + dx) * cout
            for ky in range(3):
                for kx in range(3):
                    u, v = dy + ky, dx + kx
                    s = (u % 2) * 8 + (v % 2) * 4 + (u // 2) * 2 + (v // 2)
                    c0 = s * cp
                    w4 = w4.at[r0:r0 + cout, c0:c0 + cin].set(w[:, :, ky, kx])
    return w4


def _compiler_params():
    # 48 MiB: below v7x's 64 MiB physical VMEM, ample headroom on v5e/v6e.
    return pltpu.CompilerParams(dimension_semantics=("parallel",),
                                vmem_limit_bytes=48 * 1024 * 1024)


def _conv_block(act, w, bias, *, tm_target):
    """Conv(3x3,pad=1)+GELU+MaxPool(2,2); returns un-normalized pooled output
    (with one pad column per row) and per-image BatchNorm stat partials."""
    n, c, h, wdt = act.shape
    cout = w.shape[0]
    ho, wo = h // 2, wdt // 2
    hq, wq = ho + 1, wo + 1
    cp = _round_up(c, 8)                      # aligned sublane groups
    mq = ho * wq                              # pooled pixels + 1 pad col/row
    m_in = _round_up(hq * wq + wq + 2, 128)
    tm = min(tm_target, mq)

    planes = _prep_planes(act, cp, m_in)
    w4 = _build_w4(w, cp)
    b4 = jnp.tile(bias, 4).reshape(4 * cout, 1).astype(jnp.float32)
    mask = (jnp.arange(mq) % wq < wo).astype(jnp.float32).reshape(1, mq)

    kernel = functools.partial(_conv_pool_kernel, cp=cp, cout=cout, wq=wq,
                               mq=mq, tm=tm)
    pooled, ssum, ssq = pl.pallas_call(
        kernel,
        grid=(n,),
        out_shape=(jax.ShapeDtypeStruct((n, cout, mq), jnp.float32),
                   jax.ShapeDtypeStruct((n, cout, 1), jnp.float32),
                   jax.ShapeDtypeStruct((n, cout, 1), jnp.float32)),
        in_specs=[pl.BlockSpec((1, 4, cp, m_in), lambda i: (i, 0, 0, 0)),
                  pl.BlockSpec((4 * cout, 16 * cp), lambda i: (0, 0)),
                  pl.BlockSpec((4 * cout, 1), lambda i: (0, 0)),
                  pl.BlockSpec((1, mq), lambda i: (0, 0))],
        out_specs=(pl.BlockSpec((1, cout, mq), lambda i: (i, 0, 0)),
                   pl.BlockSpec((1, cout, 1), lambda i: (i, 0, 0)),
                   pl.BlockSpec((1, cout, 1), lambda i: (i, 0, 0))),
        scratch_shapes=[pltpu.VMEM((16 * cp, tm), jnp.float32)],
        compiler_params=_compiler_params(),
    )(planes, w4, b4, mask)
    return pooled, ssum, ssq, (ho, wo, wq)


def _batchnorm_apply(pooled, ssum, ssq, gamma, beta, count):
    """Second BN pass: reduce per-image partials (tiny, plain JAX) and apply
    the per-channel affine with a gridded Pallas kernel."""
    n, cout, mq = pooled.shape
    mean = jnp.sum(ssum, axis=0) / count                        # (cout, 1)
    var = jnp.maximum(jnp.sum(ssq, axis=0) / count - mean * mean, 0.0)
    scale = gamma.reshape(cout, 1).astype(jnp.float32) * jax.lax.rsqrt(var + 1e-5)
    shift = beta.reshape(cout, 1).astype(jnp.float32) - mean * scale
    return pl.pallas_call(
        _affine_kernel,
        grid=(n,),
        out_shape=jax.ShapeDtypeStruct((n, cout, mq), jnp.float32),
        in_specs=[pl.BlockSpec((1, cout, mq), lambda i: (i, 0, 0)),
                  pl.BlockSpec((cout, 1), lambda i: (0, 0)),
                  pl.BlockSpec((cout, 1), lambda i: (0, 0))],
        out_specs=pl.BlockSpec((1, cout, mq), lambda i: (i, 0, 0)),
        compiler_params=_compiler_params(),
    )(pooled, scale, shift)


def resisc45_cnn_forward(x_nchw, params, tm_target=2048):
    """Equivalent of RESISC45Cnn.forward: NCHW in, (N, 64*(f//8)**2) out."""
    assert x_nchw.shape[2] % 8 == 0 and x_nchw.shape[3] % 8 == 0
    act = x_nchw.astype(jnp.float32)
    for blk in params:
        n = act.shape[0]
        pooled, ssum, ssq, (ho, wo, wq) = _conv_block(
            act, blk["w"], blk["b"], tm_target=tm_target)
        normed = _batchnorm_apply(pooled, ssum, ssq, blk["gamma"], blk["beta"],
                                  float(n * ho * wo))
        # Drop the one pad column per row; stay channel-first (NCHW layout).
        act = normed.reshape(n, -1, ho, wq)[:, :, :, :wo]
    n = act.shape[0]
    return act.reshape(n, -1)   # nn.Flatten(1, -1) on the NCHW tensor


# ----------------------------------------------------------------------------
# Deterministic parameter init (synthetic; shapes from the module __init__).
# ----------------------------------------------------------------------------
def init_params(key):
    chans = [(3, 16), (16, 32), (32, 64)]
    params = []
    for cin, cout in chans:
        k1, k2, k3, k4, key = jax.random.split(key, 5)
        params.append(dict(
            w=jax.random.normal(k1, (cout, cin, 3, 3), jnp.float32)
              / jnp.sqrt(float(9 * cin)),
            b=0.05 * jax.random.normal(k2, (cout,), jnp.float32),
            gamma=1.0 + 0.1 * jax.random.normal(k3, (cout,), jnp.float32),
            beta=0.1 * jax.random.normal(k4, (cout,), jnp.float32),
        ))
    return params


# ----------------------------------------------------------------------------
# Pure-JAX reference (same semantics) for the correctness check.
# ----------------------------------------------------------------------------
def reference_forward(x_nchw, params):
    x = jnp.transpose(x_nchw, (0, 2, 3, 1)).astype(jnp.float32)
    for blk in params:
        y = jax.lax.conv_general_dilated(
            x, jnp.transpose(blk["w"], (2, 3, 1, 0)),
            window_strides=(1, 1), padding=((1, 1), (1, 1)),
            dimension_numbers=("NHWC", "HWIO", "NHWC"),
            precision=jax.lax.Precision.HIGHEST,
        ) + blk["b"]
        y = jax.nn.gelu(y, approximate=False)
        n, h, w, c = y.shape
        y = y.reshape(n, h // 2, 2, w // 2, 2, c).max(axis=(2, 4))
        mean = y.mean(axis=(0, 1, 2), keepdims=True)
        var = jnp.mean(jnp.square(y - mean), axis=(0, 1, 2), keepdims=True)
        x = (y - mean) * jax.lax.rsqrt(var + 1e-5) * blk["gamma"] + blk["beta"]
    n = x.shape[0]
    return jnp.transpose(x, (0, 3, 1, 2)).reshape(n, -1)


if __name__ == "__main__":
    key = jax.random.PRNGKey(0)
    kx, kp = jax.random.split(key)
    f = 16                                               # image side (mult of 8)
    x = jax.random.normal(kx, (2, 3, f, f), jnp.float32)    # NCHW, like PyTorch
    params = init_params(kp)

    fwd = jax.jit(resisc45_cnn_forward)
    out = jax.block_until_ready(fwd(x, params))
    assert out.shape == (2, 64 * (f // 8) ** 2), out.shape

    ref = reference_forward(x, params)
    max_err = float(jnp.max(jnp.abs(out - ref)))
    assert jnp.allclose(out, ref, atol=2e-2, rtol=2e-2), max_err

    # Also exercise the in-kernel M-tiling path (multiple chunks + ragged tail).
    fwd_tiled = jax.jit(functools.partial(resisc45_cnn_forward, tm_target=32))
    out2 = jax.block_until_ready(fwd_tiled(x, params))
    max_err2 = float(jnp.max(jnp.abs(out2 - ref)))
    assert jnp.allclose(out2, ref, atol=2e-2, rtol=2e-2), max_err2

    print("KERNEL_OK")
</pallas_src>

<mosaic_0001>
module attributes {stable_mosaic.version = 11 : i64} {
  func.func @_conv_pool_kernel(%arg0: i32, %arg1: memref<1x4x8x128xf32, #tpu.memory_space<vmem>>, %arg2: memref<64x128xf32, #tpu.memory_space<vmem>>, %arg3: memref<64x1xf32, #tpu.memory_space<vmem>>, %arg4: memref<1x72xf32, #tpu.memory_space<vmem>>, %arg5: memref<1x16x72xf32, #tpu.memory_space<vmem>>, %arg6: memref<1x16x1xf32, #tpu.memory_space<vmem>>, %arg7: memref<1x16x1xf32, #tpu.memory_space<vmem>>, %arg8: memref<128x72xf32, #tpu.memory_space<vmem>>) attributes {dimension_semantics = [#tpu.dimension_semantics<parallel>], iteration_bounds = array<i64: 2>, scalar_prefetch = 0 : i64, scratch_operands = 1 : i64, tpu.core_type = #tpu.core_type<tc>, window_params = [{transform_indices = @transform_0, window_bounds = array<i64: 1, 4, 8, 128>}, {pipeline_mode = #tpu.pipeline_mode<synchronous>, transform_indices = @transform_1, window_bounds = array<i64: 64, 128>}, {pipeline_mode = #tpu.pipeline_mode<synchronous>, transform_indices = @transform_2, window_bounds = array<i64: 64, 1>}, {pipeline_mode = #tpu.pipeline_mode<synchronous>, transform_indices = @transform_3, window_bounds = array<i64: 1, 72>}, {transform_indices = @transform_4, window_bounds = array<i64: 1, 16, 72>}, {transform_indices = @transform_5, window_bounds = array<i64: 1, 16, 1>}, {transform_indices = @transform_6, window_bounds = array<i64: 1, 16, 1>}]} {
    %c0 = arith.constant 0 : index
    %c0_0 = arith.constant 0 : index
    %0 = vector.load %arg2[%c0, %c0_0] : memref<64x128xf32, #tpu.memory_space<vmem>>, vector<64x128xf32>
    %c0_1 = arith.constant 0 : index
    %c0_2 = arith.constant 0 : index
    %1 = vector.load %arg3[%c0_1, %c0_2] : memref<64x1xf32, #tpu.memory_space<vmem>>, vector<64x1xf32>
    %cst = arith.constant 0.000000e+00 : f32
    %2 = vector.broadcast %cst : f32 to vector<16x1xf32>
    %cst_3 = arith.constant 0.000000e+00 : f32
    %3 = vector.broadcast %cst_3 : f32 to vector<16x1xf32>
    %c0_4 = arith.constant 0 : index
    %c0_5 = arith.constant 0 : index
    %c0_6 = arith.constant 0 : index
    %c0_7 = arith.constant 0 : index
    %4 = vector.load %arg1[%c0_4, %c0_5, %c0_6, %c0_7] : memref<1x4x8x128xf32, #tpu.memory_space<vmem>>, vector<1x1x8x72xf32>
    %5 = vector.shape_cast %4 : vector<1x1x8x72xf32> to vector<8x72xf32>
    %c0_8 = arith.constant 0 : index
    %c0_9 = arith.constant 0 : index
    %6 = vector.load %arg8[%c0_8, %c0_9] : memref<128x72xf32, #tpu.memory_space<vmem>>, vector<8x72xf32>
    tpu.vector_store %arg8[%c0_8, %c0_9], %5 {strides = array<i32>} : memref<128x72xf32, #tpu.memory_space<vmem>>, vector<8x72xf32>,
    %c0_10 = arith.constant 0 : index
    %c0_11 = arith.constant 0 : index
    %c0_12 = arith.constant 0 : index
    %c1 = arith.constant 1 : index
    %7 = vector.load %arg1[%c0_10, %c0_11, %c0_12, %c1] : memref<1x4x8x128xf32, #tpu.memory_space<vmem>>, vector<1x1x8x72xf32>
    %8 = vector.shape_cast %7 : vector<1x1x8x72xf32> to vector<8x72xf32>
    %c8 = arith.constant 8 : index
    %c0_13 = arith.constant 0 : index
    %9 = vector.load %arg8[%c8, %c0_13] : memref<128x72xf32, #tpu.memory_space<vmem>>, vector<8x72xf32>
    tpu.vector_store %arg8[%c8, %c0_13], %8 {strides = array<i32>} : memref<128x72xf32, #tpu.memory_space<vmem>>, vector<8x72xf32>,
    %c0_14 = arith.constant 0 : index
    %c0_15 = arith.constant 0 : index
    %c0_16 = arith.constant 0 : index
    %c9 = arith.constant 9 : index
    %10 = vector.load %arg1[%c0_14, %c0_15, %c0_16, %c9] : memref<1x4x8x128xf32, #tpu.memory_space<vmem>>, vector<1x1x8x72xf32>
    %11 = vector.shape_cast %10 : vector<1x1x8x72xf32> to vector<8x72xf32>
    %c16 = arith.constant 16 : index
    %c0_17 = arith.constant 0 : index
    %12 = vector.load %arg8[%c16, %c0_17] : memref<128x72xf32, #tpu.memory_space<vmem>>, vector<8x72xf32>
    tpu.vector_store %arg8[%c16, %c0_17], %11 {strides = array<i32>} : memref<128x72xf32, #tpu.memory_space<vmem>>, vector<8x72xf32>,
    %c0_18 = arith.constant 0 : index
    %c0_19 = arith.constant 0 : index
    %c0_20 = arith.constant 0 : index
    %c10 = arith.constant 10 : index
    %13 = vector.load %arg1[%c0_18, %c0_19, %c0_20, %c10] : memref<1x4x8x128xf32, #tpu.memory_space<vmem>>, vector<1x1x8x72xf32>
    %14 = vector.shape_cast %13 : vector<1x1x8x72xf32> to vector<8x72xf32>
    %c24 = arith.constant 24 : index
    %c0_21 = arith.constant 0 : index
    %15 = vector.load %arg8[%c24, %c0_21] : memref<128x72xf32, #tpu.memory_space<vmem>>, vector<8x72xf32>
    tpu.vector_store %arg8[%c24, %c0_21], %14 {strides = array<i32>} : memref<128x72xf32, #tpu.memory_space<vmem>>, vector<8x72xf32>,
    %c0_22 = arith.constant 0 : index
    %c1_23 = arith.constant 1 : index
    %c0_24 = arith.constant 0 : index
    %c0_25 = arith.constant 0 : index
    %16 = vector.load %arg1[%c0_22, %c1_23, %c0_24, %c0_25] : memref<1x4x8x128xf32, #tpu.memory_space<vmem>>, vector<1x1x8x72xf32>
    %17 = vector.shape_cast %16 : vector<1x1x8x72xf32> to vector<8x72xf32>
    %c32 = arith.constant 32 : index
    %c0_26 = arith.constant 0 : index
    %18 = vector.load %arg8[%c32, %c0_26] : memref<128x72xf32, #tpu.memory_space<vmem>>, vector<8x72xf32>
    tpu.vector_store %arg8[%c32, %c0_26], %17 {strides = array<i32>} : memref<128x72xf32, #tpu.memory_space<vmem>>, vector<8x72xf32>,
    %c0_27 = arith.constant 0 : index
    %c1_28 = arith.constant 1 : index
    %c0_29 = arith.constant 0 : index
    %c1_30 = arith.constant 1 : index
    %19 = vector.load %arg1[%c0_27, %c1_28, %c0_29, %c1_30] : memref<1x4x8x128xf32, #tpu.memory_space<vmem>>, vector<1x1x8x72xf32>
    %20 = vector.shape_cast %19 : vector<1x1x8x72xf32> to vector<8x72xf32>
    %c40 = arith.constant 40 : index
    %c0_31 = arith.constant 0 : index
    %21 = vector.load %arg8[%c40, %c0_31] : memref<128x72xf32, #tpu.memory_space<vmem>>, vector<8x72xf32>
    tpu.vector_store %arg8[%c40, %c0_31], %20 {strides = array<i32>} : memref<128x72xf32, #tpu.memory_space<vmem>>, vector<8x72xf32>,
    %c0_32 = arith.constant 0 : index
    %c1_33 = arith.constant 1 : index
    %c0_34 = arith.constant 0 : index
    %c9_35 = arith.constant 9 : index
    %22 = vector.load %arg1[%c0_32, %c1_33, %c0_34, %c9_35] : memref<1x4x8x128xf32, #tpu.memory_space<vmem>>, vector<1x1x8x72xf32>
    %23 = vector.shape_cast %22 : vector<1x1x8x72xf32> to vector<8x72xf32>
    %c48 = arith.constant 48 : index
    %c0_36 = arith.constant 0 : index
    %24 = vector.load %arg8[%c48, %c0_36] : memref<128x72xf32, #tpu.memory_space<vmem>>, vector<8x72xf32>
    tpu.vector_store %arg8[%c48, %c0_36], %23 {strides = array<i32>} : memref<128x72xf32, #tpu.memory_space<vmem>>, vector<8x72xf32>,
    %c0_37 = arith.constant 0 : index
    %c1_38 = arith.constant 1 : index
    %c0_39 = arith.constant 0 : index
    %c10_40 = arith.constant 10 : index
    %25 = vector.load %arg1[%c0_37, %c1_38, %c0_39, %c10_40] : memref<1x4x8x128xf32, #tpu.memory_space<vmem>>, vector<1x1x8x72xf32>
    %26 = vector.shape_cast %25 : vector<1x1x8x72xf32> to vector<8x72xf32>
    %c56 = arith.constant 56 : index
    %c0_41 = arith.constant 0 : index
    %27 = vector.load %arg8[%c56, %c0_41] : memref<128x72xf32, #tpu.memory_space<vmem>>, vector<8x72xf32>
    tpu.vector_store %arg8[%c56, %c0_41], %26 {strides = array<i32>} : memref<128x72xf32, #tpu.memory_space<vmem>>, vector<8x72xf32>,
    %c0_42 = arith.constant 0 : index
    %c2 = arith.constant 2 : index
    %c0_43 = arith.constant 0 : index
    %c0_44 = arith.constant 0 : index
    %28 = vector.load %arg1[%c0_42, %c2, %c0_43, %c0_44] : memref<1x4x8x128xf32, #tpu.memory_space<vmem>>, vector<1x1x8x72xf32>
    %29 = vector.shape_cast %28 : vector<1x1x8x72xf32> to vector<8x72xf32>
    %c64 = arith.constant 64 : index
    %c0_45 = arith.constant 0 : index
    %30 = vector.load %arg8[%c64, %c0_45] : memref<128x72xf32, #tpu.memory_space<vmem>>, vector<8x72xf32>
    tpu.vector_store %arg8[%c64, %c0_45], %29 {strides = array<i32>} : memref<128x72xf32, #tpu.memory_space<vmem>>, vector<8x72xf32>,
    %c0_46 = arith.constant 0 : index
    %c2_47 = arith.constant 2 : index
    %c0_48 = arith.constant 0 : index
    %c1_49 = arith.constant 1 : index
    %31 = vector.load %arg1[%c0_46, %c2_47, %c0_48, %c1_49] : memref<1x4x8x128xf32, #tpu.memory_space<vmem>>, vector<1x1x8x72xf32>
    %32 = vector.shape_cast %31 : vector<1x1x8x72xf32> to vector<8x72xf32>
    %c72 = arith.constant 72 : index
    %c0_50 = arith.constant 0 : index
    %33 = vector.load %arg8[%c72, %c0_50] : memref<128x72xf32, #tpu.memory_space<vmem>>, vector<8x72xf32>
    tpu.vector_store %arg8[%c72, %c0_50], %32 {strides = array<i32>} : memref<128x72xf32, #tpu.memory_space<vmem>>, vector<8x72xf32>,
    %c0_51 = arith.constant 0 : index
    %c2_52 = arith.constant 2 : index
    %c0_53 = arith.constant 0 : index
    %c9_54 = arith.constant 9 : index
    %34 = vector.load %arg1[%c0_51, %c2_52, %c0_53, %c9_54] : memref<1x4x8x128xf32, #tpu.memory_space<vmem>>, vector<1x1x8x72xf32>
    %35 = vector.shape_cast %34 : vector<1x1x8x72xf32> to vector<8x72xf32>
    %c80 = arith.constant 80 : index
    %c0_55 = arith.constant 0 : index
    %36 = vector.load %arg8[%c80, %c0_55] : memref<128x72xf32, #tpu.memory_space<vmem>>, vector<8x72xf32>
    tpu.vector_store %arg8[%c80, %c0_55], %35 {strides = array<i32>} : memref<128x72xf32, #tpu.memory_space<vmem>>, vector<8x72xf32>,
    %c0_56 = arith.constant 0 : index
    %c2_57 = arith.constant 2 : index
    %c0_58 = arith.constant 0 : index
    %c10_59 = arith.constant 10 : index
    %37 = vector.load %arg1[%c0_56, %c2_57, %c0_58, %c10_59] : memref<1x4x8x128xf32, #tpu.memory_space<vmem>>, vector<1x1x8x72xf32>
    %38 = vector.shape_cast %37 : vector<1x1x8x72xf32> to vector<8x72xf32>
    %c88 = arith.constant 88 : index
    %c0_60 = arith.constant 0 : index
    %39 = vector.load %arg8[%c88, %c0_60] : memref<128x72xf32, #tpu.memory_space<vmem>>, vector<8x72xf32>
    tpu.vector_store %arg8[%c88, %c0_60], %38 {strides = array<i32>} : memref<128x72xf32, #tpu.memory_space<vmem>>, vector<8x72xf32>,
    %c0_61 = arith.constant 0 : index
    %c3 = arith.constant 3 : index
    %c0_62 = arith.constant 0 : index
    %c0_63 = arith.constant 0 : index
    %40 = vector.load %arg1[%c0_61, %c3, %c0_62, %c0_63] : memref<1x4x8x128xf32, #tpu.memory_space<vmem>>, vector<1x1x8x72xf32>
    %41 = vector.shape_cast %40 : vector<1x1x8x72xf32> to vector<8x72xf32>
    %c96 = arith.constant 96 : index
    %c0_64 = arith.constant 0 : index
    %42 = vector.load %arg8[%c96, %c0_64] : memref<128x72xf32, #tpu.memory_space<vmem>>, vector<8x72xf32>
    tpu.vector_store %arg8[%c96, %c0_64], %41 {strides = array<i32>} : memref<128x72xf32, #tpu.memory_space<vmem>>, vector<8x72xf32>,
    %c0_65 = arith.constant 0 : index
    %c3_66 = arith.constant 3 : index
    %c0_67 = arith.constant 0 : index
    %c1_68 = arith.constant 1 : index
    %43 = vector.load %arg1[%c0_65, %c3_66, %c0_67, %c1_68] : memref<1x4x8x128xf32, #tpu.memory_space<vmem>>, vector<1x1x8x72xf32>
    %44 = vector.shape_cast %43 : vector<1x1x8x72xf32> to vector<8x72xf32>
    %c104 = arith.constant 104 : index
    %c0_69 = arith.constant 0 : index
    %45 = vector.load %arg8[%c104, %c0_69] : memref<128x72xf32, #tpu.memory_space<vmem>>, vector<8x72xf32>
    tpu.vector_store %arg8[%c104, %c0_69], %44 {strides = array<i32>} : memref<128x72xf32, #tpu.memory_space<vmem>>, vector<8x72xf32>,
    %c0_70 = arith.constant 0 : index
    %c3_71 = arith.constant 3 : index
    %c0_72 = arith.constant 0 : index
    %c9_73 = arith.constant 9 : index
    %46 = vector.load %arg1[%c0_70, %c3_71, %c0_72, %c9_73] : memref<1x4x8x128xf32, #tpu.memory_space<vmem>>, vector<1x1x8x72xf32>
    %47 = vector.shape_cast %46 : vector<1x1x8x72xf32> to vector<8x72xf32>
    %c112 = arith.constant 112 : index
    %c0_74 = arith.constant 0 : index
    %48 = vector.load %arg8[%c112, %c0_74] : memref<128x72xf32, #tpu.memory_space<vmem>>, vector<8x72xf32>
    tpu.vector_store %arg8[%c112, %c0_74], %47 {strides = array<i32>} : memref<128x72xf32, #tpu.memory_space<vmem>>, vector<8x72xf32>,
    %c0_75 = arith.constant 0 : index
    %c3_76 = arith.constant 3 : index
    %c0_77 = arith.constant 0 : index
    %c10_78 = arith.constant 10 : index
    %49 = vector.load %arg1[%c0_75, %c3_76, %c0_77, %c10_78] : memref<1x4x8x128xf32, #tpu.memory_space<vmem>>, vector<1x1x8x72xf32>
    %50 = vector.shape_cast %49 : vector<1x1x8x72xf32> to vector<8x72xf32>
    %c120 = arith.constant 120 : index
    %c0_79 = arith.constant 0 : index
    %51 = vector.load %arg8[%c120, %c0_79] : memref<128x72xf32, #tpu.memory_space<vmem>>, vector<8x72xf32>
    tpu.vector_store %arg8[%c120, %c0_79], %50 {strides = array<i32>} : memref<128x72xf32, #tpu.memory_space<vmem>>, vector<8x72xf32>,
    %c0_80 = arith.constant 0 : index
    %c0_81 = arith.constant 0 : index
    %52 = vector.load %arg8[%c0_80, %c0_81] : memref<128x72xf32, #tpu.memory_space<vmem>>, vector<128x72xf32>
    %cst_82 = arith.constant dense<0.000000e+00> : vector<64x72xf32>
    %53 = tpu.matmul %0, %52, %cst_82 {dimension_numbers = #tpu.dot_dimension_numbers<[1], [0], [0], [1], [0, 0, 1, 1], [], []>} : vector<64x128xf32>, vector<128x72xf32>, vector<64x72xf32> -> vector<64x72xf32>
    %54 = vector.broadcast %1 : vector<64x1xf32> to vector<64x72xf32>
    %55 = arith.addf %53, %54 : vector<64x72xf32>
    %cst_83 = arith.constant 5.000000e-01 : f32
    %56 = vector.broadcast %cst_83 : f32 to vector<64x72xf32>
    %57 = arith.mulf %56, %55 : vector<64x72xf32>
    %cst_84 = arith.constant 0.707106769 : f32
    %58 = vector.broadcast %cst_84 : f32 to vector<64x72xf32>
    %59 = arith.mulf %55, %58 : vector<64x72xf32>
    %cst_85 = arith.constant -4.000000e+00 : f32
    %cst_86 = arith.constant 4.000000e+00 : f32
    %60 = vector.broadcast %cst_85 : f32 to vector<64x72xf32>
    %61 = arith.maximumf %60, %59 : vector<64x72xf32>
    %62 = vector.broadcast %cst_86 : f32 to vector<64x72xf32>
    %63 = arith.minimumf %62, %61 : vector<64x72xf32>
    %64 = arith.mulf %63, %63 : vector<64x72xf32>
    %cst_87 = arith.constant 2.29050653E-4 : f32
    %65 = vector.broadcast %cst_87 : f32 to vector<64x72xf32>
    %66 = arith.mulf %65, %64 : vector<64x72xf32>
    %cst_88 = arith.constant 0.00340829091 : f32
    %67 = vector.broadcast %cst_88 : f32 to vector<64x72xf32>
    %68 = arith.addf %66, %67 : vector<64x72xf32>
    %69 = arith.mulf %68, %64 : vector<64x72xf32>
    %cst_89 = arith.constant 0.0509556942 : f32
    %70 = vector.broadcast %cst_89 : f32 to vector<64x72xf32>
    %71 = arith.addf %69, %70 : vector<64x72xf32>
    %72 = arith.mulf %71, %64 : vector<64x72xf32>
    %cst_90 = arith.constant 0.185208321 : f32
    %73 = vector.broadcast %cst_90 : f32 to vector<64x72xf32>
    %74 = arith.addf %72, %73 : vector<64x72xf32>
    %75 = arith.mulf %74, %64 : vector<64x72xf32>
    %cst_91 = arith.constant 1.12837911 : f32
    %76 = vector.broadcast %cst_91 : f32 to vector<64x72xf32>
    %77 = arith.addf %75, %76 : vector<64x72xf32>
    %cst_92 = arith.constant -1.17916031E-7 : f32
    %78 = vector.broadcast %cst_92 : f32 to vector<64x72xf32>
    %79 = arith.mulf %78, %64 : vector<64x72xf32>
    %cst_93 = arith.constant 2.35479656E-5 : f32
    %80 = vector.broadcast %cst_93 : f32 to vector<64x72xf32>
    %81 = arith.addf %79, %80 : vector<64x72xf32>
    %82 = arith.mulf %81, %64 : vector<64x72xf32>
    %cst_94 = arith.constant 0.00101796258 : f32
    %83 = vector.broadcast %cst_94 : f32 to vector<64x72xf32>
    %84 = arith.addf %82, %83 : vector<64x72xf32>
    %85 = arith.mulf %84, %64 : vector<64x72xf32>
    %cst_95 = arith.constant 0.0140704699 : f32
    %86 = vector.broadcast %cst_95 : f32 to vector<64x72xf32>
    %87 = arith.addf %85, %86 : vector<64x72xf32>
    %88 = arith.mulf %87, %64 : vector<64x72xf32>
    %cst_96 = arith.constant 0.110985048 : f32
    %89 = vector.broadcast %cst_96 : f32 to vector<64x72xf32>
    %90 = arith.addf %88, %89 : vector<64x72xf32>
    %91 = arith.mulf %90, %64 : vector<64x72xf32>
    %cst_97 = arith.constant 0.497469246 : f32
    %92 = vector.broadcast %cst_97 : f32 to vector<64x72xf32>
    %93 = arith.addf %91, %92 : vector<64x72xf32>
    %94 = arith.mulf %93, %64 : vector<64x72xf32>
    %cst_98 = arith.constant 1.000000e+00 : f32
    %95 = vector.broadcast %cst_98 : f32 to vector<64x72xf32>
    %96 = arith.addf %94, %95 : vector<64x72xf32>
    %97 = arith.mulf %63, %77 : vector<64x72xf32>
    %98 = tpu.reciprocal %96 {approx = true} : vector<64x72xf32> -> vector<64x72xf32>
    %99 = arith.mulf %97, %98 : vector<64x72xf32>
    %cst_99 = arith.constant 1.000000e+00 : f32
    %100 = vector.broadcast %cst_99 : f32 to vector<64x72xf32>
    %101 = arith.addf %100, %99 : vector<64x72xf32>
    %102 = arith.mulf %57, %101 : vector<64x72xf32>
    %103 = vector.extract_strided_slice %102 {offsets = [0, 0], sizes = [16, 72], strides = [1, 1]} : vector<64x72xf32> to vector<16x72xf32>
    %104 = vector.extract_strided_slice %102 {offsets = [16, 0], sizes = [16, 72], strides = [1, 1]} : vector<64x72xf32> to vector<16x72xf32>
    %105 = arith.maximumf %103, %104 : vector<16x72xf32>
    %106 = vector.extract_strided_slice %102 {offsets = [32, 0], sizes = [16, 72], strides = [1, 1]} : vector<64x72xf32> to vector<16x72xf32>
    %107 = vector.extract_strided_slice %102 {offsets = [48, 0], sizes = [16, 72], strides = [1, 1]} : vector<64x72xf32> to vector<16x72xf32>
    %108 = arith.maximumf %106, %107 : vector<16x72xf32>
    %109 = arith.maximumf %105, %108 : vector<16x72xf32>
    %c0_100 = arith.constant 0 : index
    %c0_101 = arith.constant 0 : index
    %c0_102 = arith.constant 0 : index
    %110 = vector.load %arg5[%c0_100, %c0_101, %c0_102] : memref<1x16x72xf32, #tpu.memory_space<vmem>>, vector<1x16x72xf32>
    %111 = vector.shape_cast %110 : vector<1x16x72xf32> to vector<16x72xf32>
    %112 = vector.shape_cast %109 : vector<16x72xf32> to vector<1x16x72xf32>
    tpu.vector_store %arg5[%c0_100, %c0_101, %c0_102], %112 {strides = array<i32>} : memref<1x16x72xf32, #tpu.memory_space<vmem>>, vector<1x16x72xf32>,
    %c0_103 = arith.constant 0 : index
    %c0_104 = arith.constant 0 : index
    %113 = vector.load %arg4[%c0_103, %c0_104] : memref<1x72xf32, #tpu.memory_space<vmem>>, vector<1x72xf32>
    %114 = vector.broadcast %113 : vector<1x72xf32> to vector<16x72xf32>
    %115 = arith.mulf %109, %114 : vector<16x72xf32>
    %cst_105 = arith.constant dense<0.000000e+00> : vector<16xf32>
    %116 = vector.multi_reduction <add>, %115, %cst_105 [1] : vector<16x72xf32> to vector<16xf32>
    %117 = vector.shape_cast %116 : vector<16xf32> to vector<16x1xf32>
    %118 = arith.addf %2, %117 : vector<16x1xf32>
    %119 = arith.mulf %109, %109 : vector<16x72xf32>
    %120 = vector.broadcast %113 : vector<1x72xf32> to vector<16x72xf32>
    %121 = arith.mulf %119, %120 : vector<16x72xf32>
    %cst_106 = arith.constant dense<0.000000e+00> : vector<16xf32>
    %122 = vector.multi_reduction <add>, %121, %cst_106 [1] : vector<16x72xf32> to vector<16xf32>
    %123 = vector.shape_cast %122 : vector<16xf32> to vector<16x1xf32>
    %124 = arith.addf %3, %123 : vector<16x1xf32>
    %c0_107 = arith.constant 0 : index
    %c0_108 = arith.constant 0 : index
    %c0_109 = arith.constant 0 : index
    %125 = vector.load %arg6[%c0_107, %c0_108, %c0_109] : memref<1x16x1xf32, #tpu.memory_space<vmem>>, vector<1x16x1xf32>
    %126 = vector.shape_cast %125 : vector<1x16x1xf32> to vector<16x1xf32>
    %127 = vector.shape_cast %118 : vector<16x1xf32> to vector<1x16x1xf32>
    tpu.vector_store %arg6[%c0_107, %c0_108, %c0_109], %127 {strides = array<i32>} : memref<1x16x1xf32, #tpu.memory_space<vmem>>, vector<1x16x1xf32>,
    %c0_110 = arith.constant 0 : index
    %c0_111 = arith.constant 0 : index
    %c0_112 = arith.constant 0 : index
    %128 = vector.load %arg7[%c0_110, %c0_111, %c0_112] : memref<1x16x1xf32, #tpu.memory_space<vmem>>, vector<1x16x1xf32>
    %129 = vector.shape_cast %128 : vector<1x16x1xf32> to vector<16x1xf32>
    %130 = vector.shape_cast %124 : vector<16x1xf32> to vector<1x16x1xf32>
    tpu.vector_store %arg7[%c0_110, %c0_111, %c0_112], %130 {strides = array<i32>} : memref<1x16x1xf32, #tpu.memory_space<vmem>>, vector<1x16x1xf32>,
    return
  }
  func.func @transform_0(%arg0: i32) -> (i32, i32, i32, i32) {
    %c0_i32 = arith.constant 0 : i32
    %c0_i32_0 = arith.constant 0 : i32
    %c0_i32_1 = arith.constant 0 : i32
    %c0_i32_2 = arith.constant 0 : i32
    return %arg0, %c0_i32, %c0_i32_0, %c0_i32_1 : i32, i32, i32, i32
  }
  func.func @transform_1(%arg0: i32) -> (i32, i32) {
    %c0_i32 = arith.constant 0 : i32
    %c0_i32_0 = arith.constant 0 : i32
    %c0_i32_1 = arith.constant 0 : i32
    return %c0_i32, %c0_i32_0 : i32, i32
  }
  func.func @transform_2(%arg0: i32) -> (i32, i32) {
    %c0_i32 = arith.constant 0 : i32
    %c0_i32_0 = arith.constant 0 : i32
    %c0_i32_1 = arith.constant 0 : i32
    return %c0_i32, %c0_i32_0 : i32, i32
  }
  func.func @transform_3(%arg0: i32) -> (i32, i32) {
    %c0_i32 = arith.constant 0 : i32
    %c0_i32_0 = arith.constant 0 : i32
    %c0_i32_1 = arith.constant 0 : i32
    return %c0_i32, %c0_i32_0 : i32, i32
  }
  func.func @transform_4(%arg0: i32) -> (i32, i32, i32) {
    %c0_i32 = arith.constant 0 : i32
    %c0_i32_0 = arith.constant 0 : i32
    %c0_i32_1 = arith.constant 0 : i32
    return %arg0, %c0_i32, %c0_i32_0 : i32, i32, i32
  }
  func.func @transform_5(%arg0: i32) -> (i32, i32, i32) {
    %c0_i32 = arith.constant 0 : i32
    %c0_i32_0 = arith.constant 0 : i32
    %c0_i32_1 = arith.constant 0 : i32
    return %arg0, %c0_i32, %c0_i32_0 : i32, i32, i32
  }
  func.func @transform_6(%arg0: i32) -> (i32, i32, i32) {
    %c0_i32 = arith.constant 0 : i32
    %c0_i32_0 = arith.constant 0 : i32
    %c0_i32_1 = arith.constant 0 : i32
    return %arg0, %c0_i32, %c0_i32_0 : i32, i32, i32
  }
}

module attributes {stable_mosaic.version = 11 : i64} {
  func.func @_affine_kernel(%arg0: i32, %arg1: memref<1x16x72xf32, #tpu.memory_space<vmem>>, %arg2: memref<16x1xf32, #tpu.memory_space<vmem>>, %arg3: memref<16x1xf32, #tpu.memory_space<vmem>>, %arg4: memref<1x16x72xf32, #tpu.memory_space<vmem>>) attributes {dimension_semantics = [#tpu.dimension_semantics<parallel>], iteration_bounds = array<i64: 2>, scalar_prefetch = 0 : i64, scratch_operands = 0 : i64, tpu.core_type = #tpu.core_type<tc>, window_params = [{transform_indices = @transform_0, window_bounds = array<i64: 1, 16, 72>}, {pipeline_mode = #tpu.pipeline_mode<synchronous>, transform_indices = @transform_1, window_bounds = array<i64: 16, 1>}, {pipeline_mode = #tpu.pipeline_mode<synchronous>, transform_indices = @transform_2, window_bounds = array<i64: 16, 1>}, {transform_indices = @transform_3, window_bounds = array<i64: 1, 16, 72>}]} {
    %c0 = arith.constant 0 : index
    %c0_0 = arith.constant 0 : index
    %c0_1 = arith.constant 0 : index
    %0 = vector.load %arg1[%c0, %c0_0, %c0_1] : memref<1x16x72xf32, #tpu.memory_space<vmem>>, vector<1x16x72xf32>
    %1 = vector.shape_cast %0 : vector<1x16x72xf32> to vector<16x72xf32>
    %c0_2 = arith.constant 0 : index
    %c0_3 = arith.constant 0 : index
    %2 = vector.load %arg2[%c0_2, %c0_3] : memref<16x1xf32, #tpu.memory_space<vmem>>, vector<16x1xf32>
    %3 = vector.broadcast %2 : vector<16x1xf32> to vector<16x72xf32>
    %4 = arith.mulf %1, %3 : vector<16x72xf32>
    %c0_4 = arith.constant 0 : index
    %c0_5 = arith.constant 0 : index
    %5 = vector.load %arg3[%c0_4, %c0_5] : memref<16x1xf32, #tpu.memory_space<vmem>>, vector<16x1xf32>
    %6 = vector.broadcast %5 : vector<16x1xf32> to vector<16x72xf32>
    %7 = arith.addf %4, %6 : vector<16x72xf32>
    %c0_6 = arith.constant 0 : index
    %c0_7 = arith.constant 0 : index
    %c0_8 = arith.constant 0 : index
    %8 = vector.load %arg4[%c0_6, %c0_7, %c0_8] : memref<1x16x72xf32, #tpu.memory_space<vmem>>, vector<1x16x72xf32>
    %9 = vector.shape_cast %8 : vector<1x16x72xf32> to vector<16x72xf32>
    %10 = vector.shape_cast %7 : vector<16x72xf32> to vector<1x16x72xf32>
    tpu.vector_store %arg4[%c0_6, %c0_7, %c0_8], %10 {strides = array<i32>} : memref<1x16x72xf32, #tpu.memory_space<vmem>>, vector<1x16x72xf32>,
    return
  }
  func.func @transform_0(%arg0: i32) -> (i32, i32, i32) {
    %c0_i32 = arith.constant 0 : i32
    %c0_i32_0 = arith.constant 0 : i32
    %c0_i32_1 = arith.constant 0 : i32
    return %arg0, %c0_i32, %c0_i32_0 : i32, i32, i32
  }
  func.func @transform_1(%arg0: i32) -> (i32, i32) {
    %c0_i32 = arith.constant 0 : i32
    %c0_i32_0 = arith.constant 0 : i32
    %c0_i32_1 = arith.constant 0 : i32
    return %c0_i32, %c0_i32_0 : i32, i32
  }
  func.func @transform_2(%arg0: i32) -> (i32, i32) {
    %c0_i32 = arith.constant 0 : i32
    %c0_i32_0 = arith.constant 0 : i32
    %c0_i32_1 = arith.constant 0 : i32
    return %c0_i32, %c0_i32_0 : i32, i32
  }
  func.func @transform_3(%arg0: i32) -> (i32, i32, i32) {
    %c0_i32 = arith.constant 0 : i32
    %c0_i32_0 = arith.constant 0 : i32
    %c0_i32_1 = arith.constant 0 : i32
    return %arg0, %c0_i32, %c0_i32_0 : i32, i32, i32
  }
}

module attributes {stable_mosaic.version = 11 : i64} {
  func.func @_conv_pool_kernel(%arg0: i32, %arg1: memref<1x4x16x128xf32, #tpu.memory_space<vmem>>, %arg2: memref<128x256xf32, #tpu.memory_space<vmem>>, %arg3: memref<128x1xf32, #tpu.memory_space<vmem>>, %arg4: memref<1x20xf32, #tpu.memory_space<vmem>>, %arg5: memref<1x32x20xf32, #tpu.memory_space<vmem>>, %arg6: memref<1x32x1xf32, #tpu.memory_space<vmem>>, %arg7: memref<1x32x1xf32, #tpu.memory_space<vmem>>, %arg8: memref<256x20xf32, #tpu.memory_space<vmem>>) attributes {dimension_semantics = [#tpu.dimension_semantics<parallel>], iteration_bounds = array<i64: 2>, scalar_prefetch = 0 : i64, scratch_operands = 1 : i64, tpu.core_type = #tpu.core_type<tc>, window_params = [{transform_indices = @transform_0, window_bounds = array<i64: 1, 4, 16, 128>}, {pipeline_mode = #tpu.pipeline_mode<synchronous>, transform_indices = @transform_1, window_bounds = array<i64: 128, 256>}, {pipeline_mode = #tpu.pipeline_mode<synchronous>, transform_indices = @transform_2, window_bounds = array<i64: 128, 1>}, {pipeline_mode = #tpu.pipeline_mode<synchronous>, transform_indices = @transform_3, window_bounds = array<i64: 1, 20>}, {transform_indices = @transform_4, window_bounds = array<i64: 1, 32, 20>}, {transform_indices = @transform_5, window_bounds = array<i64: 1, 32, 1>}, {transform_indices = @transform_6, window_bounds = array<i64: 1, 32, 1>}]} {
    %c0 = arith.constant 0 : index
    %c0_0 = arith.constant 0 : index
    %0 = vector.load %arg2[%c0, %c0_0] : memref<128x256xf32, #tpu.memory_space<vmem>>, vector<128x256xf32>
    %c0_1 = arith.constant 0 : index
    %c0_2 = arith.constant 0 : index
    %1 = vector.load %arg3[%c0_1, %c0_2] : memref<128x1xf32, #tpu.memory_space<vmem>>, vector<128x1xf32>
    %cst = arith.constant 0.000000e+00 : f32
    %2 = vector.broadcast %cst : f32 to vector<32x1xf32>
    %cst_3 = arith.constant 0.000000e+00 : f32
    %3 = vector.broadcast %cst_3 : f32 to vector<32x1xf32>
    %c0_4 = arith.constant 0 : index
    %c0_5 = arith.constant 0 : index
    %c0_6 = arith.constant 0 : index
    %c0_7 = arith.constant 0 : index
    %4 = vector.load %arg1[%c0_4, %c0_5, %c0_6, %c0_7] : memref<1x4x16x128xf32, #tpu.memory_space<vmem>>, vector<1x1x16x20xf32>
    %5 = vector.shape_cast %4 : vector<1x1x16x20xf32> to vector<16x20xf32>
    %c0_8 = arith.constant 0 : index
    %c0_9 = arith.constant 0 : index
    %6 = vector.load %arg8[%c0_8, %c0_9] : memref<256x20xf32, #tpu.memory_space<vmem>>, vector<16x20xf32>
    tpu.vector_store %arg8[%c0_8, %c0_9], %5 {strides = array<i32>} : memref<256x20xf32, #tpu.memory_space<vmem>>, vector<16x20xf32>,
    %c0_10 = arith.constant 0 : index
    %c0_11 = arith.constant 0 : index
    %c0_12 = arith.constant 0 : index
    %c1 = arith.constant 1 : index
    %7 = vector.load %arg1[%c0_10, %c0_11, %c0_12, %c1] : memref<1x4x16x128xf32, #tpu.memory_space<vmem>>, vector<1x1x16x20xf32>
    %8 = vector.shape_cast %7 : vector<1x1x16x20xf32> to vector<16x20xf32>
    %c16 = arith.constant 16 : index
    %c0_13 = arith.constant 0 : index
    %9 = vector.load %arg8[%c16, %c0_13] : memref<256x20xf32, #tpu.memory_space<vmem>>, vector<16x20xf32>
    tpu.vector_store %arg8[%c16, %c0_13], %8 {strides = array<i32>} : memref<256x20xf32, #tpu.memory_space<vmem>>, vector<16x20xf32>,
    %c0_14 = arith.constant 0 : index
    %c0_15 = arith.constant 0 : index
    %c0_16 = arith.constant 0 : index
    %c5 = arith.constant 5 : index
    %10 = vector.load %arg1[%c0_14, %c0_15, %c0_16, %c5] : memref<1x4x16x128xf32, #tpu.memory_space<vmem>>, vector<1x1x16x20xf32>
    %11 = vector.shape_cast %10 : vector<1x1x16x20xf32> to vector<16x20xf32>
    %c32 = arith.constant 32 : index
    %c0_17 = arith.constant 0 : index
    %12 = vector.load %arg8[%c32, %c0_17] : memref<256x20xf32, #tpu.memory_space<vmem>>, vector<16x20xf32>
    tpu.vector_store %arg8[%c32, %c0_17], %11 {strides = array<i32>} : memref<256x20xf32, #tpu.memory_space<vmem>>, vector<16x20xf32>,
    %c0_18 = arith.constant 0 : index
    %c0_19 = arith.constant 0 : index
    %c0_20 = arith.constant 0 : index
    %c6 = arith.constant 6 : index
    %13 = vector.load %arg1[%c0_18, %c0_19, %c0_20, %c6] : memref<1x4x16x128xf32, #tpu.memory_space<vmem>>, vector<1x1x16x20xf32>
    %14 = vector.shape_cast %13 : vector<1x1x16x20xf32> to vector<16x20xf32>
    %c48 = arith.constant 48 : index
    %c0_21 = arith.constant 0 : index
    %15 = vector.load %arg8[%c48, %c0_21] : memref<256x20xf32, #tpu.memory_space<vmem>>, vector<16x20xf32>
    tpu.vector_store %arg8[%c48, %c0_21], %14 {strides = array<i32>} : memref<256x20xf32, #tpu.memory_space<vmem>>, vector<16x20xf32>,
    %c0_22 = arith.constant 0 : index
    %c1_23 = arith.constant 1 : index
    %c0_24 = arith.constant 0 : index
    %c0_25 = arith.constant 0 : index
    %16 = vector.load %arg1[%c0_22, %c1_23, %c0_24, %c0_25] : memref<1x4x16x128xf32, #tpu.memory_space<vmem>>, vector<1x1x16x20xf32>
    %17 = vector.shape_cast %16 : vector<1x1x16x20xf32> to vector<16x20xf32>
    %c64 = arith.constant 64 : index
    %c0_26 = arith.constant 0 : index
    %18 = vector.load %arg8[%c64, %c0_26] : memref<256x20xf32, #tpu.memory_space<vmem>>, vector<16x20xf32>
    tpu.vector_store %arg8[%c64, %c0_26], %17 {strides = array<i32>} : memref<256x20xf32, #tpu.memory_space<vmem>>, vector<16x20xf32>,
    %c0_27 = arith.constant 0 : index
    %c1_28 = arith.constant 1 : index
    %c0_29 = arith.constant 0 : index
    %c1_30 = arith.constant 1 : index
    %19 = vector.load %arg1[%c0_27, %c1_28, %c0_29, %c1_30] : memref<1x4x16x128xf32, #tpu.memory_space<vmem>>, vector<1x1x16x20xf32>
    %20 = vector.shape_cast %19 : vector<1x1x16x20xf32> to vector<16x20xf32>
    %c80 = arith.constant 80 : index
    %c0_31 = arith.constant 0 : index
    %21 = vector.load %arg8[%c80, %c0_31] : memref<256x20xf32, #tpu.memory_space<vmem>>, vector<16x20xf32>
    tpu.vector_store %arg8[%c80, %c0_31], %20 {strides = array<i32>} : memref<256x20xf32, #tpu.memory_space<vmem>>, vector<16x20xf32>,
    %c0_32 = arith.constant 0 : index
    %c1_33 = arith.constant 1 : index
    %c0_34 = arith.constant 0 : index
    %c5_35 = arith.constant 5 : index
    %22 = vector.load %arg1[%c0_32, %c1_33, %c0_34, %c5_35] : memref<1x4x16x128xf32, #tpu.memory_space<vmem>>, vector<1x1x16x20xf32>
    %23 = vector.shape_cast %22 : vector<1x1x16x20xf32> to vector<16x20xf32>
    %c96 = arith.constant 96 : index
    %c0_36 = arith.constant 0 : index
    %24 = vector.load %arg8[%c96, %c0_36] : memref<256x20xf32, #tpu.memory_space<vmem>>, vector<16x20xf32>
    tpu.vector_store %arg8[%c96, %c0_36], %23 {strides = array<i32>} : memref<256x20xf32, #tpu.memory_space<vmem>>, vector<16x20xf32>,
    %c0_37 = arith.constant 0 : index
    %c1_38 = arith.constant 1 : index
    %c0_39 = arith.constant 0 : index
    %c6_40 = arith.constant 6 : index
    %25 = vector.load %arg1[%c0_37, %c1_38, %c0_39, %c6_40] : memref<1x4x16x128xf32, #tpu.memory_space<vmem>>, vector<1x1x16x20xf32>
    %26 = vector.shape_cast %25 : vector<1x1x16x20xf32> to vector<16x20xf32>
    %c112 = arith.constant 112 : index
    %c0_41 = arith.constant 0 : index
    %27 = vector.load %arg8[%c112, %c0_41] : memref<256x20xf32, #tpu.memory_space<vmem>>, vector<16x20xf32>
    tpu.vector_store %arg8[%c112, %c0_41], %26 {strides = array<i32>} : memref<256x20xf32, #tpu.memory_space<vmem>>, vector<16x20xf32>,
    %c0_42 = arith.constant 0 : index
    %c2 = arith.constant 2 : index
    %c0_43 = arith.constant 0 : index
    %c0_44 = arith.constant 0 : index
    %28 = vector.load %arg1[%c0_42, %c2, %c0_43, %c0_44] : memref<1x4x16x128xf32, #tpu.memory_space<vmem>>, vector<1x1x16x20xf32>
    %29 = vector.shape_cast %28 : vector<1x1x16x20xf32> to vector<16x20xf32>
    %c128 = arith.constant 128 : index
    %c0_45 = arith.constant 0 : index
    %30 = vector.load %arg8[%c128, %c0_45] : memref<256x20xf32, #tpu.memory_space<vmem>>, vector<16x20xf32>
    tpu.vector_store %arg8[%c128, %c0_45], %29 {strides = array<i32>} : memref<256x20xf32, #tpu.memory_space<vmem>>, vector<16x20xf32>,
    %c0_46 = arith.constant 0 : index
    %c2_47 = arith.constant 2 : index
    %c0_48 = arith.constant 0 : index
    %c1_49 = arith.constant 1 : index
    %31 = vector.load %arg1[%c0_46, %c2_47, %c0_48, %c1_49] : memref<1x4x16x128xf32, #tpu.memory_space<vmem>>, vector<1x1x16x20xf32>
    %32 = vector.shape_cast %31 : vector<1x1x16x20xf32> to vector<16x20xf32>
    %c144 = arith.constant 144 : index
    %c0_50 = arith.constant 0 : index
    %33 = vector.load %arg8[%c144, %c0_50] : memref<256x20xf32, #tpu.memory_space<vmem>>, vector<16x20xf32>
    tpu.vector_store %arg8[%c144, %c0_50], %32 {strides = array<i32>} : memref<256x20xf32, #tpu.memory_space<vmem>>, vector<16x20xf32>,
    %c0_51 = arith.constant 0 : index
    %c2_52 = arith.constant 2 : index
    %c0_53 = arith.constant 0 : index
    %c5_54 = arith.constant 5 : index
    %34 = vector.load %arg1[%c0_51, %c2_52, %c0_53, %c5_54] : memref<1x4x16x128xf32, #tpu.memory_space<vmem>>, vector<1x1x16x20xf32>
    %35 = vector.shape_cast %34 : vector<1x1x16x20xf32> to vector<16x20xf32>
    %c160 = arith.constant 160 : index
    %c0_55 = arith.constant 0 : index
    %36 = vector.load %arg8[%c160, %c0_55] : memref<256x20xf32, #tpu.memory_space<vmem>>, vector<16x20xf32>
    tpu.vector_store %arg8[%c160, %c0_55], %35 {strides = array<i32>} : memref<256x20xf32, #tpu.memory_space<vmem>>, vector<16x20xf32>,
    %c0_56 = arith.constant 0 : index
    %c2_57 = arith.constant 2 : index
    %c0_58 = arith.constant 0 : index
    %c6_59 = arith.constant 6 : index
    %37 = vector.load %arg1[%c0_56, %c2_57, %c0_58, %c6_59] : memref<1x4x16x128xf32, #tpu.memory_space<vmem>>, vector<1x1x16x20xf32>
    %38 = vector.shape_cast %37 : vector<1x1x16x20xf32> to vector<16x20xf32>
    %c176 = arith.constant 176 : index
    %c0_60 = arith.constant 0 : index
    %39 = vector.load %arg8[%c176, %c0_60] : memref<256x20xf32, #tpu.memory_space<vmem>>, vector<16x20xf32>
    tpu.vector_store %arg8[%c176, %c0_60], %38 {strides = array<i32>} : memref<256x20xf32, #tpu.memory_space<vmem>>, vector<16x20xf32>,
    %c0_61 = arith.constant 0 : index
    %c3 = arith.constant 3 : index
    %c0_62 = arith.constant 0 : index
    %c0_63 = arith.constant 0 : index
    %40 = vector.load %arg1[%c0_61, %c3, %c0_62, %c0_63] : memref<1x4x16x128xf32, #tpu.memory_space<vmem>>, vector<1x1x16x20xf32>
    %41 = vector.shape_cast %40 : vector<1x1x16x20xf32> to vector<16x20xf32>
    %c192 = arith.constant 192 : index
    %c0_64 = arith.constant 0 : index
    %42 = vector.load %arg8[%c192, %c0_64] : memref<256x20xf32, #tpu.memory_space<vmem>>, vector<16x20xf32>
    tpu.vector_store %arg8[%c192, %c0_64], %41 {strides = array<i32>} : memref<256x20xf32, #tpu.memory_space<vmem>>, vector<16x20xf32>,
    %c0_65 = arith.constant 0 : index
    %c3_66 = arith.constant 3 : index
    %c0_67 = arith.constant 0 : index
    %c1_68 = arith.constant 1 : index
    %43 = vector.load %arg1[%c0_65, %c3_66, %c0_67, %c1_68] : memref<1x4x16x128xf32, #tpu.memory_space<vmem>>, vector<1x1x16x20xf32>
    %44 = vector.shape_cast %43 : vector<1x1x16x20xf32> to vector<16x20xf32>
    %c208 = arith.constant 208 : index
    %c0_69 = arith.constant 0 : index
    %45 = vector.load %arg8[%c208, %c0_69] : memref<256x20xf32, #tpu.memory_space<vmem>>, vector<16x20xf32>
    tpu.vector_store %arg8[%c208, %c0_69], %44 {strides = array<i32>} : memref<256x20xf32, #tpu.memory_space<vmem>>, vector<16x20xf32>,
    %c0_70 = arith.constant 0 : index
    %c3_71 = arith.constant 3 : index
    %c0_72 = arith.constant 0 : index
    %c5_73 = arith.constant 5 : index
    %46 = vector.load %arg1[%c0_70, %c3_71, %c0_72, %c5_73] : memref<1x4x16x128xf32, #tpu.memory_space<vmem>>, vector<1x1x16x20xf32>
    %47 = vector.shape_cast %46 : vector<1x1x16x20xf32> to vector<16x20xf32>
    %c224 = arith.constant 224 : index
    %c0_74 = arith.constant 0 : index
    %48 = vector.load %arg8[%c224, %c0_74] : memref<256x20xf32, #tpu.memory_space<vmem>>, vector<16x20xf32>
    tpu.vector_store %arg8[%c224, %c0_74], %47 {strides = array<i32>} : memref<256x20xf32, #tpu.memory_space<vmem>>, vector<16x20xf32>,
    %c0_75 = arith.constant 0 : index
    %c3_76 = arith.constant 3 : index
    %c0_77 = arith.constant 0 : index
    %c6_78 = arith.constant 6 : index
    %49 = vector.load %arg1[%c0_75, %c3_76, %c0_77, %c6_78] : memref<1x4x16x128xf32, #tpu.memory_space<vmem>>, vector<1x1x16x20xf32>
    %50 = vector.shape_cast %49 : vector<1x1x16x20xf32> to vector<16x20xf32>
    %c240 = arith.constant 240 : index
    %c0_79 = arith.constant 0 : index
    %51 = vector.load %arg8[%c240, %c0_79] : memref<256x20xf32, #tpu.memory_space<vmem>>, vector<16x20xf32>
    tpu.vector_store %arg8[%c240, %c0_79], %50 {strides = array<i32>} : memref<256x20xf32, #tpu.memory_space<vmem>>, vector<16x20xf32>,
    %c0_80 = arith.constant 0 : index
    %c0_81 = arith.constant 0 : index
    %52 = vector.load %arg8[%c0_80, %c0_81] : memref<256x20xf32, #tpu.memory_space<vmem>>, vector<256x20xf32>
    %cst_82 = arith.constant dense<0.000000e+00> : vector<128x20xf32>
    %53 = tpu.matmul %0, %52, %cst_82 {dimension_numbers = #tpu.dot_dimension_numbers<[1], [0], [0], [1], [0, 0, 1, 1], [], []>} : vector<128x256xf32>, vector<256x20xf32>, vector<128x20xf32> -> vector<128x20xf32>
    %54 = vector.broadcast %1 : vector<128x1xf32> to vector<128x20xf32>
    %55 = arith.addf %53, %54 : vector<128x20xf32>
    %cst_83 = arith.constant 5.000000e-01 : f32
    %56 = vector.broadcast %cst_83 : f32 to vector<128x20xf32>
    %57 = arith.mulf %56, %55 : vector<128x20xf32>
    %cst_84 = arith.constant 0.707106769 : f32
    %58 = vector.broadcast %cst_84 : f32 to vector<128x20xf32>
    %59 = arith.mulf %55, %58 : vector<128x20xf32>
    %cst_85 = arith.constant -4.000000e+00 : f32
    %cst_86 = arith.constant 4.000000e+00 : f32
    %60 = vector.broadcast %cst_85 : f32 to vector<128x20xf32>
    %61 = arith.maximumf %60, %59 : vector<128x20xf32>
    %62 = vector.broadcast %cst_86 : f32 to vector<128x20xf32>
    %63 = arith.minimumf %62, %61 : vector<128x20xf32>
    %64 = arith.mulf %63, %63 : vector<128x20xf32>
    %cst_87 = arith.constant 2.29050653E-4 : f32
    %65 = vector.broadcast %cst_87 : f32 to vector<128x20xf32>
    %66 = arith.mulf %65, %64 : vector<128x20xf32>
    %cst_88 = arith.constant 0.00340829091 : f32
    %67 = vector.broadcast %cst_88 : f32 to vector<128x20xf32>
    %68 = arith.addf %66, %67 : vector<128x20xf32>
    %69 = arith.mulf %68, %64 : vector<128x20xf32>
    %cst_89 = arith.constant 0.0509556942 : f32
    %70 = vector.broadcast %cst_89 : f32 to vector<128x20xf32>
    %71 = arith.addf %69, %70 : vector<128x20xf32>
    %72 = arith.mulf %71, %64 : vector<128x20xf32>
    %cst_90 = arith.constant 0.185208321 : f32
    %73 = vector.broadcast %cst_90 : f32 to vector<128x20xf32>
    %74 = arith.addf %72, %73 : vector<128x20xf32>
    %75 = arith.mulf %74, %64 : vector<128x20xf32>
    %cst_91 = arith.constant 1.12837911 : f32
    %76 = vector.broadcast %cst_91 : f32 to vector<128x20xf32>
    %77 = arith.addf %75, %76 : vector<128x20xf32>
    %cst_92 = arith.constant -1.17916031E-7 : f32
    %78 = vector.broadcast %cst_92 : f32 to vector<128x20xf32>
    %79 = arith.mulf %78, %64 : vector<128x20xf32>
    %cst_93 = arith.constant 2.35479656E-5 : f32
    %80 = vector.broadcast %cst_93 : f32 to vector<128x20xf32>
    %81 = arith.addf %79, %80 : vector<128x20xf32>
    %82 = arith.mulf %81, %64 : vector<128x20xf32>
    %cst_94 = arith.constant 0.00101796258 : f32
    %83 = vector.broadcast %cst_94 : f32 to vector<128x20xf32>
    %84 = arith.addf %82, %83 : vector<128x20xf32>
    %85 = arith.mulf %84, %64 : vector<128x20xf32>
    %cst_95 = arith.constant 0.0140704699 : f32
    %86 = vector.broadcast %cst_95 : f32 to vector<128x20xf32>
    %87 = arith.addf %85, %86 : vector<128x20xf32>
    %88 = arith.mulf %87, %64 : vector<128x20xf32>
    %cst_96 = arith.constant 0.110985048 : f32
    %89 = vector.broadcast %cst_96 : f32 to vector<128x20xf32>
    %90 = arith.addf %88, %89 : vector<128x20xf32>
    %91 = arith.mulf %90, %64 : vector<128x20xf32>
    %cst_97 = arith.constant 0.497469246 : f32
    %92 = vector.broadcast %cst_97 : f32 to vector<128x20xf32>
    %93 = arith.addf %91, %92 : vector<128x20xf32>
    %94 = arith.mulf %93, %64 : vector<128x20xf32>
    %cst_98 = arith.constant 1.000000e+00 : f32
    %95 = vector.broadcast %cst_98 : f32 to vector<128x20xf32>
    %96 = arith.addf %94, %95 : vector<128x20xf32>
    %97 = arith.mulf %63, %77 : vector<128x20xf32>
    %98 = tpu.reciprocal %96 {approx = true} : vector<128x20xf32> -> vector<128x20xf32>
    %99 = arith.mulf %97, %98 : vector<128x20xf32>
    %cst_99 = arith.constant 1.000000e+00 : f32
    %100 = vector.broadcast %cst_99 : f32 to vector<128x20xf32>
    %101 = arith.addf %100, %99 : vector<128x20xf32>
    %102 = arith.mulf %57, %101 : vector<128x20xf32>
    %103 = vector.extract_strided_slice %102 {offsets = [0, 0], sizes = [32, 20], strides = [1, 1]} : vector<128x20xf32> to vector<32x20xf32>
    %104 = vector.extract_strided_slice %102 {offsets = [32, 0], sizes = [32, 20], strides = [1, 1]} : vector<128x20xf32> to vector<32x20xf32>
    %105 = arith.maximumf %103, %104 : vector<32x20xf32>
    %106 = vector.extract_strided_slice %102 {offsets = [64, 0], sizes = [32, 20], strides = [1, 1]} : vector<128x20xf32> to vector<32x20xf32>
    %107 = vector.extract_strided_slice %102 {offsets = [96, 0], sizes = [32, 20], strides = [1, 1]} : vector<128x20xf32> to vector<32x20xf32>
    %108 = arith.maximumf %106, %107 : vector<32x20xf32>
    %109 = arith.maximumf %105, %108 : vector<32x20xf32>
    %c0_100 = arith.constant 0 : index
    %c0_101 = arith.constant 0 : index
    %c0_102 = arith.constant 0 : index
    %110 = vector.load %arg5[%c0_100, %c0_101, %c0_102] : memref<1x32x20xf32, #tpu.memory_space<vmem>>, vector<1x32x20xf32>
    %111 = vector.shape_cast %110 : vector<1x32x20xf32> to vector<32x20xf32>
    %112 = vector.shape_cast %109 : vector<32x20xf32> to vector<1x32x20xf32>
    tpu.vector_store %arg5[%c0_100, %c0_101, %c0_102], %112 {strides = array<i32>} : memref<1x32x20xf32, #tpu.memory_space<vmem>>, vector<1x32x20xf32>,
    %c0_103 = arith.constant 0 : index
    %c0_104 = arith.constant 0 : index
    %113 = vector.load %arg4[%c0_103, %c0_104] : memref<1x20xf32, #tpu.memory_space<vmem>>, vector<1x20xf32>
    %114 = vector.broadcast %113 : vector<1x20xf32> to vector<32x20xf32>
    %115 = arith.mulf %109, %114 : vector<32x20xf32>
    %cst_105 = arith.constant dense<0.000000e+00> : vector<32xf32>
    %116 = vector.multi_reduction <add>, %115, %cst_105 [1] : vector<32x20xf32> to vector<32xf32>
    %117 = vector.shape_cast %116 : vector<32xf32> to vector<32x1xf32>
    %118 = arith.addf %2, %117 : vector<32x1xf32>
    %119 = arith.mulf %109, %109 : vector<32x20xf32>
    %120 = vector.broadcast %113 : vector<1x20xf32> to vector<32x20xf32>
    %121 = arith.mulf %119, %120 : vector<32x20xf32>
    %cst_106 = arith.constant dense<0.000000e+00> : vector<32xf32>
    %122 = vector.multi_reduction <add>, %121, %cst_106 [1] : vector<32x20xf32> to vector<32xf32>
    %123 = vector.shape_cast %122 : vector<32xf32> to vector<32x1xf32>
    %124 = arith.addf %3, %123 : vector<32x1xf32>
    %c0_107 = arith.constant 0 : index
    %c0_108 = arith.constant 0 : index
    %c0_109 = arith.constant 0 : index
    %125 = vector.load %arg6[%c0_107, %c0_108, %c0_109] : memref<1x32x1xf32, #tpu.memory_space<vmem>>, vector<1x32x1xf32>
    %126 = vector.shape_cast %125 : vector<1x32x1xf32> to vector<32x1xf32>
    %127 = vector.shape_cast %118 : vector<32x1xf32> to vector<1x32x1xf32>
    tpu.vector_store %arg6[%c0_107, %c0_108, %c0_109], %127 {strides = array<i32>} : memref<1x32x1xf32, #tpu.memory_space<vmem>>, vector<1x32x1xf32>,
    %c0_110 = arith.constant 0 : index
    %c0_111 = arith.constant 0 : index
    %c0_112 = arith.constant 0 : index
    %128 = vector.load %arg7[%c0_110, %c0_111, %c0_112] : memref<1x32x1xf32, #tpu.memory_space<vmem>>, vector<1x32x1xf32>
    %129 = vector.shape_cast %128 : vector<1x32x1xf32> to vector<32x1xf32>
    %130 = vector.shape_cast %124 : vector<32x1xf32> to vector<1x32x1xf32>
    tpu.vector_store %arg7[%c0_110, %c0_111, %c0_112], %130 {strides = array<i32>} : memref<1x32x1xf32, #tpu.memory_space<vmem>>, vector<1x32x1xf32>,
    return
  }
  func.func @transform_0(%arg0: i32) -> (i32, i32, i32, i32) {
    %c0_i32 = arith.constant 0 : i32
    %c0_i32_0 = arith.constant 0 : i32
    %c0_i32_1 = arith.constant 0 : i32
    %c0_i32_2 = arith.constant 0 : i32
    return %arg0, %c0_i32, %c0_i32_0, %c0_i32_1 : i32, i32, i32, i32
  }
  func.func @transform_1(%arg0: i32) -> (i32, i32) {
    %c0_i32 = arith.constant 0 : i32
    %c0_i32_0 = arith.constant 0 : i32
    %c0_i32_1 = arith.constant 0 : i32
    return %c0_i32, %c0_i32_0 : i32, i32
  }
  func.func @transform_2(%arg0: i32) -> (i32, i32) {
    %c0_i32 = arith.constant 0 : i32
    %c0_i32_0 = arith.constant 0 : i32
    %c0_i32_1 = arith.constant 0 : i32
    return %c0_i32, %c0_i32_0 : i32, i32
  }
  func.func @transform_3(%arg0: i32) -> (i32, i32) {
    %c0_i32 = arith.constant 0 : i32
    %c0_i32_0 = arith.constant 0 : i32
    %c0_i32_1 = arith.constant 0 : i32
    return %c0_i32, %c0_i32_0 : i32, i32
  }
  func.func @transform_4(%arg0: i32) -> (i32, i32, i32) {
    %c0_i32 = arith.constant 0 : i32
    %c0_i32_0 = arith.constant 0 : i32
    %c0_i32_1 = arith.constant 0 : i32
    return %arg0, %c0_i32, %c0_i32_0 : i32, i32, i32
  }
  func.func @transform_5(%arg0: i32) -> (i32, i32, i32) {
    %c0_i32 = arith.constant 0 : i32
    %c0_i32_0 = arith.constant 0 : i32
    %c0_i32_1 = arith.constant 0 : i32
    return %arg0, %c0_i32, %c0_i32_0 : i32, i32, i32
  }
  func.func @transform_6(%arg0: i32) -> (i32, i32, i32) {
    %c0_i32 = arith.constant 0 : i32
    %c0_i32_0 = arith.constant 0 : i32
    %c0_i32_1 = arith.constant 0 : i32
    return %arg0, %c0_i32, %c0_i32_0 : i32, i32, i32
  }
}

module attributes {stable_mosaic.version = 11 : i64} {
  func.func @_affine_kernel(%arg0: i32, %arg1: memref<1x32x20xf32, #tpu.memory_space<vmem>>, %arg2: memref<32x1xf32, #tpu.memory_space<vmem>>, %arg3: memref<32x1xf32, #tpu.memory_space<vmem>>, %arg4: memref<1x32x20xf32, #tpu.memory_space<vmem>>) attributes {dimension_semantics = [#tpu.dimension_semantics<parallel>], iteration_bounds = array<i64: 2>, scalar_prefetch = 0 : i64, scratch_operands = 0 : i64, tpu.core_type = #tpu.core_type<tc>, window_params = [{transform_indices = @transform_0, window_bounds = array<i64: 1, 32, 20>}, {pipeline_mode = #tpu.pipeline_mode<synchronous>, transform_indices = @transform_1, window_bounds = array<i64: 32, 1>}, {pipeline_mode = #tpu.pipeline_mode<synchronous>, transform_indices = @transform_2, window_bounds = array<i64: 32, 1>}, {transform_indices = @transform_3, window_bounds = array<i64: 1, 32, 20>}]} {
    %c0 = arith.constant 0 : index
    %c0_0 = arith.constant 0 : index
    %c0_1 = arith.constant 0 : index
    %0 = vector.load %arg1[%c0, %c0_0, %c0_1] : memref<1x32x20xf32, #tpu.memory_space<vmem>>, vector<1x32x20xf32>
    %1 = vector.shape_cast %0 : vector<1x32x20xf32> to vector<32x20xf32>
    %c0_2 = arith.constant 0 : index
    %c0_3 = arith.constant 0 : index
    %2 = vector.load %arg2[%c0_2, %c0_3] : memref<32x1xf32, #tpu.memory_space<vmem>>, vector<32x1xf32>
    %3 = vector.broadcast %2 : vector<32x1xf32> to vector<32x20xf32>
    %4 = arith.mulf %1, %3 : vector<32x20xf32>
    %c0_4 = arith.constant 0 : index
    %c0_5 = arith.constant 0 : index
    %5 = vector.load %arg3[%c0_4, %c0_5] : memref<32x1xf32, #tpu.memory_space<vmem>>, vector<32x1xf32>
    %6 = vector.broadcast %5 : vector<32x1xf32> to vector<32x20xf32>
    %7 = arith.addf %4, %6 : vector<32x20xf32>
    %c0_6 = arith.constant 0 : index
    %c0_7 = arith.constant 0 : index
    %c0_8 = arith.constant 0 : index
    %8 = vector.load %arg4[%c0_6, %c0_7, %c0_8] : memref<1x32x20xf32, #tpu.memory_space<vmem>>, vector<1x32x20xf32>
    %9 = vector.shape_cast %8 : vector<1x32x20xf32> to vector<32x20xf32>
    %10 = vector.shape_cast %7 : vector<32x20xf32> to vector<1x32x20xf32>
    tpu.vector_store %arg4[%c0_6, %c0_7, %c0_8], %10 {strides = array<i32>} : memref<1x32x20xf32, #tpu.memory_space<vmem>>, vector<1x32x20xf32>,
    return
  }
  func.func @transform_0(%arg0: i32) -> (i32, i32, i32) {
    %c0_i32 = arith.constant 0 : i32
    %c0_i32_0 = arith.constant 0 : i32
    %c0_i32_1 = arith.constant 0 : i32
    return %arg0, %c0_i32, %c0_i32_0 : i32, i32, i32
  }
  func.func @transform_1(%arg0: i32) -> (i32, i32) {
    %c0_i32 = arith.constant 0 : i32
    %c0_i32_0 = arith.constant 0 : i32
    %c0_i32_1 = arith.constant 0 : i32
    return %c0_i32, %c0_i32_0 : i32, i32
  }
  func.func @transform_2(%arg0: i32) -> (i32, i32) {
    %c0_i32 = arith.constant 0 : i32
    %c0_i32_0 = arith.constant 0 : i32
    %c0_i32_1 = arith.constant 0 : i32
    return %c0_i32, %c0_i32_0 : i32, i32
  }
  func.func @transform_3(%arg0: i32) -> (i32, i32, i32) {
    %c0_i32 = arith.constant 0 : i32
    %c0_i32_0 = arith.constant 0 : i32
    %c0_i32_1 = arith.constant 0 : i32
    return %arg0, %c0_i32, %c0_i32_0 : i32, i32, i32
  }
}

module attributes {stable_mosaic.version = 11 : i64} {
  func.func @_conv_pool_kernel(%arg0: i32, %arg1: memref<1x4x32x128xf32, #tpu.memory_space<vmem>>, %arg2: memref<256x512xf32, #tpu.memory_space<vmem>>, %arg3: memref<256x1xf32, #tpu.memory_space<vmem>>, %arg4: memref<1x6xf32, #tpu.memory_space<vmem>>, %arg5: memref<1x64x6xf32, #tpu.memory_space<vmem>>, %arg6: memref<1x64x1xf32, #tpu.memory_space<vmem>>, %arg7: memref<1x64x1xf32, #tpu.memory_space<vmem>>, %arg8: memref<512x6xf32, #tpu.memory_space<vmem>>) attributes {dimension_semantics = [#tpu.dimension_semantics<parallel>], iteration_bounds = array<i64: 2>, scalar_prefetch = 0 : i64, scratch_operands = 1 : i64, tpu.core_type = #tpu.core_type<tc>, window_params = [{transform_indices = @transform_0, window_bounds = array<i64: 1, 4, 32, 128>}, {pipeline_mode = #tpu.pipeline_mode<synchronous>, transform_indices = @transform_1, window_bounds = array<i64: 256, 512>}, {pipeline_mode = #tpu.pipeline_mode<synchronous>, transform_indices = @transform_2, window_bounds = array<i64: 256, 1>}, {pipeline_mode = #tpu.pipeline_mode<synchronous>, transform_indices = @transform_3, window_bounds = array<i64: 1, 6>}, {transform_indices = @transform_4, window_bounds = array<i64: 1, 64, 6>}, {transform_indices = @transform_5, window_bounds = array<i64: 1, 64, 1>}, {transform_indices = @transform_6, window_bounds = array<i64: 1, 64, 1>}]} {
    %c0 = arith.constant 0 : index
    %c0_0 = arith.constant 0 : index
    %0 = vector.load %arg2[%c0, %c0_0] : memref<256x512xf32, #tpu.memory_space<vmem>>, vector<256x512xf32>
    %c0_1 = arith.constant 0 : index
    %c0_2 = arith.constant 0 : index
    %1 = vector.load %arg3[%c0_1, %c0_2] : memref<256x1xf32, #tpu.memory_space<vmem>>, vector<256x1xf32>
    %cst = arith.constant 0.000000e+00 : f32
    %2 = vector.broadcast %cst : f32 to vector<64x1xf32>
    %cst_3 = arith.constant 0.000000e+00 : f32
    %3 = vector.broadcast %cst_3 : f32 to vector<64x1xf32>
    %c0_4 = arith.constant 0 : index
    %c0_5 = arith.constant 0 : index
    %c0_6 = arith.constant 0 : index
    %c0_7 = arith.constant 0 : index
    %4 = vector.load %arg1[%c0_4, %c0_5, %c0_6, %c0_7] : memref<1x4x32x128xf32, #tpu.memory_space<vmem>>, vector<1x1x32x6xf32>
    %5 = vector.shape_cast %4 : vector<1x1x32x6xf32> to vector<32x6xf32>
    %c0_8 = arith.constant 0 : index
    %c0_9 = arith.constant 0 : index
    %6 = vector.load %arg8[%c0_8, %c0_9] : memref<512x6xf32, #tpu.memory_space<vmem>>, vector<32x6xf32>
    tpu.vector_store %arg8[%c0_8, %c0_9], %5 {strides = array<i32>} : memref<512x6xf32, #tpu.memory_space<vmem>>, vector<32x6xf32>,
    %c0_10 = arith.constant 0 : index
    %c0_11 = arith.constant 0 : index
    %c0_12 = arith.constant 0 : index
    %c1 = arith.constant 1 : index
    %7 = vector.load %arg1[%c0_10, %c0_11, %c0_12, %c1] : memref<1x4x32x128xf32, #tpu.memory_space<vmem>>, vector<1x1x32x6xf32>
    %8 = vector.shape_cast %7 : vector<1x1x32x6xf32> to vector<32x6xf32>
    %c32 = arith.constant 32 : index
    %c0_13 = arith.constant 0 : index
    %9 = vector.load %arg8[%c32, %c0_13] : memref<512x6xf32, #tpu.memory_space<vmem>>, vector<32x6xf32>
    tpu.vector_store %arg8[%c32, %c0_13], %8 {strides = array<i32>} : memref<512x6xf32, #tpu.memory_space<vmem>>, vector<32x6xf32>,
    %c0_14 = arith.constant 0 : index
    %c0_15 = arith.constant 0 : index
    %c0_16 = arith.constant 0 : index
    %c3 = arith.constant 3 : index
    %10 = vector.load %arg1[%c0_14, %c0_15, %c0_16, %c3] : memref<1x4x32x128xf32, #tpu.memory_space<vmem>>, vector<1x1x32x6xf32>
    %11 = vector.shape_cast %10 : vector<1x1x32x6xf32> to vector<32x6xf32>
    %c64 = arith.constant 64 : index
    %c0_17 = arith.constant 0 : index
    %12 = vector.load %arg8[%c64, %c0_17] : memref<512x6xf32, #tpu.memory_space<vmem>>, vector<32x6xf32>
    tpu.vector_store %arg8[%c64, %c0_17], %11 {strides = array<i32>} : memref<512x6xf32, #tpu.memory_space<vmem>>, vector<32x6xf32>,
    %c0_18 = arith.constant 0 : index
    %c0_19 = arith.constant 0 : index
    %c0_20 = arith.constant 0 : index
    %c4 = arith.constant 4 : index
    %13 = vector.load %arg1[%c0_18, %c0_19, %c0_20, %c4] : memref<1x4x32x128xf32, #tpu.memory_space<vmem>>, vector<1x1x32x6xf32>
    %14 = vector.shape_cast %13 : vector<1x1x32x6xf32> to vector<32x6xf32>
    %c96 = arith.constant 96 : index
    %c0_21 = arith.constant 0 : index
    %15 = vector.load %arg8[%c96, %c0_21] : memref<512x6xf32, #tpu.memory_space<vmem>>, vector<32x6xf32>
    tpu.vector_store %arg8[%c96, %c0_21], %14 {strides = array<i32>} : memref<512x6xf32, #tpu.memory_space<vmem>>, vector<32x6xf32>,
    %c0_22 = arith.constant 0 : index
    %c1_23 = arith.constant 1 : index
    %c0_24 = arith.constant 0 : index
    %c0_25 = arith.constant 0 : index
    %16 = vector.load %arg1[%c0_22, %c1_23, %c0_24, %c0_25] : memref<1x4x32x128xf32, #tpu.memory_space<vmem>>, vector<1x1x32x6xf32>
    %17 = vector.shape_cast %16 : vector<1x1x32x6xf32> to vector<32x6xf32>
    %c128 = arith.constant 128 : index
    %c0_26 = arith.constant 0 : index
    %18 = vector.load %arg8[%c128, %c0_26] : memref<512x6xf32, #tpu.memory_space<vmem>>, vector<32x6xf32>
    tpu.vector_store %arg8[%c128, %c0_26], %17 {strides = array<i32>} : memref<512x6xf32, #tpu.memory_space<vmem>>, vector<32x6xf32>,
    %c0_27 = arith.constant 0 : index
    %c1_28 = arith.constant 1 : index
    %c0_29 = arith.constant 0 : index
    %c1_30 = arith.constant 1 : index
    %19 = vector.load %arg1[%c0_27, %c1_28, %c0_29, %c1_30] : memref<1x4x32x128xf32, #tpu.memory_space<vmem>>, vector<1x1x32x6xf32>
    %20 = vector.shape_cast %19 : vector<1x1x32x6xf32> to vector<32x6xf32>
    %c160 = arith.constant 160 : index
    %c0_31 = arith.constant 0 : index
    %21 = vector.load %arg8[%c160, %c0_31] : memref<512x6xf32, #tpu.memory_space<vmem>>, vector<32x6xf32>
    tpu.vector_store %arg8[%c160, %c0_31], %20 {strides = array<i32>} : memref<512x6xf32, #tpu.memory_space<vmem>>, vector<32x6xf32>,
    %c0_32 = arith.constant 0 : index
    %c1_33 = arith.constant 1 : index
    %c0_34 = arith.constant 0 : index
    %c3_35 = arith.constant 3 : index
    %22 = vector.load %arg1[%c0_32, %c1_33, %c0_34, %c3_35] : memref<1x4x32x128xf32, #tpu.memory_space<vmem>>, vector<1x1x32x6xf32>
    %23 = vector.shape_cast %22 : vector<1x1x32x6xf32> to vector<32x6xf32>
    %c192 = arith.constant 192 : index
    %c0_36 = arith.constant 0 : index
    %24 = vector.load %arg8[%c192, %c0_36] : memref<512x6xf32, #tpu.memory_space<vmem>>, vector<32x6xf32>
    tpu.vector_store %arg8[%c192, %c0_36], %23 {strides = array<i32>} : memref<512x6xf32, #tpu.memory_space<vmem>>, vector<32x6xf32>,
    %c0_37 = arith.constant 0 : index
    %c1_38 = arith.constant 1 : index
    %c0_39 = arith.constant 0 : index
    %c4_40 = arith.constant 4 : index
    %25 = vector.load %arg1[%c0_37, %c1_38, %c0_39, %c4_40] : memref<1x4x32x128xf32, #tpu.memory_space<vmem>>, vector<1x1x32x6xf32>
    %26 = vector.shape_cast %25 : vector<1x1x32x6xf32> to vector<32x6xf32>
    %c224 = arith.constant 224 : index
    %c0_41 = arith.constant 0 : index
    %27 = vector.load %arg8[%c224, %c0_41] : memref<512x6xf32, #tpu.memory_space<vmem>>, vector<32x6xf32>
    tpu.vector_store %arg8[%c224, %c0_41], %26 {strides = array<i32>} : memref<512x6xf32, #tpu.memory_space<vmem>>, vector<32x6xf32>,
    %c0_42 = arith.constant 0 : index
    %c2 = arith.constant 2 : index
    %c0_43 = arith.constant 0 : index
    %c0_44 = arith.constant 0 : index
    %28 = vector.load %arg1[%c0_42, %c2, %c0_43, %c0_44] : memref<1x4x32x128xf32, #tpu.memory_space<vmem>>, vector<1x1x32x6xf32>
    %29 = vector.shape_cast %28 : vector<1x1x32x6xf32> to vector<32x6xf32>
    %c256 = arith.constant 256 : index
    %c0_45 = arith.constant 0 : index
    %30 = vector.load %arg8[%c256, %c0_45] : memref<512x6xf32, #tpu.memory_space<vmem>>, vector<32x6xf32>
    tpu.vector_store %arg8[%c256, %c0_45], %29 {strides = array<i32>} : memref<512x6xf32, #tpu.memory_space<vmem>>, vector<32x6xf32>,
    %c0_46 = arith.constant 0 : index
    %c2_47 = arith.constant 2 : index
    %c0_48 = arith.constant 0 : index
    %c1_49 = arith.constant 1 : index
    %31 = vector.load %arg1[%c0_46, %c2_47, %c0_48, %c1_49] : memref<1x4x32x128xf32, #tpu.memory_space<vmem>>, vector<1x1x32x6xf32>
    %32 = vector.shape_cast %31 : vector<1x1x32x6xf32> to vector<32x6xf32>
    %c288 = arith.constant 288 : index
    %c0_50 = arith.constant 0 : index
    %33 = vector.load %arg8[%c288, %c0_50] : memref<512x6xf32, #tpu.memory_space<vmem>>, vector<32x6xf32>
    tpu.vector_store %arg8[%c288, %c0_50], %32 {strides = array<i32>} : memref<512x6xf32, #tpu.memory_space<vmem>>, vector<32x6xf32>,
    %c0_51 = arith.constant 0 : index
    %c2_52 = arith.constant 2 : index
    %c0_53 = arith.constant 0 : index
    %c3_54 = arith.constant 3 : index
    %34 = vector.load %arg1[%c0_51, %c2_52, %c0_53, %c3_54] : memref<1x4x32x128xf32, #tpu.memory_space<vmem>>, vector<1x1x32x6xf32>
    %35 = vector.shape_cast %34 : vector<1x1x32x6xf32> to vector<32x6xf32>
    %c320 = arith.constant 320 : index
    %c0_55 = arith.constant 0 : index
    %36 = vector.load %arg8[%c320, %c0_55] : memref<512x6xf32, #tpu.memory_space<vmem>>, vector<32x6xf32>
    tpu.vector_store %arg8[%c320, %c0_55], %35 {strides = array<i32>} : memref<512x6xf32, #tpu.memory_space<vmem>>, vector<32x6xf32>,
    %c0_56 = arith.constant 0 : index
    %c2_57 = arith.constant 2 : index
    %c0_58 = arith.constant 0 : index
    %c4_59 = arith.constant 4 : index
    %37 = vector.load %arg1[%c0_56, %c2_57, %c0_58, %c4_59] : memref<1x4x32x128xf32, #tpu.memory_space<vmem>>, vector<1x1x32x6xf32>
    %38 = vector.shape_cast %37 : vector<1x1x32x6xf32> to vector<32x6xf32>
    %c352 = arith.constant 352 : index
    %c0_60 = arith.constant 0 : index
    %39 = vector.load %arg8[%c352, %c0_60] : memref<512x6xf32, #tpu.memory_space<vmem>>, vector<32x6xf32>
    tpu.vector_store %arg8[%c352, %c0_60], %38 {strides = array<i32>} : memref<512x6xf32, #tpu.memory_space<vmem>>, vector<32x6xf32>,
    %c0_61 = arith.constant 0 : index
    %c3_62 = arith.constant 3 : index
    %c0_63 = arith.constant 0 : index
    %c0_64 = arith.constant 0 : index
    %40 = vector.load %arg1[%c0_61, %c3_62, %c0_63, %c0_64] : memref<1x4x32x128xf32, #tpu.memory_space<vmem>>, vector<1x1x32x6xf32>
    %41 = vector.shape_cast %40 : vector<1x1x32x6xf32> to vector<32x6xf32>
    %c384 = arith.constant 384 : index
    %c0_65 = arith.constant 0 : index
    %42 = vector.load %arg8[%c384, %c0_65] : memref<512x6xf32, #tpu.memory_space<vmem>>, vector<32x6xf32>
    tpu.vector_store %arg8[%c384, %c0_65], %41 {strides = array<i32>} : memref<512x6xf32, #tpu.memory_space<vmem>>, vector<32x6xf32>,
    %c0_66 = arith.constant 0 : index
    %c3_67 = arith.constant 3 : index
    %c0_68 = arith.constant 0 : index
    %c1_69 = arith.constant 1 : index
    %43 = vector.load %arg1[%c0_66, %c3_67, %c0_68, %c1_69] : memref<1x4x32x128xf32, #tpu.memory_space<vmem>>, vector<1x1x32x6xf32>
    %44 = vector.shape_cast %43 : vector<1x1x32x6xf32> to vector<32x6xf32>
    %c416 = arith.constant 416 : index
    %c0_70 = arith.constant 0 : index
    %45 = vector.load %arg8[%c416, %c0_70] : memref<512x6xf32, #tpu.memory_space<vmem>>, vector<32x6xf32>
    tpu.vector_store %arg8[%c416, %c0_70], %44 {strides = array<i32>} : memref<512x6xf32, #tpu.memory_space<vmem>>, vector<32x6xf32>,
    %c0_71 = arith.constant 0 : index
    %c3_72 = arith.constant 3 : index
    %c0_73 = arith.constant 0 : index
    %c3_74 = arith.constant 3 : index
    %46 = vector.load %arg1[%c0_71, %c3_72, %c0_73, %c3_74] : memref<1x4x32x128xf32, #tpu.memory_space<vmem>>, vector<1x1x32x6xf32>
    %47 = vector.shape_cast %46 : vector<1x1x32x6xf32> to vector<32x6xf32>
    %c448 = arith.constant 448 : index
    %c0_75 = arith.constant 0 : index
    %48 = vector.load %arg8[%c448, %c0_75] : memref<512x6xf32, #tpu.memory_space<vmem>>, vector<32x6xf32>
    tpu.vector_store %arg8[%c448, %c0_75], %47 {strides = array<i32>} : memref<512x6xf32, #tpu.memory_space<vmem>>, vector<32x6xf32>,
    %c0_76 = arith.constant 0 : index
    %c3_77 = arith.constant 3 : index
    %c0_78 = arith.constant 0 : index
    %c4_79 = arith.constant 4 : index
    %49 = vector.load %arg1[%c0_76, %c3_77, %c0_78, %c4_79] : memref<1x4x32x128xf32, #tpu.memory_space<vmem>>, vector<1x1x32x6xf32>
    %50 = vector.shape_cast %49 : vector<1x1x32x6xf32> to vector<32x6xf32>
    %c480 = arith.constant 480 : index
    %c0_80 = arith.constant 0 : index
    %51 = vector.load %arg8[%c480, %c0_80] : memref<512x6xf32, #tpu.memory_space<vmem>>, vector<32x6xf32>
    tpu.vector_store %arg8[%c480, %c0_80], %50 {strides = array<i32>} : memref<512x6xf32, #tpu.memory_space<vmem>>, vector<32x6xf32>,
    %c0_81 = arith.constant 0 : index
    %c0_82 = arith.constant 0 : index
    %52 = vector.load %arg8[%c0_81, %c0_82] : memref<512x6xf32, #tpu.memory_space<vmem>>, vector<512x6xf32>
    %cst_83 = arith.constant dense<0.000000e+00> : vector<256x6xf32>
    %53 = tpu.matmul %0, %52, %cst_83 {dimension_numbers = #tpu.dot_dimension_numbers<[1], [0], [0], [1], [0, 0, 1, 1], [], []>} : vector<256x512xf32>, vector<512x6xf32>, vector<256x6xf32> -> vector<256x6xf32>
    %54 = vector.broadcast %1 : vector<256x1xf32> to vector<256x6xf32>
    %55 = arith.addf %53, %54 : vector<256x6xf32>
    %cst_84 = arith.constant 5.000000e-01 : f32
    %56 = vector.broadcast %cst_84 : f32 to vector<256x6xf32>
    %57 = arith.mulf %56, %55 : vector<256x6xf32>
    %cst_85 = arith.constant 0.707106769 : f32
    %58 = vector.broadcast %cst_85 : f32 to vector<256x6xf32>
    %59 = arith.mulf %55, %58 : vector<256x6xf32>
    %cst_86 = arith.constant -4.000000e+00 : f32
    %cst_87 = arith.constant 4.000000e+00 : f32
    %60 = vector.broadcast %cst_86 : f32 to vector<256x6xf32>
    %61 = arith.maximumf %60, %59 : vector<256x6xf32>
    %62 = vector.broadcast %cst_87 : f32 to vector<256x6xf32>
    %63 = arith.minimumf %62, %61 : vector<256x6xf32>
    %64 = arith.mulf %63, %63 : vector<256x6xf32>
    %cst_88 = arith.constant 2.29050653E-4 : f32
    %65 = vector.broadcast %cst_88 : f32 to vector<256x6xf32>
    %66 = arith.mulf %65, %64 : vector<256x6xf32>
    %cst_89 = arith.constant 0.00340829091 : f32
    %67 = vector.broadcast %cst_89 : f32 to vector<256x6xf32>
    %68 = arith.addf %66, %67 : vector<256x6xf32>
    %69 = arith.mulf %68, %64 : vector<256x6xf32>
    %cst_90 = arith.constant 0.0509556942 : f32
    %70 = vector.broadcast %cst_90 : f32 to vector<256x6xf32>
    %71 = arith.addf %69, %70 : vector<256x6xf32>
    %72 = arith.mulf %71, %64 : vector<256x6xf32>
    %cst_91 = arith.constant 0.185208321 : f32
    %73 = vector.broadcast %cst_91 : f32 to vector<256x6xf32>
    %74 = arith.addf %72, %73 : vector<256x6xf32>
    %75 = arith.mulf %74, %64 : vector<256x6xf32>
    %cst_92 = arith.constant 1.12837911 : f32
    %76 = vector.broadcast %cst_92 : f32 to vector<256x6xf32>
    %77 = arith.addf %75, %76 : vector<256x6xf32>
    %cst_93 = arith.constant -1.17916031E-7 : f32
    %78 = vector.broadcast %cst_93 : f32 to vector<256x6xf32>
    %79 = arith.mulf %78, %64 : vector<256x6xf32>
    %cst_94 = arith.constant 2.35479656E-5 : f32
    %80 = vector.broadcast %cst_94 : f32 to vector<256x6xf32>
    %81 = arith.addf %79, %80 : vector<256x6xf32>
    %82 = arith.mulf %81, %64 : vector<256x6xf32>
    %cst_95 = arith.constant 0.00101796258 : f32
    %83 = vector.broadcast %cst_95 : f32 to vector<256x6xf32>
    %84 = arith.addf %82, %83 : vector<256x6xf32>
    %85 = arith.mulf %84, %64 : vector<256x6xf32>
    %cst_96 = arith.constant 0.0140704699 : f32
    %86 = vector.broadcast %cst_96 : f32 to vector<256x6xf32>
    %87 = arith.addf %85, %86 : vector<256x6xf32>
    %88 = arith.mulf %87, %64 : vector<256x6xf32>
    %cst_97 = arith.constant 0.110985048 : f32
    %89 = vector.broadcast %cst_97 : f32 to vector<256x6xf32>
    %90 = arith.addf %88, %89 : vector<256x6xf32>
    %91 = arith.mulf %90, %64 : vector<256x6xf32>
    %cst_98 = arith.constant 0.497469246 : f32
    %92 = vector.broadcast %cst_98 : f32 to vector<256x6xf32>
    %93 = arith.addf %91, %92 : vector<256x6xf32>
    %94 = arith.mulf %93, %64 : vector<256x6xf32>
    %cst_99 = arith.constant 1.000000e+00 : f32
    %95 = vector.broadcast %cst_99 : f32 to vector<256x6xf32>
    %96 = arith.addf %94, %95 : vector<256x6xf32>
    %97 = arith.mulf %63, %77 : vector<256x6xf32>
    %98 = tpu.reciprocal %96 {approx = true} : vector<256x6xf32> -> vector<256x6xf32>
    %99 = arith.mulf %97, %98 : vector<256x6xf32>
    %cst_100 = arith.constant 1.000000e+00 : f32
    %100 = vector.broadcast %cst_100 : f32 to vector<256x6xf32>
    %101 = arith.addf %100, %99 : vector<256x6xf32>
    %102 = arith.mulf %57, %101 : vector<256x6xf32>
    %103 = vector.extract_strided_slice %102 {offsets = [0, 0], sizes = [64, 6], strides = [1, 1]} : vector<256x6xf32> to vector<64x6xf32>
    %104 = vector.extract_strided_slice %102 {offsets = [64, 0], sizes = [64, 6], strides = [1, 1]} : vector<256x6xf32> to vector<64x6xf32>
    %105 = arith.maximumf %103, %104 : vector<64x6xf32>
    %106 = vector.extract_strided_slice %102 {offsets = [128, 0], sizes = [64, 6], strides = [1, 1]} : vector<256x6xf32> to vector<64x6xf32>
    %107 = vector.extract_strided_slice %102 {offsets = [192, 0], sizes = [64, 6], strides = [1, 1]} : vector<256x6xf32> to vector<64x6xf32>
    %108 = arith.maximumf %106, %107 : vector<64x6xf32>
    %109 = arith.maximumf %105, %108 : vector<64x6xf32>
    %c0_101 = arith.constant 0 : index
    %c0_102 = arith.constant 0 : index
    %c0_103 = arith.constant 0 : index
    %110 = vector.load %arg5[%c0_101, %c0_102, %c0_103] : memref<1x64x6xf32, #tpu.memory_space<vmem>>, vector<1x64x6xf32>
    %111 = vector.shape_cast %110 : vector<1x64x6xf32> to vector<64x6xf32>
    %112 = vector.shape_cast %109 : vector<64x6xf32> to vector<1x64x6xf32>
    tpu.vector_store %arg5[%c0_101, %c0_102, %c0_103], %112 {strides = array<i32>} : memref<1x64x6xf32, #tpu.memory_space<vmem>>, vector<1x64x6xf32>,
    %c0_104 = arith.constant 0 : index
    %c0_105 = arith.constant 0 : index
    %113 = vector.load %arg4[%c0_104, %c0_105] : memref<1x6xf32, #tpu.memory_space<vmem>>, vector<1x6xf32>
    %114 = vector.broadcast %113 : vector<1x6xf32> to vector<64x6xf32>
    %115 = arith.mulf %109, %114 : vector<64x6xf32>
    %cst_106 = arith.constant dense<0.000000e+00> : vector<64xf32>
    %116 = vector.multi_reduction <add>, %115, %cst_106 [1] : vector<64x6xf32> to vector<64xf32>
    %117 = vector.shape_cast %116 : vector<64xf32> to vector<64x1xf32>
    %118 = arith.addf %2, %117 : vector<64x1xf32>
    %119 = arith.mulf %109, %109 : vector<64x6xf32>
    %120 = vector.broadcast %113 : vector<1x6xf32> to vector<64x6xf32>
    %121 = arith.mulf %119, %120 : vector<64x6xf32>
    %cst_107 = arith.constant dense<0.000000e+00> : vector<64xf32>
    %122 = vector.multi_reduction <add>, %121, %cst_107 [1] : vector<64x6xf32> to vector<64xf32>
    %123 = vector.shape_cast %122 : vector<64xf32> to vector<64x1xf32>
    %124 = arith.addf %3, %123 : vector<64x1xf32>
    %c0_108 = arith.constant 0 : index
    %c0_109 = arith.constant 0 : index
    %c0_110 = arith.constant 0 : index
    %125 = vector.load %arg6[%c0_108, %c0_109, %c0_110] : memref<1x64x1xf32, #tpu.memory_space<vmem>>, vector<1x64x1xf32>
    %126 = vector.shape_cast %125 : vector<1x64x1xf32> to vector<64x1xf32>
    %127 = vector.shape_cast %118 : vector<64x1xf32> to vector<1x64x1xf32>
    tpu.vector_store %arg6[%c0_108, %c0_109, %c0_110], %127 {strides = array<i32>} : memref<1x64x1xf32, #tpu.memory_space<vmem>>, vector<1x64x1xf32>,
    %c0_111 = arith.constant 0 : index
    %c0_112 = arith.constant 0 : index
    %c0_113 = arith.constant 0 : index
    %128 = vector.load %arg7[%c0_111, %c0_112, %c0_113] : memref<1x64x1xf32, #tpu.memory_space<vmem>>, vector<1x64x1xf32>
    %129 = vector.shape_cast %128 : vector<1x64x1xf32> to vector<64x1xf32>
    %130 = vector.shape_cast %124 : vector<64x1xf32> to vector<1x64x1xf32>
    tpu.vector_store %arg7[%c0_111, %c0_112, %c0_113], %130 {strides = array<i32>} : memref<1x64x1xf32, #tpu.memory_space<vmem>>, vector<1x64x1xf32>,
    return
  }
  func.func @transform_0(%arg0: i32) -> (i32, i32, i32, i32) {
    %c0_i32 = arith.constant 0 : i32
    %c0_i32_0 = arith.constant 0 : i32
    %c0_i32_1 = arith.constant 0 : i32
    %c0_i32_2 = arith.constant 0 : i32
    return %arg0, %c0_i32, %c0_i32_0, %c0_i32_1 : i32, i32, i32, i32
  }
  func.func @transform_1(%arg0: i32) -> (i32, i32) {
    %c0_i32 = arith.constant 0 : i32
    %c0_i32_0 = arith.constant 0 : i32
    %c0_i32_1 = arith.constant 0 : i32
    return %c0_i32, %c0_i32_0 : i32, i32
  }
  func.func @transform_2(%arg0: i32) -> (i32, i32) {
    %c0_i32 = arith.constant 0 : i32
    %c0_i32_0 = arith.constant 0 : i32
    %c0_i32_1 = arith.constant 0 : i32
    return %c0_i32, %c0_i32_0 : i32, i32
  }
  func.func @transform_3(%arg0: i32) -> (i32, i32) {
    %c0_i32 = arith.constant 0 : i32
    %c0_i32_0 = arith.constant 0 : i32
    %c0_i32_1 = arith.constant 0 : i32
    return %c0_i32, %c0_i32_0 : i32, i32
  }
  func.func @transform_4(%arg0: i32) -> (i32, i32, i32) {
    %c0_i32 = arith.constant 0 : i32
    %c0_i32_0 = arith.constant 0 : i32
    %c0_i32_1 = arith.constant 0 : i32
    return %arg0, %c0_i32, %c0_i32_0 : i32, i32, i32
  }
  func.func @transform_5(%arg0: i32) -> (i32, i32, i32) {
    %c0_i32 = arith.constant 0 : i32
    %c0_i32_0 = arith.constant 0 : i32
    %c0_i32_1 = arith.constant 0 : i32
    return %arg0, %c0_i32, %c0_i32_0 : i32, i32, i32
  }
  func.func @transform_6(%arg0: i32) -> (i32, i32, i32) {
    %c0_i32 = arith.constant 0 : i32
    %c0_i32_0 = arith.constant 0 : i32
    %c0_i32_1 = arith.constant 0 : i32
    return %arg0, %c0_i32, %c0_i32_0 : i32, i32, i32
  }
}

module attributes {stable_mosaic.version = 11 : i64} {
  func.func @_affine_kernel(%arg0: i32, %arg1: memref<1x64x6xf32, #tpu.memory_space<vmem>>, %arg2: memref<64x1xf32, #tpu.memory_space<vmem>>, %arg3: memref<64x1xf32, #tpu.memory_space<vmem>>, %arg4: memref<1x64x6xf32, #tpu.memory_space<vmem>>) attributes {dimension_semantics = [#tpu.dimension_semantics<parallel>], iteration_bounds = array<i64: 2>, scalar_prefetch = 0 : i64, scratch_operands = 0 : i64, tpu.core_type = #tpu.core_type<tc>, window_params = [{transform_indices = @transform_0, window_bounds = array<i64: 1, 64, 6>}, {pipeline_mode = #tpu.pipeline_mode<synchronous>, transform_indices = @transform_1, window_bounds = array<i64: 64, 1>}, {pipeline_mode = #tpu.pipeline_mode<synchronous>, transform_indices = @transform_2, window_bounds = array<i64: 64, 1>}, {transform_indices = @transform_3, window_bounds = array<i64: 1, 64, 6>}]} {
    %c0 = arith.constant 0 : index
    %c0_0 = arith.constant 0 : index
    %c0_1 = arith.constant 0 : index
    %0 = vector.load %arg1[%c0, %c0_0, %c0_1] : memref<1x64x6xf32, #tpu.memory_space<vmem>>, vector<1x64x6xf32>
    %1 = vector.shape_cast %0 : vector<1x64x6xf32> to vector<64x6xf32>
    %c0_2 = arith.constant 0 : index
    %c0_3 = arith.constant 0 : index
    %2 = vector.load %arg2[%c0_2, %c0_3] : memref<64x1xf32, #tpu.memory_space<vmem>>, vector<64x1xf32>
    %3 = vector.broadcast %2 : vector<64x1xf32> to vector<64x6xf32>
    %4 = arith.mulf %1, %3 : vector<64x6xf32>
    %c0_4 = arith.constant 0 : index
    %c0_5 = arith.constant 0 : index
    %5 = vector.load %arg3[%c0_4, %c0_5] : memref<64x1xf32, #tpu.memory_space<vmem>>, vector<64x1xf32>
    %6 = vector.broadcast %5 : vector<64x1xf32> to vector<64x6xf32>
    %7 = arith.addf %4, %6 : vector<64x6xf32>
    %c0_6 = arith.constant 0 : index
    %c0_7 = arith.constant 0 : index
    %c0_8 = arith.constant 0 : index
    %8 = vector.load %arg4[%c0_6, %c0_7, %c0_8] : memref<1x64x6xf32, #tpu.memory_space<vmem>>, vector<1x64x6xf32>
    %9 = vector.shape_cast %8 : vector<1x64x6xf32> to vector<64x6xf32>
    %10 = vector.shape_cast %7 : vector<64x6xf32> to vector<1x64x6xf32>
    tpu.vector_store %arg4[%c0_6, %c0_7, %c0_8], %10 {strides = array<i32>} : memref<1x64x6xf32, #tpu.memory_space<vmem>>, vector<1x64x6xf32>,
    return
  }
  func.func @transform_0(%arg0: i32) -> (i32, i32, i32) {
    %c0_i32 = arith.constant 0 : i32
    %c0_i32_0 = arith.constant 0 : i32
    %c0_i32_1 = arith.constant 0 : i32
    return %arg0, %c0_i32, %c0_i32_0 : i32, i32, i32
  }
  func.func @transform_1(%arg0: i32) -> (i32, i32) {
    %c0_i32 = arith.constant 0 : i32
    %c0_i32_0 = arith.constant 0 : i32
    %c0_i32_1 = arith.constant 0 : i32
    return %c0_i32, %c0_i32_0 : i32, i32
  }
  func.func @transform_2(%arg0: i32) -> (i32, i32) {
    %c0_i32 = arith.constant 0 : i32
    %c0_i32_0 = arith.constant 0 : i32
    %c0_i32_1 = arith.constant 0 : i32
    return %c0_i32, %c0_i32_0 : i32, i32
  }
  func.func @transform_3(%arg0: i32) -> (i32, i32, i32) {
    %c0_i32 = arith.constant 0 : i32
    %c0_i32_0 = arith.constant 0 : i32
    %c0_i32_1 = arith.constant 0 : i32
    return %arg0, %c0_i32, %c0_i32_0 : i32, i32, i32
  }
}

</mosaic_0001>

<llo_original>
// kernel: tile.18
$region0: #{tile.18}
  #allocation0 [shape = 's32[1]{0}', space=sflag, size = 0x4, scoped, tag = 'scoped memory for tile.18']
  %s0 = inlined_call_operand.vmem [shape: f32[16], index: 0, kind: input, shape index: {}]
  %s1 = inlined_call_operand.vmem [shape: f32[4,16], index: 1, kind: output, shape index: {}]
  // Predicated region
  $region2: #{tile.18} parent=0 // pred_check
    _
  $region3: #{tile.18} parent=0 // pred_check_branch
    %3 = sbr.rel (0) target = $region5
  $region4: #{tile.18} parent=0 // pred_region
    _
  $region5: #{tile.18} parent=0 // pred_fallthru
    _
  %v4 = vld [vmem:[%s0] ss:$0 sm:$0xff]
  %5 = vst [vmem:[%s1] sm:$0xf] %v4

// kernel: tile.0
$region0: #{tile.0}
  %s0 = inlined_call_operand.vmem [shape: f32[4,16], index: 0, kind: input, shape index: {}]
  %s1 = inlined_call_operand.vmem [shape: f32[64,1], index: 1, kind: output, shape index: {}]
  $region1: #{tile.0} parent=0
    #allocation0 [shape = 'u8[4096]{0}', space=vmem, size = 0x1000, scoped, tag = 'scoped mem for input reshape']
    %s3 = sshll.u32 1, 4
    %s4 = ssub.s32 %s3, 1
    %v5 = vld [vmem:[%s0] sm:%s4]
    %6 = vst [vmem:[#allocation0] sm:%s4] %v5
    %v7 = vld [vmem:[#allocation0] sm:$0xf]
    %vm8 = vcmask 7168
    %9 = vst.msk [vmem:[%s1] ss:$16 sm:$0x3] %vm8, %v7
    %10 = vst.msk [vmem:[%s1] ss:$16 sm:$0xc] %vm8, %v7
    %v11 = vld [vmem:[#allocation0] sm:$0xf]
    %12 = vrot.lane.b32.xlu0 %v11, 127
    %v13 = vpop.permute.xlu0 %12
    %vm14 = vcmask 7168
    %s15 = scalar_lea.vmem %s1, 1
    %16 = vst.msk [vmem:[%s15] ss:$16 sm:$0x3] %vm14, %v13
    %s17 = scalar_lea.vmem %s1, 1
    %18 = vst.msk [vmem:[%s17] ss:$16 sm:$0xc] %vm14, %v13
    %v19 = vld [vmem:[#allocation0] sm:$0xf]
    %20 = vrot.lane.b32.xlu0 %v19, 126
    %v21 = vpop.permute.xlu0 %20
    %vm22 = vcmask 7168
    %s23 = scalar_lea.vmem %s1, 2
    %24 = vst.msk [vmem:[%s23] ss:$16 sm:$0x3] %vm22, %v21
    %s25 = scalar_lea.vmem %s1, 2
    %26 = vst.msk [vmem:[%s25] ss:$16 sm:$0xc] %vm22, %v21
    %v27 = vld [vmem:[#allocation0] sm:$0xf]
    %28 = vrot.lane.b32.xlu0 %v27, 125
    %v29 = vpop.permute.xlu0 %28
    %vm30 = vcmask 7168
    %s31 = scalar_lea.vmem %s1, 3
    %32 = vst.msk [vmem:[%s31] ss:$16 sm:$0x3] %vm30, %v29
    %s33 = scalar_lea.vmem %s1, 3
    %34 = vst.msk [vmem:[%s33] ss:$16 sm:$0xc] %vm30, %v29
    %v35 = vld [vmem:[#allocation0] sm:$0xf]
    %36 = vrot.lane.b32.xlu0 %v35, 124
    %v37 = vpop.permute.xlu0 %36
    %vm38 = vcmask 7168
    %s39 = scalar_lea.vmem %s1, 4
    %40 = vst.msk [vmem:[%s39] ss:$16 sm:$0x3] %vm38, %v37
    %s41 = scalar_lea.vmem %s1, 4
    %42 = vst.msk [vmem:[%s41] ss:$16 sm:$0xc] %vm38, %v37
    %v43 = vld [vmem:[#allocation0] sm:$0xf]
    %44 = vrot.lane.b32.xlu0 %v43, 123
    %v45 = vpop.permute.xlu0 %44
    %vm46 = vcmask 7168
    %s47 = scalar_lea.vmem %s1, 5
    %48 = vst.msk [vmem:[%s47] ss:$16 sm:$0x3] %vm46, %v45
    %s49 = scalar_lea.vmem %s1, 5
    %50 = vst.msk [vmem:[%s49] ss:$16 sm:$0xc] %vm46, %v45
    %v51 = vld [vmem:[#allocation0] sm:$0xf]
    %52 = vrot.lane.b32.xlu0 %v51, 122
    %v53 = vpop.permute.xlu0 %52
    %vm54 = vcmask 7168
    %s55 = scalar_lea.vmem %s1, 6
    %56 = vst.msk [vmem:[%s55] ss:$16 sm:$0x3] %vm54, %v53
    %s57 = scalar_lea.vmem %s1, 6
    %58 = vst.msk [vmem:[%s57] ss:$16 sm:$0xc] %vm54, %v53
    %v59 = vld [vmem:[#allocation0] sm:$0xf]
    %60 = vrot.lane.b32.xlu0 %v59, 121
    %v61 = vpop.permute.xlu0 %60
    %vm62 = vcmask 7168
    %s63 = scalar_lea.vmem %s1, 7
    %64 = vst.msk [vmem:[%s63] ss:$16 sm:$0x3] %vm62, %v61
    %s65 = scalar_lea.vmem %s1, 7
    %66 = vst.msk [vmem:[%s65] ss:$16 sm:$0xc] %vm62, %v61
    %v67 = vld [vmem:[#allocation0] sm:$0xf]
    %68 = vrot.lane.b32.xlu0 %v67, 120
    %v69 = vpop.permute.xlu0 %68
    %vm70 = vcmask 7168
    %s71 = scalar_lea.vmem %s1, 8
    %72 = vst.msk [vmem:[%s71] ss:$16 sm:$0x3] %vm70, %v69
    %s73 = scalar_lea.vmem %s1, 8
    %74 = vst.msk [vmem:[%s73] ss:$16 sm:$0xc] %vm70, %v69
    %v75 = vld [vmem:[#allocation0] sm:$0xf]
    %76 = vrot.lane.b32.xlu0 %v75, 119
    %v77 = vpop.permute.xlu0 %76
    %vm78 = vcmask 7168
    %s79 = scalar_lea.vmem %s1, 9
    %80 = vst.msk [vmem:[%s79] ss:$16 sm:$0x3] %vm78, %v77
    %s81 = scalar_lea.vmem %s1, 9
    %82 = vst.msk [vmem:[%s81] ss:$16 sm:$0xc] %vm78, %v77
    %v83 = vld [vmem:[#allocation0] sm:$0xf]
    %84 = vrot.lane.b32.xlu0 %v83, 118
    %v85 = vpop.permute.xlu0 %84
    %vm86 = vcmask 7168
    %s87 = scalar_lea.vmem %s1, 10
    %88 = vst.msk [vmem:[%s87] ss:$16 sm:$0x3] %vm86, %v85
    %s89 = scalar_lea.vmem %s1, 10
    %90 = vst.msk [vmem:[%s89] ss:$16 sm:$0xc] %vm86, %v85
    %v91 = vld [vmem:[#allocation0] sm:$0xf]
    %92 = vrot.lane.b32.xlu0 %v91, 117
    %v93 = vpop.permute.xlu0 %92
    %vm94 = vcmask 7168
    %s95 = scalar_lea.vmem %s1, 11
    %96 = vst.msk [vmem:[%s95] ss:$16 sm:$0x3] %vm94, %v93
    %s97 = scalar_lea.vmem %s1, 11
    %98 = vst.msk [vmem:[%s97] ss:$16 sm:$0xc] %vm94, %v93
    %v99 = vld [vmem:[#allocation0] sm:$0xf]
    %100 = vrot.lane.b32.xlu0 %v99, 116
    %v101 = vpop.permute.xlu0 %100
    %vm102 = vcmask 7168
    %s103 = scalar_lea.vmem %s1, 12
    %104 = vst.msk [vmem:[%s103] ss:$16 sm:$0x3] %vm102, %v101
    %s105 = scalar_lea.vmem %s1, 12
    %106 = vst.msk [vmem:[%s105] ss:$16 sm:$0xc] %vm102, %v101
    %v107 = vld [vmem:[#allocation0] sm:$0xf]
    %108 = vrot.lane.b32.xlu0 %v107, 115
    %v109 = vpop.permute.xlu0 %108
    %vm110 = vcmask 7168
    %s111 = scalar_lea.vmem %s1, 13
    %112 = vst.msk [vmem:[%s111] ss:$16 sm:$0x3] %vm110, %v109
    %s113 = scalar_lea.vmem %s1, 13
    %114 = vst.msk [vmem:[%s113] ss:$16 sm:$0xc] %vm110, %v109
    %v115 = vld [vmem:[#allocation0] sm:$0xf]
    %116 = vrot.lane.b32.xlu0 %v115, 114
    %v117 = vpop.permute.xlu0 %116
    %vm118 = vcmask 7168
    %s119 = scalar_lea.vmem %s1, 14
    %120 = vst.msk [vmem:[%s119] ss:$16 sm:$0x3] %vm118, %v117
    %s121 = scalar_lea.vmem %s1, 14
    %122 = vst.msk [vmem:[%s121] ss:$16 sm:$0xc] %vm118, %v117
    %v123 = vld [vmem:[#allocation0] sm:$0xf]
    %124 = vrot.lane.b32.xlu0 %v123, 113
    %v125 = vpop.permute.xlu0 %124
    %vm126 = vcmask 7168
    %s127 = scalar_lea.vmem %s1, 15
    %128 = vst.msk [vmem:[%s127] ss:$16 sm:$0x3] %vm126, %v125
    %s129 = scalar_lea.vmem %s1, 15
    %130 = vst.msk [vmem:[%s129] ss:$16 sm:$0xc] %vm126, %v125

// kernel: tile.23
$region0: #{tile.23}
  #allocation0 [shape = 's32[1]{0}', space=sflag, size = 0x4, scoped, tag = 'scoped memory for tile.23']
  %s0 = inlined_call_operand.vmem [shape: f32[32], index: 0, kind: input, shape index: {}]
  %s1 = inlined_call_operand.vmem [shape: f32[4,32], index: 1, kind: output, shape index: {}]
  // Predicated region
  $region2: #{tile.23} parent=0 // pred_check
    _
  $region3: #{tile.23} parent=0 // pred_check_branch
    %3 = sbr.rel (0) target = $region5
  $region4: #{tile.23} parent=0 // pred_region
    _
  $region5: #{tile.23} parent=0 // pred_fallthru
    _
  %v4 = vld [vmem:[%s0] ss:$0 sm:$0xff]
  %5 = vst [vmem:[%s1] sm:$0xf] %v4

// kernel: tile.1
$region0: #{tile.1}
  %s0 = inlined_call_operand.vmem [shape: f32[4,32], index: 0, kind: input, shape index: {}]
  %s1 = inlined_call_operand.vmem [shape: f32[128,1], index: 1, kind: output, shape index: {}]
  $region1: #{tile.1} parent=0
    #allocation0 [shape = 'u8[4096]{0}', space=vmem, size = 0x1000, scoped, tag = 'scoped mem for input reshape']
    %s3 = sshll.u32 1, 4
    %s4 = ssub.s32 %s3, 1
    %v5 = vld [vmem:[%s0] sm:%s4]
    %6 = vst [vmem:[#allocation0] sm:%s4] %v5
    %v7 = vld [vmem:[#allocation0] sm:$0xf]
    %vm8 = vcmask 7168
    %9 = vst.msk [vmem:[%s1] sm:$0x1] %vm8, %v7
    %s10 = scalar_lea.vmem %s1, 31
    %11 = vst.msk [vmem:[%s10] sm:$0x2] %vm8, %v7
    %s12 = scalar_lea.vmem %s1, 62
    %13 = vst.msk [vmem:[%s12] sm:$0x4] %vm8, %v7
    %s14 = scalar_lea.vmem %s1, 93
    %15 = vst.msk [vmem:[%s14] sm:$0x8] %vm8, %v7
    %v16 = vld [vmem:[#allocation0] sm:$0xf]
    %17 = vrot.lane.b32.xlu0 %v16, 127
    %v18 = vpop.permute.xlu0 %17
    %vm19 = vcmask 7168
    %s20 = scalar_lea.vmem %s1, 1
    %21 = vst.msk [vmem:[%s20] sm:$0x1] %vm19, %v18
    %s22 = scalar_lea.vmem %s1, 32
    %23 = vst.msk [vmem:[%s22] sm:$0x2] %vm19, %v18
    %s24 = scalar_lea.vmem %s1, 63
    %25 = vst.msk [vmem:[%s24] sm:$0x4] %vm19, %v18
    %s26 = scalar_lea.vmem %s1, 94
    %27 = vst.msk [vmem:[%s26] sm:$0x8] %vm19, %v18
    %v28 = vld [vmem:[#allocation0] sm:$0xf]
    %29 = vrot.lane.b32.xlu0 %v28, 126
    %v30 = vpop.permute.xlu0 %29
    %vm31 = vcmask 7168
    %s32 = scalar_lea.vmem %s1, 2
    %33 = vst.msk [vmem:[%s32] sm:$0x1] %vm31, %v30
    %s34 = scalar_lea.vmem %s1, 33
    %35 = vst.msk [vmem:[%s34] sm:$0x2] %vm31, %v30
    %s36 = scalar_lea.vmem %s1, 64
    %37 = vst.msk [vmem:[%s36] sm:$0x4] %vm31, %v30
    %s38 = scalar_lea.vmem %s1, 95
    %39 = vst.msk [vmem:[%s38] sm:$0x8] %vm31, %v30
    %v40 = vld [vmem:[#allocation0] sm:$0xf]
    %41 = vrot.lane.b32.xlu0 %v40, 125
    %v42 = vpop.permute.xlu0 %41
    %vm43 = vcmask 7168
    %s44 = scalar_lea.vmem %s1, 3
    %45 = vst.msk [vmem:[%s44] sm:$0x1] %vm43, %v42
    %s46 = scalar_lea.vmem %s1, 34
    %47 = vst.msk [vmem:[%s46] sm:$0x2] %vm43, %v42
    %s48 = scalar_lea.vmem %s1, 65
    %49 = vst.msk [vmem:[%s48] sm:$0x4] %vm43, %v42
    %s50 = scalar_lea.vmem %s1, 96
    %51 = vst.msk [vmem:[%s50] sm:$0x8] %vm43, %v42
    %v52 = vld [vmem:[#allocation0] sm:$0xf]
    %53 = vrot.lane.b32.xlu0 %v52, 124
    %v54 = vpop.permute.xlu0 %53
    %vm55 = vcmask 7168
    %s56 = scalar_lea.vmem %s1, 4
    %57 = vst.msk [vmem:[%s56] sm:$0x1] %vm55, %v54
    %s58 = scalar_lea.vmem %s1, 35
    %59 = vst.msk [vmem:[%s58] sm:$0x2] %vm55, %v54
    %s60 = scalar_lea.vmem %s1, 66
    %61 = vst.msk [vmem:[%s60] sm:$0x4] %vm55, %v54
    %s62 = scalar_lea.vmem %s1, 97
    %63 = vst.msk [vmem:[%s62] sm:$0x8] %vm55, %v54
    %v64 = vld [vmem:[#allocation0] sm:$0xf]
    %65 = vrot.lane.b32.xlu0 %v64, 123
    %v66 = vpop.permute.xlu0 %65
    %vm67 = vcmask 7168
    %s68 = scalar_lea.vmem %s1, 5
    %69 = vst.msk [vmem:[%s68] sm:$0x1] %vm67, %v66
    %s70 = scalar_lea.vmem %s1, 36
    %71 = vst.msk [vmem:[%s70] sm:$0x2] %vm67, %v66
    %s72 = scalar_lea.vmem %s1, 67
    %73 = vst.msk [vmem:[%s72] sm:$0x4] %vm67, %v66
    %s74 = scalar_lea.vmem %s1, 98
    %75 = vst.msk [vmem:[%s74] sm:$0x8] %vm67, %v66
    %v76 = vld [vmem:[#allocation0] sm:$0xf]
    %77 = vrot.lane.b32.xlu0 %v76, 122
    %v78 = vpop.permute.xlu0 %77
    %vm79 = vcmask 7168
    %s80 = scalar_lea.vmem %s1, 6
    %81 = vst.msk [vmem:[%s80] sm:$0x1] %vm79, %v78
    %s82 = scalar_lea.vmem %s1, 37
    %83 = vst.msk [vmem:[%s82] sm:$0x2] %vm79, %v78
    %s84 = scalar_lea.vmem %s1, 68
    %85 = vst.msk [vmem:[%s84] sm:$0x4] %vm79, %v78
    %s86 = scalar_lea.vmem %s1, 99
    %87 = vst.msk [vmem:[%s86] sm:$0x8] %vm79, %v78
    %v88 = vld [vmem:[#allocation0] sm:$0xf]
    %89 = vrot.lane.b32.xlu0 %v88, 121
    %v90 = vpop.permute.xlu0 %89
    %vm91 = vcmask 7168
    %s92 = scalar_lea.vmem %s1, 7
    %93 = vst.msk [vmem:[%s92] sm:$0x1] %vm91, %v90
    %s94 = scalar_lea.vmem %s1, 38
    %95 = vst.msk [vmem:[%s94] sm:$0x2] %vm91, %v90
    %s96 = scalar_lea.vmem %s1, 69
    %97 = vst.msk [vmem:[%s96] sm:$0x4] %vm91, %v90
    %s98 = scalar_lea.vmem %s1, 100
    %99 = vst.msk [vmem:[%s98] sm:$0x8] %vm91, %v90
    %v100 = vld [vmem:[#allocation0] sm:$0xf]
    %101 = vrot.lane.b32.xlu0 %v100, 120
    %v102 = vpop.permute.xlu0 %101
    %vm103 = vcmask 7168
    %s104 = scalar_lea.vmem %s1, 8
    %105 = vst.msk [vmem:[%s104] sm:$0x1] %vm103, %v102
    %s106 = scalar_lea.vmem %s1, 39
    %107 = vst.msk [vmem:[%s106] sm:$0x2] %vm103, %v102
    %s108 = scalar_lea.vmem %s1, 70
    %109 = vst.msk [vmem:[%s108] sm:$0x4] %vm103, %v102
    %s110 = scalar_lea.vmem %s1, 101
    %111 = vst.msk [vmem:[%s110] sm:$0x8] %vm103, %v102
    %v112 = vld [vmem:[#allocation0] sm:$0xf]
    %113 = vrot.lane.b32.xlu0 %v112, 119
    %v114 = vpop.permute.xlu0 %113
    %vm115 = vcmask 7168
    %s116 = scalar_lea.vmem %s1, 9
    %117 = vst.msk [vmem:[%s116] sm:$0x1] %vm115, %v114
    %s118 = scalar_lea.vmem %s1, 40
    %119 = vst.msk [vmem:[%s118] sm:$0x2] %vm115, %v114
    %s120 = scalar_lea.vmem %s1, 71
    %121 = vst.msk [vmem:[%s120] sm:$0x4] %vm115, %v114
    %s122 = scalar_lea.vmem %s1, 102
    %123 = vst.msk [vmem:[%s122] sm:$0x8] %vm115, %v114
    %v124 = vld [vmem:[#allocation0] sm:$0xf]
    %125 = vrot.lane.b32.xlu0 %v124, 118
    %v126 = vpop.permute.xlu0 %125
    %vm127 = vcmask 7168
    %s128 = scalar_lea.vmem %s1, 10
    %129 = vst.msk [vmem:[%s128] sm:$0x1] %vm127, %v126
    %s130 = scalar_lea.vmem %s1, 41
    %131 = vst.msk [vmem:[%s130] sm:$0x2] %vm127, %v126
    %s132 = scalar_lea.vmem %s1, 72
    %133 = vst.msk [vmem:[%s132] sm:$0x4] %vm127, %v126
    %s134 = scalar_lea.vmem %s1, 103
    %135 = vst.msk [vmem:[%s134] sm:$0x8] %vm127, %v126
    %v136 = vld [vmem:[#allocation0] sm:$0xf]
    %137 = vrot.lane.b32.xlu0 %v136, 117
    %v138 = vpop.permute.xlu0 %137
    %vm139 = vcmask 7168
    %s140 = scalar_lea.vmem %s1, 11
    %141 = vst.msk [vmem:[%s140] sm:$0x1] %vm139, %v138
    %s142 = scalar_lea.vmem %s1, 42
    %143 = vst.msk [vmem:[%s142] sm:$0x2] %vm139, %v138
    %s144 = scalar_lea.vmem %s1, 73
    %145 = vst.msk [vmem:[%s144] sm:$0x4] %vm139, %v138
    %s146 = scalar_lea.vmem %s1, 104
    %147 = vst.msk [vmem:[%s146] sm:$0x8] %vm139, %v138
    %v148 = vld [vmem:[#allocation0] sm:$0xf]
    %149 = vrot.lane.b32.xlu0 %v148, 116
    %v150 = vpop.permute.xlu0 %149
    %vm151 = vcmask 7168
    %s152 = scalar_lea.vmem %s1, 12
    %153 = vst.msk [vmem:[%s152] sm:$0x1] %vm151, %v150
    %s154 = scalar_lea.vmem %s1, 43
    %155 = vst.msk [vmem:[%s154] sm:$0x2] %vm151, %v150
    %s156 = scalar_lea.vmem %s1, 74
    %157 = vst.msk [vmem:[%s156] sm:$0x4] %vm151, %v150
    %s158 = scalar_lea.vmem %s1, 105
    %159 = vst.msk [vmem:[%s158] sm:$0x8] %vm151, %v150
    %v160 = vld [vmem:[#allocation0] sm:$0xf]
    %161 = vrot.lane.b32.xlu0 %v160, 115
    %v162 = vpop.permute.xlu0 %161
    %vm163 = vcmask 7168
    %s164 = scalar_lea.vmem %s1, 13
    %165 = vst.msk [vmem:[%s164] sm:$0x1] %vm163, %v162
    %s166 = scalar_lea.vmem %s1, 44
    %167 = vst.msk [vmem:[%s166] sm:$0x2] %vm163, %v162
    %s168 = scalar_lea.vmem %s1, 75
    %169 = vst.msk [vmem:[%s168] sm:$0x4] %vm163, %v162
    %s170 = scalar_lea.vmem %s1, 106
    %171 = vst.msk [vmem:[%s170] sm:$0x8] %vm163, %v162
    %v172 = vld [vmem:[#allocation0] sm:$0xf]
    %173 = vrot.lane.b32.xlu0 %v172, 114
    %v174 = vpop.permute.xlu0 %173
    %vm175 = vcmask 7168
    %s176 = scalar_lea.vmem %s1, 14
    %177 = vst.msk [vmem:[%s176] sm:$0x1] %vm175, %v174
    %s178 = scalar_lea.vmem %s1, 45
    %179 = vst.msk [vmem:[%s178] sm:$0x2] %vm175, %v174
    %s180 = scalar_lea.vmem %s1, 76
    %181 = vst.msk [vmem:[%s180] sm:$0x4] %vm175, %v174
    %s182 = scalar_lea.vmem %s1, 107
    %183 = vst.msk [vmem:[%s182] sm:$0x8] %vm175, %v174
    %v184 = vld [vmem:[#allocation0] sm:$0xf]
    %185 = vrot.lane.b32.xlu0 %v184, 113
    %v186 = vpop.permute.xlu0 %185
    %vm187 = vcmask 7168
    %s188 = scalar_lea.vmem %s1, 15
    %189 = vst.msk [vmem:[%s188] sm:$0x1] %vm187, %v186
    %s190 = scalar_lea.vmem %s1, 46
    %191 = vst.msk [vmem:[%s190] sm:$0x2] %vm187, %v186
    %s192 = scalar_lea.vmem %s1, 77
    %193 = vst.msk [vmem:[%s192] sm:$0x4] %vm187, %v186
    %s194 = scalar_lea.vmem %s1, 108
    %195 = vst.msk [vmem:[%s194] sm:$0x8] %vm187, %v186
    %v196 = vld [vmem:[#allocation0] sm:$0xf]
    %197 = vrot.lane.b32.xlu0 %v196, 112
    %v198 = vpop.permute.xlu0 %197
    %vm199 = vcmask 7168
    %s200 = scalar_lea.vmem %s1, 16
    %201 = vst.msk [vmem:[%s200] sm:$0x1] %vm199, %v198
    %s202 = scalar_lea.vmem %s1, 47
    %203 = vst.msk [vmem:[%s202] sm:$0x2] %vm199, %v198
    %s204 = scalar_lea.vmem %s1, 78
    %205 = vst.msk [vmem:[%s204] sm:$0x4] %vm199, %v198
    %s206 = scalar_lea.vmem %s1, 109
    %207 = vst.msk [vmem:[%s206] sm:$0x8] %vm199, %v198
    %v208 = vld [vmem:[#allocation0] sm:$0xf]
    %209 = vrot.lane.b32.xlu0 %v208, 111
    %v210 = vpop.permute.xlu0 %209
    %vm211 = vcmask 7168
    %s212 = scalar_lea.vmem %s1, 17
    %213 = vst.msk [vmem:[%s212] sm:$0x1] %vm211, %v210
    %s214 = scalar_lea.vmem %s1, 48
    %215 = vst.msk [vmem:[%s214] sm:$0x2] %vm211, %v210
    %s216 = scalar_lea.vmem %s1, 79
    %217 = vst.msk [vmem:[%s216] sm:$0x4] %vm211, %v210
    %s218 = scalar_lea.vmem %s1, 110
    %219 = vst.msk [vmem:[%s218] sm:$0x8] %vm211, %v210
    %v220 = vld [vmem:[#allocation0] sm:$0xf]
    %221 = vrot.lane.b32.xlu0 %v220, 110
    %v222 = vpop.permute.xlu0 %221
    %vm223 = vcmask 7168
    %s224 = scalar_lea.vmem %s1, 18
    %225 = vst.msk [vmem:[%s224] sm:$0x1] %vm223, %v222
    %s226 = scalar_lea.vmem %s1, 49
    %227 = vst.msk [vmem:[%s226] sm:$0x2] %vm223, %v222
    %s228 = scalar_lea.vmem %s1, 80
    %229 = vst.msk [vmem:[%s228] sm:$0x4] %vm223, %v222
    %s230 = scalar_lea.vmem %s1, 111
    %231 = vst.msk [vmem:[%s230] sm:$0x8] %vm223, %v222
    %v232 = vld [vmem:[#allocation0] sm:$0xf]
    %233 = vrot.lane.b32.xlu0 %v232, 109
    %v234 = vpop.permute.xlu0 %233
    %vm235 = vcmask 7168
    %s236 = scalar_lea.vmem %s1, 19
    %237 = vst.msk [vmem:[%s236] sm:$0x1] %vm235, %v234
    %s238 = scalar_lea.vmem %s1, 50
    %239 = vst.msk [vmem:[%s238] sm:$0x2] %vm235, %v234
    %s240 = scalar_lea.vmem %s1, 81
    %241 = vst.msk [vmem:[%s240] sm:$0x4] %vm235, %v234
    %s242 = scalar_lea.vmem %s1, 112
    %243 = vst.msk [vmem:[%s242] sm:$0x8] %vm235, %v234
    %v244 = vld [vmem:[#allocation0] sm:$0xf]
    %245 = vrot.lane.b32.xlu0 %v244, 108
    %v246 = vpop.permute.xlu0 %245
    %vm247 = vcmask 7168
    %s248 = scalar_lea.vmem %s1, 20
    %249 = vst.msk [vmem:[%s248] sm:$0x1] %vm247, %v246
    %s250 = scalar_lea.vmem %s1, 51
    %251 = vst.msk [vmem:[%s250] sm:$0x2] %vm247, %v246
    %s252 = scalar_lea.vmem %s1, 82
    %253 = vst.msk [vmem:[%s252] sm:$0x4] %vm247, %v246
    %s254 = scalar_lea.vmem %s1, 113
    %255 = vst.msk [vmem:[%s254] sm:$0x8] %vm247, %v246
    %v256 = vld [vmem:[#allocation0] sm:$0xf]
    %257 = vrot.lane.b32.xlu0 %v256, 107
    %v258 = vpop.permute.xlu0 %257
    %vm259 = vcmask 7168
    %s260 = scalar_lea.vmem %s1, 21
    %261 = vst.msk [vmem:[%s260] sm:$0x1] %vm259, %v258
    %s262 = scalar_lea.vmem %s1, 52
    %263 = vst.msk [vmem:[%s262] sm:$0x2] %vm259, %v258
    %s264 = scalar_lea.vmem %s1, 83
    %265 = vst.msk [vmem:[%s264] sm:$0x4] %vm259, %v258
    %s266 = scalar_lea.vmem %s1, 114
    %267 = vst.msk [vmem:[%s266] sm:$0x8] %vm259, %v258
    %v268 = vld [vmem:[#allocation0] sm:$0xf]
    %269 = vrot.lane.b32.xlu0 %v268, 106
    %v270 = vpop.permute.xlu0 %269
    %vm271 = vcmask 7168
    %s272 = scalar_lea.vmem %s1, 22
    %273 = vst.msk [vmem:[%s272] sm:$0x1] %vm271, %v270
    %s274 = scalar_lea.vmem %s1, 53
    %275 = vst.msk [vmem:[%s274] sm:$0x2] %vm271, %v270
    %s276 = scalar_lea.vmem %s1, 84
    %277 = vst.msk [vmem:[%s276] sm:$0x4] %vm271, %v270
    %s278 = scalar_lea.vmem %s1, 115
    %279 = vst.msk [vmem:[%s278] sm:$0x8] %vm271, %v270
    %v280 = vld [vmem:[#allocation0] sm:$0xf]
    %281 = vrot.lane.b32.xlu0 %v280, 105
    %v282 = vpop.permute.xlu0 %281
    %vm283 = vcmask 7168
    %s284 = scalar_lea.vmem %s1, 23
    %285 = vst.msk [vmem:[%s284] sm:$0x1] %vm283, %v282
    %s286 = scalar_lea.vmem %s1, 54
    %287 = vst.msk [vmem:[%s286] sm:$0x2] %vm283, %v282
    %s288 = scalar_lea.vmem %s1, 85
    %289 = vst.msk [vmem:[%s288] sm:$0x4] %vm283, %v282
    %s290 = scalar_lea.vmem %s1, 116
    %291 = vst.msk [vmem:[%s290] sm:$0x8] %vm283, %v282
    %v292 = vld [vmem:[#allocation0] sm:$0xf]
    %293 = vrot.lane.b32.xlu0 %v292, 104
    %v294 = vpop.permute.xlu0 %293
    %vm295 = vcmask 7168
    %s296 = scalar_lea.vmem %s1, 24
    %297 = vst.msk [vmem:[%s296] sm:$0x1] %vm295, %v294
    %s298 = scalar_lea.vmem %s1, 55
    %299 = vst.msk [vmem:[%s298] sm:$0x2] %vm295, %v294
    %s300 = scalar_lea.vmem %s1, 86
    %301 = vst.msk [vmem:[%s300] sm:$0x4] %vm295, %v294
    %s302 = scalar_lea.vmem %s1, 117
    %303 = vst.msk [vmem:[%s302] sm:$0x8] %vm295, %v294
    %v304 = vld [vmem:[#allocation0] sm:$0xf]
    %305 = vrot.lane.b32.xlu0 %v304, 103
    %v306 = vpop.permute.xlu0 %305
    %vm307 = vcmask 7168
    %s308 = scalar_lea.vmem %s1, 25
    %309 = vst.msk [vmem:[%s308] sm:$0x1] %vm307, %v306
    %s310 = scalar_lea.vmem %s1, 56
    %311 = vst.msk [vmem:[%s310] sm:$0x2] %vm307, %v306
    %s312 = scalar_lea.vmem %s1, 87
    %313 = vst.msk [vmem:[%s312] sm:$0x4] %vm307, %v306
    %s314 = scalar_lea.vmem %s1, 118
    %315 = vst.msk [vmem:[%s314] sm:$0x8] %vm307, %v306
    %v316 = vld [vmem:[#allocation0] sm:$0xf]
    %317 = vrot.lane.b32.xlu0 %v316, 102
    %v318 = vpop.permute.xlu0 %317
    %vm319 = vcmask 7168
    %s320 = scalar_lea.vmem %s1, 26
    %321 = vst.msk [vmem:[%s320] sm:$0x1] %vm319, %v318
    %s322 = scalar_lea.vmem %s1, 57
    %323 = vst.msk [vmem:[%s322] sm:$0x2] %vm319, %v318
    %s324 = scalar_lea.vmem %s1, 88
    %325 = vst.msk [vmem:[%s324] sm:$0x4] %vm319, %v318
    %s326 = scalar_lea.vmem %s1, 119
    %327 = vst.msk [vmem:[%s326] sm:$0x8] %vm319, %v318
    %v328 = vld [vmem:[#allocation0] sm:$0xf]
    %329 = vrot.lane.b32.xlu0 %v328, 101
    %v330 = vpop.permute.xlu0 %329
    %vm331 = vcmask 7168
    %s332 = scalar_lea.vmem %s1, 27
    %333 = vst.msk [vmem:[%s332] sm:$0x1] %vm331, %v330
    %s334 = scalar_lea.vmem %s1, 58
    %335 = vst.msk [vmem:[%s334] sm:$0x2] %vm331, %v330
    %s336 = scalar_lea.vmem %s1, 89
    %337 = vst.msk [vmem:[%s336] sm:$0x4] %vm331, %v330
    %s338 = scalar_lea.vmem %s1, 120
    %339 = vst.msk [vmem:[%s338] sm:$0x8] %vm331, %v330
    %v340 = vld [vmem:[#allocation0] sm:$0xf]
    %341 = vrot.lane.b32.xlu0 %v340, 100
    %v342 = vpop.permute.xlu0 %341
    %vm343 = vcmask 7168
    %s344 = scalar_lea.vmem %s1, 28
    %345 = vst.msk [vmem:[%s344] sm:$0x1] %vm343, %v342
    %s346 = scalar_lea.vmem %s1, 59
    %347 = vst.msk [vmem:[%s346] sm:$0x2] %vm343, %v342
    %s348 = scalar_lea.vmem %s1, 90
    %349 = vst.msk [vmem:[%s348] sm:$0x4] %vm343, %v342
    %s350 = scalar_lea.vmem %s1, 121
    %351 = vst.msk [vmem:[%s350] sm:$0x8] %vm343, %v342
    %v352 = vld [vmem:[#allocation0] sm:$0xf]
    %353 = vrot.lane.b32.xlu0 %v352, 99
    %v354 = vpop.permute.xlu0 %353
    %vm355 = vcmask 7168
    %s356 = scalar_lea.vmem %s1, 29
    %357 = vst.msk [vmem:[%s356] sm:$0x1] %vm355, %v354
    %s358 = scalar_lea.vmem %s1, 60
    %359 = vst.msk [vmem:[%s358] sm:$0x2] %vm355, %v354
    %s360 = scalar_lea.vmem %s1, 91
    %361 = vst.msk [vmem:[%s360] sm:$0x4] %vm355, %v354
    %s362 = scalar_lea.vmem %s1, 122
    %363 = vst.msk [vmem:[%s362] sm:$0x8] %vm355, %v354
    %v364 = vld [vmem:[#allocation0] sm:$0xf]
    %365 = vrot.lane.b32.xlu0 %v364, 98
    %v366 = vpop.permute.xlu0 %365
    %vm367 = vcmask 7168
    %s368 = scalar_lea.vmem %s1, 30
    %369 = vst.msk [vmem:[%s368] sm:$0x1] %vm367, %v366
    %s370 = scalar_lea.vmem %s1, 61
    %371 = vst.msk [vmem:[%s370] sm:$0x2] %vm367, %v366
    %s372 = scalar_lea.vmem %s1, 92
    %373 = vst.msk [vmem:[%s372] sm:$0x4] %vm367, %v366
    %s374 = scalar_lea.vmem %s1, 123
    %375 = vst.msk [vmem:[%s374] sm:$0x8] %vm367, %v366
    %v376 = vld [vmem:[#allocation0] sm:$0xf]
    %377 = vrot.lane.b32.xlu0 %v376, 97
    %v378 = vpop.permute.xlu0 %377
    %vm379 = vcmask 7168
    %s380 = scalar_lea.vmem %s1, 31
    %381 = vst.msk [vmem:[%s380] sm:$0x1] %vm379, %v378
    %s382 = scalar_lea.vmem %s1, 62
    %383 = vst.msk [vmem:[%s382] sm:$0x2] %vm379, %v378
    %s384 = scalar_lea.vmem %s1, 93
    %385 = vst.msk [vmem:[%s384] sm:$0x4] %vm379, %v378
    %s386 = scalar_lea.vmem %s1, 124
    %387 = vst.msk [vmem:[%s386] sm:$0x8] %vm379, %v378

// kernel: resisc45_cnn_forward.7
$region0: #{resisc45_cnn_forward.7}
  #allocation0 [shape = 'u32[]', space=smem, size = 0x4, offset = 0x4, fixed_abs, tag = 'smem constant byte address 0x4 - core index']
  #allocation1 [shape = 'u32[144,128]{1,0:T(1,128)}', space=vmem, size = 0x12000, scoped, tag = 'internal scratch']
  %s0 = inlined_call_operand.vmem [shape: f32[2,16,72], index: 0, kind: input, shape index: {}]
  %s1 = inlined_call_operand.vmem [shape: f32[16,1], index: 1, kind: input, shape index: {}]
  %s2 = inlined_call_operand.vmem [shape: f32[16,1], index: 2, kind: input, shape index: {}]
  %s3 = inlined_call_operand.vmem [shape: f32[2,16,72], index: 3, kind: output, shape index: {}]
  %s4 = sld [smem:[#allocation0]]
  $region45: #{resisc45_cnn_forward.7} parent=0
    _
  %s6 = ssub.s32 1, %s4
  %s7 = scalar_select 0, %s6, %s4
  loop: start=0, step=1, limit=4
  $region2: #{resisc45_cnn_forward.7} parent=0 // loop_pre_header
    _
  $region3: #{resisc45_cnn_forward.7} parent=0 // loop_header
    %s9 = sphi 0, %s13
    %p10 = scmp.ge.s32.totalorder %s9, 4
    %s19 = sphi 0, %s21
    %s22 = sphi 0, %s19
    %s23 = sphi 0, %s22
    %s39 = sphi 0, %s23
    %s43 = sphi 0, %s43
    %s45 = sphi 0, %s43
    %s46 = sphi 0, %s45
    %s60 = sphi 0, %s46
    %s64 = sphi 0, %s64
    %s66 = sphi 0, %s64
    %s67 = sphi 0, %s66
    %s81 = sphi 0, %s67
    %s87 = sphi 0, %s89
    %s90 = sphi 0, %s87
    %s91 = sphi 0, %s90
    %s107 = sphi 0, %s91
  $region4: #{resisc45_cnn_forward.7} parent=0 // loop_header_branch
    %12 = sbr.rel (%p10) target = $region8
  $region5: #{resisc45_cnn_forward.7} parent=0 // loop_body
    %s14 = ssub.s32 %s9, 1
    %s15 = ssub.s32 %s9, 2
    %s16 = sadd.s32 %s9, 1
    %s17 = ssub.s32 %s9, %s16
    %p18 = scmp.eq.s32.totalorder %s17, 0
    %s20 = sadd.s32 %s19, 1
    %s21 = scalar_select %p18, %s19, %s20
    %p24 = pneg %p18
    %p25 = scmp.eq.s32.totalorder %s9, 1
    %p26 = por %p24, %p25
    %p27 = scmp.ne.s32.totalorder %s19, %s22
    %p28 = scmp.eq.s32.totalorder %s9, 0
    %p29 = por %p27, %p28
    %p30 = scmp.ne.s32.totalorder %s19, %s22
    %p31 = scmp.eq.s32.totalorder %s14, 1
    %p32 = por %p30, %p31
    %p33 = scmp.ne.s32.totalorder %s22, %s23
    %p34 = scmp.eq.s32.totalorder %s14, 0
    %p35 = por %p33, %p34
    %p36 = scmp.ne.s32.totalorder %s22, %s23
    %p37 = scmp.eq.s32.totalorder %s15, 1
    %p38 = por %p36, %p37
    %p40 = scmp.ne.s32.totalorder %s23, %s39
    %p41 = scmp.eq.s32.totalorder %s15, 0
    %p42 = por %p40, %p41
    %s44 = sadd.s32 %s43, 1
    %p47 = scmp.eq.s32.totalorder %s9, 1
    %p48 = scmp.ne.s32.totalorder %s43, %s45
    %p49 = scmp.eq.s32.totalorder %s9, 0
    %p50 = por %p48, %p49
    %p51 = scmp.ne.s32.totalorder %s43, %s45
    %p52 = scmp.eq.s32.totalorder %s14, 1
    %p53 = por %p51, %p52
    %p54 = scmp.ne.s32.totalorder %s45, %s46
    %p55 = scmp.eq.s32.totalorder %s14, 0
    %p56 = por %p54, %p55
    %p57 = scmp.ne.s32.totalorder %s45, %s46
    %p58 = scmp.eq.s32.totalorder %s15, 1
    %p59 = por %p57, %p58
    %p61 = scmp.ne.s32.totalorder %s46, %s60
    %p62 = scmp.eq.s32.totalorder %s15, 0
    %p63 = por %p61, %p62
    %s65 = sadd.s32 %s64, 1
    %p68 = scmp.eq.s32.totalorder %s9, 1
    %p69 = scmp.ne.s32.totalorder %s64, %s66
    %p70 = scmp.eq.s32.totalorder %s9, 0
    %p71 = por %p69, %p70
    %p72 = scmp.ne.s32.totalorder %s64, %s66
    %p73 = scmp.eq.s32.totalorder %s14, 1
    %p74 = por %p72, %p73
    %p75 = scmp.ne.s32.totalorder %s66, %s67
    %p76 = scmp.eq.s32.totalorder %s14, 0
    %p77 = por %p75, %p76
    %p78 = scmp.ne.s32.totalorder %s66, %s67
    %p79 = scmp.eq.s32.totalorder %s15, 1
    %p80 = por %p78, %p79
    %p82 = scmp.ne.s32.totalorder %s67, %s81
    %p83 = scmp.eq.s32.totalorder %s15, 0
    %p84 = por %p82, %p83
    %s85 = ssub.s32 %s9, %s16
    %p86 = scmp.eq.s32.totalorder %s85, 0
    %s88 = sadd.s32 %s87, 1
    %s89 = scalar_select %p86, %s87, %s88
    %p92 = pneg %p86
    %p93 = scmp.eq.s32.totalorder %s9, 1
    %p94 = por %p92, %p93
    %p95 = scmp.ne.s32.totalorder %s87, %s90
    %p96 = scmp.eq.s32.totalorder %s9, 0
    %p97 = por %p95, %p96
    %p98 = scmp.ne.s32.totalorder %s87, %s90
    %p99 = scmp.eq.s32.totalorder %s14, 1
    %p100 = por %p98, %p99
    %p101 = scmp.ne.s32.totalorder %s90, %s91
    %p102 = scmp.eq.s32.totalorder %s14, 0
    %p103 = por %p101, %p102
    %p104 = scmp.ne.s32.totalorder %s90, %s91
    %p105 = scmp.eq.s32.totalorder %s15, 1
    %p106 = por %p104, %p105
    %p108 = scmp.ne.s32.totalorder %s91, %s107
    %p109 = scmp.eq.s32.totalorder %s15, 0
    %p110 = por %p108, %p109
    %p111 = scmp.le.s32.totalorder 1, %s9
    %p112 = scmp.lt.s32.totalorder %s9, 3
    %p113 = pnand %p111, %p112
    %p114 = pneg %p113
    // Predicated region
    $region9: #{resisc45_cnn_forward.7} parent=5 // pred_check
      _
    $region10: #{resisc45_cnn_forward.7} parent=5 // pred_check_branch
      %116 = sbr.rel (%p113) target = $region12
    $region11: #{resisc45_cnn_forward.7} parent=5 // pred_region
      %s117 = ssub.s32 %s9, 1
      // Predicated region
      $region13: #{resisc45_cnn_forward.7} parent=11 // pred_check
        %p118 = pneg %p56
      $region14: #{resisc45_cnn_forward.7} parent=11 // pred_check_branch
        %120 = sbr.rel (%p118) target = $region16
      $region15: #{resisc45_cnn_forward.7} parent=11 // pred_region
        _
      $region16: #{resisc45_cnn_forward.7} parent=11 // pred_fallthru
        _
      // Predicated region
      $region17: #{resisc45_cnn_forward.7} parent=11 // pred_check
        %p121 = pneg %p77
      $region18: #{resisc45_cnn_forward.7} parent=11 // pred_check_branch
        %123 = sbr.rel (%p121) target = $region20
      $region19: #{resisc45_cnn_forward.7} parent=11 // pred_region
        _
      $region20: #{resisc45_cnn_forward.7} parent=11 // pred_fallthru
        _
    $region12: #{resisc45_cnn_forward.7} parent=5 // pred_fallthru
      _
    %p124 = scmp.lt.s32.totalorder %s9, 2
    // Predicated region
    $region21: #{resisc45_cnn_forward.7} parent=5 // pred_check
      %p125 = pneg %p124
    $region22: #{resisc45_cnn_forward.7} parent=5 // pred_check_branch
      %127 = sbr.rel (%p125) target = $region24
    $region23: #{resisc45_cnn_forward.7} parent=5 // pred_region
      // Predicated region
      $region25: #{resisc45_cnn_forward.7} parent=23 // pred_check
        %p128 = pneg %p29
      $region26: #{resisc45_cnn_forward.7} parent=23 // pred_check_branch
        %130 = sbr.rel (%p128) target = $region28
      $region27: #{resisc45_cnn_forward.7} parent=23 // pred_region
        %p131 = scmp.lt.s32.totalorder %s9, 1
        %s132 = scalar_select %p131, %s9, 1
        %s133 = smul.addr %s132, 2
        %s134 = smul.addr %s133, 8
        %s135 = scalar_lea.vmem %s0, %s134
      $region28: #{resisc45_cnn_forward.7} parent=23 // pred_fallthru
        _
    $region24: #{resisc45_cnn_forward.7} parent=5 // pred_fallthru
      _
    %p136 = scmp.le.s32.totalorder 1, %s9
    %p137 = scmp.lt.s32.totalorder %s9, 3
    %p138 = pnand %p136, %p137
    %p139 = pneg %p138
    // Predicated region
    $region29: #{resisc45_cnn_forward.7} parent=5 // pred_check
      _
    $region30: #{resisc45_cnn_forward.7} parent=5 // pred_check_branch
      %141 = sbr.rel (%p138) target = $region32
    $region31: #{resisc45_cnn_forward.7} parent=5 // pred_region
      %s142 = ssub.s32 %s9, 1
      %p143 = scmp.lt.s32.totalorder %s14, 1
      %s144 = scalar_select %p143, %s14, 1
      %s145 = smul.addr %s144, 2
      %s146 = smul.addr %s145, 8
      %s147 = scalar_lea.vmem %s0, %s146
      %p148 = pneg %p35
      %p149 = pneg %p32
      %p150 = pneg %p56
      %p151 = pneg %p53
      %p152 = pneg %p77
      %p153 = pneg %p74
      %p154 = pneg %p103
      %p155 = pneg %p100
      %p156 = scmp.lt.s32.totalorder %s14, 1
      %s157 = scalar_select %p156, %s14, 1
      %s158 = smul.addr %s157, 2
      %s159 = smul.addr %s158, 8
      %s160 = scalar_lea.vmem %s3, %s159
      %p161 = scmp.lt.s32.totalorder %s14, 1
      %s162 = scalar_select %p161, %s14, 1
      %s163 = smul.addr %s162, 2
      %s164 = smul.addr %s163, 8
      %s165 = scalar_lea.vmem %s0, %s164
      %p166 = scmp.lt.s32.totalorder %s14, 1
      %s167 = scalar_select %p166, %s14, 1
      %s168 = smul.addr %s167, 2
      %s169 = smul.addr %s168, 8
      %s170 = scalar_lea.vmem %s3, %s169
      %v171 = vld [vmem:[%s165] sm:$0xff]
      %v172 = vld [vmem:[%s165 + $0x8] sm:$0xff]
      %v173 = vld [vmem:[%s1] sm:$0xff]
      %v174 = vld [vmem:[%s1 + $0x8] sm:$0xff]
      %176 = vset.pattern.permute.xlu0 0
      %177 = vperm.xlu0 %176, %v173
      %v178 = vpop.permute.xlu0 %177
      %181 = vset.pattern.permute.xlu0 0
      %182 = vperm.xlu0 %181, %v174
      %v183 = vpop.permute.xlu0 %182
      %v185 = vmul.f32 %v171, %v178
      %v186 = vmul.f32 %v172, %v183
      %v187 = vld [vmem:[%s2] sm:$0xff]
      %v188 = vld [vmem:[%s2 + $0x8] sm:$0xff]
      %190 = vset.pattern.permute.xlu0 0
      %191 = vperm.xlu0 %190, %v187
      %v192 = vpop.permute.xlu0 %191
      %195 = vset.pattern.permute.xlu0 0
      %196 = vperm.xlu0 %195, %v188
      %v197 = vpop.permute.xlu0 %196
      %v199 = vadd.f32 %v185, %v192
      %v200 = vadd.f32 %v186, %v197
      %vm201 = vcmask 588800
      %202 = vst.msk [vmem:[%s170] sm:$0xff] %vm201, %v199
      %203 = vst.msk [vmem:[%s170 + $0x8] sm:$0xff] %vm201, %v200
      %p204 = scmp.lt.s32.totalorder %s14, 1
      %s205 = scalar_select %p204, %s14, 1
      %s206 = smul.addr %s205, 2
      %s207 = smul.addr %s206, 8
      %s208 = scalar_lea.vmem %s3, %s207
      // Predicated region
      $region33: #{resisc45_cnn_forward.7} parent=31 // pred_check
        %p209 = pneg %p100
      $region34: #{resisc45_cnn_forward.7} parent=31 // pred_check_branch
        %211 = sbr.rel (%p209) target = $region36
      $region35: #{resisc45_cnn_forward.7} parent=31 // pred_region
        _
      $region36: #{resisc45_cnn_forward.7} parent=31 // pred_fallthru
        _
    $region32: #{resisc45_cnn_forward.7} parent=5 // pred_fallthru
      _
    %p212 = scmp.le.s32.totalorder 2, %s9
    // Predicated region
    $region37: #{resisc45_cnn_forward.7} parent=5 // pred_check
      %p213 = pneg %p212
    $region38: #{resisc45_cnn_forward.7} parent=5 // pred_check_branch
      %215 = sbr.rel (%p213) target = $region40
    $region39: #{resisc45_cnn_forward.7} parent=5 // pred_region
      %s216 = ssub.s32 %s9, 2
      // Predicated region
      $region41: #{resisc45_cnn_forward.7} parent=39 // pred_check
        %p217 = pneg %p106
      $region42: #{resisc45_cnn_forward.7} parent=39 // pred_check_branch
        %219 = sbr.rel (%p217) target = $region44
      $region43: #{resisc45_cnn_forward.7} parent=39 // pred_region
        %p220 = scmp.lt.s32.totalorder %s15, 1
        %s221 = scalar_select %p220, %s15, 1
        %s222 = smul.addr %s221, 2
        %s223 = smul.addr %s222, 8
        %s224 = scalar_lea.vmem %s3, %s223
      $region44: #{resisc45_cnn_forward.7} parent=39 // pred_fallthru
        _
    $region40: #{resisc45_cnn_forward.7} parent=5 // pred_fallthru
      _
  $region6: #{resisc45_cnn_forward.7} parent=0 // loop_footer
    %s13 = sadd.s32 1, %s9
  $region7: #{resisc45_cnn_forward.7} parent=0 // loop_footer_branch
    %8 = sbr.rel target = $region3
  $region8: #{resisc45_cnn_forward.7} parent=0 // loop_exit
    _

// kernel: resisc45_cnn_forward.6
$region0: #{resisc45_cnn_forward.6}
  #allocation0 [shape = 'u32[]', space=smem, size = 0x4, offset = 0x4, fixed_abs, tag = 'smem constant byte address 0x4 - core index']
  #allocation1 [shape = 'u32[144,128]{1,0:T(1,128)}', space=vmem, size = 0x12000, scoped, tag = 'internal scratch']
  #allocation2 [shape = 'f32[128,72]{1,0:T(8,128)}', space=vmem, size = 0x10000, scoped, tag = 'scratch operand']
  %s0 = inlined_call_operand.vmem [shape: f32[2,4,8,128], index: 0, kind: input, shape index: {}]
  %s1 = inlined_call_operand.vmem [shape: f32[64,128], index: 1, kind: input, shape index: {}]
  %s2 = inlined_call_operand.vmem [shape: f32[64,1], index: 2, kind: input, shape index: {}]
  %s3 = inlined_call_operand.vmem [shape: f32[1,72], index: 3, kind: input, shape index: {}]
  %s4 = inlined_call_operand.vmem [shape: f32[2,16,72], index: 4, kind: output, shape index: {0}]
  %s5 = inlined_call_operand.vmem [shape: f32[2,16,1], index: 5, kind: output, shape index: {1}]
  %s6 = inlined_call_operand.vmem [shape: f32[2,16,1], index: 6, kind: output, shape index: {2}]
  %7 = xla_tuple %s4, %s5, %s6
  %s8 = sld [smem:[#allocation0]]
  $region65: #{resisc45_cnn_forward.6} parent=0
    _
  %s10 = ssub.s32 1, %s8
  %s11 = scalar_select 0, %s10, %s8
  loop: start=0, step=1, limit=4
  $region2: #{resisc45_cnn_forward.6} parent=0 // loop_pre_header
    _
  $region3: #{resisc45_cnn_forward.6} parent=0 // loop_header
    %s13 = sphi 0, %s17
    %p14 = scmp.ge.s32.totalorder %s13, 4
    %s23 = sphi 0, %s25
    %s26 = sphi 0, %s23
    %s27 = sphi 0, %s26
    %s43 = sphi 0, %s27
    %s47 = sphi 0, %s47
    %s49 = sphi 0, %s47
    %s50 = sphi 0, %s49
    %s64 = sphi 0, %s50
    %s68 = sphi 0, %s68
    %s70 = sphi 0, %s68
    %s71 = sphi 0, %s70
    %s85 = sphi 0, %s71
    %s89 = sphi 0, %s89
    %s91 = sphi 0, %s89
    %s92 = sphi 0, %s91
    %s106 = sphi 0, %s92
    %s112 = sphi 0, %s114
    %s115 = sphi 0, %s112
    %s116 = sphi 0, %s115
    %s132 = sphi 0, %s116
    %s138 = sphi 0, %s140
    %s141 = sphi 0, %s138
    %s142 = sphi 0, %s141
    %s158 = sphi 0, %s142
    %s164 = sphi 0, %s166
    %s167 = sphi 0, %s164
    %s168 = sphi 0, %s167
    %s184 = sphi 0, %s168
  $region4: #{resisc45_cnn_forward.6} parent=0 // loop_header_branch
    %16 = sbr.rel (%p14) target = $region8
  $region5: #{resisc45_cnn_forward.6} parent=0 // loop_body
    %s18 = ssub.s32 %s13, 1
    %s19 = ssub.s32 %s13, 2
    %s20 = sadd.s32 %s13, 1
    %s21 = ssub.s32 %s13, %s20
    %p22 = scmp.eq.s32.totalorder %s21, 0
    %s24 = sadd.s32 %s23, 1
    %s25 = scalar_select %p22, %s23, %s24
    %p28 = pneg %p22
    %p29 = scmp.eq.s32.totalorder %s13, 1
    %p30 = por %p28, %p29
    %p31 = scmp.ne.s32.totalorder %s23, %s26
    %p32 = scmp.eq.s32.totalorder %s13, 0
    %p33 = por %p31, %p32
    %p34 = scmp.ne.s32.totalorder %s23, %s26
    %p35 = scmp.eq.s32.totalorder %s18, 1
    %p36 = por %p34, %p35
    %p37 = scmp.ne.s32.totalorder %s26, %s27
    %p38 = scmp.eq.s32.totalorder %s18, 0
    %p39 = por %p37, %p38
    %p40 = scmp.ne.s32.totalorder %s26, %s27
    %p41 = scmp.eq.s32.totalorder %s19, 1
    %p42 = por %p40, %p41
    %p44 = scmp.ne.s32.totalorder %s27, %s43
    %p45 = scmp.eq.s32.totalorder %s19, 0
    %p46 = por %p44, %p45
    %s48 = sadd.s32 %s47, 1
    %p51 = scmp.eq.s32.totalorder %s13, 1
    %p52 = scmp.ne.s32.totalorder %s47, %s49
    %p53 = scmp.eq.s32.totalorder %s13, 0
    %p54 = por %p52, %p53
    %p55 = scmp.ne.s32.totalorder %s47, %s49
    %p56 = scmp.eq.s32.totalorder %s18, 1
    %p57 = por %p55, %p56
    %p58 = scmp.ne.s32.totalorder %s49, %s50
    %p59 = scmp.eq.s32.totalorder %s18, 0
    %p60 = por %p58, %p59
    %p61 = scmp.ne.s32.totalorder %s49, %s50
    %p62 = scmp.eq.s32.totalorder %s19, 1
    %p63 = por %p61, %p62
    %p65 = scmp.ne.s32.totalorder %s50, %s64
    %p66 = scmp.eq.s32.totalorder %s19, 0
    %p67 = por %p65, %p66
    %s69 = sadd.s32 %s68, 1
    %p72 = scmp.eq.s32.totalorder %s13, 1
    %p73 = scmp.ne.s32.totalorder %s68, %s70
    %p74 = scmp.eq.s32.totalorder %s13, 0
    %p75 = por %p73, %p74
    %p76 = scmp.ne.s32.totalorder %s68, %s70
    %p77 = scmp.eq.s32.totalorder %s18, 1
    %p78 = por %p76, %p77
    %p79 = scmp.ne.s32.totalorder %s70, %s71
    %p80 = scmp.eq.s32.totalorder %s18, 0
    %p81 = por %p79, %p80
    %p82 = scmp.ne.s32.totalorder %s70, %s71
    %p83 = scmp.eq.s32.totalorder %s19, 1
    %p84 = por %p82, %p83
    %p86 = scmp.ne.s32.totalorder %s71, %s85
    %p87 = scmp.eq.s32.totalorder %s19, 0
    %p88 = por %p86, %p87
    %s90 = sadd.s32 %s89, 1
    %p93 = scmp.eq.s32.totalorder %s13, 1
    %p94 = scmp.ne.s32.totalorder %s89, %s91
    %p95 = scmp.eq.s32.totalorder %s13, 0
    %p96 = por %p94, %p95
    %p97 = scmp.ne.s32.totalorder %s89, %s91
    %p98 = scmp.eq.s32.totalorder %s18, 1
    %p99 = por %p97, %p98
    %p100 = scmp.ne.s32.totalorder %s91, %s92
    %p101 = scmp.eq.s32.totalorder %s18, 0
    %p102 = por %p100, %p101
    %p103 = scmp.ne.s32.totalorder %s91, %s92
    %p104 = scmp.eq.s32.totalorder %s19, 1
    %p105 = por %p103, %p104
    %p107 = scmp.ne.s32.totalorder %s92, %s106
    %p108 = scmp.eq.s32.totalorder %s19, 0
    %p109 = por %p107, %p108
    %s110 = ssub.s32 %s13, %s20
    %p111 = scmp.eq.s32.totalorder %s110, 0
    %s113 = sadd.s32 %s112, 1
    %s114 = scalar_select %p111, %s112, %s113
    %p117 = pneg %p111
    %p118 = scmp.eq.s32.totalorder %s13, 1
    %p119 = por %p117, %p118
    %p120 = scmp.ne.s32.totalorder %s112, %s115
    %p121 = scmp.eq.s32.totalorder %s13, 0
    %p122 = por %p120, %p121
    %p123 = scmp.ne.s32.totalorder %s112, %s115
    %p124 = scmp.eq.s32.totalorder %s18, 1
    %p125 = por %p123, %p124
    %p126 = scmp.ne.s32.totalorder %s115, %s116
    %p127 = scmp.eq.s32.totalorder %s18, 0
    %p128 = por %p126, %p127
    %p129 = scmp.ne.s32.totalorder %s115, %s116
    %p130 = scmp.eq.s32.totalorder %s19, 1
    %p131 = por %p129, %p130
    %p133 = scmp.ne.s32.totalorder %s116, %s132
    %p134 = scmp.eq.s32.totalorder %s19, 0
    %p135 = por %p133, %p134
    %s136 = ssub.s32 %s13, %s20
    %p137 = scmp.eq.s32.totalorder %s136, 0
    %s139 = sadd.s32 %s138, 1
    %s140 = scalar_select %p137, %s138, %s139
    %p143 = pneg %p137
    %p144 = scmp.eq.s32.totalorder %s13, 1
    %p145 = por %p143, %p144
    %p146 = scmp.ne.s32.totalorder %s138, %s141
    %p147 = scmp.eq.s32.totalorder %s13, 0
    %p148 = por %p146, %p147
    %p149 = scmp.ne.s32.totalorder %s138, %s141
    %p150 = scmp.eq.s32.totalorder %s18, 1
    %p151 = por %p149, %p150
    %p152 = scmp.ne.s32.totalorder %s141, %s142
    %p153 = scmp.eq.s32.totalorder %s18, 0
    %p154 = por %p152, %p153
    %p155 = scmp.ne.s32.totalorder %s141, %s142
    %p156 = scmp.eq.s32.totalorder %s19, 1
    %p157 = por %p155, %p156
    %p159 = scmp.ne.s32.totalorder %s142, %s158
    %p160 = scmp.eq.s32.totalorder %s19, 0
    %p161 = por %p159, %p160
    %s162 = ssub.s32 %s13, %s20
    %p163 = scmp.eq.s32.totalorder %s162, 0
    %s165 = sadd.s32 %s164, 1
    %s166 = scalar_select %p163, %s164, %s165
    %p169 = pneg %p163
    %p170 = scmp.eq.s32.totalorder %s13, 1
    %p171 = por %p169, %p170
    %p172 = scmp.ne.s32.totalorder %s164, %s167
    %p173 = scmp.eq.s32.totalorder %s13, 0
    %p174 = por %p172, %p173
    %p175 = scmp.ne.s32.totalorder %s164, %s167
    %p176 = scmp.eq.s32.totalorder %s18, 1
    %p177 = por %p175, %p176
    %p178 = scmp.ne.s32.totalorder %s167, %s168
    %p179 = scmp.eq.s32.totalorder %s18, 0
    %p180 = por %p178, %p179
    %p181 = scmp.ne.s32.totalorder %s167, %s168
    %p182 = scmp.eq.s32.totalorder %s19, 1
    %p183 = por %p181, %p182
    %p185 = scmp.ne.s32.totalorder %s168, %s184
    %p186 = scmp.eq.s32.totalorder %s19, 0
    %p187 = por %p185, %p186
    %p188 = scmp.le.s32.totalorder 1, %s13
    %p189 = scmp.lt.s32.totalorder %s13, 3
    %p190 = pnand %p188, %p189
    %p191 = pneg %p190
    // Predicated region
    $region9: #{resisc45_cnn_forward.6} parent=5 // pred_check
      _
    $region10: #{resisc45_cnn_forward.6} parent=5 // pred_check_branch
      %193 = sbr.rel (%p190) target = $region12
    $region11: #{resisc45_cnn_forward.6} parent=5 // pred_region
      %s194 = ssub.s32 %s13, 1
      // Predicated region
      $region13: #{resisc45_cnn_forward.6} parent=11 // pred_check
        %p195 = pneg %p60
      $region14: #{resisc45_cnn_forward.6} parent=11 // pred_check_branch
        %197 = sbr.rel (%p195) target = $region16
      $region15: #{resisc45_cnn_forward.6} parent=11 // pred_region
        _
      $region16: #{resisc45_cnn_forward.6} parent=11 // pred_fallthru
        _
      // Predicated region
      $region17: #{resisc45_cnn_forward.6} parent=11 // pred_check
        %p198 = pneg %p81
      $region18: #{resisc45_cnn_forward.6} parent=11 // pred_check_branch
        %200 = sbr.rel (%p198) target = $region20
      $region19: #{resisc45_cnn_forward.6} parent=11 // pred_region
        _
      $region20: #{resisc45_cnn_forward.6} parent=11 // pred_fallthru
        _
      // Predicated region
      $region21: #{resisc45_cnn_forward.6} parent=11 // pred_check
        %p201 = pneg %p102
      $region22: #{resisc45_cnn_forward.6} parent=11 // pred_check_branch
        %203 = sbr.rel (%p201) target = $region24
      $region23: #{resisc45_cnn_forward.6} parent=11 // pred_region
        _
      $region24: #{resisc45_cnn_forward.6} parent=11 // pred_fallthru
        _
    $region12: #{resisc45_cnn_forward.6} parent=5 // pred_fallthru
      _
    %p204 = scmp.lt.s32.totalorder %s13, 2
    // Predicated region
    $region25: #{resisc45_cnn_forward.6} parent=5 // pred_check
      %p205 = pneg %p204
    $region26: #{resisc45_cnn_forward.6} parent=5 // pred_check_branch
      %207 = sbr.rel (%p205) target = $region28
    $region27: #{resisc45_cnn_forward.6} parent=5 // pred_region
      // Predicated region
      $region29: #{resisc45_cnn_forward.6} parent=27 // pred_check
        %p208 = pneg %p33
      $region30: #{resisc45_cnn_forward.6} parent=27 // pred_check_branch
        %210 = sbr.rel (%p208) target = $region32
      $region31: #{resisc45_cnn_forward.6} parent=27 // pred_region
        %p211 = scmp.lt.s32.totalorder %s13, 1
        %s212 = scalar_select %p211, %s13, 1
        %s213 = smul.addr %s212, 4
        %s214 = smul.addr %s213, 8
        %s215 = scalar_lea.vmem %s0, %s214
      $region32: #{resisc45_cnn_forward.6} parent=27 // pred_fallthru
        _
    $region28: #{resisc45_cnn_forward.6} parent=5 // pred_fallthru
      _
    %p216 = scmp.le.s32.totalorder 1, %s13
    %p217 = scmp.lt.s32.totalorder %s13, 3
    %p218 = pnand %p216, %p217
    %p219 = pneg %p218
    // Predicated region
    $region33: #{resisc45_cnn_forward.6} parent=5 // pred_check
      _
    $region34: #{resisc45_cnn_forward.6} parent=5 // pred_check_branch
      %221 = sbr.rel (%p218) target = $region36
    $region35: #{resisc45_cnn_forward.6} parent=5 // pred_region
      %s222 = ssub.s32 %s13, 1
      %p223 = scmp.lt.s32.totalorder %s18, 1
      %s224 = scalar_select %p223, %s18, 1
      %s225 = smul.addr %s224, 4
      %s226 = smul.addr %s225, 8
      %s227 = scalar_lea.vmem %s0, %s226
      %p228 = pneg %p39
      %p229 = pneg %p36
      %p230 = pneg %p60
      %p231 = pneg %p57
      %p232 = pneg %p81
      %p233 = pneg %p78
      %p234 = pneg %p102
      %p235 = pneg %p99
      %p236 = pneg %p128
      %p237 = pneg %p125
      %p238 = scmp.lt.s32.totalorder %s18, 1
      %s239 = scalar_select %p238, %s18, 1
      %s240 = smul.addr %s239, 2
      %s241 = smul.addr %s240, 8
      %s242 = scalar_lea.vmem %s4, %s241
      %p243 = pneg %p154
      %p244 = pneg %p151
      %p245 = scmp.lt.s32.totalorder %s18, 1
      %s246 = scalar_select %p245, %s18, 1
      %s247 = smul.addr %s246, 2
      %s248 = smul.addr %s247, 8
      %s249 = scalar_lea.vmem %s5, %s248
      %p250 = pneg %p180
      %p251 = pneg %p177
      %p252 = scmp.lt.s32.totalorder %s18, 1
      %s253 = scalar_select %p252, %s18, 1
      %s254 = smul.addr %s253, 2
      %s255 = smul.addr %s254, 8
      %s256 = scalar_lea.vmem %s6, %s255
      %p257 = scmp.lt.s32.totalorder %s18, 1
      %s258 = scalar_select %p257, %s18, 1
      %s259 = smul.addr %s258, 4
      %s260 = smul.addr %s259, 8
      %s261 = scalar_lea.vmem %s0, %s260
      %p262 = scmp.lt.s32.totalorder %s18, 1
      %s263 = scalar_select %p262, %s18, 1
      %s264 = smul.addr %s263, 2
      %s265 = smul.addr %s264, 8
      %s266 = scalar_lea.vmem %s4, %s265
      %p267 = scmp.lt.s32.totalorder %s18, 1
      %s268 = scalar_select %p267, %s18, 1
      %s269 = smul.addr %s268, 2
      %s270 = smul.addr %s269, 8
      %s271 = scalar_lea.vmem %s5, %s270
      %p272 = scmp.lt.s32.totalorder %s18, 1
      %s273 = scalar_select %p272, %s18, 1
      %s274 = smul.addr %s273, 2
      %s275 = smul.addr %s274, 8
      %s276 = scalar_lea.vmem %s6, %s275
      %v277 = vld [vmem:[%s1] sm:$0xff]
      %v278 = vld [vmem:[%s1 + $0x8] sm:$0xff]
      %v279 = vld [vmem:[%s1 + $0x10] sm:$0xff]
      %v280 = vld [vmem:[%s1 + $0x18] sm:$0xff]
      %v281 = vld [vmem:[%s1 + $0x20] sm:$0xff]
      %v282 = vld [vmem:[%s1 + $0x28] sm:$0xff]
      %v283 = vld [vmem:[%s1 + $0x30] sm:$0xff]
      %v284 = vld [vmem:[%s1 + $0x38] sm:$0xff]
      %v285 = vld [vmem:[%s2] sm:$0xff]
      %v286 = vld [vmem:[%s2 + $0x8] sm:$0xff]
      %v287 = vld [vmem:[%s2 + $0x10] sm:$0xff]
      %v288 = vld [vmem:[%s2 + $0x18] sm:$0xff]
      %v289 = vld [vmem:[%s2 + $0x20] sm:$0xff]
      %v290 = vld [vmem:[%s2 + $0x28] sm:$0xff]
      %v291 = vld [vmem:[%s2 + $0x30] sm:$0xff]
      %v292 = vld [vmem:[%s2 + $0x38] sm:$0xff]
      %v293 = vld [vmem:[%s261] sm:$0xff]
      %vm294 = vcmask 588800
      %295 = vst.msk [vmem:[#allocation2] sm:$0xff] %vm294, %v293
      %v296 = vld [vmem:[%s261] sm:$0xff]
      %298 = vrot.lane.b32.xlu0 %v296, 127
      %v299 = vpop.permute.xlu0 %298
      %301 = vst.msk [vmem:[#allocation2 + $0x8] sm:$0xff] %vm294, %v299
      %v302 = vld [vmem:[%s261] sm:$0xff]
      %304 = vrot.lane.b32.xlu0 %v302, 119
      %v305 = vpop.permute.xlu0 %304
      %307 = vst.msk [vmem:[#allocation2 + $0x10] sm:$0xff] %vm294, %v305
      %v308 = vld [vmem:[%s261] sm:$0xff]
      %310 = vrot.lane.b32.xlu0 %v308, 118
      %v311 = vpop.permute.xlu0 %310
      %313 = vst.msk [vmem:[#allocation2 + $0x18] sm:$0xff] %vm294, %v311
      %s314 = scalar_lea.vmem %s261, 8
      %v315 = vld [vmem:[%s314] sm:$0xff]
      %316 = vst.msk [vmem:[#allocation2 + $0x20] sm:$0xff] %vm294, %v315
      %v317 = vld [vmem:[%s314] sm:$0xff]
      %319 = vrot.lane.b32.xlu0 %v317, 127
      %v320 = vpop.permute.xlu0 %319
      %322 = vst.msk [vmem:[#allocation2 + $0x28] sm:$0xff] %vm294, %v320
      %v323 = vld [vmem:[%s314] sm:$0xff]
      %325 = vrot.lane.b32.xlu0 %v323, 119
      %v326 = vpop.permute.xlu0 %325
      %328 = vst.msk [vmem:[#allocation2 + $0x30] sm:$0xff] %vm294, %v326
      %v329 = vld [vmem:[%s314] sm:$0xff]
      %331 = vrot.lane.b32.xlu0 %v329, 118
      %v332 = vpop.permute.xlu0 %331
      %334 = vst.msk [vmem:[#allocation2 + $0x38] sm:$0xff] %vm294, %v332
      %s335 = scalar_lea.vmem %s261, 16
      %v336 = vld [vmem:[%s335] sm:$0xff]
      %337 = vst.msk [vmem:[#allocation2 + $0x40] sm:$0xff] %vm294, %v336
      %v338 = vld [vmem:[%s335] sm:$0xff]
      %340 = vrot.lane.b32.xlu0 %v338, 127
      %v341 = vpop.permute.xlu0 %340
      %343 = vst.msk [vmem:[#allocation2 + $0x48] sm:$0xff] %vm294, %v341
      %v344 = vld [vmem:[%s335] sm:$0xff]
      %346 = vrot.lane.b32.xlu0 %v344, 119
      %v347 = vpop.permute.xlu0 %346
      %349 = vst.msk [vmem:[#allocation2 + $0x50] sm:$0xff] %vm294, %v347
      %v350 = vld [vmem:[%s335] sm:$0xff]
      %352 = vrot.lane.b32.xlu0 %v350, 118
      %v353 = vpop.permute.xlu0 %352
      %355 = vst.msk [vmem:[#allocation2 + $0x58] sm:$0xff] %vm294, %v353
      %s356 = scalar_lea.vmem %s261, 24
      %v357 = vld [vmem:[%s356] sm:$0xff]
      %358 = vst.msk [vmem:[#allocation2 + $0x60] sm:$0xff] %vm294, %v357
      %v359 = vld [vmem:[%s356] sm:$0xff]
      %361 = vrot.lane.b32.xlu0 %v359, 127
      %v362 = vpop.permute.xlu0 %361
      %364 = vst.msk [vmem:[#allocation2 + $0x68] sm:$0xff] %vm294, %v362
      %v365 = vld [vmem:[%s356] sm:$0xff]
      %367 = vrot.lane.b32.xlu0 %v365, 119
      %v368 = vpop.permute.xlu0 %367
      %370 = vst.msk [vmem:[#allocation2 + $0x70] sm:$0xff] %vm294, %v368
      %v371 = vld [vmem:[%s356] sm:$0xff]
      %373 = vrot.lane.b32.xlu0 %v371, 118
      %v374 = vpop.permute.xlu0 %373
      %376 = vst.msk [vmem:[#allocation2 + $0x78] sm:$0xff] %vm294, %v374
      %v377 = vld [vmem:[#allocation2] sm:$0xff]
      %v378 = vld [vmem:[#allocation2 + $0x8] sm:$0xff]
      %v379 = vld [vmem:[#allocation2 + $0x10] sm:$0xff]
      %v380 = vld [vmem:[#allocation2 + $0x18] sm:$0xff]
      %v381 = vld [vmem:[#allocation2 + $0x20] sm:$0xff]
      %v382 = vld [vmem:[#allocation2 + $0x28] sm:$0xff]
      %v383 = vld [vmem:[#allocation2 + $0x30] sm:$0xff]
      %v384 = vld [vmem:[#allocation2 + $0x38] sm:$0xff]
      %v385 = vld [vmem:[#allocation2 + $0x40] sm:$0xff]
      %v386 = vld [vmem:[#allocation2 + $0x48] sm:$0xff]
      %v387 = vld [vmem:[#allocation2 + $0x50] sm:$0xff]
      %v388 = vld [vmem:[#allocation2 + $0x58] sm:$0xff]
      %v389 = vld [vmem:[#allocation2 + $0x60] sm:$0xff]
      %v390 = vld [vmem:[#allocation2 + $0x68] sm:$0xff]
      %v391 = vld [vmem:[#allocation2 + $0x70] sm:$0xff]
      %v392 = vld [vmem:[#allocation2 + $0x78] sm:$0xff]
      %394 = vset.pattern.permute.xlu0 0
      %395 = vperm.xlu0 %394, %v285
      %v396 = vpop.permute.xlu0 %395
      %399 = vset.pattern.permute.xlu0 0
      %400 = vperm.xlu0 %399, %v286
      %v401 = vpop.permute.xlu0 %400
      %404 = vset.pattern.permute.xlu0 0
      %405 = vperm.xlu0 %404, %v287
      %v406 = vpop.permute.xlu0 %405
      %409 = vset.pattern.permute.xlu0 0
      %410 = vperm.xlu0 %409, %v288
      %v411 = vpop.permute.xlu0 %410
      %414 = vset.pattern.permute.xlu0 0
      %415 = vperm.xlu0 %414, %v289
      %v416 = vpop.permute.xlu0 %415
      %419 = vset.pattern.permute.xlu0 0
      %420 = vperm.xlu0 %419, %v290
      %v421 = vpop.permute.xlu0 %420
      %424 = vset.pattern.permute.xlu0 0
      %425 = vperm.xlu0 %424, %v291
      %v426 = vpop.permute.xlu0 %425
      %429 = vset.pattern.permute.xlu0 0
      %430 = vperm.xlu0 %429, %v292
      %v431 = vpop.permute.xlu0 %430
      %433 = vmatprep.subr.mxu0 0.0
      %434 = vmatpush1.msra.mxu0 %v392
      %435 = vmatprep.subr.mxu0 0.0
      %436 = vmatpush1.msra.mxu0 %v391
      %437 = vmatprep.subr.mxu0 0.0
      %438 = vmatpush1.msra.mxu0 %v390
      %439 = vmatprep.subr.mxu0 0.0
      %440 = vmatpush1.msra.mxu0 %v389
      %441 = vmatprep.subr.mxu0 0.0
      %442 = vmatpush1.msra.mxu0 %v388
      %443 = vmatprep.subr.mxu0 0.0
      %444 = vmatpush1.msra.mxu0 %v387
      %445 = vmatprep.subr.mxu0 0.0
      %446 = vmatpush1.msra.mxu0 %v386
      %447 = vmatprep.subr.mxu0 0.0
      %448 = vmatpush1.msra.mxu0 %v385
      %449 = vmatprep.subr.mxu0 0.0
      %450 = vmatpush1.msra.mxu0 %v384
      %451 = vmatprep.subr.mxu0 0.0
      %452 = vmatpush1.msra.mxu0 %v383
      %453 = vmatprep.subr.mxu0 0.0
      %454 = vmatpush1.msra.mxu0 %v382
      %455 = vmatprep.subr.mxu0 0.0
      %456 = vmatpush1.msra.mxu0 %v381
      %457 = vmatprep.subr.mxu0 0.0
      %458 = vmatpush1.msra.mxu0 %v380
      %459 = vmatprep.subr.mxu0 0.0
      %460 = vmatpush1.msra.mxu0 %v379
      %461 = vmatprep.subr.mxu0 0.0
      %462 = vmatpush1.msra.mxu0 %v378
      %463 = vmatprep.subr.mxu0 0.0
      %464 = vmatpush1.msra.mxu0 %v377
      %465 = vmatprep.subr.mxu0 0.0
      %466 = vmatpush2.msra.mxu0 0.0
      %467 = vmatprep.subr.mxu0 0.0
      %468 = vmatpush2.msra.mxu0 0.0
      %469 = vmatprep.subr.mxu0 0.0
      %470 = vmatpush2.msra.mxu0 0.0
      %471 = vmatprep.subr.mxu0 0.0
      %472 = vmatpush2.msra.mxu0 0.0
      %473 = vmatprep.subr.mxu0 0.0
      %474 = vmatpush2.msra.mxu0 0.0
      %475 = vmatprep.subr.mxu0 0.0
      %476 = vmatpush2.msra.mxu0 0.0
      %477 = vmatprep.subr.mxu0 0.0
      %478 = vmatpush2.msra.mxu0 0.0
      %479 = vmatprep.subr.mxu0 0.0
      %480 = vmatpush2.msra.mxu0 0.0
      %481 = vmatprep.subr.mxu0 0.0
      %482 = vmatpush2.msra.mxu0 0.0
      %483 = vmatprep.subr.mxu0 0.0
      %484 = vmatpush2.msra.mxu0 0.0
      %485 = vmatprep.subr.mxu0 0.0
      %486 = vmatpush2.msra.mxu0 0.0
      %487 = vmatprep.subr.mxu0 0.0
      %488 = vmatpush2.msra.mxu0 0.0
      %489 = vmatprep.subr.mxu0 0.0
      %490 = vmatpush2.msra.mxu0 0.0
      %491 = vmatprep.subr.mxu0 0.0
      %492 = vmatpush2.msra.mxu0 0.0
      %493 = vmatprep.subr.mxu0 0.0
      %494 = vmatpush2.msra.mxu0 0.0
      %495 = vmatprep.subr.mxu0 0.0
      %496 = vmatpush2.msra.mxu0 0.0
      %497 = vmatprep.mubr.f32.mxu0 0.0
      %498 = vmatmul.mubr.f32.gmra.mxu0 %v277
      %v499 = vpop.f32.mrf.mxu0
      %v500 = vadd.f32 %v396, %v499
      %v501 = vpop.f32.mrf.mxu0
      %502 = vmatprep.mubr.f32.mxu0 0.0
      %503 = vmatmul.mubr.f32.gmra.mxu0 %v278
      %v504 = vpop.f32.mrf.mxu0
      %v505 = vadd.f32 %v401, %v504
      %v506 = vpop.f32.mrf.mxu0
      %507 = vmatprep.mubr.f32.mxu0 0.0
      %508 = vmatmul.mubr.f32.gmra.mxu0 %v279
      %v509 = vpop.f32.mrf.mxu0
      %v510 = vadd.f32 %v406, %v509
      %v511 = vpop.f32.mrf.mxu0
      %512 = vmatprep.mubr.f32.mxu0 0.0
      %513 = vmatmul.mubr.f32.gmra.mxu0 %v280
      %v514 = vpop.f32.mrf.mxu0
      %v515 = vadd.f32 %v411, %v514
      %v516 = vpop.f32.mrf.mxu0
      %517 = vmatprep.mubr.f32.mxu0 0.0
      %518 = vmatmul.mubr.f32.gmra.mxu0 %v281
      %v519 = vpop.f32.mrf.mxu0
      %v520 = vadd.f32 %v416, %v519
      %v521 = vpop.f32.mrf.mxu0
      %522 = vmatprep.mubr.f32.mxu0 0.0
      %523 = vmatmul.mubr.f32.gmra.mxu0 %v282
      %v524 = vpop.f32.mrf.mxu0
      %v525 = vadd.f32 %v421, %v524
      %v526 = vpop.f32.mrf.mxu0
      %527 = vmatprep.mubr.f32.mxu0 0.0
      %528 = vmatmul.mubr.f32.gmra.mxu0 %v283
      %v529 = vpop.f32.mrf.mxu0
      %v530 = vadd.f32 %v426, %v529
      %v531 = vpop.f32.mrf.mxu0
      %532 = vmatprep.mubr.f32.mxu0 0.0
      %533 = vmatmul.mubr.f32.gmra.mxu0 %v284
      %v534 = vpop.f32.mrf.mxu0
      %v535 = vadd.f32 %v431, %v534
      %v536 = vpop.f32.mrf.mxu0
      %537 = vdwg.mxu0
      %v538 = vmul.f32 %v500, 0.5
      %v539 = vmul.f32 %v505, 0.5
      %v540 = vmul.f32 %v510, 0.5
      %v541 = vmul.f32 %v515, 0.5
      %v542 = vmul.f32 %v520, 0.5
      %v543 = vmul.f32 %v525, 0.5
      %v544 = vmul.f32 %v530, 0.5
      %v545 = vmul.f32 %v535, 0.5
      %v546 = vmul.f32 %v500, 0.70710677
      %v547 = vmul.f32 %v505, 0.70710677
      %v548 = vmul.f32 %v510, 0.70710677
      %v549 = vmul.f32 %v515, 0.70710677
      %v550 = vmul.f32 %v520, 0.70710677
      %v551 = vmul.f32 %v525, 0.70710677
      %v552 = vmul.f32 %v530, 0.70710677
      %v553 = vmul.f32 %v535, 0.70710677
      %v554 = vmax.f32 %v546, -4.0
      %v555 = vmax.f32 %v547, -4.0
      %v556 = vmax.f32 %v548, -4.0
      %v557 = vmax.f32 %v549, -4.0
      %v558 = vmax.f32 %v550, -4.0
      %v559 = vmax.f32 %v551, -4.0
      %v560 = vmax.f32 %v552, -4.0
      %v561 = vmax.f32 %v553, -4.0
      %v562 = vmin.f32 %v554, 4.0
      %v563 = vmin.f32 %v555, 4.0
      %v564 = vmin.f32 %v556, 4.0
      %v565 = vmin.f32 %v557, 4.0
      %v566 = vmin.f32 %v558, 4.0
      %v567 = vmin.f32 %v559, 4.0
      %v568 = vmin.f32 %v560, 4.0
      %v569 = vmin.f32 %v561, 4.0
      %v570 = vmul.f32 %v562, %v562
      %v571 = vmul.f32 %v563, %v563
      %v572 = vmul.f32 %v564, %v564
      %v573 = vmul.f32 %v565, %v565
      %v574 = vmul.f32 %v566, %v566
      %v575 = vmul.f32 %v567, %v567
      %v576 = vmul.f32 %v568, %v568
      %v577 = vmul.f32 %v569, %v569
      %v578 = vmul.f32 %v570, 0.00022905065
      %v579 = vmul.f32 %v571, 0.00022905065
      %v580 = vmul.f32 %v572, 0.00022905065
      %v581 = vmul.f32 %v573, 0.00022905065
      %v582 = vmul.f32 %v574, 0.00022905065
      %v583 = vmul.f32 %v575, 0.00022905065
      %v584 = vmul.f32 %v576, 0.00022905065
      %v585 = vmul.f32 %v577, 0.00022905065
      %v586 = vadd.f32 %v578, 0.003408291
      %v587 = vadd.f32 %v579, 0.003408291
      %v588 = vadd.f32 %v580, 0.003408291
      %v589 = vadd.f32 %v581, 0.003408291
      %v590 = vadd.f32 %v582, 0.003408291
      %v591 = vadd.f32 %v583, 0.003408291
      %v592 = vadd.f32 %v584, 0.003408291
      %v593 = vadd.f32 %v585, 0.003408291
      %v594 = vmul.f32 %v586, %v570
      %v595 = vmul.f32 %v587, %v571
      %v596 = vmul.f32 %v588, %v572
      %v597 = vmul.f32 %v589, %v573
      %v598 = vmul.f32 %v590, %v574
      %v599 = vmul.f32 %v591, %v575
      %v600 = vmul.f32 %v592, %v576
      %v601 = vmul.f32 %v593, %v577
      %v602 = vadd.f32 %v594, 0.050955694
      %v603 = vadd.f32 %v595, 0.050955694
      %v604 = vadd.f32 %v596, 0.050955694
      %v605 = vadd.f32 %v597, 0.050955694
      %v606 = vadd.f32 %v598, 0.050955694
      %v607 = vadd.f32 %v599, 0.050955694
      %v608 = vadd.f32 %v600, 0.050955694
      %v609 = vadd.f32 %v601, 0.050955694
      %v610 = vmul.f32 %v602, %v570
      %v611 = vmul.f32 %v603, %v571
      %v612 = vmul.f32 %v604, %v572
      %v613 = vmul.f32 %v605, %v573
      %v614 = vmul.f32 %v606, %v574
      %v615 = vmul.f32 %v607, %v575
      %v616 = vmul.f32 %v608, %v576
      %v617 = vmul.f32 %v609, %v577
      %v618 = vadd.f32 %v610, 0.18520832
      %v619 = vadd.f32 %v611, 0.18520832
      %v620 = vadd.f32 %v612, 0.18520832
      %v621 = vadd.f32 %v613, 0.18520832
      %v622 = vadd.f32 %v614, 0.18520832
      %v623 = vadd.f32 %v615, 0.18520832
      %v624 = vadd.f32 %v616, 0.18520832
      %v625 = vadd.f32 %v617, 0.18520832
      %v626 = vmul.f32 %v618, %v570
      %v627 = vmul.f32 %v619, %v571
      %v628 = vmul.f32 %v620, %v572
      %v629 = vmul.f32 %v621, %v573
      %v630 = vmul.f32 %v622, %v574
      %v631 = vmul.f32 %v623, %v575
      %v632 = vmul.f32 %v624, %v576
      %v633 = vmul.f32 %v625, %v577
      %v634 = vadd.f32 %v626, 1.1283791
      %v635 = vadd.f32 %v627, 1.1283791
      %v636 = vadd.f32 %v628, 1.1283791
      %v637 = vadd.f32 %v629, 1.1283791
      %v638 = vadd.f32 %v630, 1.1283791
      %v639 = vadd.f32 %v631, 1.1283791
      %v640 = vadd.f32 %v632, 1.1283791
      %v641 = vadd.f32 %v633, 1.1283791
      %v642 = vmul.f32 %v570, -1.1791603e-07
      %v643 = vmul.f32 %v571, -1.1791603e-07
      %v644 = vmul.f32 %v572, -1.1791603e-07
      %v645 = vmul.f32 %v573, -1.1791603e-07
      %v646 = vmul.f32 %v574, -1.1791603e-07
      %v647 = vmul.f32 %v575, -1.1791603e-07
      %v648 = vmul.f32 %v576, -1.1791603e-07
      %v649 = vmul.f32 %v577, -1.1791603e-07
      %v650 = vadd.f32 %v642, 2.3547966e-05
      %v651 = vadd.f32 %v643, 2.3547966e-05
      %v652 = vadd.f32 %v644, 2.3547966e-05
      %v653 = vadd.f32 %v645, 2.3547966e-05
      %v654 = vadd.f32 %v646, 2.3547966e-05
      %v655 = vadd.f32 %v647, 2.3547966e-05
      %v656 = vadd.f32 %v648, 2.3547966e-05
      %v657 = vadd.f32 %v649, 2.3547966e-05
      %v658 = vmul.f32 %v650, %v570
      %v659 = vmul.f32 %v651, %v571
      %v660 = vmul.f32 %v652, %v572
      %v661 = vmul.f32 %v653, %v573
      %v662 = vmul.f32 %v654, %v574
      %v663 = vmul.f32 %v655, %v575
      %v664 = vmul.f32 %v656, %v576
      %v665 = vmul.f32 %v657, %v577
      %v666 = vadd.f32 %v658, 0.0010179626
      %v667 = vadd.f32 %v659, 0.0010179626
      %v668 = vadd.f32 %v660, 0.0010179626
      %v669 = vadd.f32 %v661, 0.0010179626
      %v670 = vadd.f32 %v662, 0.0010179626
      %v671 = vadd.f32 %v663, 0.0010179626
      %v672 = vadd.f32 %v664, 0.0010179626
      %v673 = vadd.f32 %v665, 0.0010179626
      %v674 = vmul.f32 %v666, %v570
      %v675 = vmul.f32 %v667, %v571
      %v676 = vmul.f32 %v668, %v572
      %v677 = vmul.f32 %v669, %v573
      %v678 = vmul.f32 %v670, %v574
      %v679 = vmul.f32 %v671, %v575
      %v680 = vmul.f32 %v672, %v576
      %v681 = vmul.f32 %v673, %v577
      %v682 = vadd.f32 %v674, 0.01407047
      %v683 = vadd.f32 %v675, 0.01407047
      %v684 = vadd.f32 %v676, 0.01407047
      %v685 = vadd.f32 %v677, 0.01407047
      %v686 = vadd.f32 %v678, 0.01407047
      %v687 = vadd.f32 %v679, 0.01407047
      %v688 = vadd.f32 %v680, 0.01407047
      %v689 = vadd.f32 %v681, 0.01407047
      %v690 = vmul.f32 %v682, %v570
      %v691 = vmul.f32 %v683, %v571
      %v692 = vmul.f32 %v684, %v572
      %v693 = vmul.f32 %v685, %v573
      %v694 = vmul.f32 %v686, %v574
      %v695 = vmul.f32 %v687, %v575
      %v696 = vmul.f32 %v688, %v576
      %v697 = vmul.f32 %v689, %v577
      %v698 = vadd.f32 %v690, 0.11098505
      %v699 = vadd.f32 %v691, 0.11098505
      %v700 = vadd.f32 %v692, 0.11098505
      %v701 = vadd.f32 %v693, 0.11098505
      %v702 = vadd.f32 %v694, 0.11098505
      %v703 = vadd.f32 %v695, 0.11098505
      %v704 = vadd.f32 %v696, 0.11098505
      %v705 = vadd.f32 %v697, 0.11098505
      %v706 = vmul.f32 %v698, %v570
      %v707 = vmul.f32 %v699, %v571
      %v708 = vmul.f32 %v700, %v572
      %v709 = vmul.f32 %v701, %v573
      %v710 = vmul.f32 %v702, %v574
      %v711 = vmul.f32 %v703, %v575
      %v712 = vmul.f32 %v704, %v576
      %v713 = vmul.f32 %v705, %v577
      %v714 = vadd.f32 %v706, 0.49746925
      %v715 = vadd.f32 %v707, 0.49746925
      %v716 = vadd.f32 %v708, 0.49746925
      %v717 = vadd.f32 %v709, 0.49746925
      %v718 = vadd.f32 %v710, 0.49746925
      %v719 = vadd.f32 %v711, 0.49746925
      %v720 = vadd.f32 %v712, 0.49746925
      %v721 = vadd.f32 %v713, 0.49746925
      %v722 = vmul.f32 %v714, %v570
      %v723 = vmul.f32 %v715, %v571
      %v724 = vmul.f32 %v716, %v572
      %v725 = vmul.f32 %v717, %v573
      %v726 = vmul.f32 %v718, %v574
      %v727 = vmul.f32 %v719, %v575
      %v728 = vmul.f32 %v720, %v576
      %v729 = vmul.f32 %v721, %v577
      %v730 = vadd.f32 %v722, 1.0
      %v731 = vadd.f32 %v723, 1.0
      %v732 = vadd.f32 %v724, 1.0
      %v733 = vadd.f32 %v725, 1.0
      %v734 = vadd.f32 %v726, 1.0
      %v735 = vadd.f32 %v727, 1.0
      %v736 = vadd.f32 %v728, 1.0
      %v737 = vadd.f32 %v729, 1.0
      %v738 = vmul.f32 %v562, %v634
      %v739 = vmul.f32 %v563, %v635
      %v740 = vmul.f32 %v564, %v636
      %v741 = vmul.f32 %v565, %v637
      %v742 = vmul.f32 %v566, %v638
      %v743 = vmul.f32 %v567, %v639
      %v744 = vmul.f32 %v568, %v640
      %v745 = vmul.f32 %v569, %v641
      %v746 = vrcp.pop %v730
      %v747 = vrcp.pop %v731
      %v748 = vrcp.pop %v732
      %v749 = vrcp.pop %v733
      %v750 = vrcp.pop %v734
      %v751 = vrcp.pop %v735
      %v752 = vrcp.pop %v736
      %v753 = vrcp.pop %v737
      %v754 = vmul.f32 %v738, %v746
      %v755 = vmul.f32 %v739, %v747
      %v756 = vmul.f32 %v740, %v748
      %v757 = vmul.f32 %v741, %v749
      %v758 = vmul.f32 %v742, %v750
      %v759 = vmul.f32 %v743, %v751
      %v760 = vmul.f32 %v744, %v752
      %v761 = vmul.f32 %v745, %v753
      %v762 = vadd.f32 %v754, 1.0
      %v763 = vadd.f32 %v755, 1.0
      %v764 = vadd.f32 %v756, 1.0
      %v765 = vadd.f32 %v757, 1.0
      %v766 = vadd.f32 %v758, 1.0
      %v767 = vadd.f32 %v759, 1.0
      %v768 = vadd.f32 %v760, 1.0
      %v769 = vadd.f32 %v761, 1.0
      %v770 = vmul.f32 %v538, %v762
      %v771 = vmul.f32 %v539, %v763
      %v772 = vmul.f32 %v540, %v764
      %v773 = vmul.f32 %v541, %v765
      %v774 = vmul.f32 %v542, %v766
      %v775 = vmul.f32 %v543, %v767
      %v776 = vmul.f32 %v544, %v768
      %v777 = vmul.f32 %v545, %v769
      %v778 = vmax.f32 %v770, %v772
      %v779 = vmax.f32 %v771, %v773
      %v780 = vmax.f32 %v774, %v776
      %v781 = vmax.f32 %v775, %v777
      %v782 = vmax.f32 %v778, %v780
      %v783 = vmax.f32 %v779, %v781
      %784 = vst.msk [vmem:[%s266] sm:$0xff] %vm294, %v782
      %785 = vst.msk [vmem:[%s266 + $0x8] sm:$0xff] %vm294, %v783
      %v786 = vld [vmem:[%s3] sm:$0x1]
      %v788 = vlaneseq
      %v789 = vshrl.u32 %v788, 7
      %v790 = vsub.s32 0, %v789
      %v791 = vrot.slane %v786, %v790
      %v793 = vmul.f32 %v782, %v791
      %v794 = vmul.f32 %v783, %v791
      %v795 = vsel %vm294, %v793, 0.0
      %796 = vadd.xlane.f32.xlu0 %v795
      %v797 = vpop.xlane.xlu0 %796
      %v798 = vsel %vm294, %v794, 0.0
      %799 = vadd.xlane.f32.xlu0 %v798
      %v800 = vpop.xlane.xlu0 %799
      %v801 = vadd.f32 %v797, 0.0
      %v802 = vadd.f32 %v800, 0.0
      %v803 = vmul.f32 %v782, %v782
      %v804 = vmul.f32 %v783, %v783
      %v805 = vmul.f32 %v803, %v791
      %v806 = vmul.f32 %v804, %v791
      %v807 = vsel %vm294, %v805, 0.0
      %808 = vadd.xlane.f32.xlu0 %v807
      %v809 = vpop.xlane.xlu0 %808
      %v810 = vsel %vm294, %v806, 0.0
      %811 = vadd.xlane.f32.xlu0 %v810
      %v812 = vpop.xlane.xlu0 %811
      %v813 = vadd.f32 %v809, 0.0
      %v814 = vadd.f32 %v812, 0.0
      %vm815 = vcmask 7168
      %816 = vst.msk [vmem:[%s271] sm:$0xff] %vm815, %v801
      %817 = vst.msk [vmem:[%s271 + $0x8] sm:$0xff] %vm815, %v802
      %818 = vst.msk [vmem:[%s276] sm:$0xff] %vm815, %v813
      %819 = vst.msk [vmem:[%s276 + $0x8] sm:$0xff] %vm815, %v814
      %p820 = scmp.lt.s32.totalorder %s18, 1
      %s821 = scalar_select %p820, %s18, 1
      %s822 = smul.addr %s821, 2
      %s823 = smul.addr %s822, 8
      %s824 = scalar_lea.vmem %s4, %s823
      %p825 = scmp.lt.s32.totalorder %s18, 1
      %s826 = scalar_select %p825, %s18, 1
      %s827 = smul.addr %s826, 2
      %s828 = smul.addr %s827, 8
      %s829 = scalar_lea.vmem %s5, %s828
      %p830 = scmp.lt.s32.totalorder %s18, 1
      %s831 = scalar_select %p830, %s18, 1
      %s832 = smul.addr %s831, 2
      %s833 = smul.addr %s832, 8
      %s834 = scalar_lea.vmem %s6, %s833
      // Predicated region
      $region37: #{resisc45_cnn_forward.6} parent=35 // pred_check
        %p835 = pneg %p125
      $region38: #{resisc45_cnn_forward.6} parent=35 // pred_check_branch
        %837 = sbr.rel (%p835) target = $region40
      $region39: #{resisc45_cnn_forward.6} parent=35 // pred_region
        _
      $region40: #{resisc45_cnn_forward.6} parent=35 // pred_fallthru
        _
      // Predicated region
      $region41: #{resisc45_cnn_forward.6} parent=35 // pred_check
        %p838 = pneg %p151
      $region42: #{resisc45_cnn_forward.6} parent=35 // pred_check_branch
        %840 = sbr.rel (%p838) target = $region44
      $region43: #{resisc45_cnn_forward.6} parent=35 // pred_region
        _
      $region44: #{resisc45_cnn_forward.6} parent=35 // pred_fallthru
        _
      // Predicated region
      $region45: #{resisc45_cnn_forward.6} parent=35 // pred_check
        %p841 = pneg %p177
      $region46: #{resisc45_cnn_forward.6} parent=35 // pred_check_branch
        %843 = sbr.rel (%p841) target = $region48
      $region47: #{resisc45_cnn_forward.6} parent=35 // pred_region
        _
      $region48: #{resisc45_cnn_forward.6} parent=35 // pred_fallthru
        _
    $region36: #{resisc45_cnn_forward.6} parent=5 // pred_fallthru
      _
    %p844 = scmp.le.s32.totalorder 2, %s13
    // Predicated region
    $region49: #{resisc45_cnn_forward.6} parent=5 // pred_check
      %p845 = pneg %p844
    $region50: #{resisc45_cnn_forward.6} parent=5 // pred_check_branch
      %847 = sbr.rel (%p845) target = $region52
    $region51: #{resisc45_cnn_forward.6} parent=5 // pred_region
      %s848 = ssub.s32 %s13, 2
      // Predicated region
      $region53: #{resisc45_cnn_forward.6} parent=51 // pred_check
        %p849 = pneg %p131
      $region54: #{resisc45_cnn_forward.6} parent=51 // pred_check_branch
        %851 = sbr.rel (%p849) target = $region56
      $region55: #{resisc45_cnn_forward.6} parent=51 // pred_region
        %p852 = scmp.lt.s32.totalorder %s19, 1
        %s853 = scalar_select %p852, %s19, 1
        %s854 = smul.addr %s853, 2
        %s855 = smul.addr %s854, 8
        %s856 = scalar_lea.vmem %s4, %s855
      $region56: #{resisc45_cnn_forward.6} parent=51 // pred_fallthru
        _
      // Predicated region
      $region57: #{resisc45_cnn_forward.6} parent=51 // pred_check
        %p857 = pneg %p157
      $region58: #{resisc45_cnn_forward.6} parent=51 // pred_check_branch
        %859 = sbr.rel (%p857) target = $region60
      $region59: #{resisc45_cnn_forward.6} parent=51 // pred_region
        %p860 = scmp.lt.s32.totalorder %s19, 1
        %s861 = scalar_select %p860, %s19, 1
        %s862 = smul.addr %s861, 2
        %s863 = smul.addr %s862, 8
        %s864 = scalar_lea.vmem %s5, %s863
      $region60: #{resisc45_cnn_forward.6} parent=51 // pred_fallthru
        _
      // Predicated region
      $region61: #{resisc45_cnn_forward.6} parent=51 // pred_check
        %p865 = pneg %p183
      $region62: #{resisc45_cnn_forward.6} parent=51 // pred_check_branch
        %867 = sbr.rel (%p865) target = $region64
      $region63: #{resisc45_cnn_forward.6} parent=51 // pred_region
        %p868 = scmp.lt.s32.totalorder %s19, 1
        %s869 = scalar_select %p868, %s19, 1
        %s870 = smul.addr %s869, 2
        %s871 = smul.addr %s870, 8
        %s872 = scalar_lea.vmem %s6, %s871
      $region64: #{resisc45_cnn_forward.6} parent=51 // pred_fallthru
        _
    $region52: #{resisc45_cnn_forward.6} parent=5 // pred_fallthru
      _
  $region6: #{resisc45_cnn_forward.6} parent=0 // loop_footer
    %s17 = sadd.s32 1, %s13
  $region7: #{resisc45_cnn_forward.6} parent=0 // loop_footer_branch
    %12 = sbr.rel target = $region3
  $region8: #{resisc45_cnn_forward.6} parent=0 // loop_exit
    _

// kernel: resisc45_cnn_forward.8
$region0: #{resisc45_cnn_forward.8}
  #allocation0 [shape = 'u32[]', space=smem, size = 0x4, offset = 0x4, fixed_abs, tag = 'smem constant byte address 0x4 - core index']
  #allocation1 [shape = 'u32[144,128]{1,0:T(1,128)}', space=vmem, size = 0x12000, scoped, tag = 'internal scratch']
  #allocation2 [shape = 'f32[256,20]{1,0:T(8,128)}', space=vmem, size = 0x20000, scoped, tag = 'scratch operand']
  %s0 = inlined_call_operand.vmem [shape: f32[2,4,16,128], index: 0, kind: input, shape index: {}]
  %s1 = inlined_call_operand.vmem [shape: f32[128,256], index: 1, kind: input, shape index: {}]
  %s2 = inlined_call_operand.vmem [shape: f32[128,1], index: 2, kind: input, shape index: {}]
  %s3 = inlined_call_operand.vmem [shape: f32[1,20], index: 3, kind: input, shape index: {}]
  %s4 = inlined_call_operand.vmem [shape: f32[2,32,20], index: 4, kind: output, shape index: {0}]
  %s5 = inlined_call_operand.vmem [shape: f32[2,32,1], index: 5, kind: output, shape index: {1}]
  %s6 = inlined_call_operand.vmem [shape: f32[2,32,1], index: 6, kind: output, shape index: {2}]
  %7 = xla_tuple %s4, %s5, %s6
  %s8 = sld [smem:[#allocation0]]
  $region65: #{resisc45_cnn_forward.8} parent=0
    _
  %s10 = ssub.s32 1, %s8
  %s11 = scalar_select 0, %s10, %s8
  loop: start=0, step=1, limit=4
  $region2: #{resisc45_cnn_forward.8} parent=0 // loop_pre_header
    _
  $region3: #{resisc45_cnn_forward.8} parent=0 // loop_header
    %s13 = sphi 0, %s17
    %p14 = scmp.ge.s32.totalorder %s13, 4
    %s23 = sphi 0, %s25
    %s26 = sphi 0, %s23
    %s27 = sphi 0, %s26
    %s43 = sphi 0, %s27
    %s47 = sphi 0, %s47
    %s49 = sphi 0, %s47
    %s50 = sphi 0, %s49
    %s64 = sphi 0, %s50
    %s68 = sphi 0, %s68
    %s70 = sphi 0, %s68
    %s71 = sphi 0, %s70
    %s85 = sphi 0, %s71
    %s89 = sphi 0, %s89
    %s91 = sphi 0, %s89
    %s92 = sphi 0, %s91
    %s106 = sphi 0, %s92
    %s112 = sphi 0, %s114
    %s115 = sphi 0, %s112
    %s116 = sphi 0, %s115
    %s132 = sphi 0, %s116
    %s138 = sphi 0, %s140
    %s141 = sphi 0, %s138
    %s142 = sphi 0, %s141
    %s158 = sphi 0, %s142
    %s164 = sphi 0, %s166
    %s167 = sphi 0, %s164
    %s168 = sphi 0, %s167
    %s184 = sphi 0, %s168
  $region4: #{resisc45_cnn_forward.8} parent=0 // loop_header_branch
    %16 = sbr.rel (%p14) target = $region8
  $region5: #{resisc45_cnn_forward.8} parent=0 // loop_body
    %s18 = ssub.s32 %s13, 1
    %s19 = ssub.s32 %s13, 2
    %s20 = sadd.s32 %s13, 1
    %s21 = ssub.s32 %s13, %s20
    %p22 = scmp.eq.s32.totalorder %s21, 0
    %s24 = sadd.s32 %s23, 1
    %s25 = scalar_select %p22, %s23, %s24
    %p28 = pneg %p22
    %p29 = scmp.eq.s32.totalorder %s13, 1
    %p30 = por %p28, %p29
    %p31 = scmp.ne.s32.totalorder %s23, %s26
    %p32 = scmp.eq.s32.totalorder %s13, 0
    %p33 = por %p31, %p32
    %p34 = scmp.ne.s32.totalorder %s23, %s26
    %p35 = scmp.eq.s32.totalorder %s18, 1
    %p36 = por %p34, %p35
    %p37 = scmp.ne.s32.totalorder %s26, %s27
    %p38 = scmp.eq.s32.totalorder %s18, 0
    %p39 = por %p37, %p38
    %p40 = scmp.ne.s32.totalorder %s26, %s27
    %p41 = scmp.eq.s32.totalorder %s19, 1
    %p42 = por %p40, %p41
    %p44 = scmp.ne.s32.totalorder %s27, %s43
    %p45 = scmp.eq.s32.totalorder %s19, 0
    %p46 = por %p44, %p45
    %s48 = sadd.s32 %s47, 1
    %p51 = scmp.eq.s32.totalorder %s13, 1
    %p52 = scmp.ne.s32.totalorder %s47, %s49
    %p53 = scmp.eq.s32.totalorder %s13, 0
    %p54 = por %p52, %p53
    %p55 = scmp.ne.s32.totalorder %s47, %s49
    %p56 = scmp.eq.s32.totalorder %s18, 1
    %p57 = por %p55, %p56
    %p58 = scmp.ne.s32.totalorder %s49, %s50
    %p59 = scmp.eq.s32.totalorder %s18, 0
    %p60 = por %p58, %p59
    %p61 = scmp.ne.s32.totalorder %s49, %s50
    %p62 = scmp.eq.s32.totalorder %s19, 1
    %p63 = por %p61, %p62
    %p65 = scmp.ne.s32.totalorder %s50, %s64
    %p66 = scmp.eq.s32.totalorder %s19, 0
    %p67 = por %p65, %p66
    %s69 = sadd.s32 %s68, 1
    %p72 = scmp.eq.s32.totalorder %s13, 1
    %p73 = scmp.ne.s32.totalorder %s68, %s70
    %p74 = scmp.eq.s32.totalorder %s13, 0
    %p75 = por %p73, %p74
    %p76 = scmp.ne.s32.totalorder %s68, %s70
    %p77 = scmp.eq.s32.totalorder %s18, 1
    %p78 = por %p76, %p77
    %p79 = scmp.ne.s32.totalorder %s70, %s71
    %p80 = scmp.eq.s32.totalorder %s18, 0
    %p81 = por %p79, %p80
    %p82 = scmp.ne.s32.totalorder %s70, %s71
    %p83 = scmp.eq.s32.totalorder %s19, 1
    %p84 = por %p82, %p83
    %p86 = scmp.ne.s32.totalorder %s71, %s85
    %p87 = scmp.eq.s32.totalorder %s19, 0
    %p88 = por %p86, %p87
    %s90 = sadd.s32 %s89, 1
    %p93 = scmp.eq.s32.totalorder %s13, 1
    %p94 = scmp.ne.s32.totalorder %s89, %s91
    %p95 = scmp.eq.s32.totalorder %s13, 0
    %p96 = por %p94, %p95
    %p97 = scmp.ne.s32.totalorder %s89, %s91
    %p98 = scmp.eq.s32.totalorder %s18, 1
    %p99 = por %p97, %p98
    %p100 = scmp.ne.s32.totalorder %s91, %s92
    %p101 = scmp.eq.s32.totalorder %s18, 0
    %p102 = por %p100, %p101
    %p103 = scmp.ne.s32.totalorder %s91, %s92
    %p104 = scmp.eq.s32.totalorder %s19, 1
    %p105 = por %p103, %p104
    %p107 = scmp.ne.s32.totalorder %s92, %s106
    %p108 = scmp.eq.s32.totalorder %s19, 0
    %p109 = por %p107, %p108
    %s110 = ssub.s32 %s13, %s20
    %p111 = scmp.eq.s32.totalorder %s110, 0
    %s113 = sadd.s32 %s112, 1
    %s114 = scalar_select %p111, %s112, %s113
    %p117 = pneg %p111
    %p118 = scmp.eq.s32.totalorder %s13, 1
    %p119 = por %p117, %p118
    %p120 = scmp.ne.s32.totalorder %s112, %s115
    %p121 = scmp.eq.s32.totalorder %s13, 0
    %p122 = por %p120, %p121
    %p123 = scmp.ne.s32.totalorder %s112, %s115
    %p124 = scmp.eq.s32.totalorder %s18, 1
    %p125 = por %p123, %p124
    %p126 = scmp.ne.s32.totalorder %s115, %s116
    %p127 = scmp.eq.s32.totalorder %s18, 0
    %p128 = por %p126, %p127
    %p129 = scmp.ne.s32.totalorder %s115, %s116
    %p130 = scmp.eq.s32.totalorder %s19, 1
    %p131 = por %p129, %p130
    %p133 = scmp.ne.s32.totalorder %s116, %s132
    %p134 = scmp.eq.s32.totalorder %s19, 0
    %p135 = por %p133, %p134
    %s136 = ssub.s32 %s13, %s20
    %p137 = scmp.eq.s32.totalorder %s136, 0
    %s139 = sadd.s32 %s138, 1
    %s140 = scalar_select %p137, %s138, %s139
    %p143 = pneg %p137
    %p144 = scmp.eq.s32.totalorder %s13, 1
    %p145 = por %p143, %p144
    %p146 = scmp.ne.s32.totalorder %s138, %s141
    %p147 = scmp.eq.s32.totalorder %s13, 0
    %p148 = por %p146, %p147
    %p149 = scmp.ne.s32.totalorder %s138, %s141
    %p150 = scmp.eq.s32.totalorder %s18, 1
    %p151 = por %p149, %p150
    %p152 = scmp.ne.s32.totalorder %s141, %s142
    %p153 = scmp.eq.s32.totalorder %s18, 0
    %p154 = por %p152, %p153
    %p155 = scmp.ne.s32.totalorder %s141, %s142
    %p156 = scmp.eq.s32.totalorder %s19, 1
    %p157 = por %p155, %p156
    %p159 = scmp.ne.s32.totalorder %s142, %s158
    %p160 = scmp.eq.s32.totalorder %s19, 0
    %p161 = por %p159, %p160
    %s162 = ssub.s32 %s13, %s20
    %p163 = scmp.eq.s32.totalorder %s162, 0
    %s165 = sadd.s32 %s164, 1
    %s166 = scalar_select %p163, %s164, %s165
    %p169 = pneg %p163
    %p170 = scmp.eq.s32.totalorder %s13, 1
    %p171 = por %p169, %p170
    %p172 = scmp.ne.s32.totalorder %s164, %s167
    %p173 = scmp.eq.s32.totalorder %s13, 0
    %p174 = por %p172, %p173
    %p175 = scmp.ne.s32.totalorder %s164, %s167
    %p176 = scmp.eq.s32.totalorder %s18, 1
    %p177 = por %p175, %p176
    %p178 = scmp.ne.s32.totalorder %s167, %s168
    %p179 = scmp.eq.s32.totalorder %s18, 0
    %p180 = por %p178, %p179
    %p181 = scmp.ne.s32.totalorder %s167, %s168
    %p182 = scmp.eq.s32.totalorder %s19, 1
    %p183 = por %p181, %p182
    %p185 = scmp.ne.s32.totalorder %s168, %s184
    %p186 = scmp.eq.s32.totalorder %s19, 0
    %p187 = por %p185, %p186
    %p188 = scmp.le.s32.totalorder 1, %s13
    %p189 = scmp.lt.s32.totalorder %s13, 3
    %p190 = pnand %p188, %p189
    %p191 = pneg %p190
    // Predicated region
    $region9: #{resisc45_cnn_forward.8} parent=5 // pred_check
      _
    $region10: #{resisc45_cnn_forward.8} parent=5 // pred_check_branch
      %193 = sbr.rel (%p190) target = $region12
    $region11: #{resisc45_cnn_forward.8} parent=5 // pred_region
      %s194 = ssub.s32 %s13, 1
      // Predicated region
      $region13: #{resisc45_cnn_forward.8} parent=11 // pred_check
        %p195 = pneg %p60
      $region14: #{resisc45_cnn_forward.8} parent=11 // pred_check_branch
        %197 = sbr.rel (%p195) target = $region16
      $region15: #{resisc45_cnn_forward.8} parent=11 // pred_region
        _
      $region16: #{resisc45_cnn_forward.8} parent=11 // pred_fallthru
        _
      // Predicated region
      $region17: #{resisc45_cnn_forward.8} parent=11 // pred_check
        %p198 = pneg %p81
      $region18: #{resisc45_cnn_forward.8} parent=11 // pred_check_branch
        %200 = sbr.rel (%p198) target = $region20
      $region19: #{resisc45_cnn_forward.8} parent=11 // pred_region
        _
      $region20: #{resisc45_cnn_forward.8} parent=11 // pred_fallthru
        _
      // Predicated region
      $region21: #{resisc45_cnn_forward.8} parent=11 // pred_check
        %p201 = pneg %p102
      $region22: #{resisc45_cnn_forward.8} parent=11 // pred_check_branch
        %203 = sbr.rel (%p201) target = $region24
      $region23: #{resisc45_cnn_forward.8} parent=11 // pred_region
        _
      $region24: #{resisc45_cnn_forward.8} parent=11 // pred_fallthru
        _
    $region12: #{resisc45_cnn_forward.8} parent=5 // pred_fallthru
      _
    %p204 = scmp.lt.s32.totalorder %s13, 2
    // Predicated region
    $region25: #{resisc45_cnn_forward.8} parent=5 // pred_check
      %p205 = pneg %p204
    $region26: #{resisc45_cnn_forward.8} parent=5 // pred_check_branch
      %207 = sbr.rel (%p205) target = $region28
    $region27: #{resisc45_cnn_forward.8} parent=5 // pred_region
      // Predicated region
      $region29: #{resisc45_cnn_forward.8} parent=27 // pred_check
        %p208 = pneg %p33
      $region30: #{resisc45_cnn_forward.8} parent=27 // pred_check_branch
        %210 = sbr.rel (%p208) target = $region32
      $region31: #{resisc45_cnn_forward.8} parent=27 // pred_region
        %p211 = scmp.lt.s32.totalorder %s13, 1
        %s212 = scalar_select %p211, %s13, 1
        %s213 = smul.addr %s212, 8
        %s214 = smul.addr %s213, 8
        %s215 = scalar_lea.vmem %s0, %s214
      $region32: #{resisc45_cnn_forward.8} parent=27 // pred_fallthru
        _
    $region28: #{resisc45_cnn_forward.8} parent=5 // pred_fallthru
      _
    %p216 = scmp.le.s32.totalorder 1, %s13
    %p217 = scmp.lt.s32.totalorder %s13, 3
    %p218 = pnand %p216, %p217
    %p219 = pneg %p218
    // Predicated region
    $region33: #{resisc45_cnn_forward.8} parent=5 // pred_check
      _
    $region34: #{resisc45_cnn_forward.8} parent=5 // pred_check_branch
      %221 = sbr.rel (%p218) target = $region36
    $region35: #{resisc45_cnn_forward.8} parent=5 // pred_region
      %s222 = ssub.s32 %s13, 1
      %p223 = scmp.lt.s32.totalorder %s18, 1
      %s224 = scalar_select %p223, %s18, 1
      %s225 = smul.addr %s224, 8
      %s226 = smul.addr %s225, 8
      %s227 = scalar_lea.vmem %s0, %s226
      %p228 = pneg %p39
      %p229 = pneg %p36
      %p230 = pneg %p60
      %p231 = pneg %p57
      %p232 = pneg %p81
      %p233 = pneg %p78
      %p234 = pneg %p102
      %p235 = pneg %p99
      %p236 = pneg %p128
      %p237 = pneg %p125
      %p238 = scmp.lt.s32.totalorder %s18, 1
      %s239 = scalar_select %p238, %s18, 1
      %s240 = smul.addr %s239, 4
      %s241 = smul.addr %s240, 8
      %s242 = scalar_lea.vmem %s4, %s241
      %p243 = pneg %p154
      %p244 = pneg %p151
      %p245 = scmp.lt.s32.totalorder %s18, 1
      %s246 = scalar_select %p245, %s18, 1
      %s247 = smul.addr %s246, 4
      %s248 = smul.addr %s247, 8
      %s249 = scalar_lea.vmem %s5, %s248
      %p250 = pneg %p180
      %p251 = pneg %p177
      %p252 = scmp.lt.s32.totalorder %s18, 1
      %s253 = scalar_select %p252, %s18, 1
      %s254 = smul.addr %s253, 4
      %s255 = smul.addr %s254, 8
      %s256 = scalar_lea.vmem %s6, %s255
      %p257 = scmp.lt.s32.totalorder %s18, 1
      %s258 = scalar_select %p257, %s18, 1
      %s259 = smul.addr %s258, 8
      %s260 = smul.addr %s259, 8
      %s261 = scalar_lea.vmem %s0, %s260
      %p262 = scmp.lt.s32.totalorder %s18, 1
      %s263 = scalar_select %p262, %s18, 1
      %s264 = smul.addr %s263, 4
      %s265 = smul.addr %s264, 8
      %s266 = scalar_lea.vmem %s4, %s265
      %p267 = scmp.lt.s32.totalorder %s18, 1
      %s268 = scalar_select %p267, %s18, 1
      %s269 = smul.addr %s268, 4
      %s270 = smul.addr %s269, 8
      %s271 = scalar_lea.vmem %s5, %s270
      %p272 = scmp.lt.s32.totalorder %s18, 1
      %s273 = scalar_select %p272, %s18, 1
      %s274 = smul.addr %s273, 4
      %s275 = smul.addr %s274, 8
      %s276 = scalar_lea.vmem %s6, %s275
      %v277 = vld [vmem:[%s1] sm:$0xff]
      %v278 = vld [vmem:[%s1 + $0x8] sm:$0xff]
      %v279 = vld [vmem:[%s1 + $0x10] sm:$0xff]
      %v280 = vld [vmem:[%s1 + $0x18] sm:$0xff]
      %v281 = vld [vmem:[%s1 + $0x20] sm:$0xff]
      %v282 = vld [vmem:[%s1 + $0x28] sm:$0xff]
      %v283 = vld [vmem:[%s1 + $0x30] sm:$0xff]
      %v284 = vld [vmem:[%s1 + $0x38] sm:$0xff]
      %v285 = vld [vmem:[%s1 + $0x40] sm:$0xff]
      %v286 = vld [vmem:[%s1 + $0x48] sm:$0xff]
      %v287 = vld [vmem:[%s1 + $0x50] sm:$0xff]
      %v288 = vld [vmem:[%s1 + $0x58] sm:$0xff]
      %v289 = vld [vmem:[%s1 + $0x60] sm:$0xff]
      %v290 = vld [vmem:[%s1 + $0x68] sm:$0xff]
      %v291 = vld [vmem:[%s1 + $0x70] sm:$0xff]
      %v292 = vld [vmem:[%s1 + $0x78] sm:$0xff]
      %v293 = vld [vmem:[%s1 + $0x80] sm:$0xff]
      %v294 = vld [vmem:[%s1 + $0x88] sm:$0xff]
      %v295 = vld [vmem:[%s1 + $0x90] sm:$0xff]
      %v296 = vld [vmem:[%s1 + $0x98] sm:$0xff]
      %v297 = vld [vmem:[%s1 + $0xa0] sm:$0xff]
      %v298 = vld [vmem:[%s1 + $0xa8] sm:$0xff]
      %v299 = vld [vmem:[%s1 + $0xb0] sm:$0xff]
      %v300 = vld [vmem:[%s1 + $0xb8] sm:$0xff]
      %v301 = vld [vmem:[%s1 + $0xc0] sm:$0xff]
      %v302 = vld [vmem:[%s1 + $0xc8] sm:$0xff]
      %v303 = vld [vmem:[%s1 + $0xd0] sm:$0xff]
      %v304 = vld [vmem:[%s1 + $0xd8] sm:$0xff]
      %v305 = vld [vmem:[%s1 + $0xe0] sm:$0xff]
      %v306 = vld [vmem:[%s1 + $0xe8] sm:$0xff]
      %v307 = vld [vmem:[%s1 + $0xf0] sm:$0xff]
      %v308 = vld [vmem:[%s1 + $0xf8] sm:$0xff]
      %v309 = vld [vmem:[%s2] sm:$0xff]
      %v310 = vld [vmem:[%s2 + $0x8] sm:$0xff]
      %v311 = vld [vmem:[%s2 + $0x10] sm:$0xff]
      %v312 = vld [vmem:[%s2 + $0x18] sm:$0xff]
      %v313 = vld [vmem:[%s2 + $0x20] sm:$0xff]
      %v314 = vld [vmem:[%s2 + $0x28] sm:$0xff]
      %v315 = vld [vmem:[%s2 + $0x30] sm:$0xff]
      %v316 = vld [vmem:[%s2 + $0x38] sm:$0xff]
      %v317 = vld [vmem:[%s2 + $0x40] sm:$0xff]
      %v318 = vld [vmem:[%s2 + $0x48] sm:$0xff]
      %v319 = vld [vmem:[%s2 + $0x50] sm:$0xff]
      %v320 = vld [vmem:[%s2 + $0x58] sm:$0xff]
      %v321 = vld [vmem:[%s2 + $0x60] sm:$0xff]
      %v322 = vld [vmem:[%s2 + $0x68] sm:$0xff]
      %v323 = vld [vmem:[%s2 + $0x70] sm:$0xff]
      %v324 = vld [vmem:[%s2 + $0x78] sm:$0xff]
      %v325 = vld [vmem:[%s261] sm:$0xff]
      %v326 = vld [vmem:[%s261 + $0x8] sm:$0xff]
      %vm327 = vcmask 162816
      %328 = vst.msk [vmem:[#allocation2] sm:$0xff] %vm327, %v325
      %329 = vst.msk [vmem:[#allocation2 + $0x8] sm:$0xff] %vm327, %v326
      %v330 = vld [vmem:[%s261] sm:$0xff]
      %v331 = vld [vmem:[%s261 + $0x8] sm:$0xff]
      %334 = vrot.lane.b32.xlu0 %v330, 127
      %v335 = vpop.permute.xlu0 %334
      %336 = vrot.lane.b32.xlu0 %v331, 127
      %v337 = vpop.permute.xlu0 %336
      %340 = vst.msk [vmem:[#allocation2 + $0x10] sm:$0xff] %vm327, %v335
      %341 = vst.msk [vmem:[#allocation2 + $0x18] sm:$0xff] %vm327, %v337
      %v342 = vld [vmem:[%s261] sm:$0xff]
      %v343 = vld [vmem:[%s261 + $0x8] sm:$0xff]
      %346 = vrot.lane.b32.xlu0 %v342, 123
      %v347 = vpop.permute.xlu0 %346
      %348 = vrot.lane.b32.xlu0 %v343, 123
      %v349 = vpop.permute.xlu0 %348
      %352 = vst.msk [vmem:[#allocation2 + $0x20] sm:$0xff] %vm327, %v347
      %353 = vst.msk [vmem:[#allocation2 + $0x28] sm:$0xff] %vm327, %v349
      %v354 = vld [vmem:[%s261] sm:$0xff]
      %v355 = vld [vmem:[%s261 + $0x8] sm:$0xff]
      %358 = vrot.lane.b32.xlu0 %v354, 122
      %v359 = vpop.permute.xlu0 %358
      %360 = vrot.lane.b32.xlu0 %v355, 122
      %v361 = vpop.permute.xlu0 %360
      %364 = vst.msk [vmem:[#allocation2 + $0x30] sm:$0xff] %vm327, %v359
      %365 = vst.msk [vmem:[#allocation2 + $0x38] sm:$0xff] %vm327, %v361
      %s366 = scalar_lea.vmem %s261, 16
      %v367 = vld [vmem:[%s366] sm:$0xff]
      %v368 = vld [vmem:[%s366 + $0x8] sm:$0xff]
      %369 = vst.msk [vmem:[#allocation2 + $0x40] sm:$0xff] %vm327, %v367
      %370 = vst.msk [vmem:[#allocation2 + $0x48] sm:$0xff] %vm327, %v368
      %v371 = vld [vmem:[%s366] sm:$0xff]
      %v372 = vld [vmem:[%s366 + $0x8] sm:$0xff]
      %375 = vrot.lane.b32.xlu0 %v371, 127
      %v376 = vpop.permute.xlu0 %375
      %377 = vrot.lane.b32.xlu0 %v372, 127
      %v378 = vpop.permute.xlu0 %377
      %381 = vst.msk [vmem:[#allocation2 + $0x50] sm:$0xff] %vm327, %v376
      %382 = vst.msk [vmem:[#allocation2 + $0x58] sm:$0xff] %vm327, %v378
      %v383 = vld [vmem:[%s366] sm:$0xff]
      %v384 = vld [vmem:[%s366 + $0x8] sm:$0xff]
      %387 = vrot.lane.b32.xlu0 %v383, 123
      %v388 = vpop.permute.xlu0 %387
      %389 = vrot.lane.b32.xlu0 %v384, 123
      %v390 = vpop.permute.xlu0 %389
      %393 = vst.msk [vmem:[#allocation2 + $0x60] sm:$0xff] %vm327, %v388
      %394 = vst.msk [vmem:[#allocation2 + $0x68] sm:$0xff] %vm327, %v390
      %v395 = vld [vmem:[%s366] sm:$0xff]
      %v396 = vld [vmem:[%s366 + $0x8] sm:$0xff]
      %399 = vrot.lane.b32.xlu0 %v395, 122
      %v400 = vpop.permute.xlu0 %399
      %401 = vrot.lane.b32.xlu0 %v396, 122
      %v402 = vpop.permute.xlu0 %401
      %405 = vst.msk [vmem:[#allocation2 + $0x70] sm:$0xff] %vm327, %v400
      %406 = vst.msk [vmem:[#allocation2 + $0x78] sm:$0xff] %vm327, %v402
      %s407 = scalar_lea.vmem %s261, 32
      %v408 = vld [vmem:[%s407] sm:$0xff]
      %v409 = vld [vmem:[%s407 + $0x8] sm:$0xff]
      %410 = vst.msk [vmem:[#allocation2 + $0x80] sm:$0xff] %vm327, %v408
      %411 = vst.msk [vmem:[#allocation2 + $0x88] sm:$0xff] %vm327, %v409
      %v412 = vld [vmem:[%s407] sm:$0xff]
      %v413 = vld [vmem:[%s407 + $0x8] sm:$0xff]
      %416 = vrot.lane.b32.xlu0 %v412, 127
      %v417 = vpop.permute.xlu0 %416
      %418 = vrot.lane.b32.xlu0 %v413, 127
      %v419 = vpop.permute.xlu0 %418
      %422 = vst.msk [vmem:[#allocation2 + $0x90] sm:$0xff] %vm327, %v417
      %423 = vst.msk [vmem:[#allocation2 + $0x98] sm:$0xff] %vm327, %v419
      %v424 = vld [vmem:[%s407] sm:$0xff]
      %v425 = vld [vmem:[%s407 + $0x8] sm:$0xff]
      %428 = vrot.lane.b32.xlu0 %v424, 123
      %v429 = vpop.permute.xlu0 %428
      %430 = vrot.lane.b32.xlu0 %v425, 123
      %v431 = vpop.permute.xlu0 %430
      %434 = vst.msk [vmem:[#allocation2 + $0xa0] sm:$0xff] %vm327, %v429
      %435 = vst.msk [vmem:[#allocation2 + $0xa8] sm:$0xff] %vm327, %v431
      %v436 = vld [vmem:[%s407] sm:$0xff]
      %v437 = vld [vmem:[%s407 + $0x8] sm:$0xff]
      %440 = vrot.lane.b32.xlu0 %v436, 122
      %v441 = vpop.permute.xlu0 %440
      %442 = vrot.lane.b32.xlu0 %v437, 122
      %v443 = vpop.permute.xlu0 %442
      %446 = vst.msk [vmem:[#allocation2 + $0xb0] sm:$0xff] %vm327, %v441
      %447 = vst.msk [vmem:[#allocation2 + $0xb8] sm:$0xff] %vm327, %v443
      %s448 = scalar_lea.vmem %s261, 48
      %v449 = vld [vmem:[%s448] sm:$0xff]
      %v450 = vld [vmem:[%s448 + $0x8] sm:$0xff]
      %451 = vst.msk [vmem:[#allocation2 + $0xc0] sm:$0xff] %vm327, %v449
      %452 = vst.msk [vmem:[#allocation2 + $0xc8] sm:$0xff] %vm327, %v450
      %v453 = vld [vmem:[%s448] sm:$0xff]
      %v454 = vld [vmem:[%s448 + $0x8] sm:$0xff]
      %457 = vrot.lane.b32.xlu0 %v453, 127
      %v458 = vpop.permute.xlu0 %457
      %459 = vrot.lane.b32.xlu0 %v454, 127
      %v460 = vpop.permute.xlu0 %459
      %463 = vst.msk [vmem:[#allocation2 + $0xd0] sm:$0xff] %vm327, %v458
      %464 = vst.msk [vmem:[#allocation2 + $0xd8] sm:$0xff] %vm327, %v460
      %v465 = vld [vmem:[%s448] sm:$0xff]
      %v466 = vld [vmem:[%s448 + $0x8] sm:$0xff]
      %469 = vrot.lane.b32.xlu0 %v465, 123
      %v470 = vpop.permute.xlu0 %469
      %471 = vrot.lane.b32.xlu0 %v466, 123
      %v472 = vpop.permute.xlu0 %471
      %475 = vst.msk [vmem:[#allocation2 + $0xe0] sm:$0xff] %vm327, %v470
      %476 = vst.msk [vmem:[#allocation2 + $0xe8] sm:$0xff] %vm327, %v472
      %v477 = vld [vmem:[%s448] sm:$0xff]
      %v478 = vld [vmem:[%s448 + $0x8] sm:$0xff]
      %481 = vrot.lane.b32.xlu0 %v477, 122
      %v482 = vpop.permute.xlu0 %481
      %483 = vrot.lane.b32.xlu0 %v478, 122
      %v484 = vpop.permute.xlu0 %483
      %487 = vst.msk [vmem:[#allocation2 + $0xf0] sm:$0xff] %vm327, %v482
      %488 = vst.msk [vmem:[#allocation2 + $0xf8] sm:$0xff] %vm327, %v484
      %v489 = vld [vmem:[#allocation2] sm:$0xff]
      %v490 = vld [vmem:[#allocation2 + $0x8] sm:$0xff]
      %v491 = vld [vmem:[#allocation2 + $0x10] sm:$0xff]
      %v492 = vld [vmem:[#allocation2 + $0x18] sm:$0xff]
      %v493 = vld [vmem:[#allocation2 + $0x20] sm:$0xff]
      %v494 = vld [vmem:[#allocation2 + $0x28] sm:$0xff]
      %v495 = vld [vmem:[#allocation2 + $0x30] sm:$0xff]
      %v496 = vld [vmem:[#allocation2 + $0x38] sm:$0xff]
      %v497 = vld [vmem:[#allocation2 + $0x40] sm:$0xff]
      %v498 = vld [vmem:[#allocation2 + $0x48] sm:$0xff]
      %v499 = vld [vmem:[#allocation2 + $0x50] sm:$0xff]
      %v500 = vld [vmem:[#allocation2 + $0x58] sm:$0xff]
      %v501 = vld [vmem:[#allocation2 + $0x60] sm:$0xff]
      %v502 = vld [vmem:[#allocation2 + $0x68] sm:$0xff]
      %v503 = vld [vmem:[#allocation2 + $0x70] sm:$0xff]
      %v504 = vld [vmem:[#allocation2 + $0x78] sm:$0xff]
      %v505 = vld [vmem:[#allocation2 + $0x80] sm:$0xff]
      %v506 = vld [vmem:[#allocation2 + $0x88] sm:$0xff]
      %v507 = vld [vmem:[#allocation2 + $0x90] sm:$0xff]
      %v508 = vld [vmem:[#allocation2 + $0x98] sm:$0xff]
      %v509 = vld [vmem:[#allocation2 + $0xa0] sm:$0xff]
      %v510 = vld [vmem:[#allocation2 + $0xa8] sm:$0xff]
      %v511 = vld [vmem:[#allocation2 + $0xb0] sm:$0xff]
      %v512 = vld [vmem:[#allocation2 + $0xb8] sm:$0xff]
      %v513 = vld [vmem:[#allocation2 + $0xc0] sm:$0xff]
      %v514 = vld [vmem:[#allocation2 + $0xc8] sm:$0xff]
      %v515 = vld [vmem:[#allocation2 + $0xd0] sm:$0xff]
      %v516 = vld [vmem:[#allocation2 + $0xd8] sm:$0xff]
      %v517 = vld [vmem:[#allocation2 + $0xe0] sm:$0xff]
      %v518 = vld [vmem:[#allocation2 + $0xe8] sm:$0xff]
      %v519 = vld [vmem:[#allocation2 + $0xf0] sm:$0xff]
      %v520 = vld [vmem:[#allocation2 + $0xf8] sm:$0xff]
      %522 = vset.pattern.permute.xlu0 0
      %523 = vperm.xlu0 %522, %v309
      %v524 = vpop.permute.xlu0 %523
      %527 = vset.pattern.permute.xlu0 0
      %528 = vperm.xlu0 %527, %v310
      %v529 = vpop.permute.xlu0 %528
      %532 = vset.pattern.permute.xlu0 0
      %533 = vperm.xlu0 %532, %v311
      %v534 = vpop.permute.xlu0 %533
      %537 = vset.pattern.permute.xlu0 0
      %538 = vperm.xlu0 %537, %v312
      %v539 = vpop.permute.xlu0 %538
      %542 = vset.pattern.permute.xlu0 0
      %543 = vperm.xlu0 %542, %v313
      %v544 = vpop.permute.xlu0 %543
      %547 = vset.pattern.permute.xlu0 0
      %548 = vperm.xlu0 %547, %v314
      %v549 = vpop.permute.xlu0 %548
      %552 = vset.pattern.permute.xlu0 0
      %553 = vperm.xlu0 %552, %v315
      %v554 = vpop.permute.xlu0 %553
      %557 = vset.pattern.permute.xlu0 0
      %558 = vperm.xlu0 %557, %v316
      %v559 = vpop.permute.xlu0 %558
      %562 = vset.pattern.permute.xlu0 0
      %563 = vperm.xlu0 %562, %v317
      %v564 = vpop.permute.xlu0 %563
      %567 = vset.pattern.permute.xlu0 0
      %568 = vperm.xlu0 %567, %v318
      %v569 = vpop.permute.xlu0 %568
      %572 = vset.pattern.permute.xlu0 0
      %573 = vperm.xlu0 %572, %v319
      %v574 = vpop.permute.xlu0 %573
      %577 = vset.pattern.permute.xlu0 0
      %578 = vperm.xlu0 %577, %v320
      %v579 = vpop.permute.xlu0 %578
      %582 = vset.pattern.permute.xlu0 0
      %583 = vperm.xlu0 %582, %v321
      %v584 = vpop.permute.xlu0 %583
      %587 = vset.pattern.permute.xlu0 0
      %588 = vperm.xlu0 %587, %v322
      %v589 = vpop.permute.xlu0 %588
      %592 = vset.pattern.permute.xlu0 0
      %593 = vperm.xlu0 %592, %v323
      %v594 = vpop.permute.xlu0 %593
      %597 = vset.pattern.permute.xlu0 0
      %598 = vperm.xlu0 %597, %v324
      %v599 = vpop.permute.xlu0 %598
      %601 = vmatprep.subr.mxu0 0.0
      %602 = vmatpush1.msra.mxu0 %v504
      %603 = vmatprep.subr.mxu0 0.0
      %604 = vmatpush1.msra.mxu0 %v503
      %605 = vmatprep.subr.mxu0 0.0
      %606 = vmatpush1.msra.mxu0 %v502
      %607 = vmatprep.subr.mxu0 0.0
      %608 = vmatpush1.msra.mxu0 %v501
      %609 = vmatprep.subr.mxu0 0.0
      %610 = vmatpush1.msra.mxu0 %v500
      %611 = vmatprep.subr.mxu0 0.0
      %612 = vmatpush1.msra.mxu0 %v499
      %613 = vmatprep.subr.mxu0 0.0
      %614 = vmatpush1.msra.mxu0 %v498
      %615 = vmatprep.subr.mxu0 0.0
      %616 = vmatpush1.msra.mxu0 %v497
      %617 = vmatprep.subr.mxu0 0.0
      %618 = vmatpush1.msra.mxu0 %v496
      %619 = vmatprep.subr.mxu0 0.0
      %620 = vmatpush1.msra.mxu0 %v495
      %621 = vmatprep.subr.mxu0 0.0
      %622 = vmatpush1.msra.mxu0 %v494
      %623 = vmatprep.subr.mxu0 0.0
      %624 = vmatpush1.msra.mxu0 %v493
      %625 = vmatprep.subr.mxu0 0.0
      %626 = vmatpush1.msra.mxu0 %v492
      %627 = vmatprep.subr.mxu0 0.0
      %628 = vmatpush1.msra.mxu0 %v491
      %629 = vmatprep.subr.mxu0 0.0
      %630 = vmatpush1.msra.mxu0 %v490
      %631 = vmatprep.subr.mxu0 0.0
      %632 = vmatpush1.msra.mxu0 %v489
      %633 = vmatprep.subr.mxu0 0.0
      %634 = vmatpush2.msra.mxu0 %v520
      %635 = vmatprep.subr.mxu0 0.0
      %636 = vmatpush2.msra.mxu0 %v519
      %637 = vmatprep.subr.mxu0 0.0
      %638 = vmatpush2.msra.mxu0 %v518
      %639 = vmatprep.subr.mxu0 0.0
      %640 = vmatpush2.msra.mxu0 %v517
      %641 = vmatprep.subr.mxu0 0.0
      %642 = vmatpush2.msra.mxu0 %v516
      %643 = vmatprep.subr.mxu0 0.0
      %644 = vmatpush2.msra.mxu0 %v515
      %645 = vmatprep.subr.mxu0 0.0
      %646 = vmatpush2.msra.mxu0 %v514
      %647 = vmatprep.subr.mxu0 0.0
      %648 = vmatpush2.msra.mxu0 %v513
      %649 = vmatprep.subr.mxu0 0.0
      %650 = vmatpush2.msra.mxu0 %v512
      %651 = vmatprep.subr.mxu0 0.0
      %652 = vmatpush2.msra.mxu0 %v511
      %653 = vmatprep.subr.mxu0 0.0
      %654 = vmatpush2.msra.mxu0 %v510
      %655 = vmatprep.subr.mxu0 0.0
      %656 = vmatpush2.msra.mxu0 %v509
      %657 = vmatprep.subr.mxu0 0.0
      %658 = vmatpush2.msra.mxu0 %v508
      %659 = vmatprep.subr.mxu0 0.0
      %660 = vmatpush2.msra.mxu0 %v507
      %661 = vmatprep.subr.mxu0 0.0
      %662 = vmatpush2.msra.mxu0 %v506
      %663 = vmatprep.subr.mxu0 0.0
      %664 = vmatpush2.msra.mxu0 %v505
      %665 = vmatprep.mubr.f32.mxu0 %v278
      %666 = vmatmul.mubr.f32.gmra.mxu0 %v277
      %v667 = vpop.f32.mrf.mxu0
      %v668 = vadd.f32 %v524, %v667
      %v669 = vpop.f32.mrf.mxu0
      %670 = vmatprep.mubr.f32.mxu0 %v280
      %671 = vmatmul.mubr.f32.gmra.mxu0 %v279
      %v672 = vpop.f32.mrf.mxu0
      %v673 = vadd.f32 %v529, %v672
      %v674 = vpop.f32.mrf.mxu0
      %675 = vmatprep.mubr.f32.mxu0 %v282
      %676 = vmatmul.mubr.f32.gmra.mxu0 %v281
      %v677 = vpop.f32.mrf.mxu0
      %v678 = vadd.f32 %v534, %v677
      %v679 = vpop.f32.mrf.mxu0
      %680 = vmatprep.mubr.f32.mxu0 %v284
      %681 = vmatmul.mubr.f32.gmra.mxu0 %v283
      %v682 = vpop.f32.mrf.mxu0
      %v683 = vadd.f32 %v539, %v682
      %v684 = vpop.f32.mrf.mxu0
      %685 = vmatprep.mubr.f32.mxu0 %v286
      %686 = vmatmul.mubr.f32.gmra.mxu0 %v285
      %v687 = vpop.f32.mrf.mxu0
      %v688 = vadd.f32 %v544, %v687
      %v689 = vpop.f32.mrf.mxu0
      %690 = vmatprep.mubr.f32.mxu0 %v288
      %691 = vmatmul.mubr.f32.gmra.mxu0 %v287
      %v692 = vpop.f32.mrf.mxu0
      %v693 = vadd.f32 %v549, %v692
      %v694 = vpop.f32.mrf.mxu0
      %695 = vmatprep.mubr.f32.mxu0 %v290
      %696 = vmatmul.mubr.f32.gmra.mxu0 %v289
      %v697 = vpop.f32.mrf.mxu0
      %v698 = vadd.f32 %v554, %v697
      %v699 = vpop.f32.mrf.mxu0
      %700 = vmatprep.mubr.f32.mxu0 %v292
      %701 = vmatmul.mubr.f32.gmra.mxu0 %v291
      %v702 = vpop.f32.mrf.mxu0
      %v703 = vadd.f32 %v559, %v702
      %v704 = vpop.f32.mrf.mxu0
      %705 = vmatprep.mubr.f32.mxu0 %v294
      %706 = vmatmul.mubr.f32.gmra.mxu0 %v293
      %v707 = vpop.f32.mrf.mxu0
      %v708 = vadd.f32 %v564, %v707
      %v709 = vpop.f32.mrf.mxu0
      %710 = vmatprep.mubr.f32.mxu0 %v296
      %711 = vmatmul.mubr.f32.gmra.mxu0 %v295
      %v712 = vpop.f32.mrf.mxu0
      %v713 = vadd.f32 %v569, %v712
      %v714 = vpop.f32.mrf.mxu0
      %715 = vmatprep.mubr.f32.mxu0 %v298
      %716 = vmatmul.mubr.f32.gmra.mxu0 %v297
      %v717 = vpop.f32.mrf.mxu0
      %v718 = vadd.f32 %v574, %v717
      %v719 = vpop.f32.mrf.mxu0
      %720 = vmatprep.mubr.f32.mxu0 %v300
      %721 = vmatmul.mubr.f32.gmra.mxu0 %v299
      %v722 = vpop.f32.mrf.mxu0
      %v723 = vadd.f32 %v579, %v722
      %v724 = vpop.f32.mrf.mxu0
      %725 = vmatprep.mubr.f32.mxu0 %v302
      %726 = vmatmul.mubr.f32.gmra.mxu0 %v301
      %v727 = vpop.f32.mrf.mxu0
      %v728 = vadd.f32 %v584, %v727
      %v729 = vpop.f32.mrf.mxu0
      %730 = vmatprep.mubr.f32.mxu0 %v304
      %731 = vmatmul.mubr.f32.gmra.mxu0 %v303
      %v732 = vpop.f32.mrf.mxu0
      %v733 = vadd.f32 %v589, %v732
      %v734 = vpop.f32.mrf.mxu0
      %735 = vmatprep.mubr.f32.mxu0 %v306
      %736 = vmatmul.mubr.f32.gmra.mxu0 %v305
      %v737 = vpop.f32.mrf.mxu0
      %v738 = vadd.f32 %v594, %v737
      %v739 = vpop.f32.mrf.mxu0
      %740 = vmatprep.mubr.f32.mxu0 %v308
      %741 = vmatmul.mubr.f32.gmra.mxu0 %v307
      %v742 = vpop.f32.mrf.mxu0
      %v743 = vadd.f32 %v599, %v742
      %v744 = vpop.f32.mrf.mxu0
      %745 = vdwg.mxu0
      %v746 = vmul.f32 %v668, 0.5
      %v747 = vmul.f32 %v673, 0.5
      %v748 = vmul.f32 %v678, 0.5
      %v749 = vmul.f32 %v683, 0.5
      %v750 = vmul.f32 %v688, 0.5
      %v751 = vmul.f32 %v693, 0.5
      %v752 = vmul.f32 %v698, 0.5
      %v753 = vmul.f32 %v703, 0.5
      %v754 = vmul.f32 %v708, 0.5
      %v755 = vmul.f32 %v713, 0.5
      %v756 = vmul.f32 %v718, 0.5
      %v757 = vmul.f32 %v723, 0.5
      %v758 = vmul.f32 %v728, 0.5
      %v759 = vmul.f32 %v733, 0.5
      %v760 = vmul.f32 %v738, 0.5
      %v761 = vmul.f32 %v743, 0.5
      %v762 = vmul.f32 %v668, 0.70710677
      %v763 = vmul.f32 %v673, 0.70710677
      %v764 = vmul.f32 %v678, 0.70710677
      %v765 = vmul.f32 %v683, 0.70710677
      %v766 = vmul.f32 %v688, 0.70710677
      %v767 = vmul.f32 %v693, 0.70710677
      %v768 = vmul.f32 %v698, 0.70710677
      %v769 = vmul.f32 %v703, 0.70710677
      %v770 = vmul.f32 %v708, 0.70710677
      %v771 = vmul.f32 %v713, 0.70710677
      %v772 = vmul.f32 %v718, 0.70710677
      %v773 = vmul.f32 %v723, 0.70710677
      %v774 = vmul.f32 %v728, 0.70710677
      %v775 = vmul.f32 %v733, 0.70710677
      %v776 = vmul.f32 %v738, 0.70710677
      %v777 = vmul.f32 %v743, 0.70710677
      %v778 = vmax.f32 %v762, -4.0
      %v779 = vmax.f32 %v763, -4.0
      %v780 = vmax.f32 %v764, -4.0
      %v781 = vmax.f32 %v765, -4.0
      %v782 = vmax.f32 %v766, -4.0
      %v783 = vmax.f32 %v767, -4.0
      %v784 = vmax.f32 %v768, -4.0
      %v785 = vmax.f32 %v769, -4.0
      %v786 = vmax.f32 %v770, -4.0
      %v787 = vmax.f32 %v771, -4.0
      %v788 = vmax.f32 %v772, -4.0
      %v789 = vmax.f32 %v773, -4.0
      %v790 = vmax.f32 %v774, -4.0
      %v791 = vmax.f32 %v775, -4.0
      %v792 = vmax.f32 %v776, -4.0
      %v793 = vmax.f32 %v777, -4.0
      %v794 = vmin.f32 %v778, 4.0
      %v795 = vmin.f32 %v779, 4.0
      %v796 = vmin.f32 %v780, 4.0
      %v797 = vmin.f32 %v781, 4.0
      %v798 = vmin.f32 %v782, 4.0
      %v799 = vmin.f32 %v783, 4.0
      %v800 = vmin.f32 %v784, 4.0
      %v801 = vmin.f32 %v785, 4.0
      %v802 = vmin.f32 %v786, 4.0
      %v803 = vmin.f32 %v787, 4.0
      %v804 = vmin.f32 %v788, 4.0
      %v805 = vmin.f32 %v789, 4.0
      %v806 = vmin.f32 %v790, 4.0
      %v807 = vmin.f32 %v791, 4.0
      %v808 = vmin.f32 %v792, 4.0
      %v809 = vmin.f32 %v793, 4.0
      %v810 = vmul.f32 %v794, %v794
      %v811 = vmul.f32 %v795, %v795
      %v812 = vmul.f32 %v796, %v796
      %v813 = vmul.f32 %v797, %v797
      %v814 = vmul.f32 %v798, %v798
      %v815 = vmul.f32 %v799, %v799
      %v816 = vmul.f32 %v800, %v800
      %v817 = vmul.f32 %v801, %v801
      %v818 = vmul.f32 %v802, %v802
      %v819 = vmul.f32 %v803, %v803
      %v820 = vmul.f32 %v804, %v804
      %v821 = vmul.f32 %v805, %v805
      %v822 = vmul.f32 %v806, %v806
      %v823 = vmul.f32 %v807, %v807
      %v824 = vmul.f32 %v808, %v808
      %v825 = vmul.f32 %v809, %v809
      %v826 = vmul.f32 %v810, 0.00022905065
      %v827 = vmul.f32 %v811, 0.00022905065
      %v828 = vmul.f32 %v812, 0.00022905065
      %v829 = vmul.f32 %v813, 0.00022905065
      %v830 = vmul.f32 %v814, 0.00022905065
      %v831 = vmul.f32 %v815, 0.00022905065
      %v832 = vmul.f32 %v816, 0.00022905065
      %v833 = vmul.f32 %v817, 0.00022905065
      %v834 = vmul.f32 %v818, 0.00022905065
      %v835 = vmul.f32 %v819, 0.00022905065
      %v836 = vmul.f32 %v820, 0.00022905065
      %v837 = vmul.f32 %v821, 0.00022905065
      %v838 = vmul.f32 %v822, 0.00022905065
      %v839 = vmul.f32 %v823, 0.00022905065
      %v840 = vmul.f32 %v824, 0.00022905065
      %v841 = vmul.f32 %v825, 0.00022905065
      %v842 = vadd.f32 %v826, 0.003408291
      %v843 = vadd.f32 %v827, 0.003408291
      %v844 = vadd.f32 %v828, 0.003408291
      %v845 = vadd.f32 %v829, 0.003408291
      %v846 = vadd.f32 %v830, 0.003408291
      %v847 = vadd.f32 %v831, 0.003408291
      %v848 = vadd.f32 %v832, 0.003408291
      %v849 = vadd.f32 %v833, 0.003408291
      %v850 = vadd.f32 %v834, 0.003408291
      %v851 = vadd.f32 %v835, 0.003408291
      %v852 = vadd.f32 %v836, 0.003408291
      %v853 = vadd.f32 %v837, 0.003408291
      %v854 = vadd.f32 %v838, 0.003408291
      %v855 = vadd.f32 %v839, 0.003408291
      %v856 = vadd.f32 %v840, 0.003408291
      %v857 = vadd.f32 %v841, 0.003408291
      %v858 = vmul.f32 %v842, %v810
      %v859 = vmul.f32 %v843, %v811
      %v860 = vmul.f32 %v844, %v812
      %v861 = vmul.f32 %v845, %v813
      %v862 = vmul.f32 %v846, %v814
      %v863 = vmul.f32 %v847, %v815
      %v864 = vmul.f32 %v848, %v816
      %v865 = vmul.f32 %v849, %v817
      %v866 = vmul.f32 %v850, %v818
      %v867 = vmul.f32 %v851, %v819
      %v868 = vmul.f32 %v852, %v820
      %v869 = vmul.f32 %v853, %v821
      %v870 = vmul.f32 %v854, %v822
      %v871 = vmul.f32 %v855, %v823
      %v872 = vmul.f32 %v856, %v824
      %v873 = vmul.f32 %v857, %v825
      %v874 = vadd.f32 %v858, 0.050955694
      %v875 = vadd.f32 %v859, 0.050955694
      %v876 = vadd.f32 %v860, 0.050955694
      %v877 = vadd.f32 %v861, 0.050955694
      %v878 = vadd.f32 %v862, 0.050955694
      %v879 = vadd.f32 %v863, 0.050955694
      %v880 = vadd.f32 %v864, 0.050955694
      %v881 = vadd.f32 %v865, 0.050955694
      %v882 = vadd.f32 %v866, 0.050955694
      %v883 = vadd.f32 %v867, 0.050955694
      %v884 = vadd.f32 %v868, 0.050955694
      %v885 = vadd.f32 %v869, 0.050955694
      %v886 = vadd.f32 %v870, 0.050955694
      %v887 = vadd.f32 %v871, 0.050955694
      %v888 = vadd.f32 %v872, 0.050955694
      %v889 = vadd.f32 %v873, 0.050955694
      %v890 = vmul.f32 %v874, %v810
      %v891 = vmul.f32 %v875, %v811
      %v892 = vmul.f32 %v876, %v812
      %v893 = vmul.f32 %v877, %v813
      %v894 = vmul.f32 %v878, %v814
      %v895 = vmul.f32 %v879, %v815
      %v896 = vmul.f32 %v880, %v816
      %v897 = vmul.f32 %v881, %v817
      %v898 = vmul.f32 %v882, %v818
      %v899 = vmul.f32 %v883, %v819
      %v900 = vmul.f32 %v884, %v820
      %v901 = vmul.f32 %v885, %v821
      %v902 = vmul.f32 %v886, %v822
      %v903 = vmul.f32 %v887, %v823
      %v904 = vmul.f32 %v888, %v824
      %v905 = vmul.f32 %v889, %v825
      %v906 = vadd.f32 %v890, 0.18520832
      %v907 = vadd.f32 %v891, 0.18520832
      %v908 = vadd.f32 %v892, 0.18520832
      %v909 = vadd.f32 %v893, 0.18520832
      %v910 = vadd.f32 %v894, 0.18520832
      %v911 = vadd.f32 %v895, 0.18520832
      %v912 = vadd.f32 %v896, 0.18520832
      %v913 = vadd.f32 %v897, 0.18520832
      %v914 = vadd.f32 %v898, 0.18520832
      %v915 = vadd.f32 %v899, 0.18520832
      %v916 = vadd.f32 %v900, 0.18520832
      %v917 = vadd.f32 %v901, 0.18520832
      %v918 = vadd.f32 %v902, 0.18520832
      %v919 = vadd.f32 %v903, 0.18520832
      %v920 = vadd.f32 %v904, 0.18520832
      %v921 = vadd.f32 %v905, 0.18520832
      %v922 = vmul.f32 %v906, %v810
      %v923 = vmul.f32 %v907, %v811
      %v924 = vmul.f32 %v908, %v812
      %v925 = vmul.f32 %v909, %v813
      %v926 = vmul.f32 %v910, %v814
      %v927 = vmul.f32 %v911, %v815
      %v928 = vmul.f32 %v912, %v816
      %v929 = vmul.f32 %v913, %v817
      %v930 = vmul.f32 %v914, %v818
      %v931 = vmul.f32 %v915, %v819
      %v932 = vmul.f32 %v916, %v820
      %v933 = vmul.f32 %v917, %v821
      %v934 = vmul.f32 %v918, %v822
      %v935 = vmul.f32 %v919, %v823
      %v936 = vmul.f32 %v920, %v824
      %v937 = vmul.f32 %v921, %v825
      %v938 = vadd.f32 %v922, 1.1283791
      %v939 = vadd.f32 %v923, 1.1283791
      %v940 = vadd.f32 %v924, 1.1283791
      %v941 = vadd.f32 %v925, 1.1283791
      %v942 = vadd.f32 %v926, 1.1283791
      %v943 = vadd.f32 %v927, 1.1283791
      %v944 = vadd.f32 %v928, 1.1283791
      %v945 = vadd.f32 %v929, 1.1283791
      %v946 = vadd.f32 %v930, 1.1283791
      %v947 = vadd.f32 %v931, 1.1283791
      %v948 = vadd.f32 %v932, 1.1283791
      %v949 = vadd.f32 %v933, 1.1283791
      %v950 = vadd.f32 %v934, 1.1283791
      %v951 = vadd.f32 %v935, 1.1283791
      %v952 = vadd.f32 %v936, 1.1283791
      %v953 = vadd.f32 %v937, 1.1283791
      %v954 = vmul.f32 %v810, -1.1791603e-07
      %v955 = vmul.f32 %v811, -1.1791603e-07
      %v956 = vmul.f32 %v812, -1.1791603e-07
      %v957 = vmul.f32 %v813, -1.1791603e-07
      %v958 = vmul.f32 %v814, -1.1791603e-07
      %v959 = vmul.f32 %v815, -1.1791603e-07
      %v960 = vmul.f32 %v816, -1.1791603e-07
      %v961 = vmul.f32 %v817, -1.1791603e-07
      %v962 = vmul.f32 %v818, -1.1791603e-07
      %v963 = vmul.f32 %v819, -1.1791603e-07
      %v964 = vmul.f32 %v820, -1.1791603e-07
      %v965 = vmul.f32 %v821, -1.1791603e-07
      %v966 = vmul.f32 %v822, -1.1791603e-07
      %v967 = vmul.f32 %v823, -1.1791603e-07
      %v968 = vmul.f32 %v824, -1.1791603e-07
      %v969 = vmul.f32 %v825, -1.1791603e-07
      %v970 = vadd.f32 %v954, 2.3547966e-05
      %v971 = vadd.f32 %v955, 2.3547966e-05
      %v972 = vadd.f32 %v956, 2.3547966e-05
      %v973 = vadd.f32 %v957, 2.3547966e-05
      %v974 = vadd.f32 %v958, 2.3547966e-05
      %v975 = vadd.f32 %v959, 2.3547966e-05
      %v976 = vadd.f32 %v960, 2.3547966e-05
      %v977 = vadd.f32 %v961, 2.3547966e-05
      %v978 = vadd.f32 %v962, 2.3547966e-05
      %v979 = vadd.f32 %v963, 2.3547966e-05
      %v980 = vadd.f32 %v964, 2.3547966e-05
      %v981 = vadd.f32 %v965, 2.3547966e-05
      %v982 = vadd.f32 %v966, 2.3547966e-05
      %v983 = vadd.f32 %v967, 2.3547966e-05
      %v984 = vadd.f32 %v968, 2.3547966e-05
      %v985 = vadd.f32 %v969, 2.3547966e-05
      %v986 = vmul.f32 %v970, %v810
      %v987 = vmul.f32 %v971, %v811
      %v988 = vmul.f32 %v972, %v812
      %v989 = vmul.f32 %v973, %v813
      %v990 = vmul.f32 %v974, %v814
      %v991 = vmul.f32 %v975, %v815
      %v992 = vmul.f32 %v976, %v816
      %v993 = vmul.f32 %v977, %v817
      %v994 = vmul.f32 %v978, %v818
      %v995 = vmul.f32 %v979, %v819
      %v996 = vmul.f32 %v980, %v820
      %v997 = vmul.f32 %v981, %v821
      %v998 = vmul.f32 %v982, %v822
      %v999 = vmul.f32 %v983, %v823
      %v1000 = vmul.f32 %v984, %v824
      %v1001 = vmul.f32 %v985, %v825
      %v1002 = vadd.f32 %v986, 0.0010179626
      %v1003 = vadd.f32 %v987, 0.0010179626
      %v1004 = vadd.f32 %v988, 0.0010179626
      %v1005 = vadd.f32 %v989, 0.0010179626
      %v1006 = vadd.f32 %v990, 0.0010179626
      %v1007 = vadd.f32 %v991, 0.0010179626
      %v1008 = vadd.f32 %v992, 0.0010179626
      %v1009 = vadd.f32 %v993, 0.0010179626
      %v1010 = vadd.f32 %v994, 0.0010179626
      %v1011 = vadd.f32 %v995, 0.0010179626
      %v1012 = vadd.f32 %v996, 0.0010179626
      %v1013 = vadd.f32 %v997, 0.0010179626
      %v1014 = vadd.f32 %v998, 0.0010179626
      %v1015 = vadd.f32 %v999, 0.0010179626
      %v1016 = vadd.f32 %v1000, 0.0010179626
      %v1017 = vadd.f32 %v1001, 0.0010179626
      %v1018 = vmul.f32 %v1002, %v810
      %v1019 = vmul.f32 %v1003, %v811
      %v1020 = vmul.f32 %v1004, %v812
      %v1021 = vmul.f32 %v1005, %v813
      %v1022 = vmul.f32 %v1006, %v814
      %v1023 = vmul.f32 %v1007, %v815
      %v1024 = vmul.f32 %v1008, %v816
      %v1025 = vmul.f32 %v1009, %v817
      %v1026 = vmul.f32 %v1010, %v818
      %v1027 = vmul.f32 %v1011, %v819
      %v1028 = vmul.f32 %v1012, %v820
      %v1029 = vmul.f32 %v1013, %v821
      %v1030 = vmul.f32 %v1014, %v822
      %v1031 = vmul.f32 %v1015, %v823
      %v1032 = vmul.f32 %v1016, %v824
      %v1033 = vmul.f32 %v1017, %v825
      %v1034 = vadd.f32 %v1018, 0.01407047
      %v1035 = vadd.f32 %v1019, 0.01407047
      %v1036 = vadd.f32 %v1020, 0.01407047
      %v1037 = vadd.f32 %v1021, 0.01407047
      %v1038 = vadd.f32 %v1022, 0.01407047
      %v1039 = vadd.f32 %v1023, 0.01407047
      %v1040 = vadd.f32 %v1024, 0.01407047
      %v1041 = vadd.f32 %v1025, 0.01407047
      %v1042 = vadd.f32 %v1026, 0.01407047
      %v1043 = vadd.f32 %v1027, 0.01407047
      %v1044 = vadd.f32 %v1028, 0.01407047
      %v1045 = vadd.f32 %v1029, 0.01407047
      %v1046 = vadd.f32 %v1030, 0.01407047
      %v1047 = vadd.f32 %v1031, 0.01407047
      %v1048 = vadd.f32 %v1032, 0.01407047
      %v1049 = vadd.f32 %v1033, 0.01407047
      %v1050 = vmul.f32 %v1034, %v810
      %v1051 = vmul.f32 %v1035, %v811
      %v1052 = vmul.f32 %v1036, %v812
      %v1053 = vmul.f32 %v1037, %v813
      %v1054 = vmul.f32 %v1038, %v814
      %v1055 = vmul.f32 %v1039, %v815
      %v1056 = vmul.f32 %v1040, %v816
      %v1057 = vmul.f32 %v1041, %v817
      %v1058 = vmul.f32 %v1042, %v818
      %v1059 = vmul.f32 %v1043, %v819
      %v1060 = vmul.f32 %v1044, %v820
      %v1061 = vmul.f32 %v1045, %v821
      %v1062 = vmul.f32 %v1046, %v822
      %v1063 = vmul.f32 %v1047, %v823
      %v1064 = vmul.f32 %v1048, %v824
      %v1065 = vmul.f32 %v1049, %v825
      %v1066 = vadd.f32 %v1050, 0.11098505
      %v1067 = vadd.f32 %v1051, 0.11098505
      %v1068 = vadd.f32 %v1052, 0.11098505
      %v1069 = vadd.f32 %v1053, 0.11098505
      %v1070 = vadd.f32 %v1054, 0.11098505
      %v1071 = vadd.f32 %v1055, 0.11098505
      %v1072 = vadd.f32 %v1056, 0.11098505
      %v1073 = vadd.f32 %v1057, 0.11098505
      %v1074 = vadd.f32 %v1058, 0.11098505
      %v1075 = vadd.f32 %v1059, 0.11098505
      %v1076 = vadd.f32 %v1060, 0.11098505
      %v1077 = vadd.f32 %v1061, 0.11098505
      %v1078 = vadd.f32 %v1062, 0.11098505
      %v1079 = vadd.f32 %v1063, 0.11098505
      %v1080 = vadd.f32 %v1064, 0.11098505
      %v1081 = vadd.f32 %v1065, 0.11098505
      %v1082 = vmul.f32 %v1066, %v810
      %v1083 = vmul.f32 %v1067, %v811
      %v1084 = vmul.f32 %v1068, %v812
      %v1085 = vmul.f32 %v1069, %v813
      %v1086 = vmul.f32 %v1070, %v814
      %v1087 = vmul.f32 %v1071, %v815
      %v1088 = vmul.f32 %v1072, %v816
      %v1089 = vmul.f32 %v1073, %v817
      %v1090 = vmul.f32 %v1074, %v818
      %v1091 = vmul.f32 %v1075, %v819
      %v1092 = vmul.f32 %v1076, %v820
      %v1093 = vmul.f32 %v1077, %v821
      %v1094 = vmul.f32 %v1078, %v822
      %v1095 = vmul.f32 %v1079, %v823
      %v1096 = vmul.f32 %v1080, %v824
      %v1097 = vmul.f32 %v1081, %v825
      %v1098 = vadd.f32 %v1082, 0.49746925
      %v1099 = vadd.f32 %v1083, 0.49746925
      %v1100 = vadd.f32 %v1084, 0.49746925
      %v1101 = vadd.f32 %v1085, 0.49746925
      %v1102 = vadd.f32 %v1086, 0.49746925
      %v1103 = vadd.f32 %v1087, 0.49746925
      %v1104 = vadd.f32 %v1088, 0.49746925
      %v1105 = vadd.f32 %v1089, 0.49746925
      %v1106 = vadd.f32 %v1090, 0.49746925
      %v1107 = vadd.f32 %v1091, 0.49746925
      %v1108 = vadd.f32 %v1092, 0.49746925
      %v1109 = vadd.f32 %v1093, 0.49746925
      %v1110 = vadd.f32 %v1094, 0.49746925
      %v1111 = vadd.f32 %v1095, 0.49746925
      %v1112 = vadd.f32 %v1096, 0.49746925
      %v1113 = vadd.f32 %v1097, 0.49746925
      %v1114 = vmul.f32 %v1098, %v810
      %v1115 = vmul.f32 %v1099, %v811
      %v1116 = vmul.f32 %v1100, %v812
      %v1117 = vmul.f32 %v1101, %v813
      %v1118 = vmul.f32 %v1102, %v814
      %v1119 = vmul.f32 %v1103, %v815
      %v1120 = vmul.f32 %v1104, %v816
      %v1121 = vmul.f32 %v1105, %v817
      %v1122 = vmul.f32 %v1106, %v818
      %v1123 = vmul.f32 %v1107, %v819
      %v1124 = vmul.f32 %v1108, %v820
      %v1125 = vmul.f32 %v1109, %v821
      %v1126 = vmul.f32 %v1110, %v822
      %v1127 = vmul.f32 %v1111, %v823
      %v1128 = vmul.f32 %v1112, %v824
      %v1129 = vmul.f32 %v1113, %v825
      %v1130 = vadd.f32 %v1114, 1.0
      %v1131 = vadd.f32 %v1115, 1.0
      %v1132 = vadd.f32 %v1116, 1.0
      %v1133 = vadd.f32 %v1117, 1.0
      %v1134 = vadd.f32 %v1118, 1.0
      %v1135 = vadd.f32 %v1119, 1.0
      %v1136 = vadd.f32 %v1120, 1.0
      %v1137 = vadd.f32 %v1121, 1.0
      %v1138 = vadd.f32 %v1122, 1.0
      %v1139 = vadd.f32 %v1123, 1.0
      %v1140 = vadd.f32 %v1124, 1.0
      %v1141 = vadd.f32 %v1125, 1.0
      %v1142 = vadd.f32 %v1126, 1.0
      %v1143 = vadd.f32 %v1127, 1.0
      %v1144 = vadd.f32 %v1128, 1.0
      %v1145 = vadd.f32 %v1129, 1.0
      %v1146 = vmul.f32 %v794, %v938
      %v1147 = vmul.f32 %v795, %v939
      %v1148 = vmul.f32 %v796, %v940
      %v1149 = vmul.f32 %v797, %v941
      %v1150 = vmul.f32 %v798, %v942
      %v1151 = vmul.f32 %v799, %v943
      %v1152 = vmul.f32 %v800, %v944
      %v1153 = vmul.f32 %v801, %v945
      %v1154 = vmul.f32 %v802, %v946
      %v1155 = vmul.f32 %v803, %v947
      %v1156 = vmul.f32 %v804, %v948
      %v1157 = vmul.f32 %v805, %v949
      %v1158 = vmul.f32 %v806, %v950
      %v1159 = vmul.f32 %v807, %v951
      %v1160 = vmul.f32 %v808, %v952
      %v1161 = vmul.f32 %v809, %v953
      %v1162 = vrcp.pop %v1130
      %v1163 = vrcp.pop %v1131
      %v1164 = vrcp.pop %v1132
      %v1165 = vrcp.pop %v1133
      %v1166 = vrcp.pop %v1134
      %v1167 = vrcp.pop %v1135
      %v1168 = vrcp.pop %v1136
      %v1169 = vrcp.pop %v1137
      %v1170 = vrcp.pop %v1138
      %v1171 = vrcp.pop %v1139
      %v1172 = vrcp.pop %v1140
      %v1173 = vrcp.pop %v1141
      %v1174 = vrcp.pop %v1142
      %v1175 = vrcp.pop %v1143
      %v1176 = vrcp.pop %v1144
      %v1177 = vrcp.pop %v1145
      %v1178 = vmul.f32 %v1146, %v1162
      %v1179 = vmul.f32 %v1147, %v1163
      %v1180 = vmul.f32 %v1148, %v1164
      %v1181 = vmul.f32 %v1149, %v1165
      %v1182 = vmul.f32 %v1150, %v1166
      %v1183 = vmul.f32 %v1151, %v1167
      %v1184 = vmul.f32 %v1152, %v1168
      %v1185 = vmul.f32 %v1153, %v1169
      %v1186 = vmul.f32 %v1154, %v1170
      %v1187 = vmul.f32 %v1155, %v1171
      %v1188 = vmul.f32 %v1156, %v1172
      %v1189 = vmul.f32 %v1157, %v1173
      %v1190 = vmul.f32 %v1158, %v1174
      %v1191 = vmul.f32 %v1159, %v1175
      %v1192 = vmul.f32 %v1160, %v1176
      %v1193 = vmul.f32 %v1161, %v1177
      %v1194 = vadd.f32 %v1178, 1.0
      %v1195 = vadd.f32 %v1179, 1.0
      %v1196 = vadd.f32 %v1180, 1.0
      %v1197 = vadd.f32 %v1181, 1.0
      %v1198 = vadd.f32 %v1182, 1.0
      %v1199 = vadd.f32 %v1183, 1.0
      %v1200 = vadd.f32 %v1184, 1.0
      %v1201 = vadd.f32 %v1185, 1.0
      %v1202 = vadd.f32 %v1186, 1.0
      %v1203 = vadd.f32 %v1187, 1.0
      %v1204 = vadd.f32 %v1188, 1.0
      %v1205 = vadd.f32 %v1189, 1.0
      %v1206 = vadd.f32 %v1190, 1.0
      %v1207 = vadd.f32 %v1191, 1.0
      %v1208 = vadd.f32 %v1192, 1.0
      %v1209 = vadd.f32 %v1193, 1.0
      %v1210 = vmul.f32 %v746, %v1194
      %v1211 = vmul.f32 %v747, %v1195
      %v1212 = vmul.f32 %v748, %v1196
      %v1213 = vmul.f32 %v749, %v1197
      %v1214 = vmul.f32 %v750, %v1198
      %v1215 = vmul.f32 %v751, %v1199
      %v1216 = vmul.f32 %v752, %v1200
      %v1217 = vmul.f32 %v753, %v1201
      %v1218 = vmul.f32 %v754, %v1202
      %v1219 = vmul.f32 %v755, %v1203
      %v1220 = vmul.f32 %v756, %v1204
      %v1221 = vmul.f32 %v757, %v1205
      %v1222 = vmul.f32 %v758, %v1206
      %v1223 = vmul.f32 %v759, %v1207
      %v1224 = vmul.f32 %v760, %v1208
      %v1225 = vmul.f32 %v761, %v1209
      %v1226 = vmax.f32 %v1210, %v1214
      %v1227 = vmax.f32 %v1211, %v1215
      %v1228 = vmax.f32 %v1212, %v1216
      %v1229 = vmax.f32 %v1213, %v1217
      %v1230 = vmax.f32 %v1218, %v1222
      %v1231 = vmax.f32 %v1219, %v1223
      %v1232 = vmax.f32 %v1220, %v1224
      %v1233 = vmax.f32 %v1221, %v1225
      %v1234 = vmax.f32 %v1226, %v1230
      %v1235 = vmax.f32 %v1227, %v1231
      %v1236 = vmax.f32 %v1228, %v1232
      %v1237 = vmax.f32 %v1229, %v1233
      %1238 = vst.msk [vmem:[%s266] sm:$0xff] %vm327, %v1234
      %1239 = vst.msk [vmem:[%s266 + $0x8] sm:$0xff] %vm327, %v1235
      %1240 = vst.msk [vmem:[%s266 + $0x10] sm:$0xff] %vm327, %v1236
      %1241 = vst.msk [vmem:[%s266 + $0x18] sm:$0xff] %vm327, %v1237
      %v1242 = vld [vmem:[%s3] sm:$0x1]
      %v1244 = vlaneseq
      %v1245 = vshrl.u32 %v1244, 7
      %v1246 = vsub.s32 0, %v1245
      %v1247 = vrot.slane %v1242, %v1246
      %v1249 = vmul.f32 %v1234, %v1247
      %v1250 = vmul.f32 %v1235, %v1247
      %v1251 = vmul.f32 %v1236, %v1247
      %v1252 = vmul.f32 %v1237, %v1247
      %v1253 = vsel %vm327, %v1249, 0.0
      %1254 = vadd.xlane.f32.xlu0 %v1253
      %v1255 = vpop.xlane.xlu0 %1254
      %v1256 = vsel %vm327, %v1250, 0.0
      %1257 = vadd.xlane.f32.xlu0 %v1256
      %v1258 = vpop.xlane.xlu0 %1257
      %v1259 = vsel %vm327, %v1251, 0.0
      %1260 = vadd.xlane.f32.xlu0 %v1259
      %v1261 = vpop.xlane.xlu0 %1260
      %v1262 = vsel %vm327, %v1252, 0.0
      %1263 = vadd.xlane.f32.xlu0 %v1262
      %v1264 = vpop.xlane.xlu0 %1263
      %v1265 = vadd.f32 %v1255, 0.0
      %v1266 = vadd.f32 %v1258, 0.0
      %v1267 = vadd.f32 %v1261, 0.0
      %v1268 = vadd.f32 %v1264, 0.0
      %v1269 = vmul.f32 %v1234, %v1234
      %v1270 = vmul.f32 %v1235, %v1235
      %v1271 = vmul.f32 %v1236, %v1236
      %v1272 = vmul.f32 %v1237, %v1237
      %v1273 = vmul.f32 %v1269, %v1247
      %v1274 = vmul.f32 %v1270, %v1247
      %v1275 = vmul.f32 %v1271, %v1247
      %v1276 = vmul.f32 %v1272, %v1247
      %v1277 = vsel %vm327, %v1273, 0.0
      %1278 = vadd.xlane.f32.xlu0 %v1277
      %v1279 = vpop.xlane.xlu0 %1278
      %v1280 = vsel %vm327, %v1274, 0.0
      %1281 = vadd.xlane.f32.xlu0 %v1280
      %v1282 = vpop.xlane.xlu0 %1281
      %v1283 = vsel %vm327, %v1275, 0.0
      %1284 = vadd.xlane.f32.xlu0 %v1283
      %v1285 = vpop.xlane.xlu0 %1284
      %v1286 = vsel %vm327, %v1276, 0.0
      %1287 = vadd.xlane.f32.xlu0 %v1286
      %v1288 = vpop.xlane.xlu0 %1287
      %v1289 = vadd.f32 %v1279, 0.0
      %v1290 = vadd.f32 %v1282, 0.0
      %v1291 = vadd.f32 %v1285, 0.0
      %v1292 = vadd.f32 %v1288, 0.0
      %vm1293 = vcmask 7168
      %1294 = vst.msk [vmem:[%s271] sm:$0xff] %vm1293, %v1265
      %1295 = vst.msk [vmem:[%s271 + $0x8] sm:$0xff] %vm1293, %v1266
      %1296 = vst.msk [vmem:[%s271 + $0x10] sm:$0xff] %vm1293, %v1267
      %1297 = vst.msk [vmem:[%s271 + $0x18] sm:$0xff] %vm1293, %v1268
      %1298 = vst.msk [vmem:[%s276] sm:$0xff] %vm1293, %v1289
      %1299 = vst.msk [vmem:[%s276 + $0x8] sm:$0xff] %vm1293, %v1290
      %1300 = vst.msk [vmem:[%s276 + $0x10] sm:$0xff] %vm1293, %v1291
      %1301 = vst.msk [vmem:[%s276 + $0x18] sm:$0xff] %vm1293, %v1292
      %p1302 = scmp.lt.s32.totalorder %s18, 1
      %s1303 = scalar_select %p1302, %s18, 1
      %s1304 = smul.addr %s1303, 4
      %s1305 = smul.addr %s1304, 8
      %s1306 = scalar_lea.vmem %s4, %s1305
      %p1307 = scmp.lt.s32.totalorder %s18, 1
      %s1308 = scalar_select %p1307, %s18, 1
      %s1309 = smul.addr %s1308, 4
      %s1310 = smul.addr %s1309, 8
      %s1311 = scalar_lea.vmem %s5, %s1310
      %p1312 = scmp.lt.s32.totalorder %s18, 1
      %s1313 = scalar_select %p1312, %s18, 1
      %s1314 = smul.addr %s1313, 4
      %s1315 = smul.addr %s1314, 8
      %s1316 = scalar_lea.vmem %s6, %s1315
      // Predicated region
      $region37: #{resisc45_cnn_forward.8} parent=35 // pred_check
        %p1317 = pneg %p125
      $region38: #{resisc45_cnn_forward.8} parent=35 // pred_check_branch
        %1319 = sbr.rel (%p1317) target = $region40
      $region39: #{resisc45_cnn_forward.8} parent=35 // pred_region
        _
      $region40: #{resisc45_cnn_forward.8} parent=35 // pred_fallthru
        _
      // Predicated region
      $region41: #{resisc45_cnn_forward.8} parent=35 // pred_check
        %p1320 = pneg %p151
      $region42: #{resisc45_cnn_forward.8} parent=35 // pred_check_branch
        %1322 = sbr.rel (%p1320) target = $region44
      $region43: #{resisc45_cnn_forward.8} parent=35 // pred_region
        _
      $region44: #{resisc45_cnn_forward.8} parent=35 // pred_fallthru
        _
      // Predicated region
      $region45: #{resisc45_cnn_forward.8} parent=35 // pred_check
        %p1323 = pneg %p177
      $region46: #{resisc45_cnn_forward.8} parent=35 // pred_check_branch
        %1325 = sbr.rel (%p1323) target = $region48
      $region47: #{resisc45_cnn_forward.8} parent=35 // pred_region
        _
      $region48: #{resisc45_cnn_forward.8} parent=35 // pred_fallthru
        _
    $region36: #{resisc45_cnn_forward.8} parent=5 // pred_fallthru
      _
    %p1326 = scmp.le.s32.totalorder 2, %s13
    // Predicated region
    $region49: #{resisc45_cnn_forward.8} parent=5 // pred_check
      %p1327 = pneg %p1326
    $region50: #{resisc45_cnn_forward.8} parent=5 // pred_check_branch
      %1329 = sbr.rel (%p1327) target = $region52
    $region51: #{resisc45_cnn_forward.8} parent=5 // pred_region
      %s1330 = ssub.s32 %s13, 2
      // Predicated region
      $region53: #{resisc45_cnn_forward.8} parent=51 // pred_check
        %p1331 = pneg %p131
      $region54: #{resisc45_cnn_forward.8} parent=51 // pred_check_branch
        %1333 = sbr.rel (%p1331) target = $region56
      $region55: #{resisc45_cnn_forward.8} parent=51 // pred_region
        %p1334 = scmp.lt.s32.totalorder %s19, 1
        %s1335 = scalar_select %p1334, %s19, 1
        %s1336 = smul.addr %s1335, 4
        %s1337 = smul.addr %s1336, 8
        %s1338 = scalar_lea.vmem %s4, %s1337
      $region56: #{resisc45_cnn_forward.8} parent=51 // pred_fallthru
        _
      // Predicated region
      $region57: #{resisc45_cnn_forward.8} parent=51 // pred_check
        %p1339 = pneg %p157
      $region58: #{resisc45_cnn_forward.8} parent=51 // pred_check_branch
        %1341 = sbr.rel (%p1339) target = $region60
      $region59: #{resisc45_cnn_forward.8} parent=51 // pred_region
        %p1342 = scmp.lt.s32.totalorder %s19, 1
        %s1343 = scalar_select %p1342, %s19, 1
        %s1344 = smul.addr %s1343, 4
        %s1345 = smul.addr %s1344, 8
        %s1346 = scalar_lea.vmem %s5, %s1345
      $region60: #{resisc45_cnn_forward.8} parent=51 // pred_fallthru
        _
      // Predicated region
      $region61: #{resisc45_cnn_forward.8} parent=51 // pred_check
        %p1347 = pneg %p183
      $region62: #{resisc45_cnn_forward.8} parent=51 // pred_check_branch
        %1349 = sbr.rel (%p1347) target = $region64
      $region63: #{resisc45_cnn_forward.8} parent=51 // pred_region
        %p1350 = scmp.lt.s32.totalorder %s19, 1
        %s1351 = scalar_select %p1350, %s19, 1
        %s1352 = smul.addr %s1351, 4
        %s1353 = smul.addr %s1352, 8
        %s1354 = scalar_lea.vmem %s6, %s1353
      $region64: #{resisc45_cnn_forward.8} parent=51 // pred_fallthru
        _
    $region52: #{resisc45_cnn_forward.8} parent=5 // pred_fallthru
      _
  $region6: #{resisc45_cnn_forward.8} parent=0 // loop_footer
    %s17 = sadd.s32 1, %s13
  $region7: #{resisc45_cnn_forward.8} parent=0 // loop_footer_branch
    %12 = sbr.rel target = $region3
  $region8: #{resisc45_cnn_forward.8} parent=0 // loop_exit
    _

// kernel: tile.28
$region0: #{tile.28}
  #allocation0 [shape = 's32[1]{0}', space=sflag, size = 0x4, scoped, tag = 'scoped memory for tile.28']
  %s0 = inlined_call_operand.vmem [shape: f32[64], index: 0, kind: input, shape index: {}]
  %s1 = inlined_call_operand.vmem [shape: f32[4,64], index: 1, kind: output, shape index: {}]
  // Predicated region
  $region2: #{tile.28} parent=0 // pred_check
    _
  $region3: #{tile.28} parent=0 // pred_check_branch
    %3 = sbr.rel (0) target = $region5
  $region4: #{tile.28} parent=0 // pred_region
    _
  $region5: #{tile.28} parent=0 // pred_fallthru
    _
  %v4 = vld [vmem:[%s0] ss:$0 sm:$0xff]
  %5 = vst [vmem:[%s1] sm:$0xf] %v4

// kernel: tile.2
$region0: #{tile.2}
  %s0 = inlined_call_operand.vmem [shape: f32[4,64], index: 0, kind: input, shape index: {}]
  %s1 = inlined_call_operand.vmem [shape: f32[256,1], index: 1, kind: output, shape index: {}]
  $region1: #{tile.2} parent=0
    #allocation0 [shape = 'u8[4096]{0}', space=vmem, size = 0x1000, scoped, tag = 'scoped mem for input reshape']
    %s3 = sshll.u32 1, 4
    %s4 = ssub.s32 %s3, 1
    %v5 = vld [vmem:[%s0] sm:%s4]
    %6 = vst [vmem:[#allocation0] sm:%s4] %v5
    %v7 = vld [vmem:[#allocation0] sm:$0xf]
    %vm8 = vcmask 7168
    %9 = vst.msk [vmem:[%s1] sm:$0x1] %vm8, %v7
    %s10 = scalar_lea.vmem %s1, 63
    %11 = vst.msk [vmem:[%s10] sm:$0x2] %vm8, %v7
    %s12 = scalar_lea.vmem %s1, 126
    %13 = vst.msk [vmem:[%s12] sm:$0x4] %vm8, %v7
    %s14 = scalar_lea.vmem %s1, 189
    %15 = vst.msk [vmem:[%s14] sm:$0x8] %vm8, %v7
    %v16 = vld [vmem:[#allocation0] sm:$0xf]
    %17 = vrot.lane.b32.xlu0 %v16, 127
    %v18 = vpop.permute.xlu0 %17
    %vm19 = vcmask 7168
    %s20 = scalar_lea.vmem %s1, 1
    %21 = vst.msk [vmem:[%s20] sm:$0x1] %vm19, %v18
    %s22 = scalar_lea.vmem %s1, 64
    %23 = vst.msk [vmem:[%s22] sm:$0x2] %vm19, %v18
    %s24 = scalar_lea.vmem %s1, 127
    %25 = vst.msk [vmem:[%s24] sm:$0x4] %vm19, %v18
    %s26 = scalar_lea.vmem %s1, 190
    %27 = vst.msk [vmem:[%s26] sm:$0x8] %vm19, %v18
    %v28 = vld [vmem:[#allocation0] sm:$0xf]
    %29 = vrot.lane.b32.xlu0 %v28, 126
    %v30 = vpop.permute.xlu0 %29
    %vm31 = vcmask 7168
    %s32 = scalar_lea.vmem %s1, 2
    %33 = vst.msk [vmem:[%s32] sm:$0x1] %vm31, %v30
    %s34 = scalar_lea.vmem %s1, 65
    %35 = vst.msk [vmem:[%s34] sm:$0x2] %vm31, %v30
    %s36 = scalar_lea.vmem %s1, 128
    %37 = vst.msk [vmem:[%s36] sm:$0x4] %vm31, %v30
    %s38 = scalar_lea.vmem %s1, 191
    %39 = vst.msk [vmem:[%s38] sm:$0x8] %vm31, %v30
    %v40 = vld [vmem:[#allocation0] sm:$0xf]
    %41 = vrot.lane.b32.xlu0 %v40, 125
    %v42 = vpop.permute.xlu0 %41
    %vm43 = vcmask 7168
    %s44 = scalar_lea.vmem %s1, 3
    %45 = vst.msk [vmem:[%s44] sm:$0x1] %vm43, %v42
    %s46 = scalar_lea.vmem %s1, 66
    %47 = vst.msk [vmem:[%s46] sm:$0x2] %vm43, %v42
    %s48 = scalar_lea.vmem %s1, 129
    %49 = vst.msk [vmem:[%s48] sm:$0x4] %vm43, %v42
    %s50 = scalar_lea.vmem %s1, 192
    %51 = vst.msk [vmem:[%s50] sm:$0x8] %vm43, %v42
    %v52 = vld [vmem:[#allocation0] sm:$0xf]
    %53 = vrot.lane.b32.xlu0 %v52, 124
    %v54 = vpop.permute.xlu0 %53
    %vm55 = vcmask 7168
    %s56 = scalar_lea.vmem %s1, 4
    %57 = vst.msk [vmem:[%s56] sm:$0x1] %vm55, %v54
    %s58 = scalar_lea.vmem %s1, 67
    %59 = vst.msk [vmem:[%s58] sm:$0x2] %vm55, %v54
    %s60 = scalar_lea.vmem %s1, 130
    %61 = vst.msk [vmem:[%s60] sm:$0x4] %vm55, %v54
    %s62 = scalar_lea.vmem %s1, 193
    %63 = vst.msk [vmem:[%s62] sm:$0x8] %vm55, %v54
    %v64 = vld [vmem:[#allocation0] sm:$0xf]
    %65 = vrot.lane.b32.xlu0 %v64, 123
    %v66 = vpop.permute.xlu0 %65
    %vm67 = vcmask 7168
    %s68 = scalar_lea.vmem %s1, 5
    %69 = vst.msk [vmem:[%s68] sm:$0x1] %vm67, %v66
    %s70 = scalar_lea.vmem %s1, 68
    %71 = vst.msk [vmem:[%s70] sm:$0x2] %vm67, %v66
    %s72 = scalar_lea.vmem %s1, 131
    %73 = vst.msk [vmem:[%s72] sm:$0x4] %vm67, %v66
    %s74 = scalar_lea.vmem %s1, 194
    %75 = vst.msk [vmem:[%s74] sm:$0x8] %vm67, %v66
    %v76 = vld [vmem:[#allocation0] sm:$0xf]
    %77 = vrot.lane.b32.xlu0 %v76, 122
    %v78 = vpop.permute.xlu0 %77
    %vm79 = vcmask 7168
    %s80 = scalar_lea.vmem %s1, 6
    %81 = vst.msk [vmem:[%s80] sm:$0x1] %vm79, %v78
    %s82 = scalar_lea.vmem %s1, 69
    %83 = vst.msk [vmem:[%s82] sm:$0x2] %vm79, %v78
    %s84 = scalar_lea.vmem %s1, 132
    %85 = vst.msk [vmem:[%s84] sm:$0x4] %vm79, %v78
    %s86 = scalar_lea.vmem %s1, 195
    %87 = vst.msk [vmem:[%s86] sm:$0x8] %vm79, %v78
    %v88 = vld [vmem:[#allocation0] sm:$0xf]
    %89 = vrot.lane.b32.xlu0 %v88, 121
    %v90 = vpop.permute.xlu0 %89
    %vm91 = vcmask 7168
    %s92 = scalar_lea.vmem %s1, 7
    %93 = vst.msk [vmem:[%s92] sm:$0x1] %vm91, %v90
    %s94 = scalar_lea.vmem %s1, 70
    %95 = vst.msk [vmem:[%s94] sm:$0x2] %vm91, %v90
    %s96 = scalar_lea.vmem %s1, 133
    %97 = vst.msk [vmem:[%s96] sm:$0x4] %vm91, %v90
    %s98 = scalar_lea.vmem %s1, 196
    %99 = vst.msk [vmem:[%s98] sm:$0x8] %vm91, %v90
    %v100 = vld [vmem:[#allocation0] sm:$0xf]
    %101 = vrot.lane.b32.xlu0 %v100, 120
    %v102 = vpop.permute.xlu0 %101
    %vm103 = vcmask 7168
    %s104 = scalar_lea.vmem %s1, 8
    %105 = vst.msk [vmem:[%s104] sm:$0x1] %vm103, %v102
    %s106 = scalar_lea.vmem %s1, 71
    %107 = vst.msk [vmem:[%s106] sm:$0x2] %vm103, %v102
    %s108 = scalar_lea.vmem %s1, 134
    %109 = vst.msk [vmem:[%s108] sm:$0x4] %vm103, %v102
    %s110 = scalar_lea.vmem %s1, 197
    %111 = vst.msk [vmem:[%s110] sm:$0x8] %vm103, %v102
    %v112 = vld [vmem:[#allocation0] sm:$0xf]
    %113 = vrot.lane.b32.xlu0 %v112, 119
    %v114 = vpop.permute.xlu0 %113
    %vm115 = vcmask 7168
    %s116 = scalar_lea.vmem %s1, 9
    %117 = vst.msk [vmem:[%s116] sm:$0x1] %vm115, %v114
    %s118 = scalar_lea.vmem %s1, 72
    %119 = vst.msk [vmem:[%s118] sm:$0x2] %vm115, %v114
    %s120 = scalar_lea.vmem %s1, 135
    %121 = vst.msk [vmem:[%s120] sm:$0x4] %vm115, %v114
    %s122 = scalar_lea.vmem %s1, 198
    %123 = vst.msk [vmem:[%s122] sm:$0x8] %vm115, %v114
    %v124 = vld [vmem:[#allocation0] sm:$0xf]
    %125 = vrot.lane.b32.xlu0 %v124, 118
    %v126 = vpop.permute.xlu0 %125
    %vm127 = vcmask 7168
    %s128 = scalar_lea.vmem %s1, 10
    %129 = vst.msk [vmem:[%s128] sm:$0x1] %vm127, %v126
    %s130 = scalar_lea.vmem %s1, 73
    %131 = vst.msk [vmem:[%s130] sm:$0x2] %vm127, %v126
    %s132 = scalar_lea.vmem %s1, 136
    %133 = vst.msk [vmem:[%s132] sm:$0x4] %vm127, %v126
    %s134 = scalar_lea.vmem %s1, 199
    %135 = vst.msk [vmem:[%s134] sm:$0x8] %vm127, %v126
    %v136 = vld [vmem:[#allocation0] sm:$0xf]
    %137 = vrot.lane.b32.xlu0 %v136, 117
    %v138 = vpop.permute.xlu0 %137
    %vm139 = vcmask 7168
    %s140 = scalar_lea.vmem %s1, 11
    %141 = vst.msk [vmem:[%s140] sm:$0x1] %vm139, %v138
    %s142 = scalar_lea.vmem %s1, 74
    %143 = vst.msk [vmem:[%s142] sm:$0x2] %vm139, %v138
    %s144 = scalar_lea.vmem %s1, 137
    %145 = vst.msk [vmem:[%s144] sm:$0x4] %vm139, %v138
    %s146 = scalar_lea.vmem %s1, 200
    %147 = vst.msk [vmem:[%s146] sm:$0x8] %vm139, %v138
    %v148 = vld [vmem:[#allocation0] sm:$0xf]
    %149 = vrot.lane.b32.xlu0 %v148, 116
    %v150 = vpop.permute.xlu0 %149
    %vm151 = vcmask 7168
    %s152 = scalar_lea.vmem %s1, 12
    %153 = vst.msk [vmem:[%s152] sm:$0x1] %vm151, %v150
    %s154 = scalar_lea.vmem %s1, 75
    %155 = vst.msk [vmem:[%s154] sm:$0x2] %vm151, %v150
    %s156 = scalar_lea.vmem %s1, 138
    %157 = vst.msk [vmem:[%s156] sm:$0x4] %vm151, %v150
    %s158 = scalar_lea.vmem %s1, 201
    %159 = vst.msk [vmem:[%s158] sm:$0x8] %vm151, %v150
    %v160 = vld [vmem:[#allocation0] sm:$0xf]
    %161 = vrot.lane.b32.xlu0 %v160, 115
    %v162 = vpop.permute.xlu0 %161
    %vm163 = vcmask 7168
    %s164 = scalar_lea.vmem %s1, 13
    %165 = vst.msk [vmem:[%s164] sm:$0x1] %vm163, %v162
    %s166 = scalar_lea.vmem %s1, 76
    %167 = vst.msk [vmem:[%s166] sm:$0x2] %vm163, %v162
    %s168 = scalar_lea.vmem %s1, 139
    %169 = vst.msk [vmem:[%s168] sm:$0x4] %vm163, %v162
    %s170 = scalar_lea.vmem %s1, 202
    %171 = vst.msk [vmem:[%s170] sm:$0x8] %vm163, %v162
    %v172 = vld [vmem:[#allocation0] sm:$0xf]
    %173 = vrot.lane.b32.xlu0 %v172, 114
    %v174 = vpop.permute.xlu0 %173
    %vm175 = vcmask 7168
    %s176 = scalar_lea.vmem %s1, 14
    %177 = vst.msk [vmem:[%s176] sm:$0x1] %vm175, %v174
    %s178 = scalar_lea.vmem %s1, 77
    %179 = vst.msk [vmem:[%s178] sm:$0x2] %vm175, %v174
    %s180 = scalar_lea.vmem %s1, 140
    %181 = vst.msk [vmem:[%s180] sm:$0x4] %vm175, %v174
    %s182 = scalar_lea.vmem %s1, 203
    %183 = vst.msk [vmem:[%s182] sm:$0x8] %vm175, %v174
    %v184 = vld [vmem:[#allocation0] sm:$0xf]
    %185 = vrot.lane.b32.xlu0 %v184, 113
    %v186 = vpop.permute.xlu0 %185
    %vm187 = vcmask 7168
    %s188 = scalar_lea.vmem %s1, 15
    %189 = vst.msk [vmem:[%s188] sm:$0x1] %vm187, %v186
    %s190 = scalar_lea.vmem %s1, 78
    %191 = vst.msk [vmem:[%s190] sm:$0x2] %vm187, %v186
    %s192 = scalar_lea.vmem %s1, 141
    %193 = vst.msk [vmem:[%s192] sm:$0x4] %vm187, %v186
    %s194 = scalar_lea.vmem %s1, 204
    %195 = vst.msk [vmem:[%s194] sm:$0x8] %vm187, %v186
    %v196 = vld [vmem:[#allocation0] sm:$0xf]
    %197 = vrot.lane.b32.xlu0 %v196, 112
    %v198 = vpop.permute.xlu0 %197
    %vm199 = vcmask 7168
    %s200 = scalar_lea.vmem %s1, 16
    %201 = vst.msk [vmem:[%s200] sm:$0x1] %vm199, %v198
    %s202 = scalar_lea.vmem %s1, 79
    %203 = vst.msk [vmem:[%s202] sm:$0x2] %vm199, %v198
    %s204 = scalar_lea.vmem %s1, 142
    %205 = vst.msk [vmem:[%s204] sm:$0x4] %vm199, %v198
    %s206 = scalar_lea.vmem %s1, 205
    %207 = vst.msk [vmem:[%s206] sm:$0x8] %vm199, %v198
    %v208 = vld [vmem:[#allocation0] sm:$0xf]
    %209 = vrot.lane.b32.xlu0 %v208, 111
    %v210 = vpop.permute.xlu0 %209
    %vm211 = vcmask 7168
    %s212 = scalar_lea.vmem %s1, 17
    %213 = vst.msk [vmem:[%s212] sm:$0x1] %vm211, %v210
    %s214 = scalar_lea.vmem %s1, 80
    %215 = vst.msk [vmem:[%s214] sm:$0x2] %vm211, %v210
    %s216 = scalar_lea.vmem %s1, 143
    %217 = vst.msk [vmem:[%s216] sm:$0x4] %vm211, %v210
    %s218 = scalar_lea.vmem %s1, 206
    %219 = vst.msk [vmem:[%s218] sm:$0x8] %vm211, %v210
    %v220 = vld [vmem:[#allocation0] sm:$0xf]
    %221 = vrot.lane.b32.xlu0 %v220, 110
    %v222 = vpop.permute.xlu0 %221
    %vm223 = vcmask 7168
    %s224 = scalar_lea.vmem %s1, 18
    %225 = vst.msk [vmem:[%s224] sm:$0x1] %vm223, %v222
    %s226 = scalar_lea.vmem %s1, 81
    %227 = vst.msk [vmem:[%s226] sm:$0x2] %vm223, %v222
    %s228 = scalar_lea.vmem %s1, 144
    %229 = vst.msk [vmem:[%s228] sm:$0x4] %vm223, %v222
    %s230 = scalar_lea.vmem %s1, 207
    %231 = vst.msk [vmem:[%s230] sm:$0x8] %vm223, %v222
    %v232 = vld [vmem:[#allocation0] sm:$0xf]
    %233 = vrot.lane.b32.xlu0 %v232, 109
    %v234 = vpop.permute.xlu0 %233
    %vm235 = vcmask 7168
    %s236 = scalar_lea.vmem %s1, 19
    %237 = vst.msk [vmem:[%s236] sm:$0x1] %vm235, %v234
    %s238 = scalar_lea.vmem %s1, 82
    %239 = vst.msk [vmem:[%s238] sm:$0x2] %vm235, %v234
    %s240 = scalar_lea.vmem %s1, 145
    %241 = vst.msk [vmem:[%s240] sm:$0x4] %vm235, %v234
    %s242 = scalar_lea.vmem %s1, 208
    %243 = vst.msk [vmem:[%s242] sm:$0x8] %vm235, %v234
    %v244 = vld [vmem:[#allocation0] sm:$0xf]
    %245 = vrot.lane.b32.xlu0 %v244, 108
    %v246 = vpop.permute.xlu0 %245
    %vm247 = vcmask 7168
    %s248 = scalar_lea.vmem %s1, 20
    %249 = vst.msk [vmem:[%s248] sm:$0x1] %vm247, %v246
    %s250 = scalar_lea.vmem %s1, 83
    %251 = vst.msk [vmem:[%s250] sm:$0x2] %vm247, %v246
    %s252 = scalar_lea.vmem %s1, 146
    %253 = vst.msk [vmem:[%s252] sm:$0x4] %vm247, %v246
    %s254 = scalar_lea.vmem %s1, 209
    %255 = vst.msk [vmem:[%s254] sm:$0x8] %vm247, %v246
    %v256 = vld [vmem:[#allocation0] sm:$0xf]
    %257 = vrot.lane.b32.xlu0 %v256, 107
    %v258 = vpop.permute.xlu0 %257
    %vm259 = vcmask 7168
    %s260 = scalar_lea.vmem %s1, 21
    %261 = vst.msk [vmem:[%s260] sm:$0x1] %vm259, %v258
    %s262 = scalar_lea.vmem %s1, 84
    %263 = vst.msk [vmem:[%s262] sm:$0x2] %vm259, %v258
    %s264 = scalar_lea.vmem %s1, 147
    %265 = vst.msk [vmem:[%s264] sm:$0x4] %vm259, %v258
    %s266 = scalar_lea.vmem %s1, 210
    %267 = vst.msk [vmem:[%s266] sm:$0x8] %vm259, %v258
    %v268 = vld [vmem:[#allocation0] sm:$0xf]
    %269 = vrot.lane.b32.xlu0 %v268, 106
    %v270 = vpop.permute.xlu0 %269
    %vm271 = vcmask 7168
    %s272 = scalar_lea.vmem %s1, 22
    %273 = vst.msk [vmem:[%s272] sm:$0x1] %vm271, %v270
    %s274 = scalar_lea.vmem %s1, 85
    %275 = vst.msk [vmem:[%s274] sm:$0x2] %vm271, %v270
    %s276 = scalar_lea.vmem %s1, 148
    %277 = vst.msk [vmem:[%s276] sm:$0x4] %vm271, %v270
    %s278 = scalar_lea.vmem %s1, 211
    %279 = vst.msk [vmem:[%s278] sm:$0x8] %vm271, %v270
    %v280 = vld [vmem:[#allocation0] sm:$0xf]
    %281 = vrot.lane.b32.xlu0 %v280, 105
    %v282 = vpop.permute.xlu0 %281
    %vm283 = vcmask 7168
    %s284 = scalar_lea.vmem %s1, 23
    %285 = vst.msk [vmem:[%s284] sm:$0x1] %vm283, %v282
    %s286 = scalar_lea.vmem %s1, 86
    %287 = vst.msk [vmem:[%s286] sm:$0x2] %vm283, %v282
    %s288 = scalar_lea.vmem %s1, 149
    %289 = vst.msk [vmem:[%s288] sm:$0x4] %vm283, %v282
    %s290 = scalar_lea.vmem %s1, 212
    %291 = vst.msk [vmem:[%s290] sm:$0x8] %vm283, %v282
    %v292 = vld [vmem:[#allocation0] sm:$0xf]
    %293 = vrot.lane.b32.xlu0 %v292, 104
    %v294 = vpop.permute.xlu0 %293
    %vm295 = vcmask 7168
    %s296 = scalar_lea.vmem %s1, 24
    %297 = vst.msk [vmem:[%s296] sm:$0x1] %vm295, %v294
    %s298 = scalar_lea.vmem %s1, 87
    %299 = vst.msk [vmem:[%s298] sm:$0x2] %vm295, %v294
    %s300 = scalar_lea.vmem %s1, 150
    %301 = vst.msk [vmem:[%s300] sm:$0x4] %vm295, %v294
    %s302 = scalar_lea.vmem %s1, 213
    %303 = vst.msk [vmem:[%s302] sm:$0x8] %vm295, %v294
    %v304 = vld [vmem:[#allocation0] sm:$0xf]
    %305 = vrot.lane.b32.xlu0 %v304, 103
    %v306 = vpop.permute.xlu0 %305
    %vm307 = vcmask 7168
    %s308 = scalar_lea.vmem %s1, 25
    %309 = vst.msk [vmem:[%s308] sm:$0x1] %vm307, %v306
    %s310 = scalar_lea.vmem %s1, 88
    %311 = vst.msk [vmem:[%s310] sm:$0x2] %vm307, %v306
    %s312 = scalar_lea.vmem %s1, 151
    %313 = vst.msk [vmem:[%s312] sm:$0x4] %vm307, %v306
    %s314 = scalar_lea.vmem %s1, 214
    %315 = vst.msk [vmem:[%s314] sm:$0x8] %vm307, %v306
    %v316 = vld [vmem:[#allocation0] sm:$0xf]
    %317 = vrot.lane.b32.xlu0 %v316, 102
    %v318 = vpop.permute.xlu0 %317
    %vm319 = vcmask 7168
    %s320 = scalar_lea.vmem %s1, 26
    %321 = vst.msk [vmem:[%s320] sm:$0x1] %vm319, %v318
    %s322 = scalar_lea.vmem %s1, 89
    %323 = vst.msk [vmem:[%s322] sm:$0x2] %vm319, %v318
    %s324 = scalar_lea.vmem %s1, 152
    %325 = vst.msk [vmem:[%s324] sm:$0x4] %vm319, %v318
    %s326 = scalar_lea.vmem %s1, 215
    %327 = vst.msk [vmem:[%s326] sm:$0x8] %vm319, %v318
    %v328 = vld [vmem:[#allocation0] sm:$0xf]
    %329 = vrot.lane.b32.xlu0 %v328, 101
    %v330 = vpop.permute.xlu0 %329
    %vm331 = vcmask 7168
    %s332 = scalar_lea.vmem %s1, 27
    %333 = vst.msk [vmem:[%s332] sm:$0x1] %vm331, %v330
    %s334 = scalar_lea.vmem %s1, 90
    %335 = vst.msk [vmem:[%s334] sm:$0x2] %vm331, %v330
    %s336 = scalar_lea.vmem %s1, 153
    %337 = vst.msk [vmem:[%s336] sm:$0x4] %vm331, %v330
    %s338 = scalar_lea.vmem %s1, 216
    %339 = vst.msk [vmem:[%s338] sm:$0x8] %vm331, %v330
    %v340 = vld [vmem:[#allocation0] sm:$0xf]
    %341 = vrot.lane.b32.xlu0 %v340, 100
    %v342 = vpop.permute.xlu0 %341
    %vm343 = vcmask 7168
    %s344 = scalar_lea.vmem %s1, 28
    %345 = vst.msk [vmem:[%s344] sm:$0x1] %vm343, %v342
    %s346 = scalar_lea.vmem %s1, 91
    %347 = vst.msk [vmem:[%s346] sm:$0x2] %vm343, %v342
    %s348 = scalar_lea.vmem %s1, 154
    %349 = vst.msk [vmem:[%s348] sm:$0x4] %vm343, %v342
    %s350 = scalar_lea.vmem %s1, 217
    %351 = vst.msk [vmem:[%s350] sm:$0x8] %vm343, %v342
    %v352 = vld [vmem:[#allocation0] sm:$0xf]
    %353 = vrot.lane.b32.xlu0 %v352, 99
    %v354 = vpop.permute.xlu0 %353
    %vm355 = vcmask 7168
    %s356 = scalar_lea.vmem %s1, 29
    %357 = vst.msk [vmem:[%s356] sm:$0x1] %vm355, %v354
    %s358 = scalar_lea.vmem %s1, 92
    %359 = vst.msk [vmem:[%s358] sm:$0x2] %vm355, %v354
    %s360 = scalar_lea.vmem %s1, 155
    %361 = vst.msk [vmem:[%s360] sm:$0x4] %vm355, %v354
    %s362 = scalar_lea.vmem %s1, 218
    %363 = vst.msk [vmem:[%s362] sm:$0x8] %vm355, %v354
    %v364 = vld [vmem:[#allocation0] sm:$0xf]
    %365 = vrot.lane.b32.xlu0 %v364, 98
    %v366 = vpop.permute.xlu0 %365
    %vm367 = vcmask 7168
    %s368 = scalar_lea.vmem %s1, 30
    %369 = vst.msk [vmem:[%s368] sm:$0x1] %vm367, %v366
    %s370 = scalar_lea.vmem %s1, 93
    %371 = vst.msk [vmem:[%s370] sm:$0x2] %vm367, %v366
    %s372 = scalar_lea.vmem %s1, 156
    %373 = vst.msk [vmem:[%s372] sm:$0x4] %vm367, %v366
    %s374 = scalar_lea.vmem %s1, 219
    %375 = vst.msk [vmem:[%s374] sm:$0x8] %vm367, %v366
    %v376 = vld [vmem:[#allocation0] sm:$0xf]
    %377 = vrot.lane.b32.xlu0 %v376, 97
    %v378 = vpop.permute.xlu0 %377
    %vm379 = vcmask 7168
    %s380 = scalar_lea.vmem %s1, 31
    %381 = vst.msk [vmem:[%s380] sm:$0x1] %vm379, %v378
    %s382 = scalar_lea.vmem %s1, 94
    %383 = vst.msk [vmem:[%s382] sm:$0x2] %vm379, %v378
    %s384 = scalar_lea.vmem %s1, 157
    %385 = vst.msk [vmem:[%s384] sm:$0x4] %vm379, %v378
    %s386 = scalar_lea.vmem %s1, 220
    %387 = vst.msk [vmem:[%s386] sm:$0x8] %vm379, %v378
    %v388 = vld [vmem:[#allocation0] sm:$0xf]
    %389 = vrot.lane.b32.xlu0 %v388, 96
    %v390 = vpop.permute.xlu0 %389
    %vm391 = vcmask 7168
    %s392 = scalar_lea.vmem %s1, 32
    %393 = vst.msk [vmem:[%s392] sm:$0x1] %vm391, %v390
    %s394 = scalar_lea.vmem %s1, 95
    %395 = vst.msk [vmem:[%s394] sm:$0x2] %vm391, %v390
    %s396 = scalar_lea.vmem %s1, 158
    %397 = vst.msk [vmem:[%s396] sm:$0x4] %vm391, %v390
    %s398 = scalar_lea.vmem %s1, 221
    %399 = vst.msk [vmem:[%s398] sm:$0x8] %vm391, %v390
    %v400 = vld [vmem:[#allocation0] sm:$0xf]
    %401 = vrot.lane.b32.xlu0 %v400, 95
    %v402 = vpop.permute.xlu0 %401
    %vm403 = vcmask 7168
    %s404 = scalar_lea.vmem %s1, 33
    %405 = vst.msk [vmem:[%s404] sm:$0x1] %vm403, %v402
    %s406 = scalar_lea.vmem %s1, 96
    %407 = vst.msk [vmem:[%s406] sm:$0x2] %vm403, %v402
    %s408 = scalar_lea.vmem %s1, 159
    %409 = vst.msk [vmem:[%s408] sm:$0x4] %vm403, %v402
    %s410 = scalar_lea.vmem %s1, 222
    %411 = vst.msk [vmem:[%s410] sm:$0x8] %vm403, %v402
    %v412 = vld [vmem:[#allocation0] sm:$0xf]
    %413 = vrot.lane.b32.xlu0 %v412, 94
    %v414 = vpop.permute.xlu0 %413
    %vm415 = vcmask 7168
    %s416 = scalar_lea.vmem %s1, 34
    %417 = vst.msk [vmem:[%s416] sm:$0x1] %vm415, %v414
    %s418 = scalar_lea.vmem %s1, 97
    %419 = vst.msk [vmem:[%s418] sm:$0x2] %vm415, %v414
    %s420 = scalar_lea.vmem %s1, 160
    %421 = vst.msk [vmem:[%s420] sm:$0x4] %vm415, %v414
    %s422 = scalar_lea.vmem %s1, 223
    %423 = vst.msk [vmem:[%s422] sm:$0x8] %vm415, %v414
    %v424 = vld [vmem:[#allocation0] sm:$0xf]
    %425 = vrot.lane.b32.xlu0 %v424, 93
    %v426 = vpop.permute.xlu0 %425
    %vm427 = vcmask 7168
    %s428 = scalar_lea.vmem %s1, 35
    %429 = vst.msk [vmem:[%s428] sm:$0x1] %vm427, %v426
    %s430 = scalar_lea.vmem %s1, 98
    %431 = vst.msk [vmem:[%s430] sm:$0x2] %vm427, %v426
    %s432 = scalar_lea.vmem %s1, 161
    %433 = vst.msk [vmem:[%s432] sm:$0x4] %vm427, %v426
    %s434 = scalar_lea.vmem %s1, 224
    %435 = vst.msk [vmem:[%s434] sm:$0x8] %vm427, %v426
    %v436 = vld [vmem:[#allocation0] sm:$0xf]
    %437 = vrot.lane.b32.xlu0 %v436, 92
    %v438 = vpop.permute.xlu0 %437
    %vm439 = vcmask 7168
    %s440 = scalar_lea.vmem %s1, 36
    %441 = vst.msk [vmem:[%s440] sm:$0x1] %vm439, %v438
    %s442 = scalar_lea.vmem %s1, 99
    %443 = vst.msk [vmem:[%s442] sm:$0x2] %vm439, %v438
    %s444 = scalar_lea.vmem %s1, 162
    %445 = vst.msk [vmem:[%s444] sm:$0x4] %vm439, %v438
    %s446 = scalar_lea.vmem %s1, 225
    %447 = vst.msk [vmem:[%s446] sm:$0x8] %vm439, %v438
    %v448 = vld [vmem:[#allocation0] sm:$0xf]
    %449 = vrot.lane.b32.xlu0 %v448, 91
    %v450 = vpop.permute.xlu0 %449
    %vm451 = vcmask 7168
    %s452 = scalar_lea.vmem %s1, 37
    %453 = vst.msk [vmem:[%s452] sm:$0x1] %vm451, %v450
    %s454 = scalar_lea.vmem %s1, 100
    %455 = vst.msk [vmem:[%s454] sm:$0x2] %vm451, %v450
    %s456 = scalar_lea.vmem %s1, 163
    %457 = vst.msk [vmem:[%s456] sm:$0x4] %vm451, %v450
    %s458 = scalar_lea.vmem %s1, 226
    %459 = vst.msk [vmem:[%s458] sm:$0x8] %vm451, %v450
    %v460 = vld [vmem:[#allocation0] sm:$0xf]
    %461 = vrot.lane.b32.xlu0 %v460, 90
    %v462 = vpop.permute.xlu0 %461
    %vm463 = vcmask 7168
    %s464 = scalar_lea.vmem %s1, 38
    %465 = vst.msk [vmem:[%s464] sm:$0x1] %vm463, %v462
    %s466 = scalar_lea.vmem %s1, 101
    %467 = vst.msk [vmem:[%s466] sm:$0x2] %vm463, %v462
    %s468 = scalar_lea.vmem %s1, 164
    %469 = vst.msk [vmem:[%s468] sm:$0x4] %vm463, %v462
    %s470 = scalar_lea.vmem %s1, 227
    %471 = vst.msk [vmem:[%s470] sm:$0x8] %vm463, %v462
    %v472 = vld [vmem:[#allocation0] sm:$0xf]
    %473 = vrot.lane.b32.xlu0 %v472, 89
    %v474 = vpop.permute.xlu0 %473
    %vm475 = vcmask 7168
    %s476 = scalar_lea.vmem %s1, 39
    %477 = vst.msk [vmem:[%s476] sm:$0x1] %vm475, %v474
    %s478 = scalar_lea.vmem %s1, 102
    %479 = vst.msk [vmem:[%s478] sm:$0x2] %vm475, %v474
    %s480 = scalar_lea.vmem %s1, 165
    %481 = vst.msk [vmem:[%s480] sm:$0x4] %vm475, %v474
    %s482 = scalar_lea.vmem %s1, 228
    %483 = vst.msk [vmem:[%s482] sm:$0x8] %vm475, %v474
    %v484 = vld [vmem:[#allocation0] sm:$0xf]
    %485 = vrot.lane.b32.xlu0 %v484, 88
    %v486 = vpop.permute.xlu0 %485
    %vm487 = vcmask 7168
    %s488 = scalar_lea.vmem %s1, 40
    %489 = vst.msk [vmem:[%s488] sm:$0x1] %vm487, %v486
    %s490 = scalar_lea.vmem %s1, 103
    %491 = vst.msk [vmem:[%s490] sm:$0x2] %vm487, %v486
    %s492 = scalar_lea.vmem %s1, 166
    %493 = vst.msk [vmem:[%s492] sm:$0x4] %vm487, %v486
    %s494 = scalar_lea.vmem %s1, 229
    %495 = vst.msk [vmem:[%s494] sm:$0x8] %vm487, %v486
    %v496 = vld [vmem:[#allocation0] sm:$0xf]
    %497 = vrot.lane.b32.xlu0 %v496, 87
    %v498 = vpop.permute.xlu0 %497
    %vm499 = vcmask 7168
    %s500 = scalar_lea.vmem %s1, 41
    %501 = vst.msk [vmem:[%s500] sm:$0x1] %vm499, %v498
    %s502 = scalar_lea.vmem %s1, 104
    %503 = vst.msk [vmem:[%s502] sm:$0x2] %vm499, %v498
    %s504 = scalar_lea.vmem %s1, 167
    %505 = vst.msk [vmem:[%s504] sm:$0x4] %vm499, %v498
    %s506 = scalar_lea.vmem %s1, 230
    %507 = vst.msk [vmem:[%s506] sm:$0x8] %vm499, %v498
    %v508 = vld [vmem:[#allocation0] sm:$0xf]
    %509 = vrot.lane.b32.xlu0 %v508, 86
    %v510 = vpop.permute.xlu0 %509
    %vm511 = vcmask 7168
    %s512 = scalar_lea.vmem %s1, 42
    %513 = vst.msk [vmem:[%s512] sm:$0x1] %vm511, %v510
    %s514 = scalar_lea.vmem %s1, 105
    %515 = vst.msk [vmem:[%s514] sm:$0x2] %vm511, %v510
    %s516 = scalar_lea.vmem %s1, 168
    %517 = vst.msk [vmem:[%s516] sm:$0x4] %vm511, %v510
    %s518 = scalar_lea.vmem %s1, 231
    %519 = vst.msk [vmem:[%s518] sm:$0x8] %vm511, %v510
    %v520 = vld [vmem:[#allocation0] sm:$0xf]
    %521 = vrot.lane.b32.xlu0 %v520, 85
    %v522 = vpop.permute.xlu0 %521
    %vm523 = vcmask 7168
    %s524 = scalar_lea.vmem %s1, 43
    %525 = vst.msk [vmem:[%s524] sm:$0x1] %vm523, %v522
    %s526 = scalar_lea.vmem %s1, 106
    %527 = vst.msk [vmem:[%s526] sm:$0x2] %vm523, %v522
    %s528 = scalar_lea.vmem %s1, 169
    %529 = vst.msk [vmem:[%s528] sm:$0x4] %vm523, %v522
    %s530 = scalar_lea.vmem %s1, 232
    %531 = vst.msk [vmem:[%s530] sm:$0x8] %vm523, %v522
    %v532 = vld [vmem:[#allocation0] sm:$0xf]
    %533 = vrot.lane.b32.xlu0 %v532, 84
    %v534 = vpop.permute.xlu0 %533
    %vm535 = vcmask 7168
    %s536 = scalar_lea.vmem %s1, 44
    %537 = vst.msk [vmem:[%s536] sm:$0x1] %vm535, %v534
    %s538 = scalar_lea.vmem %s1, 107
    %539 = vst.msk [vmem:[%s538] sm:$0x2] %vm535, %v534
    %s540 = scalar_lea.vmem %s1, 170
    %541 = vst.msk [vmem:[%s540] sm:$0x4] %vm535, %v534
    %s542 = scalar_lea.vmem %s1, 233
    %543 = vst.msk [vmem:[%s542] sm:$0x8] %vm535, %v534
    %v544 = vld [vmem:[#allocation0] sm:$0xf]
    %545 = vrot.lane.b32.xlu0 %v544, 83
    %v546 = vpop.permute.xlu0 %545
    %vm547 = vcmask 7168
    %s548 = scalar_lea.vmem %s1, 45
    %549 = vst.msk [vmem:[%s548] sm:$0x1] %vm547, %v546
    %s550 = scalar_lea.vmem %s1, 108
    %551 = vst.msk [vmem:[%s550] sm:$0x2] %vm547, %v546
    %s552 = scalar_lea.vmem %s1, 171
    %553 = vst.msk [vmem:[%s552] sm:$0x4] %vm547, %v546
    %s554 = scalar_lea.vmem %s1, 234
    %555 = vst.msk [vmem:[%s554] sm:$0x8] %vm547, %v546
    %v556 = vld [vmem:[#allocation0] sm:$0xf]
    %557 = vrot.lane.b32.xlu0 %v556, 82
    %v558 = vpop.permute.xlu0 %557
    %vm559 = vcmask 7168
    %s560 = scalar_lea.vmem %s1, 46
    %561 = vst.msk [vmem:[%s560] sm:$0x1] %vm559, %v558
    %s562 = scalar_lea.vmem %s1, 109
    %563 = vst.msk [vmem:[%s562] sm:$0x2] %vm559, %v558
    %s564 = scalar_lea.vmem %s1, 172
    %565 = vst.msk [vmem:[%s564] sm:$0x4] %vm559, %v558
    %s566 = scalar_lea.vmem %s1, 235
    %567 = vst.msk [vmem:[%s566] sm:$0x8] %vm559, %v558
    %v568 = vld [vmem:[#allocation0] sm:$0xf]
    %569 = vrot.lane.b32.xlu0 %v568, 81
    %v570 = vpop.permute.xlu0 %569
    %vm571 = vcmask 7168
    %s572 = scalar_lea.vmem %s1, 47
    %573 = vst.msk [vmem:[%s572] sm:$0x1] %vm571, %v570
    %s574 = scalar_lea.vmem %s1, 110
    %575 = vst.msk [vmem:[%s574] sm:$0x2] %vm571, %v570
    %s576 = scalar_lea.vmem %s1, 173
    %577 = vst.msk [vmem:[%s576] sm:$0x4] %vm571, %v570
    %s578 = scalar_lea.vmem %s1, 236
    %579 = vst.msk [vmem:[%s578] sm:$0x8] %vm571, %v570
    %v580 = vld [vmem:[#allocation0] sm:$0xf]
    %581 = vrot.lane.b32.xlu0 %v580, 80
    %v582 = vpop.permute.xlu0 %581
    %vm583 = vcmask 7168
    %s584 = scalar_lea.vmem %s1, 48
    %585 = vst.msk [vmem:[%s584] sm:$0x1] %vm583, %v582
    %s586 = scalar_lea.vmem %s1, 111
    %587 = vst.msk [vmem:[%s586] sm:$0x2] %vm583, %v582
    %s588 = scalar_lea.vmem %s1, 174
    %589 = vst.msk [vmem:[%s588] sm:$0x4] %vm583, %v582
    %s590 = scalar_lea.vmem %s1, 237
    %591 = vst.msk [vmem:[%s590] sm:$0x8] %vm583, %v582
    %v592 = vld [vmem:[#allocation0] sm:$0xf]
    %593 = vrot.lane.b32.xlu0 %v592, 79
    %v594 = vpop.permute.xlu0 %593
    %vm595 = vcmask 7168
    %s596 = scalar_lea.vmem %s1, 49
    %597 = vst.msk [vmem:[%s596] sm:$0x1] %vm595, %v594
    %s598 = scalar_lea.vmem %s1, 112
    %599 = vst.msk [vmem:[%s598] sm:$0x2] %vm595, %v594
    %s600 = scalar_lea.vmem %s1, 175
    %601 = vst.msk [vmem:[%s600] sm:$0x4] %vm595, %v594
    %s602 = scalar_lea.vmem %s1, 238
    %603 = vst.msk [vmem:[%s602] sm:$0x8] %vm595, %v594
    %v604 = vld [vmem:[#allocation0] sm:$0xf]
    %605 = vrot.lane.b32.xlu0 %v604, 78
    %v606 = vpop.permute.xlu0 %605
    %vm607 = vcmask 7168
    %s608 = scalar_lea.vmem %s1, 50
    %609 = vst.msk [vmem:[%s608] sm:$0x1] %vm607, %v606
    %s610 = scalar_lea.vmem %s1, 113
    %611 = vst.msk [vmem:[%s610] sm:$0x2] %vm607, %v606
    %s612 = scalar_lea.vmem %s1, 176
    %613 = vst.msk [vmem:[%s612] sm:$0x4] %vm607, %v606
    %s614 = scalar_lea.vmem %s1, 239
    %615 = vst.msk [vmem:[%s614] sm:$0x8] %vm607, %v606
    %v616 = vld [vmem:[#allocation0] sm:$0xf]
    %617 = vrot.lane.b32.xlu0 %v616, 77
    %v618 = vpop.permute.xlu0 %617
    %vm619 = vcmask 7168
    %s620 = scalar_lea.vmem %s1, 51
    %621 = vst.msk [vmem:[%s620] sm:$0x1] %vm619, %v618
    %s622 = scalar_lea.vmem %s1, 114
    %623 = vst.msk [vmem:[%s622] sm:$0x2] %vm619, %v618
    %s624 = scalar_lea.vmem %s1, 177
    %625 = vst.msk [vmem:[%s624] sm:$0x4] %vm619, %v618
    %s626 = scalar_lea.vmem %s1, 240
    %627 = vst.msk [vmem:[%s626] sm:$0x8] %vm619, %v618
    %v628 = vld [vmem:[#allocation0] sm:$0xf]
    %629 = vrot.lane.b32.xlu0 %v628, 76
    %v630 = vpop.permute.xlu0 %629
    %vm631 = vcmask 7168
    %s632 = scalar_lea.vmem %s1, 52
    %633 = vst.msk [vmem:[%s632] sm:$0x1] %vm631, %v630
    %s634 = scalar_lea.vmem %s1, 115
    %635 = vst.msk [vmem:[%s634] sm:$0x2] %vm631, %v630
    %s636 = scalar_lea.vmem %s1, 178
    %637 = vst.msk [vmem:[%s636] sm:$0x4] %vm631, %v630
    %s638 = scalar_lea.vmem %s1, 241
    %639 = vst.msk [vmem:[%s638] sm:$0x8] %vm631, %v630
    %v640 = vld [vmem:[#allocation0] sm:$0xf]
    %641 = vrot.lane.b32.xlu0 %v640, 75
    %v642 = vpop.permute.xlu0 %641
    %vm643 = vcmask 7168
    %s644 = scalar_lea.vmem %s1, 53
    %645 = vst.msk [vmem:[%s644] sm:$0x1] %vm643, %v642
    %s646 = scalar_lea.vmem %s1, 116
    %647 = vst.msk [vmem:[%s646] sm:$0x2] %vm643, %v642
    %s648 = scalar_lea.vmem %s1, 179
    %649 = vst.msk [vmem:[%s648] sm:$0x4] %vm643, %v642
    %s650 = scalar_lea.vmem %s1, 242
    %651 = vst.msk [vmem:[%s650] sm:$0x8] %vm643, %v642
    %v652 = vld [vmem:[#allocation0] sm:$0xf]
    %653 = vrot.lane.b32.xlu0 %v652, 74
    %v654 = vpop.permute.xlu0 %653
    %vm655 = vcmask 7168
    %s656 = scalar_lea.vmem %s1, 54
    %657 = vst.msk [vmem:[%s656] sm:$0x1] %vm655, %v654
    %s658 = scalar_lea.vmem %s1, 117
    %659 = vst.msk [vmem:[%s658] sm:$0x2] %vm655, %v654
    %s660 = scalar_lea.vmem %s1, 180
    %661 = vst.msk [vmem:[%s660] sm:$0x4] %vm655, %v654
    %s662 = scalar_lea.vmem %s1, 243
    %663 = vst.msk [vmem:[%s662] sm:$0x8] %vm655, %v654
    %v664 = vld [vmem:[#allocation0] sm:$0xf]
    %665 = vrot.lane.b32.xlu0 %v664, 73
    %v666 = vpop.permute.xlu0 %665
    %vm667 = vcmask 7168
    %s668 = scalar_lea.vmem %s1, 55
    %669 = vst.msk [vmem:[%s668] sm:$0x1] %vm667, %v666
    %s670 = scalar_lea.vmem %s1, 118
    %671 = vst.msk [vmem:[%s670] sm:$0x2] %vm667, %v666
    %s672 = scalar_lea.vmem %s1, 181
    %673 = vst.msk [vmem:[%s672] sm:$0x4] %vm667, %v666
    %s674 = scalar_lea.vmem %s1, 244
    %675 = vst.msk [vmem:[%s674] sm:$0x8] %vm667, %v666
    %v676 = vld [vmem:[#allocation0] sm:$0xf]
    %677 = vrot.lane.b32.xlu0 %v676, 72
    %v678 = vpop.permute.xlu0 %677
    %vm679 = vcmask 7168
    %s680 = scalar_lea.vmem %s1, 56
    %681 = vst.msk [vmem:[%s680] sm:$0x1] %vm679, %v678
    %s682 = scalar_lea.vmem %s1, 119
    %683 = vst.msk [vmem:[%s682] sm:$0x2] %vm679, %v678
    %s684 = scalar_lea.vmem %s1, 182
    %685 = vst.msk [vmem:[%s684] sm:$0x4] %vm679, %v678
    %s686 = scalar_lea.vmem %s1, 245
    %687 = vst.msk [vmem:[%s686] sm:$0x8] %vm679, %v678
    %v688 = vld [vmem:[#allocation0] sm:$0xf]
    %689 = vrot.lane.b32.xlu0 %v688, 71
    %v690 = vpop.permute.xlu0 %689
    %vm691 = vcmask 7168
    %s692 = scalar_lea.vmem %s1, 57
    %693 = vst.msk [vmem:[%s692] sm:$0x1] %vm691, %v690
    %s694 = scalar_lea.vmem %s1, 120
    %695 = vst.msk [vmem:[%s694] sm:$0x2] %vm691, %v690
    %s696 = scalar_lea.vmem %s1, 183
    %697 = vst.msk [vmem:[%s696] sm:$0x4] %vm691, %v690
    %s698 = scalar_lea.vmem %s1, 246
    %699 = vst.msk [vmem:[%s698] sm:$0x8] %vm691, %v690
    %v700 = vld [vmem:[#allocation0] sm:$0xf]
    %701 = vrot.lane.b32.xlu0 %v700, 70
    %v702 = vpop.permute.xlu0 %701
    %vm703 = vcmask 7168
    %s704 = scalar_lea.vmem %s1, 58
    %705 = vst.msk [vmem:[%s704] sm:$0x1] %vm703, %v702
    %s706 = scalar_lea.vmem %s1, 121
    %707 = vst.msk [vmem:[%s706] sm:$0x2] %vm703, %v702
    %s708 = scalar_lea.vmem %s1, 184
    %709 = vst.msk [vmem:[%s708] sm:$0x4] %vm703, %v702
    %s710 = scalar_lea.vmem %s1, 247
    %711 = vst.msk [vmem:[%s710] sm:$0x8] %vm703, %v702
    %v712 = vld [vmem:[#allocation0] sm:$0xf]
    %713 = vrot.lane.b32.xlu0 %v712, 69
    %v714 = vpop.permute.xlu0 %713
    %vm715 = vcmask 7168
    %s716 = scalar_lea.vmem %s1, 59
    %717 = vst.msk [vmem:[%s716] sm:$0x1] %vm715, %v714
    %s718 = scalar_lea.vmem %s1, 122
    %719 = vst.msk [vmem:[%s718] sm:$0x2] %vm715, %v714
    %s720 = scalar_lea.vmem %s1, 185
    %721 = vst.msk [vmem:[%s720] sm:$0x4] %vm715, %v714
    %s722 = scalar_lea.vmem %s1, 248
    %723 = vst.msk [vmem:[%s722] sm:$0x8] %vm715, %v714
    %v724 = vld [vmem:[#allocation0] sm:$0xf]
    %725 = vrot.lane.b32.xlu0 %v724, 68
    %v726 = vpop.permute.xlu0 %725
    %vm727 = vcmask 7168
    %s728 = scalar_lea.vmem %s1, 60
    %729 = vst.msk [vmem:[%s728] sm:$0x1] %vm727, %v726
    %s730 = scalar_lea.vmem %s1, 123
    %731 = vst.msk [vmem:[%s730] sm:$0x2] %vm727, %v726
    %s732 = scalar_lea.vmem %s1, 186
    %733 = vst.msk [vmem:[%s732] sm:$0x4] %vm727, %v726
    %s734 = scalar_lea.vmem %s1, 249
    %735 = vst.msk [vmem:[%s734] sm:$0x8] %vm727, %v726
    %v736 = vld [vmem:[#allocation0] sm:$0xf]
    %737 = vrot.lane.b32.xlu0 %v736, 67
    %v738 = vpop.permute.xlu0 %737
    %vm739 = vcmask 7168
    %s740 = scalar_lea.vmem %s1, 61
    %741 = vst.msk [vmem:[%s740] sm:$0x1] %vm739, %v738
    %s742 = scalar_lea.vmem %s1, 124
    %743 = vst.msk [vmem:[%s742] sm:$0x2] %vm739, %v738
    %s744 = scalar_lea.vmem %s1, 187
    %745 = vst.msk [vmem:[%s744] sm:$0x4] %vm739, %v738
    %s746 = scalar_lea.vmem %s1, 250
    %747 = vst.msk [vmem:[%s746] sm:$0x8] %vm739, %v738
    %v748 = vld [vmem:[#allocation0] sm:$0xf]
    %749 = vrot.lane.b32.xlu0 %v748, 66
    %v750 = vpop.permute.xlu0 %749
    %vm751 = vcmask 7168
    %s752 = scalar_lea.vmem %s1, 62
    %753 = vst.msk [vmem:[%s752] sm:$0x1] %vm751, %v750
    %s754 = scalar_lea.vmem %s1, 125
    %755 = vst.msk [vmem:[%s754] sm:$0x2] %vm751, %v750
    %s756 = scalar_lea.vmem %s1, 188
    %757 = vst.msk [vmem:[%s756] sm:$0x4] %vm751, %v750
    %s758 = scalar_lea.vmem %s1, 251
    %759 = vst.msk [vmem:[%s758] sm:$0x8] %vm751, %v750
    %v760 = vld [vmem:[#allocation0] sm:$0xf]
    %761 = vrot.lane.b32.xlu0 %v760, 65
    %v762 = vpop.permute.xlu0 %761
    %vm763 = vcmask 7168
    %s764 = scalar_lea.vmem %s1, 63
    %765 = vst.msk [vmem:[%s764] sm:$0x1] %vm763, %v762
    %s766 = scalar_lea.vmem %s1, 126
    %767 = vst.msk [vmem:[%s766] sm:$0x2] %vm763, %v762
    %s768 = scalar_lea.vmem %s1, 189
    %769 = vst.msk [vmem:[%s768] sm:$0x4] %vm763, %v762
    %s770 = scalar_lea.vmem %s1, 252
    %771 = vst.msk [vmem:[%s770] sm:$0x8] %vm763, %v762

// kernel: resisc45_cnn_forward.9
$region0: #{resisc45_cnn_forward.9}
  #allocation0 [shape = 'u32[]', space=smem, size = 0x4, offset = 0x4, fixed_abs, tag = 'smem constant byte address 0x4 - core index']
  #allocation1 [shape = 'u32[144,128]{1,0:T(1,128)}', space=vmem, size = 0x12000, scoped, tag = 'internal scratch']
  %s0 = inlined_call_operand.vmem [shape: f32[2,32,20], index: 0, kind: input, shape index: {}]
  %s1 = inlined_call_operand.vmem [shape: f32[32,1], index: 1, kind: input, shape index: {}]
  %s2 = inlined_call_operand.vmem [shape: f32[32,1], index: 2, kind: input, shape index: {}]
  %s3 = inlined_call_operand.vmem [shape: f32[2,32,20], index: 3, kind: output, shape index: {}]
  %s4 = sld [smem:[#allocation0]]
  $region45: #{resisc45_cnn_forward.9} parent=0
    _
  %s6 = ssub.s32 1, %s4
  %s7 = scalar_select 0, %s6, %s4
  loop: start=0, step=1, limit=4
  $region2: #{resisc45_cnn_forward.9} parent=0 // loop_pre_header
    _
  $region3: #{resisc45_cnn_forward.9} parent=0 // loop_header
    %s9 = sphi 0, %s13
    %p10 = scmp.ge.s32.totalorder %s9, 4
    %s19 = sphi 0, %s21
    %s22 = sphi 0, %s19
    %s23 = sphi 0, %s22
    %s39 = sphi 0, %s23
    %s43 = sphi 0, %s43
    %s45 = sphi 0, %s43
    %s46 = sphi 0, %s45
    %s60 = sphi 0, %s46
    %s64 = sphi 0, %s64
    %s66 = sphi 0, %s64
    %s67 = sphi 0, %s66
    %s81 = sphi 0, %s67
    %s87 = sphi 0, %s89
    %s90 = sphi 0, %s87
    %s91 = sphi 0, %s90
    %s107 = sphi 0, %s91
  $region4: #{resisc45_cnn_forward.9} parent=0 // loop_header_branch
    %12 = sbr.rel (%p10) target = $region8
  $region5: #{resisc45_cnn_forward.9} parent=0 // loop_body
    %s14 = ssub.s32 %s9, 1
    %s15 = ssub.s32 %s9, 2
    %s16 = sadd.s32 %s9, 1
    %s17 = ssub.s32 %s9, %s16
    %p18 = scmp.eq.s32.totalorder %s17, 0
    %s20 = sadd.s32 %s19, 1
    %s21 = scalar_select %p18, %s19, %s20
    %p24 = pneg %p18
    %p25 = scmp.eq.s32.totalorder %s9, 1
    %p26 = por %p24, %p25
    %p27 = scmp.ne.s32.totalorder %s19, %s22
    %p28 = scmp.eq.s32.totalorder %s9, 0
    %p29 = por %p27, %p28
    %p30 = scmp.ne.s32.totalorder %s19, %s22
    %p31 = scmp.eq.s32.totalorder %s14, 1
    %p32 = por %p30, %p31
    %p33 = scmp.ne.s32.totalorder %s22, %s23
    %p34 = scmp.eq.s32.totalorder %s14, 0
    %p35 = por %p33, %p34
    %p36 = scmp.ne.s32.totalorder %s22, %s23
    %p37 = scmp.eq.s32.totalorder %s15, 1
    %p38 = por %p36, %p37
    %p40 = scmp.ne.s32.totalorder %s23, %s39
    %p41 = scmp.eq.s32.totalorder %s15, 0
    %p42 = por %p40, %p41
    %s44 = sadd.s32 %s43, 1
    %p47 = scmp.eq.s32.totalorder %s9, 1
    %p48 = scmp.ne.s32.totalorder %s43, %s45
    %p49 = scmp.eq.s32.totalorder %s9, 0
    %p50 = por %p48, %p49
    %p51 = scmp.ne.s32.totalorder %s43, %s45
    %p52 = scmp.eq.s32.totalorder %s14, 1
    %p53 = por %p51, %p52
    %p54 = scmp.ne.s32.totalorder %s45, %s46
    %p55 = scmp.eq.s32.totalorder %s14, 0
    %p56 = por %p54, %p55
    %p57 = scmp.ne.s32.totalorder %s45, %s46
    %p58 = scmp.eq.s32.totalorder %s15, 1
    %p59 = por %p57, %p58
    %p61 = scmp.ne.s32.totalorder %s46, %s60
    %p62 = scmp.eq.s32.totalorder %s15, 0
    %p63 = por %p61, %p62
    %s65 = sadd.s32 %s64, 1
    %p68 = scmp.eq.s32.totalorder %s9, 1
    %p69 = scmp.ne.s32.totalorder %s64, %s66
    %p70 = scmp.eq.s32.totalorder %s9, 0
    %p71 = por %p69, %p70
    %p72 = scmp.ne.s32.totalorder %s64, %s66
    %p73 = scmp.eq.s32.totalorder %s14, 1
    %p74 = por %p72, %p73
    %p75 = scmp.ne.s32.totalorder %s66, %s67
    %p76 = scmp.eq.s32.totalorder %s14, 0
    %p77 = por %p75, %p76
    %p78 = scmp.ne.s32.totalorder %s66, %s67
    %p79 = scmp.eq.s32.totalorder %s15, 1
    %p80 = por %p78, %p79
    %p82 = scmp.ne.s32.totalorder %s67, %s81
    %p83 = scmp.eq.s32.totalorder %s15, 0
    %p84 = por %p82, %p83
    %s85 = ssub.s32 %s9, %s16
    %p86 = scmp.eq.s32.totalorder %s85, 0
    %s88 = sadd.s32 %s87, 1
    %s89 = scalar_select %p86, %s87, %s88
    %p92 = pneg %p86
    %p93 = scmp.eq.s32.totalorder %s9, 1
    %p94 = por %p92, %p93
    %p95 = scmp.ne.s32.totalorder %s87, %s90
    %p96 = scmp.eq.s32.totalorder %s9, 0
    %p97 = por %p95, %p96
    %p98 = scmp.ne.s32.totalorder %s87, %s90
    %p99 = scmp.eq.s32.totalorder %s14, 1
    %p100 = por %p98, %p99
    %p101 = scmp.ne.s32.totalorder %s90, %s91
    %p102 = scmp.eq.s32.totalorder %s14, 0
    %p103 = por %p101, %p102
    %p104 = scmp.ne.s32.totalorder %s90, %s91
    %p105 = scmp.eq.s32.totalorder %s15, 1
    %p106 = por %p104, %p105
    %p108 = scmp.ne.s32.totalorder %s91, %s107
    %p109 = scmp.eq.s32.totalorder %s15, 0
    %p110 = por %p108, %p109
    %p111 = scmp.le.s32.totalorder 1, %s9
    %p112 = scmp.lt.s32.totalorder %s9, 3
    %p113 = pnand %p111, %p112
    %p114 = pneg %p113
    // Predicated region
    $region9: #{resisc45_cnn_forward.9} parent=5 // pred_check
      _
    $region10: #{resisc45_cnn_forward.9} parent=5 // pred_check_branch
      %116 = sbr.rel (%p113) target = $region12
    $region11: #{resisc45_cnn_forward.9} parent=5 // pred_region
      %s117 = ssub.s32 %s9, 1
      // Predicated region
      $region13: #{resisc45_cnn_forward.9} parent=11 // pred_check
        %p118 = pneg %p56
      $region14: #{resisc45_cnn_forward.9} parent=11 // pred_check_branch
        %120 = sbr.rel (%p118) target = $region16
      $region15: #{resisc45_cnn_forward.9} parent=11 // pred_region
        _
      $region16: #{resisc45_cnn_forward.9} parent=11 // pred_fallthru
        _
      // Predicated region
      $region17: #{resisc45_cnn_forward.9} parent=11 // pred_check
        %p121 = pneg %p77
      $region18: #{resisc45_cnn_forward.9} parent=11 // pred_check_branch
        %123 = sbr.rel (%p121) target = $region20
      $region19: #{resisc45_cnn_forward.9} parent=11 // pred_region
        _
      $region20: #{resisc45_cnn_forward.9} parent=11 // pred_fallthru
        _
    $region12: #{resisc45_cnn_forward.9} parent=5 // pred_fallthru
      _
    %p124 = scmp.lt.s32.totalorder %s9, 2
    // Predicated region
    $region21: #{resisc45_cnn_forward.9} parent=5 // pred_check
      %p125 = pneg %p124
    $region22: #{resisc45_cnn_forward.9} parent=5 // pred_check_branch
      %127 = sbr.rel (%p125) target = $region24
    $region23: #{resisc45_cnn_forward.9} parent=5 // pred_region
      // Predicated region
      $region25: #{resisc45_cnn_forward.9} parent=23 // pred_check
        %p128 = pneg %p29
      $region26: #{resisc45_cnn_forward.9} parent=23 // pred_check_branch
        %130 = sbr.rel (%p128) target = $region28
      $region27: #{resisc45_cnn_forward.9} parent=23 // pred_region
        %p131 = scmp.lt.s32.totalorder %s9, 1
        %s132 = scalar_select %p131, %s9, 1
        %s133 = smul.addr %s132, 4
        %s134 = smul.addr %s133, 8
        %s135 = scalar_lea.vmem %s0, %s134
      $region28: #{resisc45_cnn_forward.9} parent=23 // pred_fallthru
        _
    $region24: #{resisc45_cnn_forward.9} parent=5 // pred_fallthru
      _
    %p136 = scmp.le.s32.totalorder 1, %s9
    %p137 = scmp.lt.s32.totalorder %s9, 3
    %p138 = pnand %p136, %p137
    %p139 = pneg %p138
    // Predicated region
    $region29: #{resisc45_cnn_forward.9} parent=5 // pred_check
      _
    $region30: #{resisc45_cnn_forward.9} parent=5 // pred_check_branch
      %141 = sbr.rel (%p138) target = $region32
    $region31: #{resisc45_cnn_forward.9} parent=5 // pred_region
      %s142 = ssub.s32 %s9, 1
      %p143 = scmp.lt.s32.totalorder %s14, 1
      %s144 = scalar_select %p143, %s14, 1
      %s145 = smul.addr %s144, 4
      %s146 = smul.addr %s145, 8
      %s147 = scalar_lea.vmem %s0, %s146
      %p148 = pneg %p35
      %p149 = pneg %p32
      %p150 = pneg %p56
      %p151 = pneg %p53
      %p152 = pneg %p77
      %p153 = pneg %p74
      %p154 = pneg %p103
      %p155 = pneg %p100
      %p156 = scmp.lt.s32.totalorder %s14, 1
      %s157 = scalar_select %p156, %s14, 1
      %s158 = smul.addr %s157, 4
      %s159 = smul.addr %s158, 8
      %s160 = scalar_lea.vmem %s3, %s159
      %p161 = scmp.lt.s32.totalorder %s14, 1
      %s162 = scalar_select %p161, %s14, 1
      %s163 = smul.addr %s162, 4
      %s164 = smul.addr %s163, 8
      %s165 = scalar_lea.vmem %s0, %s164
      %p166 = scmp.lt.s32.totalorder %s14, 1
      %s167 = scalar_select %p166, %s14, 1
      %s168 = smul.addr %s167, 4
      %s169 = smul.addr %s168, 8
      %s170 = scalar_lea.vmem %s3, %s169
      %v171 = vld [vmem:[%s165] sm:$0xff]
      %v172 = vld [vmem:[%s165 + $0x8] sm:$0xff]
      %v173 = vld [vmem:[%s165 + $0x10] sm:$0xff]
      %v174 = vld [vmem:[%s165 + $0x18] sm:$0xff]
      %v175 = vld [vmem:[%s1] sm:$0xff]
      %v176 = vld [vmem:[%s1 + $0x8] sm:$0xff]
      %v177 = vld [vmem:[%s1 + $0x10] sm:$0xff]
      %v178 = vld [vmem:[%s1 + $0x18] sm:$0xff]
      %180 = vset.pattern.permute.xlu0 0
      %181 = vperm.xlu0 %180, %v175
      %v182 = vpop.permute.xlu0 %181
      %185 = vset.pattern.permute.xlu0 0
      %186 = vperm.xlu0 %185, %v176
      %v187 = vpop.permute.xlu0 %186
      %190 = vset.pattern.permute.xlu0 0
      %191 = vperm.xlu0 %190, %v177
      %v192 = vpop.permute.xlu0 %191
      %195 = vset.pattern.permute.xlu0 0
      %196 = vperm.xlu0 %195, %v178
      %v197 = vpop.permute.xlu0 %196
      %v199 = vmul.f32 %v171, %v182
      %v200 = vmul.f32 %v172, %v187
      %v201 = vmul.f32 %v173, %v192
      %v202 = vmul.f32 %v174, %v197
      %v203 = vld [vmem:[%s2] sm:$0xff]
      %v204 = vld [vmem:[%s2 + $0x8] sm:$0xff]
      %v205 = vld [vmem:[%s2 + $0x10] sm:$0xff]
      %v206 = vld [vmem:[%s2 + $0x18] sm:$0xff]
      %208 = vset.pattern.permute.xlu0 0
      %209 = vperm.xlu0 %208, %v203
      %v210 = vpop.permute.xlu0 %209
      %213 = vset.pattern.permute.xlu0 0
      %214 = vperm.xlu0 %213, %v204
      %v215 = vpop.permute.xlu0 %214
      %218 = vset.pattern.permute.xlu0 0
      %219 = vperm.xlu0 %218, %v205
      %v220 = vpop.permute.xlu0 %219
      %223 = vset.pattern.permute.xlu0 0
      %224 = vperm.xlu0 %223, %v206
      %v225 = vpop.permute.xlu0 %224
      %v227 = vadd.f32 %v199, %v210
      %v228 = vadd.f32 %v200, %v215
      %v229 = vadd.f32 %v201, %v220
      %v230 = vadd.f32 %v202, %v225
      %vm231 = vcmask 162816
      %232 = vst.msk [vmem:[%s170] sm:$0xff] %vm231, %v227
      %233 = vst.msk [vmem:[%s170 + $0x8] sm:$0xff] %vm231, %v228
      %234 = vst.msk [vmem:[%s170 + $0x10] sm:$0xff] %vm231, %v229
      %235 = vst.msk [vmem:[%s170 + $0x18] sm:$0xff] %vm231, %v230
      %p236 = scmp.lt.s32.totalorder %s14, 1
      %s237 = scalar_select %p236, %s14, 1
      %s238 = smul.addr %s237, 4
      %s239 = smul.addr %s238, 8
      %s240 = scalar_lea.vmem %s3, %s239
      // Predicated region
      $region33: #{resisc45_cnn_forward.9} parent=31 // pred_check
        %p241 = pneg %p100
      $region34: #{resisc45_cnn_forward.9} parent=31 // pred_check_branch
        %243 = sbr.rel (%p241) target = $region36
      $region35: #{resisc45_cnn_forward.9} parent=31 // pred_region
        _
      $region36: #{resisc45_cnn_forward.9} parent=31 // pred_fallthru
        _
    $region32: #{resisc45_cnn_forward.9} parent=5 // pred_fallthru
      _
    %p244 = scmp.le.s32.totalorder 2, %s9
    // Predicated region
    $region37: #{resisc45_cnn_forward.9} parent=5 // pred_check
      %p245 = pneg %p244
    $region38: #{resisc45_cnn_forward.9} parent=5 // pred_check_branch
      %247 = sbr.rel (%p245) target = $region40
    $region39: #{resisc45_cnn_forward.9} parent=5 // pred_region
      %s248 = ssub.s32 %s9, 2
      // Predicated region
      $region41: #{resisc45_cnn_forward.9} parent=39 // pred_check
        %p249 = pneg %p106
      $region42: #{resisc45_cnn_forward.9} parent=39 // pred_check_branch
        %251 = sbr.rel (%p249) target = $region44
      $region43: #{resisc45_cnn_forward.9} parent=39 // pred_region
        %p252 = scmp.lt.s32.totalorder %s15, 1
        %s253 = scalar_select %p252, %s15, 1
        %s254 = smul.addr %s253, 4
        %s255 = smul.addr %s254, 8
        %s256 = scalar_lea.vmem %s3, %s255
      $region44: #{resisc45_cnn_forward.9} parent=39 // pred_fallthru
        _
    $region40: #{resisc45_cnn_forward.9} parent=5 // pred_fallthru
      _
  $region6: #{resisc45_cnn_forward.9} parent=0 // loop_footer
    %s13 = sadd.s32 1, %s9
  $region7: #{resisc45_cnn_forward.9} parent=0 // loop_footer_branch
    %8 = sbr.rel target = $region3
  $region8: #{resisc45_cnn_forward.9} parent=0 // loop_exit
    _

// kernel: resisc45_cnn_forward.11
$region0: #{resisc45_cnn_forward.11}
  #allocation0 [shape = 'u32[]', space=smem, size = 0x4, offset = 0x4, fixed_abs, tag = 'smem constant byte address 0x4 - core index']
  #allocation1 [shape = 'u32[144,128]{1,0:T(1,128)}', space=vmem, size = 0x12000, scoped, tag = 'internal scratch']
  %s0 = inlined_call_operand.vmem [shape: f32[2,64,6], index: 0, kind: input, shape index: {}]
  %s1 = inlined_call_operand.vmem [shape: f32[64,1], index: 1, kind: input, shape index: {}]
  %s2 = inlined_call_operand.vmem [shape: f32[64,1], index: 2, kind: input, shape index: {}]
  %s3 = inlined_call_operand.vmem [shape: f32[2,64,6], index: 3, kind: output, shape index: {}]
  %s4 = sld [smem:[#allocation0]]
  $region45: #{resisc45_cnn_forward.11} parent=0
    _
  %s6 = ssub.s32 1, %s4
  %s7 = scalar_select 0, %s6, %s4
  loop: start=0, step=1, limit=4
  $region2: #{resisc45_cnn_forward.11} parent=0 // loop_pre_header
    _
  $region3: #{resisc45_cnn_forward.11} parent=0 // loop_header
    %s9 = sphi 0, %s13
    %p10 = scmp.ge.s32.totalorder %s9, 4
    %s19 = sphi 0, %s21
    %s22 = sphi 0, %s19
    %s23 = sphi 0, %s22
    %s39 = sphi 0, %s23
    %s43 = sphi 0, %s43
    %s45 = sphi 0, %s43
    %s46 = sphi 0, %s45
    %s60 = sphi 0, %s46
    %s64 = sphi 0, %s64
    %s66 = sphi 0, %s64
    %s67 = sphi 0, %s66
    %s81 = sphi 0, %s67
    %s87 = sphi 0, %s89
    %s90 = sphi 0, %s87
    %s91 = sphi 0, %s90
    %s107 = sphi 0, %s91
  $region4: #{resisc45_cnn_forward.11} parent=0 // loop_header_branch
    %12 = sbr.rel (%p10) target = $region8
  $region5: #{resisc45_cnn_forward.11} parent=0 // loop_body
    %s14 = ssub.s32 %s9, 1
    %s15 = ssub.s32 %s9, 2
    %s16 = sadd.s32 %s9, 1
    %s17 = ssub.s32 %s9, %s16
    %p18 = scmp.eq.s32.totalorder %s17, 0
    %s20 = sadd.s32 %s19, 1
    %s21 = scalar_select %p18, %s19, %s20
    %p24 = pneg %p18
    %p25 = scmp.eq.s32.totalorder %s9, 1
    %p26 = por %p24, %p25
    %p27 = scmp.ne.s32.totalorder %s19, %s22
    %p28 = scmp.eq.s32.totalorder %s9, 0
    %p29 = por %p27, %p28
    %p30 = scmp.ne.s32.totalorder %s19, %s22
    %p31 = scmp.eq.s32.totalorder %s14, 1
    %p32 = por %p30, %p31
    %p33 = scmp.ne.s32.totalorder %s22, %s23
    %p34 = scmp.eq.s32.totalorder %s14, 0
    %p35 = por %p33, %p34
    %p36 = scmp.ne.s32.totalorder %s22, %s23
    %p37 = scmp.eq.s32.totalorder %s15, 1
    %p38 = por %p36, %p37
    %p40 = scmp.ne.s32.totalorder %s23, %s39
    %p41 = scmp.eq.s32.totalorder %s15, 0
    %p42 = por %p40, %p41
    %s44 = sadd.s32 %s43, 1
    %p47 = scmp.eq.s32.totalorder %s9, 1
    %p48 = scmp.ne.s32.totalorder %s43, %s45
    %p49 = scmp.eq.s32.totalorder %s9, 0
    %p50 = por %p48, %p49
    %p51 = scmp.ne.s32.totalorder %s43, %s45
    %p52 = scmp.eq.s32.totalorder %s14, 1
    %p53 = por %p51, %p52
    %p54 = scmp.ne.s32.totalorder %s45, %s46
    %p55 = scmp.eq.s32.totalorder %s14, 0
    %p56 = por %p54, %p55
    %p57 = scmp.ne.s32.totalorder %s45, %s46
    %p58 = scmp.eq.s32.totalorder %s15, 1
    %p59 = por %p57, %p58
    %p61 = scmp.ne.s32.totalorder %s46, %s60
    %p62 = scmp.eq.s32.totalorder %s15, 0
    %p63 = por %p61, %p62
    %s65 = sadd.s32 %s64, 1
    %p68 = scmp.eq.s32.totalorder %s9, 1
    %p69 = scmp.ne.s32.totalorder %s64, %s66
    %p70 = scmp.eq.s32.totalorder %s9, 0
    %p71 = por %p69, %p70
    %p72 = scmp.ne.s32.totalorder %s64, %s66
    %p73 = scmp.eq.s32.totalorder %s14, 1
    %p74 = por %p72, %p73
    %p75 = scmp.ne.s32.totalorder %s66, %s67
    %p76 = scmp.eq.s32.totalorder %s14, 0
    %p77 = por %p75, %p76
    %p78 = scmp.ne.s32.totalorder %s66, %s67
    %p79 = scmp.eq.s32.totalorder %s15, 1
    %p80 = por %p78, %p79
    %p82 = scmp.ne.s32.totalorder %s67, %s81
    %p83 = scmp.eq.s32.totalorder %s15, 0
    %p84 = por %p82, %p83
    %s85 = ssub.s32 %s9, %s16
    %p86 = scmp.eq.s32.totalorder %s85, 0
    %s88 = sadd.s32 %s87, 1
    %s89 = scalar_select %p86, %s87, %s88
    %p92 = pneg %p86
    %p93 = scmp.eq.s32.totalorder %s9, 1
    %p94 = por %p92, %p93
    %p95 = scmp.ne.s32.totalorder %s87, %s90
    %p96 = scmp.eq.s32.totalorder %s9, 0
    %p97 = por %p95, %p96
    %p98 = scmp.ne.s32.totalorder %s87, %s90
    %p99 = scmp.eq.s32.totalorder %s14, 1
    %p100 = por %p98, %p99
    %p101 = scmp.ne.s32.totalorder %s90, %s91
    %p102 = scmp.eq.s32.totalorder %s14, 0
    %p103 = por %p101, %p102
    %p104 = scmp.ne.s32.totalorder %s90, %s91
    %p105 = scmp.eq.s32.totalorder %s15, 1
    %p106 = por %p104, %p105
    %p108 = scmp.ne.s32.totalorder %s91, %s107
    %p109 = scmp.eq.s32.totalorder %s15, 0
    %p110 = por %p108, %p109
    %p111 = scmp.le.s32.totalorder 1, %s9
    %p112 = scmp.lt.s32.totalorder %s9, 3
    %p113 = pnand %p111, %p112
    %p114 = pneg %p113
    // Predicated region
    $region9: #{resisc45_cnn_forward.11} parent=5 // pred_check
      _
    $region10: #{resisc45_cnn_forward.11} parent=5 // pred_check_branch
      %116 = sbr.rel (%p113) target = $region12
    $region11: #{resisc45_cnn_forward.11} parent=5 // pred_region
      %s117 = ssub.s32 %s9, 1
      // Predicated region
      $region13: #{resisc45_cnn_forward.11} parent=11 // pred_check
        %p118 = pneg %p56
      $region14: #{resisc45_cnn_forward.11} parent=11 // pred_check_branch
        %120 = sbr.rel (%p118) target = $region16
      $region15: #{resisc45_cnn_forward.11} parent=11 // pred_region
        _
      $region16: #{resisc45_cnn_forward.11} parent=11 // pred_fallthru
        _
      // Predicated region
      $region17: #{resisc45_cnn_forward.11} parent=11 // pred_check
        %p121 = pneg %p77
      $region18: #{resisc45_cnn_forward.11} parent=11 // pred_check_branch
        %123 = sbr.rel (%p121) target = $region20
      $region19: #{resisc45_cnn_forward.11} parent=11 // pred_region
        _
      $region20: #{resisc45_cnn_forward.11} parent=11 // pred_fallthru
        _
    $region12: #{resisc45_cnn_forward.11} parent=5 // pred_fallthru
      _
    %p124 = scmp.lt.s32.totalorder %s9, 2
    // Predicated region
    $region21: #{resisc45_cnn_forward.11} parent=5 // pred_check
      %p125 = pneg %p124
    $region22: #{resisc45_cnn_forward.11} parent=5 // pred_check_branch
      %127 = sbr.rel (%p125) target = $region24
    $region23: #{resisc45_cnn_forward.11} parent=5 // pred_region
      // Predicated region
      $region25: #{resisc45_cnn_forward.11} parent=23 // pred_check
        %p128 = pneg %p29
      $region26: #{resisc45_cnn_forward.11} parent=23 // pred_check_branch
        %130 = sbr.rel (%p128) target = $region28
      $region27: #{resisc45_cnn_forward.11} parent=23 // pred_region
        %p131 = scmp.lt.s32.totalorder %s9, 1
        %s132 = scalar_select %p131, %s9, 1
        %s133 = smul.addr %s132, 8
        %s134 = smul.addr %s133, 8
        %s135 = scalar_lea.vmem %s0, %s134
      $region28: #{resisc45_cnn_forward.11} parent=23 // pred_fallthru
        _
    $region24: #{resisc45_cnn_forward.11} parent=5 // pred_fallthru
      _
    %p136 = scmp.le.s32.totalorder 1, %s9
    %p137 = scmp.lt.s32.totalorder %s9, 3
    %p138 = pnand %p136, %p137
    %p139 = pneg %p138
    // Predicated region
    $region29: #{resisc45_cnn_forward.11} parent=5 // pred_check
      _
    $region30: #{resisc45_cnn_forward.11} parent=5 // pred_check_branch
      %141 = sbr.rel (%p138) target = $region32
    $region31: #{resisc45_cnn_forward.11} parent=5 // pred_region
      %s142 = ssub.s32 %s9, 1
      %p143 = scmp.lt.s32.totalorder %s14, 1
      %s144 = scalar_select %p143, %s14, 1
      %s145 = smul.addr %s144, 8
      %s146 = smul.addr %s145, 8
      %s147 = scalar_lea.vmem %s0, %s146
      %p148 = pneg %p35
      %p149 = pneg %p32
      %p150 = pneg %p56
      %p151 = pneg %p53
      %p152 = pneg %p77
      %p153 = pneg %p74
      %p154 = pneg %p103
      %p155 = pneg %p100
      %p156 = scmp.lt.s32.totalorder %s14, 1
      %s157 = scalar_select %p156, %s14, 1
      %s158 = smul.addr %s157, 8
      %s159 = smul.addr %s158, 8
      %s160 = scalar_lea.vmem %s3, %s159
      %p161 = scmp.lt.s32.totalorder %s14, 1
      %s162 = scalar_select %p161, %s14, 1
      %s163 = smul.addr %s162, 8
      %s164 = smul.addr %s163, 8
      %s165 = scalar_lea.vmem %s0, %s164
      %p166 = scmp.lt.s32.totalorder %s14, 1
      %s167 = scalar_select %p166, %s14, 1
      %s168 = smul.addr %s167, 8
      %s169 = smul.addr %s168, 8
      %s170 = scalar_lea.vmem %s3, %s169
      %v171 = vld [vmem:[%s165] sm:$0xff]
      %v172 = vld [vmem:[%s165 + $0x8] sm:$0xff]
      %v173 = vld [vmem:[%s165 + $0x10] sm:$0xff]
      %v174 = vld [vmem:[%s165 + $0x18] sm:$0xff]
      %v175 = vld [vmem:[%s165 + $0x20] sm:$0xff]
      %v176 = vld [vmem:[%s165 + $0x28] sm:$0xff]
      %v177 = vld [vmem:[%s165 + $0x30] sm:$0xff]
      %v178 = vld [vmem:[%s165 + $0x38] sm:$0xff]
      %v179 = vld [vmem:[%s1] sm:$0xff]
      %v180 = vld [vmem:[%s1 + $0x8] sm:$0xff]
      %v181 = vld [vmem:[%s1 + $0x10] sm:$0xff]
      %v182 = vld [vmem:[%s1 + $0x18] sm:$0xff]
      %v183 = vld [vmem:[%s1 + $0x20] sm:$0xff]
      %v184 = vld [vmem:[%s1 + $0x28] sm:$0xff]
      %v185 = vld [vmem:[%s1 + $0x30] sm:$0xff]
      %v186 = vld [vmem:[%s1 + $0x38] sm:$0xff]
      %188 = vset.pattern.permute.xlu0 0
      %189 = vperm.xlu0 %188, %v179
      %v190 = vpop.permute.xlu0 %189
      %193 = vset.pattern.permute.xlu0 0
      %194 = vperm.xlu0 %193, %v180
      %v195 = vpop.permute.xlu0 %194
      %198 = vset.pattern.permute.xlu0 0
      %199 = vperm.xlu0 %198, %v181
      %v200 = vpop.permute.xlu0 %199
      %203 = vset.pattern.permute.xlu0 0
      %204 = vperm.xlu0 %203, %v182
      %v205 = vpop.permute.xlu0 %204
      %208 = vset.pattern.permute.xlu0 0
      %209 = vperm.xlu0 %208, %v183
      %v210 = vpop.permute.xlu0 %209
      %213 = vset.pattern.permute.xlu0 0
      %214 = vperm.xlu0 %213, %v184
      %v215 = vpop.permute.xlu0 %214
      %218 = vset.pattern.permute.xlu0 0
      %219 = vperm.xlu0 %218, %v185
      %v220 = vpop.permute.xlu0 %219
      %223 = vset.pattern.permute.xlu0 0
      %224 = vperm.xlu0 %223, %v186
      %v225 = vpop.permute.xlu0 %224
      %v227 = vmul.f32 %v171, %v190
      %v228 = vmul.f32 %v172, %v195
      %v229 = vmul.f32 %v173, %v200
      %v230 = vmul.f32 %v174, %v205
      %v231 = vmul.f32 %v175, %v210
      %v232 = vmul.f32 %v176, %v215
      %v233 = vmul.f32 %v177, %v220
      %v234 = vmul.f32 %v178, %v225
      %v235 = vld [vmem:[%s2] sm:$0xff]
      %v236 = vld [vmem:[%s2 + $0x8] sm:$0xff]
      %v237 = vld [vmem:[%s2 + $0x10] sm:$0xff]
      %v238 = vld [vmem:[%s2 + $0x18] sm:$0xff]
      %v239 = vld [vmem:[%s2 + $0x20] sm:$0xff]
      %v240 = vld [vmem:[%s2 + $0x28] sm:$0xff]
      %v241 = vld [vmem:[%s2 + $0x30] sm:$0xff]
      %v242 = vld [vmem:[%s2 + $0x38] sm:$0xff]
      %244 = vset.pattern.permute.xlu0 0
      %245 = vperm.xlu0 %244, %v235
      %v246 = vpop.permute.xlu0 %245
      %249 = vset.pattern.permute.xlu0 0
      %250 = vperm.xlu0 %249, %v236
      %v251 = vpop.permute.xlu0 %250
      %254 = vset.pattern.permute.xlu0 0
      %255 = vperm.xlu0 %254, %v237
      %v256 = vpop.permute.xlu0 %255
      %259 = vset.pattern.permute.xlu0 0
      %260 = vperm.xlu0 %259, %v238
      %v261 = vpop.permute.xlu0 %260
      %264 = vset.pattern.permute.xlu0 0
      %265 = vperm.xlu0 %264, %v239
      %v266 = vpop.permute.xlu0 %265
      %269 = vset.pattern.permute.xlu0 0
      %270 = vperm.xlu0 %269, %v240
      %v271 = vpop.permute.xlu0 %270
      %274 = vset.pattern.permute.xlu0 0
      %275 = vperm.xlu0 %274, %v241
      %v276 = vpop.permute.xlu0 %275
      %279 = vset.pattern.permute.xlu0 0
      %280 = vperm.xlu0 %279, %v242
      %v281 = vpop.permute.xlu0 %280
      %v283 = vadd.f32 %v227, %v246
      %v284 = vadd.f32 %v228, %v251
      %v285 = vadd.f32 %v229, %v256
      %v286 = vadd.f32 %v230, %v261
      %v287 = vadd.f32 %v231, %v266
      %v288 = vadd.f32 %v232, %v271
      %v289 = vadd.f32 %v233, %v276
      %v290 = vadd.f32 %v234, %v281
      %vm291 = vcmask 48128
      %292 = vst.msk [vmem:[%s170] sm:$0xff] %vm291, %v283
      %293 = vst.msk [vmem:[%s170 + $0x8] sm:$0xff] %vm291, %v284
      %294 = vst.msk [vmem:[%s170 + $0x10] sm:$0xff] %vm291, %v285
      %295 = vst.msk [vmem:[%s170 + $0x18] sm:$0xff] %vm291, %v286
      %296 = vst.msk [vmem:[%s170 + $0x20] sm:$0xff] %vm291, %v287
      %297 = vst.msk [vmem:[%s170 + $0x28] sm:$0xff] %vm291, %v288
      %298 = vst.msk [vmem:[%s170 + $0x30] sm:$0xff] %vm291, %v289
      %299 = vst.msk [vmem:[%s170 + $0x38] sm:$0xff] %vm291, %v290
      %p300 = scmp.lt.s32.totalorder %s14, 1
      %s301 = scalar_select %p300, %s14, 1
      %s302 = smul.addr %s301, 8
      %s303 = smul.addr %s302, 8
      %s304 = scalar_lea.vmem %s3, %s303
      // Predicated region
      $region33: #{resisc45_cnn_forward.11} parent=31 // pred_check
        %p305 = pneg %p100
      $region34: #{resisc45_cnn_forward.11} parent=31 // pred_check_branch
        %307 = sbr.rel (%p305) target = $region36
      $region35: #{resisc45_cnn_forward.11} parent=31 // pred_region
        _
      $region36: #{resisc45_cnn_forward.11} parent=31 // pred_fallthru
        _
    $region32: #{resisc45_cnn_forward.11} parent=5 // pred_fallthru
      _
    %p308 = scmp.le.s32.totalorder 2, %s9
    // Predicated region
    $region37: #{resisc45_cnn_forward.11} parent=5 // pred_check
      %p309 = pneg %p308
    $region38: #{resisc45_cnn_forward.11} parent=5 // pred_check_branch
      %311 = sbr.rel (%p309) target = $region40
    $region39: #{resisc45_cnn_forward.11} parent=5 // pred_region
      %s312 = ssub.s32 %s9, 2
      // Predicated region
      $region41: #{resisc45_cnn_forward.11} parent=39 // pred_check
        %p313 = pneg %p106
      $region42: #{resisc45_cnn_forward.11} parent=39 // pred_check_branch
        %315 = sbr.rel (%p313) target = $region44
      $region43: #{resisc45_cnn_forward.11} parent=39 // pred_region
        %p316 = scmp.lt.s32.totalorder %s15, 1
        %s317 = scalar_select %p316, %s15, 1
        %s318 = smul.addr %s317, 8
        %s319 = smul.addr %s318, 8
        %s320 = scalar_lea.vmem %s3, %s319
      $region44: #{resisc45_cnn_forward.11} parent=39 // pred_fallthru
        _
    $region40: #{resisc45_cnn_forward.11} parent=5 // pred_fallthru
      _
  $region6: #{resisc45_cnn_forward.11} parent=0 // loop_footer
    %s13 = sadd.s32 1, %s9
  $region7: #{resisc45_cnn_forward.11} parent=0 // loop_footer_branch
    %8 = sbr.rel target = $region3
  $region8: #{resisc45_cnn_forward.11} parent=0 // loop_exit
    _

// kernel: resisc45_cnn_forward.10
$region0: #{resisc45_cnn_forward.10}
  #allocation0 [shape = 'u32[]', space=smem, size = 0x4, offset = 0x4, fixed_abs, tag = 'smem constant byte address 0x4 - core index']
  #allocation1 [shape = 'u32[144,128]{1,0:T(1,128)}', space=vmem, size = 0x12000, scoped, tag = 'internal scratch']
  #allocation2 [shape = 'f32[512,6]{1,0:T(8,128)}', space=vmem, size = 0x40000, scoped, tag = 'scratch operand']
  %s0 = inlined_call_operand.vmem [shape: f32[2,4,32,128], index: 0, kind: input, shape index: {}]
  %s1 = inlined_call_operand.vmem [shape: f32[256,512], index: 1, kind: input, shape index: {}]
  %s2 = inlined_call_operand.vmem [shape: f32[256,1], index: 2, kind: input, shape index: {}]
  %s3 = inlined_call_operand.vmem [shape: f32[1,6], index: 3, kind: input, shape index: {}]
  %s4 = inlined_call_operand.vmem [shape: f32[2,64,6], index: 4, kind: output, shape index: {0}]
  %s5 = inlined_call_operand.vmem [shape: f32[2,64,1], index: 5, kind: output, shape index: {1}]
  %s6 = inlined_call_operand.vmem [shape: f32[2,64,1], index: 6, kind: output, shape index: {2}]
  %7 = xla_tuple %s4, %s5, %s6
  %s8 = sld [smem:[#allocation0]]
  $region65: #{resisc45_cnn_forward.10} parent=0
    _
  %s10 = ssub.s32 1, %s8
  %s11 = scalar_select 0, %s10, %s8
  loop: start=0, step=1, limit=4
  $region2: #{resisc45_cnn_forward.10} parent=0 // loop_pre_header
    _
  $region3: #{resisc45_cnn_forward.10} parent=0 // loop_header
    %s13 = sphi 0, %s17
    %p14 = scmp.ge.s32.totalorder %s13, 4
    %s23 = sphi 0, %s25
    %s26 = sphi 0, %s23
    %s27 = sphi 0, %s26
    %s43 = sphi 0, %s27
    %s47 = sphi 0, %s47
    %s49 = sphi 0, %s47
    %s50 = sphi 0, %s49
    %s64 = sphi 0, %s50
    %s68 = sphi 0, %s68
    %s70 = sphi 0, %s68
    %s71 = sphi 0, %s70
    %s85 = sphi 0, %s71
    %s89 = sphi 0, %s89
    %s91 = sphi 0, %s89
    %s92 = sphi 0, %s91
    %s106 = sphi 0, %s92
    %s112 = sphi 0, %s114
    %s115 = sphi 0, %s112
    %s116 = sphi 0, %s115
    %s132 = sphi 0, %s116
    %s138 = sphi 0, %s140
    %s141 = sphi 0, %s138
    %s142 = sphi 0, %s141
    %s158 = sphi 0, %s142
    %s164 = sphi 0, %s166
    %s167 = sphi 0, %s164
    %s168 = sphi 0, %s167
    %s184 = sphi 0, %s168
  $region4: #{resisc45_cnn_forward.10} parent=0 // loop_header_branch
    %16 = sbr.rel (%p14) target = $region8
  $region5: #{resisc45_cnn_forward.10} parent=0 // loop_body
    %s18 = ssub.s32 %s13, 1
    %s19 = ssub.s32 %s13, 2
    %s20 = sadd.s32 %s13, 1
    %s21 = ssub.s32 %s13, %s20
    %p22 = scmp.eq.s32.totalorder %s21, 0
    %s24 = sadd.s32 %s23, 1
    %s25 = scalar_select %p22, %s23, %s24
    %p28 = pneg %p22
    %p29 = scmp.eq.s32.totalorder %s13, 1
    %p30 = por %p28, %p29
    %p31 = scmp.ne.s32.totalorder %s23, %s26
    %p32 = scmp.eq.s32.totalorder %s13, 0
    %p33 = por %p31, %p32
    %p34 = scmp.ne.s32.totalorder %s23, %s26
    %p35 = scmp.eq.s32.totalorder %s18, 1
    %p36 = por %p34, %p35
    %p37 = scmp.ne.s32.totalorder %s26, %s27
    %p38 = scmp.eq.s32.totalorder %s18, 0
    %p39 = por %p37, %p38
    %p40 = scmp.ne.s32.totalorder %s26, %s27
    %p41 = scmp.eq.s32.totalorder %s19, 1
    %p42 = por %p40, %p41
    %p44 = scmp.ne.s32.totalorder %s27, %s43
    %p45 = scmp.eq.s32.totalorder %s19, 0
    %p46 = por %p44, %p45
    %s48 = sadd.s32 %s47, 1
    %p51 = scmp.eq.s32.totalorder %s13, 1
    %p52 = scmp.ne.s32.totalorder %s47, %s49
    %p53 = scmp.eq.s32.totalorder %s13, 0
    %p54 = por %p52, %p53
    %p55 = scmp.ne.s32.totalorder %s47, %s49
    %p56 = scmp.eq.s32.totalorder %s18, 1
    %p57 = por %p55, %p56
    %p58 = scmp.ne.s32.totalorder %s49, %s50
    %p59 = scmp.eq.s32.totalorder %s18, 0
    %p60 = por %p58, %p59
    %p61 = scmp.ne.s32.totalorder %s49, %s50
    %p62 = scmp.eq.s32.totalorder %s19, 1
    %p63 = por %p61, %p62
    %p65 = scmp.ne.s32.totalorder %s50, %s64
    %p66 = scmp.eq.s32.totalorder %s19, 0
    %p67 = por %p65, %p66
    %s69 = sadd.s32 %s68, 1
    %p72 = scmp.eq.s32.totalorder %s13, 1
    %p73 = scmp.ne.s32.totalorder %s68, %s70
    %p74 = scmp.eq.s32.totalorder %s13, 0
    %p75 = por %p73, %p74
    %p76 = scmp.ne.s32.totalorder %s68, %s70
    %p77 = scmp.eq.s32.totalorder %s18, 1
    %p78 = por %p76, %p77
    %p79 = scmp.ne.s32.totalorder %s70, %s71
    %p80 = scmp.eq.s32.totalorder %s18, 0
    %p81 = por %p79, %p80
    %p82 = scmp.ne.s32.totalorder %s70, %s71
    %p83 = scmp.eq.s32.totalorder %s19, 1
    %p84 = por %p82, %p83
    %p86 = scmp.ne.s32.totalorder %s71, %s85
    %p87 = scmp.eq.s32.totalorder %s19, 0
    %p88 = por %p86, %p87
    %s90 = sadd.s32 %s89, 1
    %p93 = scmp.eq.s32.totalorder %s13, 1
    %p94 = scmp.ne.s32.totalorder %s89, %s91
    %p95 = scmp.eq.s32.totalorder %s13, 0
    %p96 = por %p94, %p95
    %p97 = scmp.ne.s32.totalorder %s89, %s91
    %p98 = scmp.eq.s32.totalorder %s18, 1
    %p99 = por %p97, %p98
    %p100 = scmp.ne.s32.totalorder %s91, %s92
    %p101 = scmp.eq.s32.totalorder %s18, 0
    %p102 = por %p100, %p101
    %p103 = scmp.ne.s32.totalorder %s91, %s92
    %p104 = scmp.eq.s32.totalorder %s19, 1
    %p105 = por %p103, %p104
    %p107 = scmp.ne.s32.totalorder %s92, %s106
    %p108 = scmp.eq.s32.totalorder %s19, 0
    %p109 = por %p107, %p108
    %s110 = ssub.s32 %s13, %s20
    %p111 = scmp.eq.s32.totalorder %s110, 0
    %s113 = sadd.s32 %s112, 1
    %s114 = scalar_select %p111, %s112, %s113
    %p117 = pneg %p111
    %p118 = scmp.eq.s32.totalorder %s13, 1
    %p119 = por %p117, %p118
    %p120 = scmp.ne.s32.totalorder %s112, %s115
    %p121 = scmp.eq.s32.totalorder %s13, 0
    %p122 = por %p120, %p121
    %p123 = scmp.ne.s32.totalorder %s112, %s115
    %p124 = scmp.eq.s32.totalorder %s18, 1
    %p125 = por %p123, %p124
    %p126 = scmp.ne.s32.totalorder %s115, %s116
    %p127 = scmp.eq.s32.totalorder %s18, 0
    %p128 = por %p126, %p127
    %p129 = scmp.ne.s32.totalorder %s115, %s116
    %p130 = scmp.eq.s32.totalorder %s19, 1
    %p131 = por %p129, %p130
    %p133 = scmp.ne.s32.totalorder %s116, %s132
    %p134 = scmp.eq.s32.totalorder %s19, 0
    %p135 = por %p133, %p134
    %s136 = ssub.s32 %s13, %s20
    %p137 = scmp.eq.s32.totalorder %s136, 0
    %s139 = sadd.s32 %s138, 1
    %s140 = scalar_select %p137, %s138, %s139
    %p143 = pneg %p137
    %p144 = scmp.eq.s32.totalorder %s13, 1
    %p145 = por %p143, %p144
    %p146 = scmp.ne.s32.totalorder %s138, %s141
    %p147 = scmp.eq.s32.totalorder %s13, 0
    %p148 = por %p146, %p147
    %p149 = scmp.ne.s32.totalorder %s138, %s141
    %p150 = scmp.eq.s32.totalorder %s18, 1
    %p151 = por %p149, %p150
    %p152 = scmp.ne.s32.totalorder %s141, %s142
    %p153 = scmp.eq.s32.totalorder %s18, 0
    %p154 = por %p152, %p153
    %p155 = scmp.ne.s32.totalorder %s141, %s142
    %p156 = scmp.eq.s32.totalorder %s19, 1
    %p157 = por %p155, %p156
    %p159 = scmp.ne.s32.totalorder %s142, %s158
    %p160 = scmp.eq.s32.totalorder %s19, 0
    %p161 = por %p159, %p160
    %s162 = ssub.s32 %s13, %s20
    %p163 = scmp.eq.s32.totalorder %s162, 0
    %s165 = sadd.s32 %s164, 1
    %s166 = scalar_select %p163, %s164, %s165
    %p169 = pneg %p163
    %p170 = scmp.eq.s32.totalorder %s13, 1
    %p171 = por %p169, %p170
    %p172 = scmp.ne.s32.totalorder %s164, %s167
    %p173 = scmp.eq.s32.totalorder %s13, 0
    %p174 = por %p172, %p173
    %p175 = scmp.ne.s32.totalorder %s164, %s167
    %p176 = scmp.eq.s32.totalorder %s18, 1
    %p177 = por %p175, %p176
    %p178 = scmp.ne.s32.totalorder %s167, %s168
    %p179 = scmp.eq.s32.totalorder %s18, 0
    %p180 = por %p178, %p179
    %p181 = scmp.ne.s32.totalorder %s167, %s168
    %p182 = scmp.eq.s32.totalorder %s19, 1
    %p183 = por %p181, %p182
    %p185 = scmp.ne.s32.totalorder %s168, %s184
    %p186 = scmp.eq.s32.totalorder %s19, 0
    %p187 = por %p185, %p186
    %p188 = scmp.le.s32.totalorder 1, %s13
    %p189 = scmp.lt.s32.totalorder %s13, 3
    %p190 = pnand %p188, %p189
    %p191 = pneg %p190
    // Predicated region
    $region9: #{resisc45_cnn_forward.10} parent=5 // pred_check
      _
    $region10: #{resisc45_cnn_forward.10} parent=5 // pred_check_branch
      %193 = sbr.rel (%p190) target = $region12
    $region11: #{resisc45_cnn_forward.10} parent=5 // pred_region
      %s194 = ssub.s32 %s13, 1
      // Predicated region
      $region13: #{resisc45_cnn_forward.10} parent=11 // pred_check
        %p195 = pneg %p60
      $region14: #{resisc45_cnn_forward.10} parent=11 // pred_check_branch
        %197 = sbr.rel (%p195) target = $region16
      $region15: #{resisc45_cnn_forward.10} parent=11 // pred_region
        _
      $region16: #{resisc45_cnn_forward.10} parent=11 // pred_fallthru
        _
      // Predicated region
      $region17: #{resisc45_cnn_forward.10} parent=11 // pred_check
        %p198 = pneg %p81
      $region18: #{resisc45_cnn_forward.10} parent=11 // pred_check_branch
        %200 = sbr.rel (%p198) target = $region20
      $region19: #{resisc45_cnn_forward.10} parent=11 // pred_region
        _
      $region20: #{resisc45_cnn_forward.10} parent=11 // pred_fallthru
        _
      // Predicated region
      $region21: #{resisc45_cnn_forward.10} parent=11 // pred_check
        %p201 = pneg %p102
      $region22: #{resisc45_cnn_forward.10} parent=11 // pred_check_branch
        %203 = sbr.rel (%p201) target = $region24
      $region23: #{resisc45_cnn_forward.10} parent=11 // pred_region
        _
      $region24: #{resisc45_cnn_forward.10} parent=11 // pred_fallthru
        _
    $region12: #{resisc45_cnn_forward.10} parent=5 // pred_fallthru
      _
    %p204 = scmp.lt.s32.totalorder %s13, 2
    // Predicated region
    $region25: #{resisc45_cnn_forward.10} parent=5 // pred_check
      %p205 = pneg %p204
    $region26: #{resisc45_cnn_forward.10} parent=5 // pred_check_branch
      %207 = sbr.rel (%p205) target = $region28
    $region27: #{resisc45_cnn_forward.10} parent=5 // pred_region
      // Predicated region
      $region29: #{resisc45_cnn_forward.10} parent=27 // pred_check
        %p208 = pneg %p33
      $region30: #{resisc45_cnn_forward.10} parent=27 // pred_check_branch
        %210 = sbr.rel (%p208) target = $region32
      $region31: #{resisc45_cnn_forward.10} parent=27 // pred_region
        %p211 = scmp.lt.s32.totalorder %s13, 1
        %s212 = scalar_select %p211, %s13, 1
        %s213 = smul.addr %s212, 16
        %s214 = smul.addr %s213, 8
        %s215 = scalar_lea.vmem %s0, %s214
      $region32: #{resisc45_cnn_forward.10} parent=27 // pred_fallthru
        _
    $region28: #{resisc45_cnn_forward.10} parent=5 // pred_fallthru
      _
    %p216 = scmp.le.s32.totalorder 1, %s13
    %p217 = scmp.lt.s32.totalorder %s13, 3
    %p218 = pnand %p216, %p217
    %p219 = pneg %p218
    // Predicated region
    $region33: #{resisc45_cnn_forward.10} parent=5 // pred_check
      _
    $region34: #{resisc45_cnn_forward.10} parent=5 // pred_check_branch
      %221 = sbr.rel (%p218) target = $region36
    $region35: #{resisc45_cnn_forward.10} parent=5 // pred_region
      %s222 = ssub.s32 %s13, 1
      %p223 = scmp.lt.s32.totalorder %s18, 1
      %s224 = scalar_select %p223, %s18, 1
      %s225 = smul.addr %s224, 16
      %s226 = smul.addr %s225, 8
      %s227 = scalar_lea.vmem %s0, %s226
      %p228 = pneg %p39
      %p229 = pneg %p36
      %p230 = pneg %p60
      %p231 = pneg %p57
      %p232 = pneg %p81
      %p233 = pneg %p78
      %p234 = pneg %p102
      %p235 = pneg %p99
      %p236 = pneg %p128
      %p237 = pneg %p125
      %p238 = scmp.lt.s32.totalorder %s18, 1
      %s239 = scalar_select %p238, %s18, 1
      %s240 = smul.addr %s239, 8
      %s241 = smul.addr %s240, 8
      %s242 = scalar_lea.vmem %s4, %s241
      %p243 = pneg %p154
      %p244 = pneg %p151
      %p245 = scmp.lt.s32.totalorder %s18, 1
      %s246 = scalar_select %p245, %s18, 1
      %s247 = smul.addr %s246, 8
      %s248 = smul.addr %s247, 8
      %s249 = scalar_lea.vmem %s5, %s248
      %p250 = pneg %p180
      %p251 = pneg %p177
      %p252 = scmp.lt.s32.totalorder %s18, 1
      %s253 = scalar_select %p252, %s18, 1
      %s254 = smul.addr %s253, 8
      %s255 = smul.addr %s254, 8
      %s256 = scalar_lea.vmem %s6, %s255
      %p257 = scmp.lt.s32.totalorder %s18, 1
      %s258 = scalar_select %p257, %s18, 1
      %s259 = smul.addr %s258, 16
      %s260 = smul.addr %s259, 8
      %s261 = scalar_lea.vmem %s0, %s260
      %p262 = scmp.lt.s32.totalorder %s18, 1
      %s263 = scalar_select %p262, %s18, 1
      %s264 = smul.addr %s263, 8
      %s265 = smul.addr %s264, 8
      %s266 = scalar_lea.vmem %s4, %s265
      %p267 = scmp.lt.s32.totalorder %s18, 1
      %s268 = scalar_select %p267, %s18, 1
      %s269 = smul.addr %s268, 8
      %s270 = smul.addr %s269, 8
      %s271 = scalar_lea.vmem %s5, %s270
      %p272 = scmp.lt.s32.totalorder %s18, 1
      %s273 = scalar_select %p272, %s18, 1
      %s274 = smul.addr %s273, 8
      %s275 = smul.addr %s274, 8
      %s276 = scalar_lea.vmem %s6, %s275
      %v277 = vld [vmem:[%s1] sm:$0xff]
      %v278 = vld [vmem:[%s1 + $0x8] sm:$0xff]
      %v279 = vld [vmem:[%s1 + $0x10] sm:$0xff]
      %v280 = vld [vmem:[%s1 + $0x18] sm:$0xff]
      %v281 = vld [vmem:[%s1 + $0x20] sm:$0xff]
      %v282 = vld [vmem:[%s1 + $0x28] sm:$0xff]
      %v283 = vld [vmem:[%s1 + $0x30] sm:$0xff]
      %v284 = vld [vmem:[%s1 + $0x38] sm:$0xff]
      %v285 = vld [vmem:[%s1 + $0x40] sm:$0xff]
      %v286 = vld [vmem:[%s1 + $0x48] sm:$0xff]
      %v287 = vld [vmem:[%s1 + $0x50] sm:$0xff]
      %v288 = vld [vmem:[%s1 + $0x58] sm:$0xff]
      %v289 = vld [vmem:[%s1 + $0x60] sm:$0xff]
      %v290 = vld [vmem:[%s1 + $0x68] sm:$0xff]
      %v291 = vld [vmem:[%s1 + $0x70] sm:$0xff]
      %v292 = vld [vmem:[%s1 + $0x78] sm:$0xff]
      %v293 = vld [vmem:[%s1 + $0x80] sm:$0xff]
      %v294 = vld [vmem:[%s1 + $0x88] sm:$0xff]
      %v295 = vld [vmem:[%s1 + $0x90] sm:$0xff]
      %v296 = vld [vmem:[%s1 + $0x98] sm:$0xff]
      %v297 = vld [vmem:[%s1 + $0xa0] sm:$0xff]
      %v298 = vld [vmem:[%s1 + $0xa8] sm:$0xff]
      %v299 = vld [vmem:[%s1 + $0xb0] sm:$0xff]
      %v300 = vld [vmem:[%s1 + $0xb8] sm:$0xff]
      %v301 = vld [vmem:[%s1 + $0xc0] sm:$0xff]
      %v302 = vld [vmem:[%s1 + $0xc8] sm:$0xff]
      %v303 = vld [vmem:[%s1 + $0xd0] sm:$0xff]
      %v304 = vld [vmem:[%s1 + $0xd8] sm:$0xff]
      %v305 = vld [vmem:[%s1 + $0xe0] sm:$0xff]
      %v306 = vld [vmem:[%s1 + $0xe8] sm:$0xff]
      %v307 = vld [vmem:[%s1 + $0xf0] sm:$0xff]
      %v308 = vld [vmem:[%s1 + $0xf8] sm:$0xff]
      %v309 = vld [vmem:[%s1 + $0x100] sm:$0xff]
      %v310 = vld [vmem:[%s1 + $0x108] sm:$0xff]
      %v311 = vld [vmem:[%s1 + $0x110] sm:$0xff]
      %v312 = vld [vmem:[%s1 + $0x118] sm:$0xff]
      %v313 = vld [vmem:[%s1 + $0x120] sm:$0xff]
      %v314 = vld [vmem:[%s1 + $0x128] sm:$0xff]
      %v315 = vld [vmem:[%s1 + $0x130] sm:$0xff]
      %v316 = vld [vmem:[%s1 + $0x138] sm:$0xff]
      %v317 = vld [vmem:[%s1 + $0x140] sm:$0xff]
      %v318 = vld [vmem:[%s1 + $0x148] sm:$0xff]
      %v319 = vld [vmem:[%s1 + $0x150] sm:$0xff]
      %v320 = vld [vmem:[%s1 + $0x158] sm:$0xff]
      %v321 = vld [vmem:[%s1 + $0x160] sm:$0xff]
      %v322 = vld [vmem:[%s1 + $0x168] sm:$0xff]
      %v323 = vld [vmem:[%s1 + $0x170] sm:$0xff]
      %v324 = vld [vmem:[%s1 + $0x178] sm:$0xff]
      %v325 = vld [vmem:[%s1 + $0x180] sm:$0xff]
      %v326 = vld [vmem:[%s1 + $0x188] sm:$0xff]
      %v327 = vld [vmem:[%s1 + $0x190] sm:$0xff]
      %v328 = vld [vmem:[%s1 + $0x198] sm:$0xff]
      %v329 = vld [vmem:[%s1 + $0x1a0] sm:$0xff]
      %v330 = vld [vmem:[%s1 + $0x1a8] sm:$0xff]
      %v331 = vld [vmem:[%s1 + $0x1b0] sm:$0xff]
      %v332 = vld [vmem:[%s1 + $0x1b8] sm:$0xff]
      %v333 = vld [vmem:[%s1 + $0x1c0] sm:$0xff]
      %v334 = vld [vmem:[%s1 + $0x1c8] sm:$0xff]
      %v335 = vld [vmem:[%s1 + $0x1d0] sm:$0xff]
      %v336 = vld [vmem:[%s1 + $0x1d8] sm:$0xff]
      %v337 = vld [vmem:[%s1 + $0x1e0] sm:$0xff]
      %v338 = vld [vmem:[%s1 + $0x1e8] sm:$0xff]
      %v339 = vld [vmem:[%s1 + $0x1f0] sm:$0xff]
      %v340 = vld [vmem:[%s1 + $0x1f8] sm:$0xff]
      %v341 = vld [vmem:[%s1 + $0x200] sm:$0xff]
      %v342 = vld [vmem:[%s1 + $0x208] sm:$0xff]
      %v343 = vld [vmem:[%s1 + $0x210] sm:$0xff]
      %v344 = vld [vmem:[%s1 + $0x218] sm:$0xff]
      %v345 = vld [vmem:[%s1 + $0x220] sm:$0xff]
      %v346 = vld [vmem:[%s1 + $0x228] sm:$0xff]
      %v347 = vld [vmem:[%s1 + $0x230] sm:$0xff]
      %v348 = vld [vmem:[%s1 + $0x238] sm:$0xff]
      %v349 = vld [vmem:[%s1 + $0x240] sm:$0xff]
      %v350 = vld [vmem:[%s1 + $0x248] sm:$0xff]
      %v351 = vld [vmem:[%s1 + $0x250] sm:$0xff]
      %v352 = vld [vmem:[%s1 + $0x258] sm:$0xff]
      %v353 = vld [vmem:[%s1 + $0x260] sm:$0xff]
      %v354 = vld [vmem:[%s1 + $0x268] sm:$0xff]
      %v355 = vld [vmem:[%s1 + $0x270] sm:$0xff]
      %v356 = vld [vmem:[%s1 + $0x278] sm:$0xff]
      %v357 = vld [vmem:[%s1 + $0x280] sm:$0xff]
      %v358 = vld [vmem:[%s1 + $0x288] sm:$0xff]
      %v359 = vld [vmem:[%s1 + $0x290] sm:$0xff]
      %v360 = vld [vmem:[%s1 + $0x298] sm:$0xff]
      %v361 = vld [vmem:[%s1 + $0x2a0] sm:$0xff]
      %v362 = vld [vmem:[%s1 + $0x2a8] sm:$0xff]
      %v363 = vld [vmem:[%s1 + $0x2b0] sm:$0xff]
      %v364 = vld [vmem:[%s1 + $0x2b8] sm:$0xff]
      %v365 = vld [vmem:[%s1 + $0x2c0] sm:$0xff]
      %v366 = vld [vmem:[%s1 + $0x2c8] sm:$0xff]
      %v367 = vld [vmem:[%s1 + $0x2d0] sm:$0xff]
      %v368 = vld [vmem:[%s1 + $0x2d8] sm:$0xff]
      %v369 = vld [vmem:[%s1 + $0x2e0] sm:$0xff]
      %v370 = vld [vmem:[%s1 + $0x2e8] sm:$0xff]
      %v371 = vld [vmem:[%s1 + $0x2f0] sm:$0xff]
      %v372 = vld [vmem:[%s1 + $0x2f8] sm:$0xff]
      %v373 = vld [vmem:[%s1 + $0x300] sm:$0xff]
      %v374 = vld [vmem:[%s1 + $0x308] sm:$0xff]
      %v375 = vld [vmem:[%s1 + $0x310] sm:$0xff]
      %v376 = vld [vmem:[%s1 + $0x318] sm:$0xff]
      %v377 = vld [vmem:[%s1 + $0x320] sm:$0xff]
      %v378 = vld [vmem:[%s1 + $0x328] sm:$0xff]
      %v379 = vld [vmem:[%s1 + $0x330] sm:$0xff]
      %v380 = vld [vmem:[%s1 + $0x338] sm:$0xff]
      %v381 = vld [vmem:[%s1 + $0x340] sm:$0xff]
      %v382 = vld [vmem:[%s1 + $0x348] sm:$0xff]
      %v383 = vld [vmem:[%s1 + $0x350] sm:$0xff]
      %v384 = vld [vmem:[%s1 + $0x358] sm:$0xff]
      %v385 = vld [vmem:[%s1 + $0x360] sm:$0xff]
      %v386 = vld [vmem:[%s1 + $0x368] sm:$0xff]
      %v387 = vld [vmem:[%s1 + $0x370] sm:$0xff]
      %v388 = vld [vmem:[%s1 + $0x378] sm:$0xff]
      %v389 = vld [vmem:[%s1 + $0x380] sm:$0xff]
      %v390 = vld [vmem:[%s1 + $0x388] sm:$0xff]
      %v391 = vld [vmem:[%s1 + $0x390] sm:$0xff]
      %v392 = vld [vmem:[%s1 + $0x398] sm:$0xff]
      %v393 = vld [vmem:[%s1 + $0x3a0] sm:$0xff]
      %v394 = vld [vmem:[%s1 + $0x3a8] sm:$0xff]
      %v395 = vld [vmem:[%s1 + $0x3b0] sm:$0xff]
      %v396 = vld [vmem:[%s1 + $0x3b8] sm:$0xff]
      %v397 = vld [vmem:[%s1 + $0x3c0] sm:$0xff]
      %v398 = vld [vmem:[%s1 + $0x3c8] sm:$0xff]
      %v399 = vld [vmem:[%s1 + $0x3d0] sm:$0xff]
      %v400 = vld [vmem:[%s1 + $0x3d8] sm:$0xff]
      %v401 = vld [vmem:[%s1 + $0x3e0] sm:$0xff]
      %v402 = vld [vmem:[%s1 + $0x3e8] sm:$0xff]
      %v403 = vld [vmem:[%s1 + $0x3f0] sm:$0xff]
      %v404 = vld [vmem:[%s1 + $0x3f8] sm:$0xff]
      %v405 = vld [vmem:[%s2] sm:$0xff]
      %v406 = vld [vmem:[%s2 + $0x8] sm:$0xff]
      %v407 = vld [vmem:[%s2 + $0x10] sm:$0xff]
      %v408 = vld [vmem:[%s2 + $0x18] sm:$0xff]
      %v409 = vld [vmem:[%s2 + $0x20] sm:$0xff]
      %v410 = vld [vmem:[%s2 + $0x28] sm:$0xff]
      %v411 = vld [vmem:[%s2 + $0x30] sm:$0xff]
      %v412 = vld [vmem:[%s2 + $0x38] sm:$0xff]
      %v413 = vld [vmem:[%s2 + $0x40] sm:$0xff]
      %v414 = vld [vmem:[%s2 + $0x48] sm:$0xff]
      %v415 = vld [vmem:[%s2 + $0x50] sm:$0xff]
      %v416 = vld [vmem:[%s2 + $0x58] sm:$0xff]
      %v417 = vld [vmem:[%s2 + $0x60] sm:$0xff]
      %v418 = vld [vmem:[%s2 + $0x68] sm:$0xff]
      %v419 = vld [vmem:[%s2 + $0x70] sm:$0xff]
      %v420 = vld [vmem:[%s2 + $0x78] sm:$0xff]
      %v421 = vld [vmem:[%s2 + $0x80] sm:$0xff]
      %v422 = vld [vmem:[%s2 + $0x88] sm:$0xff]
      %v423 = vld [vmem:[%s2 + $0x90] sm:$0xff]
      %v424 = vld [vmem:[%s2 + $0x98] sm:$0xff]
      %v425 = vld [vmem:[%s2 + $0xa0] sm:$0xff]
      %v426 = vld [vmem:[%s2 + $0xa8] sm:$0xff]
      %v427 = vld [vmem:[%s2 + $0xb0] sm:$0xff]
      %v428 = vld [vmem:[%s2 + $0xb8] sm:$0xff]
      %v429 = vld [vmem:[%s2 + $0xc0] sm:$0xff]
      %v430 = vld [vmem:[%s2 + $0xc8] sm:$0xff]
      %v431 = vld [vmem:[%s2 + $0xd0] sm:$0xff]
      %v432 = vld [vmem:[%s2 + $0xd8] sm:$0xff]
      %v433 = vld [vmem:[%s2 + $0xe0] sm:$0xff]
      %v434 = vld [vmem:[%s2 + $0xe8] sm:$0xff]
      %v435 = vld [vmem:[%s2 + $0xf0] sm:$0xff]
      %v436 = vld [vmem:[%s2 + $0xf8] sm:$0xff]
      %v437 = vld [vmem:[%s261] sm:$0xff]
      %v438 = vld [vmem:[%s261 + $0x8] sm:$0xff]
      %v439 = vld [vmem:[%s261 + $0x10] sm:$0xff]
      %v440 = vld [vmem:[%s261 + $0x18] sm:$0xff]
      %vm441 = vcmask 48128
      %442 = vst.msk [vmem:[#allocation2] sm:$0xff] %vm441, %v437
      %443 = vst.msk [vmem:[#allocation2 + $0x8] sm:$0xff] %vm441, %v438
      %444 = vst.msk [vmem:[#allocation2 + $0x10] sm:$0xff] %vm441, %v439
      %445 = vst.msk [vmem:[#allocation2 + $0x18] sm:$0xff] %vm441, %v440
      %v446 = vld [vmem:[%s261] sm:$0xff]
      %v447 = vld [vmem:[%s261 + $0x8] sm:$0xff]
      %v448 = vld [vmem:[%s261 + $0x10] sm:$0xff]
      %v449 = vld [vmem:[%s261 + $0x18] sm:$0xff]
      %454 = vrot.lane.b32.xlu0 %v446, 127
      %v455 = vpop.permute.xlu0 %454
      %456 = vrot.lane.b32.xlu0 %v447, 127
      %v457 = vpop.permute.xlu0 %456
      %458 = vrot.lane.b32.xlu0 %v448, 127
      %v459 = vpop.permute.xlu0 %458
      %460 = vrot.lane.b32.xlu0 %v449, 127
      %v461 = vpop.permute.xlu0 %460
      %466 = vst.msk [vmem:[#allocation2 + $0x20] sm:$0xff] %vm441, %v455
      %467 = vst.msk [vmem:[#allocation2 + $0x28] sm:$0xff] %vm441, %v457
      %468 = vst.msk [vmem:[#allocation2 + $0x30] sm:$0xff] %vm441, %v459
      %469 = vst.msk [vmem:[#allocation2 + $0x38] sm:$0xff] %vm441, %v461
      %v470 = vld [vmem:[%s261] sm:$0xff]
      %v471 = vld [vmem:[%s261 + $0x8] sm:$0xff]
      %v472 = vld [vmem:[%s261 + $0x10] sm:$0xff]
      %v473 = vld [vmem:[%s261 + $0x18] sm:$0xff]
      %478 = vrot.lane.b32.xlu0 %v470, 125
      %v479 = vpop.permute.xlu0 %478
      %480 = vrot.lane.b32.xlu0 %v471, 125
      %v481 = vpop.permute.xlu0 %480
      %482 = vrot.lane.b32.xlu0 %v472, 125
      %v483 = vpop.permute.xlu0 %482
      %484 = vrot.lane.b32.xlu0 %v473, 125
      %v485 = vpop.permute.xlu0 %484
      %490 = vst.msk [vmem:[#allocation2 + $0x40] sm:$0xff] %vm441, %v479
      %491 = vst.msk [vmem:[#allocation2 + $0x48] sm:$0xff] %vm441, %v481
      %492 = vst.msk [vmem:[#allocation2 + $0x50] sm:$0xff] %vm441, %v483
      %493 = vst.msk [vmem:[#allocation2 + $0x58] sm:$0xff] %vm441, %v485
      %v494 = vld [vmem:[%s261] sm:$0xff]
      %v495 = vld [vmem:[%s261 + $0x8] sm:$0xff]
      %v496 = vld [vmem:[%s261 + $0x10] sm:$0xff]
      %v497 = vld [vmem:[%s261 + $0x18] sm:$0xff]
      %502 = vrot.lane.b32.xlu0 %v494, 124
      %v503 = vpop.permute.xlu0 %502
      %504 = vrot.lane.b32.xlu0 %v495, 124
      %v505 = vpop.permute.xlu0 %504
      %506 = vrot.lane.b32.xlu0 %v496, 124
      %v507 = vpop.permute.xlu0 %506
      %508 = vrot.lane.b32.xlu0 %v497, 124
      %v509 = vpop.permute.xlu0 %508
      %514 = vst.msk [vmem:[#allocation2 + $0x60] sm:$0xff] %vm441, %v503
      %515 = vst.msk [vmem:[#allocation2 + $0x68] sm:$0xff] %vm441, %v505
      %516 = vst.msk [vmem:[#allocation2 + $0x70] sm:$0xff] %vm441, %v507
      %517 = vst.msk [vmem:[#allocation2 + $0x78] sm:$0xff] %vm441, %v509
      %s518 = scalar_lea.vmem %s261, 32
      %v519 = vld [vmem:[%s518] sm:$0xff]
      %v520 = vld [vmem:[%s518 + $0x8] sm:$0xff]
      %v521 = vld [vmem:[%s518 + $0x10] sm:$0xff]
      %v522 = vld [vmem:[%s518 + $0x18] sm:$0xff]
      %523 = vst.msk [vmem:[#allocation2 + $0x80] sm:$0xff] %vm441, %v519
      %524 = vst.msk [vmem:[#allocation2 + $0x88] sm:$0xff] %vm441, %v520
      %525 = vst.msk [vmem:[#allocation2 + $0x90] sm:$0xff] %vm441, %v521
      %526 = vst.msk [vmem:[#allocation2 + $0x98] sm:$0xff] %vm441, %v522
      %v527 = vld [vmem:[%s518] sm:$0xff]
      %v528 = vld [vmem:[%s518 + $0x8] sm:$0xff]
      %v529 = vld [vmem:[%s518 + $0x10] sm:$0xff]
      %v530 = vld [vmem:[%s518 + $0x18] sm:$0xff]
      %535 = vrot.lane.b32.xlu0 %v527, 127
      %v536 = vpop.permute.xlu0 %535
      %537 = vrot.lane.b32.xlu0 %v528, 127
      %v538 = vpop.permute.xlu0 %537
      %539 = vrot.lane.b32.xlu0 %v529, 127
      %v540 = vpop.permute.xlu0 %539
      %541 = vrot.lane.b32.xlu0 %v530, 127
      %v542 = vpop.permute.xlu0 %541
      %547 = vst.msk [vmem:[#allocation2 + $0xa0] sm:$0xff] %vm441, %v536
      %548 = vst.msk [vmem:[#allocation2 + $0xa8] sm:$0xff] %vm441, %v538
      %549 = vst.msk [vmem:[#allocation2 + $0xb0] sm:$0xff] %vm441, %v540
      %550 = vst.msk [vmem:[#allocation2 + $0xb8] sm:$0xff] %vm441, %v542
      %v551 = vld [vmem:[%s518] sm:$0xff]
      %v552 = vld [vmem:[%s518 + $0x8] sm:$0xff]
      %v553 = vld [vmem:[%s518 + $0x10] sm:$0xff]
      %v554 = vld [vmem:[%s518 + $0x18] sm:$0xff]
      %559 = vrot.lane.b32.xlu0 %v551, 125
      %v560 = vpop.permute.xlu0 %559
      %561 = vrot.lane.b32.xlu0 %v552, 125
      %v562 = vpop.permute.xlu0 %561
      %563 = vrot.lane.b32.xlu0 %v553, 125
      %v564 = vpop.permute.xlu0 %563
      %565 = vrot.lane.b32.xlu0 %v554, 125
      %v566 = vpop.permute.xlu0 %565
      %571 = vst.msk [vmem:[#allocation2 + $0xc0] sm:$0xff] %vm441, %v560
      %572 = vst.msk [vmem:[#allocation2 + $0xc8] sm:$0xff] %vm441, %v562
      %573 = vst.msk [vmem:[#allocation2 + $0xd0] sm:$0xff] %vm441, %v564
      %574 = vst.msk [vmem:[#allocation2 + $0xd8] sm:$0xff] %vm441, %v566
      %v575 = vld [vmem:[%s518] sm:$0xff]
      %v576 = vld [vmem:[%s518 + $0x8] sm:$0xff]
      %v577 = vld [vmem:[%s518 + $0x10] sm:$0xff]
      %v578 = vld [vmem:[%s518 + $0x18] sm:$0xff]
      %583 = vrot.lane.b32.xlu0 %v575, 124
      %v584 = vpop.permute.xlu0 %583
      %585 = vrot.lane.b32.xlu0 %v576, 124
      %v586 = vpop.permute.xlu0 %585
      %587 = vrot.lane.b32.xlu0 %v577, 124
      %v588 = vpop.permute.xlu0 %587
      %589 = vrot.lane.b32.xlu0 %v578, 124
      %v590 = vpop.permute.xlu0 %589
      %595 = vst.msk [vmem:[#allocation2 + $0xe0] sm:$0xff] %vm441, %v584
      %596 = vst.msk [vmem:[#allocation2 + $0xe8] sm:$0xff] %vm441, %v586
      %597 = vst.msk [vmem:[#allocation2 + $0xf0] sm:$0xff] %vm441, %v588
      %598 = vst.msk [vmem:[#allocation2 + $0xf8] sm:$0xff] %vm441, %v590
      %s599 = scalar_lea.vmem %s261, 64
      %v600 = vld [vmem:[%s599] sm:$0xff]
      %v601 = vld [vmem:[%s599 + $0x8] sm:$0xff]
      %v602 = vld [vmem:[%s599 + $0x10] sm:$0xff]
      %v603 = vld [vmem:[%s599 + $0x18] sm:$0xff]
      %604 = vst.msk [vmem:[#allocation2 + $0x100] sm:$0xff] %vm441, %v600
      %605 = vst.msk [vmem:[#allocation2 + $0x108] sm:$0xff] %vm441, %v601
      %606 = vst.msk [vmem:[#allocation2 + $0x110] sm:$0xff] %vm441, %v602
      %607 = vst.msk [vmem:[#allocation2 + $0x118] sm:$0xff] %vm441, %v603
      %v608 = vld [vmem:[%s599] sm:$0xff]
      %v609 = vld [vmem:[%s599 + $0x8] sm:$0xff]
      %v610 = vld [vmem:[%s599 + $0x10] sm:$0xff]
      %v611 = vld [vmem:[%s599 + $0x18] sm:$0xff]
      %616 = vrot.lane.b32.xlu0 %v608, 127
      %v617 = vpop.permute.xlu0 %616
      %618 = vrot.lane.b32.xlu0 %v609, 127
      %v619 = vpop.permute.xlu0 %618
      %620 = vrot.lane.b32.xlu0 %v610, 127
      %v621 = vpop.permute.xlu0 %620
      %622 = vrot.lane.b32.xlu0 %v611, 127
      %v623 = vpop.permute.xlu0 %622
      %628 = vst.msk [vmem:[#allocation2 + $0x120] sm:$0xff] %vm441, %v617
      %629 = vst.msk [vmem:[#allocation2 + $0x128] sm:$0xff] %vm441, %v619
      %630 = vst.msk [vmem:[#allocation2 + $0x130] sm:$0xff] %vm441, %v621
      %631 = vst.msk [vmem:[#allocation2 + $0x138] sm:$0xff] %vm441, %v623
      %v632 = vld [vmem:[%s599] sm:$0xff]
      %v633 = vld [vmem:[%s599 + $0x8] sm:$0xff]
      %v634 = vld [vmem:[%s599 + $0x10] sm:$0xff]
      %v635 = vld [vmem:[%s599 + $0x18] sm:$0xff]
      %640 = vrot.lane.b32.xlu0 %v632, 125
      %v641 = vpop.permute.xlu0 %640
      %642 = vrot.lane.b32.xlu0 %v633, 125
      %v643 = vpop.permute.xlu0 %642
      %644 = vrot.lane.b32.xlu0 %v634, 125
      %v645 = vpop.permute.xlu0 %644
      %646 = vrot.lane.b32.xlu0 %v635, 125
      %v647 = vpop.permute.xlu0 %646
      %652 = vst.msk [vmem:[#allocation2 + $0x140] sm:$0xff] %vm441, %v641
      %653 = vst.msk [vmem:[#allocation2 + $0x148] sm:$0xff] %vm441, %v643
      %654 = vst.msk [vmem:[#allocation2 + $0x150] sm:$0xff] %vm441, %v645
      %655 = vst.msk [vmem:[#allocation2 + $0x158] sm:$0xff] %vm441, %v647
      %v656 = vld [vmem:[%s599] sm:$0xff]
      %v657 = vld [vmem:[%s599 + $0x8] sm:$0xff]
      %v658 = vld [vmem:[%s599 + $0x10] sm:$0xff]
      %v659 = vld [vmem:[%s599 + $0x18] sm:$0xff]
      %664 = vrot.lane.b32.xlu0 %v656, 124
      %v665 = vpop.permute.xlu0 %664
      %666 = vrot.lane.b32.xlu0 %v657, 124
      %v667 = vpop.permute.xlu0 %666
      %668 = vrot.lane.b32.xlu0 %v658, 124
      %v669 = vpop.permute.xlu0 %668
      %670 = vrot.lane.b32.xlu0 %v659, 124
      %v671 = vpop.permute.xlu0 %670
      %676 = vst.msk [vmem:[#allocation2 + $0x160] sm:$0xff] %vm441, %v665
      %677 = vst.msk [vmem:[#allocation2 + $0x168] sm:$0xff] %vm441, %v667
      %678 = vst.msk [vmem:[#allocation2 + $0x170] sm:$0xff] %vm441, %v669
      %679 = vst.msk [vmem:[#allocation2 + $0x178] sm:$0xff] %vm441, %v671
      %s680 = scalar_lea.vmem %s261, 96
      %v681 = vld [vmem:[%s680] sm:$0xff]
      %v682 = vld [vmem:[%s680 + $0x8] sm:$0xff]
      %v683 = vld [vmem:[%s680 + $0x10] sm:$0xff]
      %v684 = vld [vmem:[%s680 + $0x18] sm:$0xff]
      %685 = vst.msk [vmem:[#allocation2 + $0x180] sm:$0xff] %vm441, %v681
      %686 = vst.msk [vmem:[#allocation2 + $0x188] sm:$0xff] %vm441, %v682
      %687 = vst.msk [vmem:[#allocation2 + $0x190] sm:$0xff] %vm441, %v683
      %688 = vst.msk [vmem:[#allocation2 + $0x198] sm:$0xff] %vm441, %v684
      %v689 = vld [vmem:[%s680] sm:$0xff]
      %v690 = vld [vmem:[%s680 + $0x8] sm:$0xff]
      %v691 = vld [vmem:[%s680 + $0x10] sm:$0xff]
      %v692 = vld [vmem:[%s680 + $0x18] sm:$0xff]
      %697 = vrot.lane.b32.xlu0 %v689, 127
      %v698 = vpop.permute.xlu0 %697
      %699 = vrot.lane.b32.xlu0 %v690, 127
      %v700 = vpop.permute.xlu0 %699
      %701 = vrot.lane.b32.xlu0 %v691, 127
      %v702 = vpop.permute.xlu0 %701
      %703 = vrot.lane.b32.xlu0 %v692, 127
      %v704 = vpop.permute.xlu0 %703
      %709 = vst.msk [vmem:[#allocation2 + $0x1a0] sm:$0xff] %vm441, %v698
      %710 = vst.msk [vmem:[#allocation2 + $0x1a8] sm:$0xff] %vm441, %v700
      %711 = vst.msk [vmem:[#allocation2 + $0x1b0] sm:$0xff] %vm441, %v702
      %712 = vst.msk [vmem:[#allocation2 + $0x1b8] sm:$0xff] %vm441, %v704
      %v713 = vld [vmem:[%s680] sm:$0xff]
      %v714 = vld [vmem:[%s680 + $0x8] sm:$0xff]
      %v715 = vld [vmem:[%s680 + $0x10] sm:$0xff]
      %v716 = vld [vmem:[%s680 + $0x18] sm:$0xff]
      %721 = vrot.lane.b32.xlu0 %v713, 125
      %v722 = vpop.permute.xlu0 %721
      %723 = vrot.lane.b32.xlu0 %v714, 125
      %v724 = vpop.permute.xlu0 %723
      %725 = vrot.lane.b32.xlu0 %v715, 125
      %v726 = vpop.permute.xlu0 %725
      %727 = vrot.lane.b32.xlu0 %v716, 125
      %v728 = vpop.permute.xlu0 %727
      %733 = vst.msk [vmem:[#allocation2 + $0x1c0] sm:$0xff] %vm441, %v722
      %734 = vst.msk [vmem:[#allocation2 + $0x1c8] sm:$0xff] %vm441, %v724
      %735 = vst.msk [vmem:[#allocation2 + $0x1d0] sm:$0xff] %vm441, %v726
      %736 = vst.msk [vmem:[#allocation2 + $0x1d8] sm:$0xff] %vm441, %v728
      %v737 = vld [vmem:[%s680] sm:$0xff]
      %v738 = vld [vmem:[%s680 + $0x8] sm:$0xff]
      %v739 = vld [vmem:[%s680 + $0x10] sm:$0xff]
      %v740 = vld [vmem:[%s680 + $0x18] sm:$0xff]
      %745 = vrot.lane.b32.xlu0 %v737, 124
      %v746 = vpop.permute.xlu0 %745
      %747 = vrot.lane.b32.xlu0 %v738, 124
      %v748 = vpop.permute.xlu0 %747
      %749 = vrot.lane.b32.xlu0 %v739, 124
      %v750 = vpop.permute.xlu0 %749
      %751 = vrot.lane.b32.xlu0 %v740, 124
      %v752 = vpop.permute.xlu0 %751
      %757 = vst.msk [vmem:[#allocation2 + $0x1e0] sm:$0xff] %vm441, %v746
      %758 = vst.msk [vmem:[#allocation2 + $0x1e8] sm:$0xff] %vm441, %v748
      %759 = vst.msk [vmem:[#allocation2 + $0x1f0] sm:$0xff] %vm441, %v750
      %760 = vst.msk [vmem:[#allocation2 + $0x1f8] sm:$0xff] %vm441, %v752
      %v761 = vld [vmem:[#allocation2] sm:$0xff]
      %v762 = vld [vmem:[#allocation2 + $0x8] sm:$0xff]
      %v763 = vld [vmem:[#allocation2 + $0x10] sm:$0xff]
      %v764 = vld [vmem:[#allocation2 + $0x18] sm:$0xff]
      %v765 = vld [vmem:[#allocation2 + $0x20] sm:$0xff]
      %v766 = vld [vmem:[#allocation2 + $0x28] sm:$0xff]
      %v767 = vld [vmem:[#allocation2 + $0x30] sm:$0xff]
      %v768 = vld [vmem:[#allocation2 + $0x38] sm:$0xff]
      %v769 = vld [vmem:[#allocation2 + $0x40] sm:$0xff]
      %v770 = vld [vmem:[#allocation2 + $0x48] sm:$0xff]
      %v771 = vld [vmem:[#allocation2 + $0x50] sm:$0xff]
      %v772 = vld [vmem:[#allocation2 + $0x58] sm:$0xff]
      %v773 = vld [vmem:[#allocation2 + $0x60] sm:$0xff]
      %v774 = vld [vmem:[#allocation2 + $0x68] sm:$0xff]
      %v775 = vld [vmem:[#allocation2 + $0x70] sm:$0xff]
      %v776 = vld [vmem:[#allocation2 + $0x78] sm:$0xff]
      %v777 = vld [vmem:[#allocation2 + $0x80] sm:$0xff]
      %v778 = vld [vmem:[#allocation2 + $0x88] sm:$0xff]
      %v779 = vld [vmem:[#allocation2 + $0x90] sm:$0xff]
      %v780 = vld [vmem:[#allocation2 + $0x98] sm:$0xff]
      %v781 = vld [vmem:[#allocation2 + $0xa0] sm:$0xff]
      %v782 = vld [vmem:[#allocation2 + $0xa8] sm:$0xff]
      %v783 = vld [vmem:[#allocation2 + $0xb0] sm:$0xff]
      %v784 = vld [vmem:[#allocation2 + $0xb8] sm:$0xff]
      %v785 = vld [vmem:[#allocation2 + $0xc0] sm:$0xff]
      %v786 = vld [vmem:[#allocation2 + $0xc8] sm:$0xff]
      %v787 = vld [vmem:[#allocation2 + $0xd0] sm:$0xff]
      %v788 = vld [vmem:[#allocation2 + $0xd8] sm:$0xff]
      %v789 = vld [vmem:[#allocation2 + $0xe0] sm:$0xff]
      %v790 = vld [vmem:[#allocation2 + $0xe8] sm:$0xff]
      %v791 = vld [vmem:[#allocation2 + $0xf0] sm:$0xff]
      %v792 = vld [vmem:[#allocation2 + $0xf8] sm:$0xff]
      %v793 = vld [vmem:[#allocation2 + $0x100] sm:$0xff]
      %v794 = vld [vmem:[#allocation2 + $0x108] sm:$0xff]
      %v795 = vld [vmem:[#allocation2 + $0x110] sm:$0xff]
      %v796 = vld [vmem:[#allocation2 + $0x118] sm:$0xff]
      %v797 = vld [vmem:[#allocation2 + $0x120] sm:$0xff]
      %v798 = vld [vmem:[#allocation2 + $0x128] sm:$0xff]
      %v799 = vld [vmem:[#allocation2 + $0x130] sm:$0xff]
      %v800 = vld [vmem:[#allocation2 + $0x138] sm:$0xff]
      %v801 = vld [vmem:[#allocation2 + $0x140] sm:$0xff]
      %v802 = vld [vmem:[#allocation2 + $0x148] sm:$0xff]
      %v803 = vld [vmem:[#allocation2 + $0x150] sm:$0xff]
      %v804 = vld [vmem:[#allocation2 + $0x158] sm:$0xff]
      %v805 = vld [vmem:[#allocation2 + $0x160] sm:$0xff]
      %v806 = vld [vmem:[#allocation2 + $0x168] sm:$0xff]
      %v807 = vld [vmem:[#allocation2 + $0x170] sm:$0xff]
      %v808 = vld [vmem:[#allocation2 + $0x178] sm:$0xff]
      %v809 = vld [vmem:[#allocation2 + $0x180] sm:$0xff]
      %v810 = vld [vmem:[#allocation2 + $0x188] sm:$0xff]
      %v811 = vld [vmem:[#allocation2 + $0x190] sm:$0xff]
      %v812 = vld [vmem:[#allocation2 + $0x198] sm:$0xff]
      %v813 = vld [vmem:[#allocation2 + $0x1a0] sm:$0xff]
      %v814 = vld [vmem:[#allocation2 + $0x1a8] sm:$0xff]
      %v815 = vld [vmem:[#allocation2 + $0x1b0] sm:$0xff]
      %v816 = vld [vmem:[#allocation2 + $0x1b8] sm:$0xff]
      %v817 = vld [vmem:[#allocation2 + $0x1c0] sm:$0xff]
      %v818 = vld [vmem:[#allocation2 + $0x1c8] sm:$0xff]
      %v819 = vld [vmem:[#allocation2 + $0x1d0] sm:$0xff]
      %v820 = vld [vmem:[#allocation2 + $0x1d8] sm:$0xff]
      %v821 = vld [vmem:[#allocation2 + $0x1e0] sm:$0xff]
      %v822 = vld [vmem:[#allocation2 + $0x1e8] sm:$0xff]
      %v823 = vld [vmem:[#allocation2 + $0x1f0] sm:$0xff]
      %v824 = vld [vmem:[#allocation2 + $0x1f8] sm:$0xff]
      %826 = vset.pattern.permute.xlu0 0
      %827 = vperm.xlu0 %826, %v405
      %v828 = vpop.permute.xlu0 %827
      %831 = vset.pattern.permute.xlu0 0
      %832 = vperm.xlu0 %831, %v406
      %v833 = vpop.permute.xlu0 %832
      %836 = vset.pattern.permute.xlu0 0
      %837 = vperm.xlu0 %836, %v407
      %v838 = vpop.permute.xlu0 %837
      %841 = vset.pattern.permute.xlu0 0
      %842 = vperm.xlu0 %841, %v408
      %v843 = vpop.permute.xlu0 %842
      %846 = vset.pattern.permute.xlu0 0
      %847 = vperm.xlu0 %846, %v409
      %v848 = vpop.permute.xlu0 %847
      %851 = vset.pattern.permute.xlu0 0
      %852 = vperm.xlu0 %851, %v410
      %v853 = vpop.permute.xlu0 %852
      %856 = vset.pattern.permute.xlu0 0
      %857 = vperm.xlu0 %856, %v411
      %v858 = vpop.permute.xlu0 %857
      %861 = vset.pattern.permute.xlu0 0
      %862 = vperm.xlu0 %861, %v412
      %v863 = vpop.permute.xlu0 %862
      %866 = vset.pattern.permute.xlu0 0
      %867 = vperm.xlu0 %866, %v413
      %v868 = vpop.permute.xlu0 %867
      %871 = vset.pattern.permute.xlu0 0
      %872 = vperm.xlu0 %871, %v414
      %v873 = vpop.permute.xlu0 %872
      %876 = vset.pattern.permute.xlu0 0
      %877 = vperm.xlu0 %876, %v415
      %v878 = vpop.permute.xlu0 %877
      %881 = vset.pattern.permute.xlu0 0
      %882 = vperm.xlu0 %881, %v416
      %v883 = vpop.permute.xlu0 %882
      %886 = vset.pattern.permute.xlu0 0
      %887 = vperm.xlu0 %886, %v417
      %v888 = vpop.permute.xlu0 %887
      %891 = vset.pattern.permute.xlu0 0
      %892 = vperm.xlu0 %891, %v418
      %v893 = vpop.permute.xlu0 %892
      %896 = vset.pattern.permute.xlu0 0
      %897 = vperm.xlu0 %896, %v419
      %v898 = vpop.permute.xlu0 %897
      %901 = vset.pattern.permute.xlu0 0
      %902 = vperm.xlu0 %901, %v420
      %v903 = vpop.permute.xlu0 %902
      %906 = vset.pattern.permute.xlu0 0
      %907 = vperm.xlu0 %906, %v421
      %v908 = vpop.permute.xlu0 %907
      %911 = vset.pattern.permute.xlu0 0
      %912 = vperm.xlu0 %911, %v422
      %v913 = vpop.permute.xlu0 %912
      %916 = vset.pattern.permute.xlu0 0
      %917 = vperm.xlu0 %916, %v423
      %v918 = vpop.permute.xlu0 %917
      %921 = vset.pattern.permute.xlu0 0
      %922 = vperm.xlu0 %921, %v424
      %v923 = vpop.permute.xlu0 %922
      %926 = vset.pattern.permute.xlu0 0
      %927 = vperm.xlu0 %926, %v425
      %v928 = vpop.permute.xlu0 %927
      %931 = vset.pattern.permute.xlu0 0
      %932 = vperm.xlu0 %931, %v426
      %v933 = vpop.permute.xlu0 %932
      %936 = vset.pattern.permute.xlu0 0
      %937 = vperm.xlu0 %936, %v427
      %v938 = vpop.permute.xlu0 %937
      %941 = vset.pattern.permute.xlu0 0
      %942 = vperm.xlu0 %941, %v428
      %v943 = vpop.permute.xlu0 %942
      %946 = vset.pattern.permute.xlu0 0
      %947 = vperm.xlu0 %946, %v429
      %v948 = vpop.permute.xlu0 %947
      %951 = vset.pattern.permute.xlu0 0
      %952 = vperm.xlu0 %951, %v430
      %v953 = vpop.permute.xlu0 %952
      %956 = vset.pattern.permute.xlu0 0
      %957 = vperm.xlu0 %956, %v431
      %v958 = vpop.permute.xlu0 %957
      %961 = vset.pattern.permute.xlu0 0
      %962 = vperm.xlu0 %961, %v432
      %v963 = vpop.permute.xlu0 %962
      %966 = vset.pattern.permute.xlu0 0
      %967 = vperm.xlu0 %966, %v433
      %v968 = vpop.permute.xlu0 %967
      %971 = vset.pattern.permute.xlu0 0
      %972 = vperm.xlu0 %971, %v434
      %v973 = vpop.permute.xlu0 %972
      %976 = vset.pattern.permute.xlu0 0
      %977 = vperm.xlu0 %976, %v435
      %v978 = vpop.permute.xlu0 %977
      %981 = vset.pattern.permute.xlu0 0
      %982 = vperm.xlu0 %981, %v436
      %v983 = vpop.permute.xlu0 %982
      %985 = vmatprep.subr.mxu0 0.0
      %986 = vmatpush1.msra.mxu0 %v776
      %987 = vmatprep.subr.mxu0 0.0
      %988 = vmatpush1.msra.mxu0 %v775
      %989 = vmatprep.subr.mxu0 0.0
      %990 = vmatpush1.msra.mxu0 %v774
      %991 = vmatprep.subr.mxu0 0.0
      %992 = vmatpush1.msra.mxu0 %v773
      %993 = vmatprep.subr.mxu0 0.0
      %994 = vmatpush1.msra.mxu0 %v772
      %995 = vmatprep.subr.mxu0 0.0
      %996 = vmatpush1.msra.mxu0 %v771
      %997 = vmatprep.subr.mxu0 0.0
      %998 = vmatpush1.msra.mxu0 %v770
      %999 = vmatprep.subr.mxu0 0.0
      %1000 = vmatpush1.msra.mxu0 %v769
      %1001 = vmatprep.subr.mxu0 0.0
      %1002 = vmatpush1.msra.mxu0 %v768
      %1003 = vmatprep.subr.mxu0 0.0
      %1004 = vmatpush1.msra.mxu0 %v767
      %1005 = vmatprep.subr.mxu0 0.0
      %1006 = vmatpush1.msra.mxu0 %v766
      %1007 = vmatprep.subr.mxu0 0.0
      %1008 = vmatpush1.msra.mxu0 %v765
      %1009 = vmatprep.subr.mxu0 0.0
      %1010 = vmatpush1.msra.mxu0 %v764
      %1011 = vmatprep.subr.mxu0 0.0
      %1012 = vmatpush1.msra.mxu0 %v763
      %1013 = vmatprep.subr.mxu0 0.0
      %1014 = vmatpush1.msra.mxu0 %v762
      %1015 = vmatprep.subr.mxu0 0.0
      %1016 = vmatpush1.msra.mxu0 %v761
      %1017 = vmatprep.subr.mxu0 0.0
      %1018 = vmatpush2.msra.mxu0 %v792
      %1019 = vmatprep.subr.mxu0 0.0
      %1020 = vmatpush2.msra.mxu0 %v791
      %1021 = vmatprep.subr.mxu0 0.0
      %1022 = vmatpush2.msra.mxu0 %v790
      %1023 = vmatprep.subr.mxu0 0.0
      %1024 = vmatpush2.msra.mxu0 %v789
      %1025 = vmatprep.subr.mxu0 0.0
      %1026 = vmatpush2.msra.mxu0 %v788
      %1027 = vmatprep.subr.mxu0 0.0
      %1028 = vmatpush2.msra.mxu0 %v787
      %1029 = vmatprep.subr.mxu0 0.0
      %1030 = vmatpush2.msra.mxu0 %v786
      %1031 = vmatprep.subr.mxu0 0.0
      %1032 = vmatpush2.msra.mxu0 %v785
      %1033 = vmatprep.subr.mxu0 0.0
      %1034 = vmatpush2.msra.mxu0 %v784
      %1035 = vmatprep.subr.mxu0 0.0
      %1036 = vmatpush2.msra.mxu0 %v783
      %1037 = vmatprep.subr.mxu0 0.0
      %1038 = vmatpush2.msra.mxu0 %v782
      %1039 = vmatprep.subr.mxu0 0.0
      %1040 = vmatpush2.msra.mxu0 %v781
      %1041 = vmatprep.subr.mxu0 0.0
      %1042 = vmatpush2.msra.mxu0 %v780
      %1043 = vmatprep.subr.mxu0 0.0
      %1044 = vmatpush2.msra.mxu0 %v779
      %1045 = vmatprep.subr.mxu0 0.0
      %1046 = vmatpush2.msra.mxu0 %v778
      %1047 = vmatprep.subr.mxu0 0.0
      %1048 = vmatpush2.msra.mxu0 %v777
      %1049 = vmatprep.mubr.f32.mxu0 %v278
      %1050 = vmatmul.mubr.f32.gmra.mxu0 %v277
      %v1051 = vpop.f32.mrf.mxu0
      %v1052 = vadd.f32 %v828, %v1051
      %v1053 = vpop.f32.mrf.mxu0
      %1054 = vmatprep.mubr.f32.mxu0 %v282
      %1055 = vmatmul.mubr.f32.gmra.mxu0 %v281
      %v1056 = vpop.f32.mrf.mxu0
      %v1057 = vadd.f32 %v833, %v1056
      %v1058 = vpop.f32.mrf.mxu0
      %1059 = vmatprep.mubr.f32.mxu0 %v286
      %1060 = vmatmul.mubr.f32.gmra.mxu0 %v285
      %v1061 = vpop.f32.mrf.mxu0
      %v1062 = vadd.f32 %v838, %v1061
      %v1063 = vpop.f32.mrf.mxu0
      %1064 = vmatprep.mubr.f32.mxu0 %v290
      %1065 = vmatmul.mubr.f32.gmra.mxu0 %v289
      %v1066 = vpop.f32.mrf.mxu0
      %v1067 = vadd.f32 %v843, %v1066
      %v1068 = vpop.f32.mrf.mxu0
      %1069 = vmatprep.mubr.f32.mxu0 %v294
      %1070 = vmatmul.mubr.f32.gmra.mxu0 %v293
      %v1071 = vpop.f32.mrf.mxu0
      %v1072 = vadd.f32 %v848, %v1071
      %v1073 = vpop.f32.mrf.mxu0
      %1074 = vmatprep.mubr.f32.mxu0 %v298
      %1075 = vmatmul.mubr.f32.gmra.mxu0 %v297
      %v1076 = vpop.f32.mrf.mxu0
      %v1077 = vadd.f32 %v853, %v1076
      %v1078 = vpop.f32.mrf.mxu0
      %1079 = vmatprep.mubr.f32.mxu0 %v302
      %1080 = vmatmul.mubr.f32.gmra.mxu0 %v301
      %v1081 = vpop.f32.mrf.mxu0
      %v1082 = vadd.f32 %v858, %v1081
      %v1083 = vpop.f32.mrf.mxu0
      %1084 = vmatprep.mubr.f32.mxu0 %v306
      %1085 = vmatmul.mubr.f32.gmra.mxu0 %v305
      %v1086 = vpop.f32.mrf.mxu0
      %v1087 = vadd.f32 %v863, %v1086
      %v1088 = vpop.f32.mrf.mxu0
      %1089 = vmatprep.mubr.f32.mxu0 %v310
      %1090 = vmatmul.mubr.f32.gmra.mxu0 %v309
      %v1091 = vpop.f32.mrf.mxu0
      %v1092 = vadd.f32 %v868, %v1091
      %v1093 = vpop.f32.mrf.mxu0
      %1094 = vmatprep.mubr.f32.mxu0 %v314
      %1095 = vmatmul.mubr.f32.gmra.mxu0 %v313
      %v1096 = vpop.f32.mrf.mxu0
      %v1097 = vadd.f32 %v873, %v1096
      %v1098 = vpop.f32.mrf.mxu0
      %1099 = vmatprep.mubr.f32.mxu0 %v318
      %1100 = vmatmul.mubr.f32.gmra.mxu0 %v317
      %v1101 = vpop.f32.mrf.mxu0
      %v1102 = vadd.f32 %v878, %v1101
      %v1103 = vpop.f32.mrf.mxu0
      %1104 = vmatprep.mubr.f32.mxu0 %v322
      %1105 = vmatmul.mubr.f32.gmra.mxu0 %v321
      %v1106 = vpop.f32.mrf.mxu0
      %v1107 = vadd.f32 %v883, %v1106
      %v1108 = vpop.f32.mrf.mxu0
      %1109 = vmatprep.mubr.f32.mxu0 %v326
      %1110 = vmatmul.mubr.f32.gmra.mxu0 %v325
      %v1111 = vpop.f32.mrf.mxu0
      %v1112 = vadd.f32 %v888, %v1111
      %v1113 = vpop.f32.mrf.mxu0
      %1114 = vmatprep.mubr.f32.mxu0 %v330
      %1115 = vmatmul.mubr.f32.gmra.mxu0 %v329
      %v1116 = vpop.f32.mrf.mxu0
      %v1117 = vadd.f32 %v893, %v1116
      %v1118 = vpop.f32.mrf.mxu0
      %1119 = vmatprep.mubr.f32.mxu0 %v334
      %1120 = vmatmul.mubr.f32.gmra.mxu0 %v333
      %v1121 = vpop.f32.mrf.mxu0
      %v1122 = vadd.f32 %v898, %v1121
      %v1123 = vpop.f32.mrf.mxu0
      %1124 = vmatprep.mubr.f32.mxu0 %v338
      %1125 = vmatmul.mubr.f32.gmra.mxu0 %v337
      %v1126 = vpop.f32.mrf.mxu0
      %v1127 = vadd.f32 %v903, %v1126
      %v1128 = vpop.f32.mrf.mxu0
      %1129 = vmatprep.mubr.f32.mxu0 %v342
      %1130 = vmatmul.mubr.f32.gmra.mxu0 %v341
      %v1131 = vpop.f32.mrf.mxu0
      %v1132 = vadd.f32 %v908, %v1131
      %v1133 = vpop.f32.mrf.mxu0
      %1134 = vmatprep.mubr.f32.mxu0 %v346
      %1135 = vmatmul.mubr.f32.gmra.mxu0 %v345
      %v1136 = vpop.f32.mrf.mxu0
      %v1137 = vadd.f32 %v913, %v1136
      %v1138 = vpop.f32.mrf.mxu0
      %1139 = vmatprep.mubr.f32.mxu0 %v350
      %1140 = vmatmul.mubr.f32.gmra.mxu0 %v349
      %v1141 = vpop.f32.mrf.mxu0
      %v1142 = vadd.f32 %v918, %v1141
      %v1143 = vpop.f32.mrf.mxu0
      %1144 = vmatprep.mubr.f32.mxu0 %v354
      %1145 = vmatmul.mubr.f32.gmra.mxu0 %v353
      %v1146 = vpop.f32.mrf.mxu0
      %v1147 = vadd.f32 %v923, %v1146
      %v1148 = vpop.f32.mrf.mxu0
      %1149 = vmatprep.mubr.f32.mxu0 %v358
      %1150 = vmatmul.mubr.f32.gmra.mxu0 %v357
      %v1151 = vpop.f32.mrf.mxu0
      %v1152 = vadd.f32 %v928, %v1151
      %v1153 = vpop.f32.mrf.mxu0
      %1154 = vmatprep.mubr.f32.mxu0 %v362
      %1155 = vmatmul.mubr.f32.gmra.mxu0 %v361
      %v1156 = vpop.f32.mrf.mxu0
      %v1157 = vadd.f32 %v933, %v1156
      %v1158 = vpop.f32.mrf.mxu0
      %1159 = vmatprep.mubr.f32.mxu0 %v366
      %1160 = vmatmul.mubr.f32.gmra.mxu0 %v365
      %v1161 = vpop.f32.mrf.mxu0
      %v1162 = vadd.f32 %v938, %v1161
      %v1163 = vpop.f32.mrf.mxu0
      %1164 = vmatprep.mubr.f32.mxu0 %v370
      %1165 = vmatmul.mubr.f32.gmra.mxu0 %v369
      %v1166 = vpop.f32.mrf.mxu0
      %v1167 = vadd.f32 %v943, %v1166
      %v1168 = vpop.f32.mrf.mxu0
      %1169 = vmatprep.mubr.f32.mxu0 %v374
      %1170 = vmatmul.mubr.f32.gmra.mxu0 %v373
      %v1171 = vpop.f32.mrf.mxu0
      %v1172 = vadd.f32 %v948, %v1171
      %v1173 = vpop.f32.mrf.mxu0
      %1174 = vmatprep.mubr.f32.mxu0 %v378
      %1175 = vmatmul.mubr.f32.gmra.mxu0 %v377
      %v1176 = vpop.f32.mrf.mxu0
      %v1177 = vadd.f32 %v953, %v1176
      %v1178 = vpop.f32.mrf.mxu0
      %1179 = vmatprep.mubr.f32.mxu0 %v382
      %1180 = vmatmul.mubr.f32.gmra.mxu0 %v381
      %v1181 = vpop.f32.mrf.mxu0
      %v1182 = vadd.f32 %v958, %v1181
      %v1183 = vpop.f32.mrf.mxu0
      %1184 = vmatprep.mubr.f32.mxu0 %v386
      %1185 = vmatmul.mubr.f32.gmra.mxu0 %v385
      %v1186 = vpop.f32.mrf.mxu0
      %v1187 = vadd.f32 %v963, %v1186
      %v1188 = vpop.f32.mrf.mxu0
      %1189 = vmatprep.mubr.f32.mxu0 %v390
      %1190 = vmatmul.mubr.f32.gmra.mxu0 %v389
      %v1191 = vpop.f32.mrf.mxu0
      %v1192 = vadd.f32 %v968, %v1191
      %v1193 = vpop.f32.mrf.mxu0
      %1194 = vmatprep.mubr.f32.mxu0 %v394
      %1195 = vmatmul.mubr.f32.gmra.mxu0 %v393
      %v1196 = vpop.f32.mrf.mxu0
      %v1197 = vadd.f32 %v973, %v1196
      %v1198 = vpop.f32.mrf.mxu0
      %1199 = vmatprep.mubr.f32.mxu0 %v398
      %1200 = vmatmul.mubr.f32.gmra.mxu0 %v397
      %v1201 = vpop.f32.mrf.mxu0
      %v1202 = vadd.f32 %v978, %v1201
      %v1203 = vpop.f32.mrf.mxu0
      %1204 = vmatprep.mubr.f32.mxu0 %v402
      %1205 = vmatmul.mubr.f32.gmra.mxu0 %v401
      %v1206 = vpop.f32.mrf.mxu0
      %v1207 = vadd.f32 %v983, %v1206
      %v1208 = vpop.f32.mrf.mxu0
      %1209 = vdwg.mxu0
      %1210 = vmatprep.subr.mxu0 0.0
      %1211 = vmatpush1.msra.mxu0 %v808
      %1212 = vmatprep.subr.mxu0 0.0
      %1213 = vmatpush1.msra.mxu0 %v807
      %1214 = vmatprep.subr.mxu0 0.0
      %1215 = vmatpush1.msra.mxu0 %v806
      %1216 = vmatprep.subr.mxu0 0.0
      %1217 = vmatpush1.msra.mxu0 %v805
      %1218 = vmatprep.subr.mxu0 0.0
      %1219 = vmatpush1.msra.mxu0 %v804
      %1220 = vmatprep.subr.mxu0 0.0
      %1221 = vmatpush1.msra.mxu0 %v803
      %1222 = vmatprep.subr.mxu0 0.0
      %1223 = vmatpush1.msra.mxu0 %v802
      %1224 = vmatprep.subr.mxu0 0.0
      %1225 = vmatpush1.msra.mxu0 %v801
      %1226 = vmatprep.subr.mxu0 0.0
      %1227 = vmatpush1.msra.mxu0 %v800
      %1228 = vmatprep.subr.mxu0 0.0
      %1229 = vmatpush1.msra.mxu0 %v799
      %1230 = vmatprep.subr.mxu0 0.0
      %1231 = vmatpush1.msra.mxu0 %v798
      %1232 = vmatprep.subr.mxu0 0.0
      %1233 = vmatpush1.msra.mxu0 %v797
      %1234 = vmatprep.subr.mxu0 0.0
      %1235 = vmatpush1.msra.mxu0 %v796
      %1236 = vmatprep.subr.mxu0 0.0
      %1237 = vmatpush1.msra.mxu0 %v795
      %1238 = vmatprep.subr.mxu0 0.0
      %1239 = vmatpush1.msra.mxu0 %v794
      %1240 = vmatprep.subr.mxu0 0.0
      %1241 = vmatpush1.msra.mxu0 %v793
      %1242 = vmatprep.subr.mxu0 0.0
      %1243 = vmatpush2.msra.mxu0 %v824
      %1244 = vmatprep.subr.mxu0 0.0
      %1245 = vmatpush2.msra.mxu0 %v823
      %1246 = vmatprep.subr.mxu0 0.0
      %1247 = vmatpush2.msra.mxu0 %v822
      %1248 = vmatprep.subr.mxu0 0.0
      %1249 = vmatpush2.msra.mxu0 %v821
      %1250 = vmatprep.subr.mxu0 0.0
      %1251 = vmatpush2.msra.mxu0 %v820
      %1252 = vmatprep.subr.mxu0 0.0
      %1253 = vmatpush2.msra.mxu0 %v819
      %1254 = vmatprep.subr.mxu0 0.0
      %1255 = vmatpush2.msra.mxu0 %v818
      %1256 = vmatprep.subr.mxu0 0.0
      %1257 = vmatpush2.msra.mxu0 %v817
      %1258 = vmatprep.subr.mxu0 0.0
      %1259 = vmatpush2.msra.mxu0 %v816
      %1260 = vmatprep.subr.mxu0 0.0
      %1261 = vmatpush2.msra.mxu0 %v815
      %1262 = vmatprep.subr.mxu0 0.0
      %1263 = vmatpush2.msra.mxu0 %v814
      %1264 = vmatprep.subr.mxu0 0.0
      %1265 = vmatpush2.msra.mxu0 %v813
      %1266 = vmatprep.subr.mxu0 0.0
      %1267 = vmatpush2.msra.mxu0 %v812
      %1268 = vmatprep.subr.mxu0 0.0
      %1269 = vmatpush2.msra.mxu0 %v811
      %1270 = vmatprep.subr.mxu0 0.0
      %1271 = vmatpush2.msra.mxu0 %v810
      %1272 = vmatprep.subr.mxu0 0.0
      %1273 = vmatpush2.msra.mxu0 %v809
      %1274 = vmatprep.mubr.f32.mxu0 %v280
      %1275 = vmatmul.mubr.f32.gmra.mxu0 %v279
      %v1276 = vpop.f32.mrf.mxu0
      %v1277 = vadd.f32 %v1052, %v1276
      %v1278 = vpop.f32.mrf.mxu0
      %1279 = vmatprep.mubr.f32.mxu0 %v284
      %1280 = vmatmul.mubr.f32.gmra.mxu0 %v283
      %v1281 = vpop.f32.mrf.mxu0
      %v1282 = vadd.f32 %v1057, %v1281
      %v1283 = vpop.f32.mrf.mxu0
      %1284 = vmatprep.mubr.f32.mxu0 %v288
      %1285 = vmatmul.mubr.f32.gmra.mxu0 %v287
      %v1286 = vpop.f32.mrf.mxu0
      %v1287 = vadd.f32 %v1062, %v1286
      %v1288 = vpop.f32.mrf.mxu0
      %1289 = vmatprep.mubr.f32.mxu0 %v292
      %1290 = vmatmul.mubr.f32.gmra.mxu0 %v291
      %v1291 = vpop.f32.mrf.mxu0
      %v1292 = vadd.f32 %v1067, %v1291
      %v1293 = vpop.f32.mrf.mxu0
      %1294 = vmatprep.mubr.f32.mxu0 %v296
      %1295 = vmatmul.mubr.f32.gmra.mxu0 %v295
      %v1296 = vpop.f32.mrf.mxu0
      %v1297 = vadd.f32 %v1072, %v1296
      %v1298 = vpop.f32.mrf.mxu0
      %1299 = vmatprep.mubr.f32.mxu0 %v300
      %1300 = vmatmul.mubr.f32.gmra.mxu0 %v299
      %v1301 = vpop.f32.mrf.mxu0
      %v1302 = vadd.f32 %v1077, %v1301
      %v1303 = vpop.f32.mrf.mxu0
      %1304 = vmatprep.mubr.f32.mxu0 %v304
      %1305 = vmatmul.mubr.f32.gmra.mxu0 %v303
      %v1306 = vpop.f32.mrf.mxu0
      %v1307 = vadd.f32 %v1082, %v1306
      %v1308 = vpop.f32.mrf.mxu0
      %1309 = vmatprep.mubr.f32.mxu0 %v308
      %1310 = vmatmul.mubr.f32.gmra.mxu0 %v307
      %v1311 = vpop.f32.mrf.mxu0
      %v1312 = vadd.f32 %v1087, %v1311
      %v1313 = vpop.f32.mrf.mxu0
      %1314 = vmatprep.mubr.f32.mxu0 %v312
      %1315 = vmatmul.mubr.f32.gmra.mxu0 %v311
      %v1316 = vpop.f32.mrf.mxu0
      %v1317 = vadd.f32 %v1092, %v1316
      %v1318 = vpop.f32.mrf.mxu0
      %1319 = vmatprep.mubr.f32.mxu0 %v316
      %1320 = vmatmul.mubr.f32.gmra.mxu0 %v315
      %v1321 = vpop.f32.mrf.mxu0
      %v1322 = vadd.f32 %v1097, %v1321
      %v1323 = vpop.f32.mrf.mxu0
      %1324 = vmatprep.mubr.f32.mxu0 %v320
      %1325 = vmatmul.mubr.f32.gmra.mxu0 %v319
      %v1326 = vpop.f32.mrf.mxu0
      %v1327 = vadd.f32 %v1102, %v1326
      %v1328 = vpop.f32.mrf.mxu0
      %1329 = vmatprep.mubr.f32.mxu0 %v324
      %1330 = vmatmul.mubr.f32.gmra.mxu0 %v323
      %v1331 = vpop.f32.mrf.mxu0
      %v1332 = vadd.f32 %v1107, %v1331
      %v1333 = vpop.f32.mrf.mxu0
      %1334 = vmatprep.mubr.f32.mxu0 %v328
      %1335 = vmatmul.mubr.f32.gmra.mxu0 %v327
      %v1336 = vpop.f32.mrf.mxu0
      %v1337 = vadd.f32 %v1112, %v1336
      %v1338 = vpop.f32.mrf.mxu0
      %1339 = vmatprep.mubr.f32.mxu0 %v332
      %1340 = vmatmul.mubr.f32.gmra.mxu0 %v331
      %v1341 = vpop.f32.mrf.mxu0
      %v1342 = vadd.f32 %v1117, %v1341
      %v1343 = vpop.f32.mrf.mxu0
      %1344 = vmatprep.mubr.f32.mxu0 %v336
      %1345 = vmatmul.mubr.f32.gmra.mxu0 %v335
      %v1346 = vpop.f32.mrf.mxu0
      %v1347 = vadd.f32 %v1122, %v1346
      %v1348 = vpop.f32.mrf.mxu0
      %1349 = vmatprep.mubr.f32.mxu0 %v340
      %1350 = vmatmul.mubr.f32.gmra.mxu0 %v339
      %v1351 = vpop.f32.mrf.mxu0
      %v1352 = vadd.f32 %v1127, %v1351
      %v1353 = vpop.f32.mrf.mxu0
      %1354 = vmatprep.mubr.f32.mxu0 %v344
      %1355 = vmatmul.mubr.f32.gmra.mxu0 %v343
      %v1356 = vpop.f32.mrf.mxu0
      %v1357 = vadd.f32 %v1132, %v1356
      %v1358 = vpop.f32.mrf.mxu0
      %1359 = vmatprep.mubr.f32.mxu0 %v348
      %1360 = vmatmul.mubr.f32.gmra.mxu0 %v347
      %v1361 = vpop.f32.mrf.mxu0
      %v1362 = vadd.f32 %v1137, %v1361
      %v1363 = vpop.f32.mrf.mxu0
      %1364 = vmatprep.mubr.f32.mxu0 %v352
      %1365 = vmatmul.mubr.f32.gmra.mxu0 %v351
      %v1366 = vpop.f32.mrf.mxu0
      %v1367 = vadd.f32 %v1142, %v1366
      %v1368 = vpop.f32.mrf.mxu0
      %1369 = vmatprep.mubr.f32.mxu0 %v356
      %1370 = vmatmul.mubr.f32.gmra.mxu0 %v355
      %v1371 = vpop.f32.mrf.mxu0
      %v1372 = vadd.f32 %v1147, %v1371
      %v1373 = vpop.f32.mrf.mxu0
      %1374 = vmatprep.mubr.f32.mxu0 %v360
      %1375 = vmatmul.mubr.f32.gmra.mxu0 %v359
      %v1376 = vpop.f32.mrf.mxu0
      %v1377 = vadd.f32 %v1152, %v1376
      %v1378 = vpop.f32.mrf.mxu0
      %1379 = vmatprep.mubr.f32.mxu0 %v364
      %1380 = vmatmul.mubr.f32.gmra.mxu0 %v363
      %v1381 = vpop.f32.mrf.mxu0
      %v1382 = vadd.f32 %v1157, %v1381
      %v1383 = vpop.f32.mrf.mxu0
      %1384 = vmatprep.mubr.f32.mxu0 %v368
      %1385 = vmatmul.mubr.f32.gmra.mxu0 %v367
      %v1386 = vpop.f32.mrf.mxu0
      %v1387 = vadd.f32 %v1162, %v1386
      %v1388 = vpop.f32.mrf.mxu0
      %1389 = vmatprep.mubr.f32.mxu0 %v372
      %1390 = vmatmul.mubr.f32.gmra.mxu0 %v371
      %v1391 = vpop.f32.mrf.mxu0
      %v1392 = vadd.f32 %v1167, %v1391
      %v1393 = vpop.f32.mrf.mxu0
      %1394 = vmatprep.mubr.f32.mxu0 %v376
      %1395 = vmatmul.mubr.f32.gmra.mxu0 %v375
      %v1396 = vpop.f32.mrf.mxu0
      %v1397 = vadd.f32 %v1172, %v1396
      %v1398 = vpop.f32.mrf.mxu0
      %1399 = vmatprep.mubr.f32.mxu0 %v380
      %1400 = vmatmul.mubr.f32.gmra.mxu0 %v379
      %v1401 = vpop.f32.mrf.mxu0
      %v1402 = vadd.f32 %v1177, %v1401
      %v1403 = vpop.f32.mrf.mxu0
      %1404 = vmatprep.mubr.f32.mxu0 %v384
      %1405 = vmatmul.mubr.f32.gmra.mxu0 %v383
      %v1406 = vpop.f32.mrf.mxu0
      %v1407 = vadd.f32 %v1182, %v1406
      %v1408 = vpop.f32.mrf.mxu0
      %1409 = vmatprep.mubr.f32.mxu0 %v388
      %1410 = vmatmul.mubr.f32.gmra.mxu0 %v387
      %v1411 = vpop.f32.mrf.mxu0
      %v1412 = vadd.f32 %v1187, %v1411
      %v1413 = vpop.f32.mrf.mxu0
      %1414 = vmatprep.mubr.f32.mxu0 %v392
      %1415 = vmatmul.mubr.f32.gmra.mxu0 %v391
      %v1416 = vpop.f32.mrf.mxu0
      %v1417 = vadd.f32 %v1192, %v1416
      %v1418 = vpop.f32.mrf.mxu0
      %1419 = vmatprep.mubr.f32.mxu0 %v396
      %1420 = vmatmul.mubr.f32.gmra.mxu0 %v395
      %v1421 = vpop.f32.mrf.mxu0
      %v1422 = vadd.f32 %v1197, %v1421
      %v1423 = vpop.f32.mrf.mxu0
      %1424 = vmatprep.mubr.f32.mxu0 %v400
      %1425 = vmatmul.mubr.f32.gmra.mxu0 %v399
      %v1426 = vpop.f32.mrf.mxu0
      %v1427 = vadd.f32 %v1202, %v1426
      %v1428 = vpop.f32.mrf.mxu0
      %1429 = vmatprep.mubr.f32.mxu0 %v404
      %1430 = vmatmul.mubr.f32.gmra.mxu0 %v403
      %v1431 = vpop.f32.mrf.mxu0
      %v1432 = vadd.f32 %v1207, %v1431
      %v1433 = vpop.f32.mrf.mxu0
      %1434 = vdwg.mxu0
      %v1435 = vmul.f32 %v1277, 0.5
      %v1436 = vmul.f32 %v1282, 0.5
      %v1437 = vmul.f32 %v1287, 0.5
      %v1438 = vmul.f32 %v1292, 0.5
      %v1439 = vmul.f32 %v1297, 0.5
      %v1440 = vmul.f32 %v1302, 0.5
      %v1441 = vmul.f32 %v1307, 0.5
      %v1442 = vmul.f32 %v1312, 0.5
      %v1443 = vmul.f32 %v1317, 0.5
      %v1444 = vmul.f32 %v1322, 0.5
      %v1445 = vmul.f32 %v1327, 0.5
      %v1446 = vmul.f32 %v1332, 0.5
      %v1447 = vmul.f32 %v1337, 0.5
      %v1448 = vmul.f32 %v1342, 0.5
      %v1449 = vmul.f32 %v1347, 0.5
      %v1450 = vmul.f32 %v1352, 0.5
      %v1451 = vmul.f32 %v1357, 0.5
      %v1452 = vmul.f32 %v1362, 0.5
      %v1453 = vmul.f32 %v1367, 0.5
      %v1454 = vmul.f32 %v1372, 0.5
      %v1455 = vmul.f32 %v1377, 0.5
      %v1456 = vmul.f32 %v1382, 0.5
      %v1457 = vmul.f32 %v1387, 0.5
      %v1458 = vmul.f32 %v1392, 0.5
      %v1459 = vmul.f32 %v1397, 0.5
      %v1460 = vmul.f32 %v1402, 0.5
      %v1461 = vmul.f32 %v1407, 0.5
      %v1462 = vmul.f32 %v1412, 0.5
      %v1463 = vmul.f32 %v1417, 0.5
      %v1464 = vmul.f32 %v1422, 0.5
      %v1465 = vmul.f32 %v1427, 0.5
      %v1466 = vmul.f32 %v1432, 0.5
      %v1467 = vmul.f32 %v1277, 0.70710677
      %v1468 = vmul.f32 %v1282, 0.70710677
      %v1469 = vmul.f32 %v1287, 0.70710677
      %v1470 = vmul.f32 %v1292, 0.70710677
      %v1471 = vmul.f32 %v1297, 0.70710677
      %v1472 = vmul.f32 %v1302, 0.70710677
      %v1473 = vmul.f32 %v1307, 0.70710677
      %v1474 = vmul.f32 %v1312, 0.70710677
      %v1475 = vmul.f32 %v1317, 0.70710677
      %v1476 = vmul.f32 %v1322, 0.70710677
      %v1477 = vmul.f32 %v1327, 0.70710677
      %v1478 = vmul.f32 %v1332, 0.70710677
      %v1479 = vmul.f32 %v1337, 0.70710677
      %v1480 = vmul.f32 %v1342, 0.70710677
      %v1481 = vmul.f32 %v1347, 0.70710677
      %v1482 = vmul.f32 %v1352, 0.70710677
      %v1483 = vmul.f32 %v1357, 0.70710677
      %v1484 = vmul.f32 %v1362, 0.70710677
      %v1485 = vmul.f32 %v1367, 0.70710677
      %v1486 = vmul.f32 %v1372, 0.70710677
      %v1487 = vmul.f32 %v1377, 0.70710677
      %v1488 = vmul.f32 %v1382, 0.70710677
      %v1489 = vmul.f32 %v1387, 0.70710677
      %v1490 = vmul.f32 %v1392, 0.70710677
      %v1491 = vmul.f32 %v1397, 0.70710677
      %v1492 = vmul.f32 %v1402, 0.70710677
      %v1493 = vmul.f32 %v1407, 0.70710677
      %v1494 = vmul.f32 %v1412, 0.70710677
      %v1495 = vmul.f32 %v1417, 0.70710677
      %v1496 = vmul.f32 %v1422, 0.70710677
      %v1497 = vmul.f32 %v1427, 0.70710677
      %v1498 = vmul.f32 %v1432, 0.70710677
      %v1499 = vmax.f32 %v1467, -4.0
      %v1500 = vmax.f32 %v1468, -4.0
      %v1501 = vmax.f32 %v1469, -4.0
      %v1502 = vmax.f32 %v1470, -4.0
      %v1503 = vmax.f32 %v1471, -4.0
      %v1504 = vmax.f32 %v1472, -4.0
      %v1505 = vmax.f32 %v1473, -4.0
      %v1506 = vmax.f32 %v1474, -4.0
      %v1507 = vmax.f32 %v1475, -4.0
      %v1508 = vmax.f32 %v1476, -4.0
      %v1509 = vmax.f32 %v1477, -4.0
      %v1510 = vmax.f32 %v1478, -4.0
      %v1511 = vmax.f32 %v1479, -4.0
      %v1512 = vmax.f32 %v1480, -4.0
      %v1513 = vmax.f32 %v1481, -4.0
      %v1514 = vmax.f32 %v1482, -4.0
      %v1515 = vmax.f32 %v1483, -4.0
      %v1516 = vmax.f32 %v1484, -4.0
      %v1517 = vmax.f32 %v1485, -4.0
      %v1518 = vmax.f32 %v1486, -4.0
      %v1519 = vmax.f32 %v1487, -4.0
      %v1520 = vmax.f32 %v1488, -4.0
      %v1521 = vmax.f32 %v1489, -4.0
      %v1522 = vmax.f32 %v1490, -4.0
      %v1523 = vmax.f32 %v1491, -4.0
      %v1524 = vmax.f32 %v1492, -4.0
      %v1525 = vmax.f32 %v1493, -4.0
      %v1526 = vmax.f32 %v1494, -4.0
      %v1527 = vmax.f32 %v1495, -4.0
      %v1528 = vmax.f32 %v1496, -4.0
      %v1529 = vmax.f32 %v1497, -4.0
      %v1530 = vmax.f32 %v1498, -4.0
      %v1531 = vmin.f32 %v1499, 4.0
      %v1532 = vmin.f32 %v1500, 4.0
      %v1533 = vmin.f32 %v1501, 4.0
      %v1534 = vmin.f32 %v1502, 4.0
      %v1535 = vmin.f32 %v1503, 4.0
      %v1536 = vmin.f32 %v1504, 4.0
      %v1537 = vmin.f32 %v1505, 4.0
      %v1538 = vmin.f32 %v1506, 4.0
      %v1539 = vmin.f32 %v1507, 4.0
      %v1540 = vmin.f32 %v1508, 4.0
      %v1541 = vmin.f32 %v1509, 4.0
      %v1542 = vmin.f32 %v1510, 4.0
      %v1543 = vmin.f32 %v1511, 4.0
      %v1544 = vmin.f32 %v1512, 4.0
      %v1545 = vmin.f32 %v1513, 4.0
      %v1546 = vmin.f32 %v1514, 4.0
      %v1547 = vmin.f32 %v1515, 4.0
      %v1548 = vmin.f32 %v1516, 4.0
      %v1549 = vmin.f32 %v1517, 4.0
      %v1550 = vmin.f32 %v1518, 4.0
      %v1551 = vmin.f32 %v1519, 4.0
      %v1552 = vmin.f32 %v1520, 4.0
      %v1553 = vmin.f32 %v1521, 4.0
      %v1554 = vmin.f32 %v1522, 4.0
      %v1555 = vmin.f32 %v1523, 4.0
      %v1556 = vmin.f32 %v1524, 4.0
      %v1557 = vmin.f32 %v1525, 4.0
      %v1558 = vmin.f32 %v1526, 4.0
      %v1559 = vmin.f32 %v1527, 4.0
      %v1560 = vmin.f32 %v1528, 4.0
      %v1561 = vmin.f32 %v1529, 4.0
      %v1562 = vmin.f32 %v1530, 4.0
      %v1563 = vmul.f32 %v1531, %v1531
      %v1564 = vmul.f32 %v1532, %v1532
      %v1565 = vmul.f32 %v1533, %v1533
      %v1566 = vmul.f32 %v1534, %v1534
      %v1567 = vmul.f32 %v1535, %v1535
      %v1568 = vmul.f32 %v1536, %v1536
      %v1569 = vmul.f32 %v1537, %v1537
      %v1570 = vmul.f32 %v1538, %v1538
      %v1571 = vmul.f32 %v1539, %v1539
      %v1572 = vmul.f32 %v1540, %v1540
      %v1573 = vmul.f32 %v1541, %v1541
      %v1574 = vmul.f32 %v1542, %v1542
      %v1575 = vmul.f32 %v1543, %v1543
      %v1576 = vmul.f32 %v1544, %v1544
      %v1577 = vmul.f32 %v1545, %v1545
      %v1578 = vmul.f32 %v1546, %v1546
      %v1579 = vmul.f32 %v1547, %v1547
      %v1580 = vmul.f32 %v1548, %v1548
      %v1581 = vmul.f32 %v1549, %v1549
      %v1582 = vmul.f32 %v1550, %v1550
      %v1583 = vmul.f32 %v1551, %v1551
      %v1584 = vmul.f32 %v1552, %v1552
      %v1585 = vmul.f32 %v1553, %v1553
      %v1586 = vmul.f32 %v1554, %v1554
      %v1587 = vmul.f32 %v1555, %v1555
      %v1588 = vmul.f32 %v1556, %v1556
      %v1589 = vmul.f32 %v1557, %v1557
      %v1590 = vmul.f32 %v1558, %v1558
      %v1591 = vmul.f32 %v1559, %v1559
      %v1592 = vmul.f32 %v1560, %v1560
      %v1593 = vmul.f32 %v1561, %v1561
      %v1594 = vmul.f32 %v1562, %v1562
      %v1595 = vmul.f32 %v1563, 0.00022905065
      %v1596 = vmul.f32 %v1564, 0.00022905065
      %v1597 = vmul.f32 %v1565, 0.00022905065
      %v1598 = vmul.f32 %v1566, 0.00022905065
      %v1599 = vmul.f32 %v1567, 0.00022905065
      %v1600 = vmul.f32 %v1568, 0.00022905065
      %v1601 = vmul.f32 %v1569, 0.00022905065
      %v1602 = vmul.f32 %v1570, 0.00022905065
      %v1603 = vmul.f32 %v1571, 0.00022905065
      %v1604 = vmul.f32 %v1572, 0.00022905065
      %v1605 = vmul.f32 %v1573, 0.00022905065
      %v1606 = vmul.f32 %v1574, 0.00022905065
      %v1607 = vmul.f32 %v1575, 0.00022905065
      %v1608 = vmul.f32 %v1576, 0.00022905065
      %v1609 = vmul.f32 %v1577, 0.00022905065
      %v1610 = vmul.f32 %v1578, 0.00022905065
      %v1611 = vmul.f32 %v1579, 0.00022905065
      %v1612 = vmul.f32 %v1580, 0.00022905065
      %v1613 = vmul.f32 %v1581, 0.00022905065
      %v1614 = vmul.f32 %v1582, 0.00022905065
      %v1615 = vmul.f32 %v1583, 0.00022905065
      %v1616 = vmul.f32 %v1584, 0.00022905065
      %v1617 = vmul.f32 %v1585, 0.00022905065
      %v1618 = vmul.f32 %v1586, 0.00022905065
      %v1619 = vmul.f32 %v1587, 0.00022905065
      %v1620 = vmul.f32 %v1588, 0.00022905065
      %v1621 = vmul.f32 %v1589, 0.00022905065
      %v1622 = vmul.f32 %v1590, 0.00022905065
      %v1623 = vmul.f32 %v1591, 0.00022905065
      %v1624 = vmul.f32 %v1592, 0.00022905065
      %v1625 = vmul.f32 %v1593, 0.00022905065
      %v1626 = vmul.f32 %v1594, 0.00022905065
      %v1627 = vadd.f32 %v1595, 0.003408291
      %v1628 = vadd.f32 %v1596, 0.003408291
      %v1629 = vadd.f32 %v1597, 0.003408291
      %v1630 = vadd.f32 %v1598, 0.003408291
      %v1631 = vadd.f32 %v1599, 0.003408291
      %v1632 = vadd.f32 %v1600, 0.003408291
      %v1633 = vadd.f32 %v1601, 0.003408291
      %v1634 = vadd.f32 %v1602, 0.003408291
      %v1635 = vadd.f32 %v1603, 0.003408291
      %v1636 = vadd.f32 %v1604, 0.003408291
      %v1637 = vadd.f32 %v1605, 0.003408291
      %v1638 = vadd.f32 %v1606, 0.003408291
      %v1639 = vadd.f32 %v1607, 0.003408291
      %v1640 = vadd.f32 %v1608, 0.003408291
      %v1641 = vadd.f32 %v1609, 0.003408291
      %v1642 = vadd.f32 %v1610, 0.003408291
      %v1643 = vadd.f32 %v1611, 0.003408291
      %v1644 = vadd.f32 %v1612, 0.003408291
      %v1645 = vadd.f32 %v1613, 0.003408291
      %v1646 = vadd.f32 %v1614, 0.003408291
      %v1647 = vadd.f32 %v1615, 0.003408291
      %v1648 = vadd.f32 %v1616, 0.003408291
      %v1649 = vadd.f32 %v1617, 0.003408291
      %v1650 = vadd.f32 %v1618, 0.003408291
      %v1651 = vadd.f32 %v1619, 0.003408291
      %v1652 = vadd.f32 %v1620, 0.003408291
      %v1653 = vadd.f32 %v1621, 0.003408291
      %v1654 = vadd.f32 %v1622, 0.003408291
      %v1655 = vadd.f32 %v1623, 0.003408291
      %v1656 = vadd.f32 %v1624, 0.003408291
      %v1657 = vadd.f32 %v1625, 0.003408291
      %v1658 = vadd.f32 %v1626, 0.003408291
      %v1659 = vmul.f32 %v1627, %v1563
      %v1660 = vmul.f32 %v1628, %v1564
      %v1661 = vmul.f32 %v1629, %v1565
      %v1662 = vmul.f32 %v1630, %v1566
      %v1663 = vmul.f32 %v1631, %v1567
      %v1664 = vmul.f32 %v1632, %v1568
      %v1665 = vmul.f32 %v1633, %v1569
      %v1666 = vmul.f32 %v1634, %v1570
      %v1667 = vmul.f32 %v1635, %v1571
      %v1668 = vmul.f32 %v1636, %v1572
      %v1669 = vmul.f32 %v1637, %v1573
      %v1670 = vmul.f32 %v1638, %v1574
      %v1671 = vmul.f32 %v1639, %v1575
      %v1672 = vmul.f32 %v1640, %v1576
      %v1673 = vmul.f32 %v1641, %v1577
      %v1674 = vmul.f32 %v1642, %v1578
      %v1675 = vmul.f32 %v1643, %v1579
      %v1676 = vmul.f32 %v1644, %v1580
      %v1677 = vmul.f32 %v1645, %v1581
      %v1678 = vmul.f32 %v1646, %v1582
      %v1679 = vmul.f32 %v1647, %v1583
      %v1680 = vmul.f32 %v1648, %v1584
      %v1681 = vmul.f32 %v1649, %v1585
      %v1682 = vmul.f32 %v1650, %v1586
      %v1683 = vmul.f32 %v1651, %v1587
      %v1684 = vmul.f32 %v1652, %v1588
      %v1685 = vmul.f32 %v1653, %v1589
      %v1686 = vmul.f32 %v1654, %v1590
      %v1687 = vmul.f32 %v1655, %v1591
      %v1688 = vmul.f32 %v1656, %v1592
      %v1689 = vmul.f32 %v1657, %v1593
      %v1690 = vmul.f32 %v1658, %v1594
      %v1691 = vadd.f32 %v1659, 0.050955694
      %v1692 = vadd.f32 %v1660, 0.050955694
      %v1693 = vadd.f32 %v1661, 0.050955694
      %v1694 = vadd.f32 %v1662, 0.050955694
      %v1695 = vadd.f32 %v1663, 0.050955694
      %v1696 = vadd.f32 %v1664, 0.050955694
      %v1697 = vadd.f32 %v1665, 0.050955694
      %v1698 = vadd.f32 %v1666, 0.050955694
      %v1699 = vadd.f32 %v1667, 0.050955694
      %v1700 = vadd.f32 %v1668, 0.050955694
      %v1701 = vadd.f32 %v1669, 0.050955694
      %v1702 = vadd.f32 %v1670, 0.050955694
      %v1703 = vadd.f32 %v1671, 0.050955694
      %v1704 = vadd.f32 %v1672, 0.050955694
      %v1705 = vadd.f32 %v1673, 0.050955694
      %v1706 = vadd.f32 %v1674, 0.050955694
      %v1707 = vadd.f32 %v1675, 0.050955694
      %v1708 = vadd.f32 %v1676, 0.050955694
      %v1709 = vadd.f32 %v1677, 0.050955694
      %v1710 = vadd.f32 %v1678, 0.050955694
      %v1711 = vadd.f32 %v1679, 0.050955694
      %v1712 = vadd.f32 %v1680, 0.050955694
      %v1713 = vadd.f32 %v1681, 0.050955694
      %v1714 = vadd.f32 %v1682, 0.050955694
      %v1715 = vadd.f32 %v1683, 0.050955694
      %v1716 = vadd.f32 %v1684, 0.050955694
      %v1717 = vadd.f32 %v1685, 0.050955694
      %v1718 = vadd.f32 %v1686, 0.050955694
      %v1719 = vadd.f32 %v1687, 0.050955694
      %v1720 = vadd.f32 %v1688, 0.050955694
      %v1721 = vadd.f32 %v1689, 0.050955694
      %v1722 = vadd.f32 %v1690, 0.050955694
      %v1723 = vmul.f32 %v1691, %v1563
      %v1724 = vmul.f32 %v1692, %v1564
      %v1725 = vmul.f32 %v1693, %v1565
      %v1726 = vmul.f32 %v1694, %v1566
      %v1727 = vmul.f32 %v1695, %v1567
      %v1728 = vmul.f32 %v1696, %v1568
      %v1729 = vmul.f32 %v1697, %v1569
      %v1730 = vmul.f32 %v1698, %v1570
      %v1731 = vmul.f32 %v1699, %v1571
      %v1732 = vmul.f32 %v1700, %v1572
      %v1733 = vmul.f32 %v1701, %v1573
      %v1734 = vmul.f32 %v1702, %v1574
      %v1735 = vmul.f32 %v1703, %v1575
      %v1736 = vmul.f32 %v1704, %v1576
      %v1737 = vmul.f32 %v1705, %v1577
      %v1738 = vmul.f32 %v1706, %v1578
      %v1739 = vmul.f32 %v1707, %v1579
      %v1740 = vmul.f32 %v1708, %v1580
      %v1741 = vmul.f32 %v1709, %v1581
      %v1742 = vmul.f32 %v1710, %v1582
      %v1743 = vmul.f32 %v1711, %v1583
      %v1744 = vmul.f32 %v1712, %v1584
      %v1745 = vmul.f32 %v1713, %v1585
      %v1746 = vmul.f32 %v1714, %v1586
      %v1747 = vmul.f32 %v1715, %v1587
      %v1748 = vmul.f32 %v1716, %v1588
      %v1749 = vmul.f32 %v1717, %v1589
      %v1750 = vmul.f32 %v1718, %v1590
      %v1751 = vmul.f32 %v1719, %v1591
      %v1752 = vmul.f32 %v1720, %v1592
      %v1753 = vmul.f32 %v1721, %v1593
      %v1754 = vmul.f32 %v1722, %v1594
      %v1755 = vadd.f32 %v1723, 0.18520832
      %v1756 = vadd.f32 %v1724, 0.18520832
      %v1757 = vadd.f32 %v1725, 0.18520832
      %v1758 = vadd.f32 %v1726, 0.18520832
      %v1759 = vadd.f32 %v1727, 0.18520832
      %v1760 = vadd.f32 %v1728, 0.18520832
      %v1761 = vadd.f32 %v1729, 0.18520832
      %v1762 = vadd.f32 %v1730, 0.18520832
      %v1763 = vadd.f32 %v1731, 0.18520832
      %v1764 = vadd.f32 %v1732, 0.18520832
      %v1765 = vadd.f32 %v1733, 0.18520832
      %v1766 = vadd.f32 %v1734, 0.18520832
      %v1767 = vadd.f32 %v1735, 0.18520832
      %v1768 = vadd.f32 %v1736, 0.18520832
      %v1769 = vadd.f32 %v1737, 0.18520832
      %v1770 = vadd.f32 %v1738, 0.18520832
      %v1771 = vadd.f32 %v1739, 0.18520832
      %v1772 = vadd.f32 %v1740, 0.18520832
      %v1773 = vadd.f32 %v1741, 0.18520832
      %v1774 = vadd.f32 %v1742, 0.18520832
      %v1775 = vadd.f32 %v1743, 0.18520832
      %v1776 = vadd.f32 %v1744, 0.18520832
      %v1777 = vadd.f32 %v1745, 0.18520832
      %v1778 = vadd.f32 %v1746, 0.18520832
      %v1779 = vadd.f32 %v1747, 0.18520832
      %v1780 = vadd.f32 %v1748, 0.18520832
      %v1781 = vadd.f32 %v1749, 0.18520832
      %v1782 = vadd.f32 %v1750, 0.18520832
      %v1783 = vadd.f32 %v1751, 0.18520832
      %v1784 = vadd.f32 %v1752, 0.18520832
      %v1785 = vadd.f32 %v1753, 0.18520832
      %v1786 = vadd.f32 %v1754, 0.18520832
      %v1787 = vmul.f32 %v1755, %v1563
      %v1788 = vmul.f32 %v1756, %v1564
      %v1789 = vmul.f32 %v1757, %v1565
      %v1790 = vmul.f32 %v1758, %v1566
      %v1791 = vmul.f32 %v1759, %v1567
      %v1792 = vmul.f32 %v1760, %v1568
      %v1793 = vmul.f32 %v1761, %v1569
      %v1794 = vmul.f32 %v1762, %v1570
      %v1795 = vmul.f32 %v1763, %v1571
      %v1796 = vmul.f32 %v1764, %v1572
      %v1797 = vmul.f32 %v1765, %v1573
      %v1798 = vmul.f32 %v1766, %v1574
      %v1799 = vmul.f32 %v1767, %v1575
      %v1800 = vmul.f32 %v1768, %v1576
      %v1801 = vmul.f32 %v1769, %v1577
      %v1802 = vmul.f32 %v1770, %v1578
      %v1803 = vmul.f32 %v1771, %v1579
      %v1804 = vmul.f32 %v1772, %v1580
      %v1805 = vmul.f32 %v1773, %v1581
      %v1806 = vmul.f32 %v1774, %v1582
      %v1807 = vmul.f32 %v1775, %v1583
      %v1808 = vmul.f32 %v1776, %v1584
      %v1809 = vmul.f32 %v1777, %v1585
      %v1810 = vmul.f32 %v1778, %v1586
      %v1811 = vmul.f32 %v1779, %v1587
      %v1812 = vmul.f32 %v1780, %v1588
      %v1813 = vmul.f32 %v1781, %v1589
      %v1814 = vmul.f32 %v1782, %v1590
      %v1815 = vmul.f32 %v1783, %v1591
      %v1816 = vmul.f32 %v1784, %v1592
      %v1817 = vmul.f32 %v1785, %v1593
      %v1818 = vmul.f32 %v1786, %v1594
      %v1819 = vadd.f32 %v1787, 1.1283791
      %v1820 = vadd.f32 %v1788, 1.1283791
      %v1821 = vadd.f32 %v1789, 1.1283791
      %v1822 = vadd.f32 %v1790, 1.1283791
      %v1823 = vadd.f32 %v1791, 1.1283791
      %v1824 = vadd.f32 %v1792, 1.1283791
      %v1825 = vadd.f32 %v1793, 1.1283791
      %v1826 = vadd.f32 %v1794, 1.1283791
      %v1827 = vadd.f32 %v1795, 1.1283791
      %v1828 = vadd.f32 %v1796, 1.1283791
      %v1829 = vadd.f32 %v1797, 1.1283791
      %v1830 = vadd.f32 %v1798, 1.1283791
      %v1831 = vadd.f32 %v1799, 1.1283791
      %v1832 = vadd.f32 %v1800, 1.1283791
      %v1833 = vadd.f32 %v1801, 1.1283791
      %v1834 = vadd.f32 %v1802, 1.1283791
      %v1835 = vadd.f32 %v1803, 1.1283791
      %v1836 = vadd.f32 %v1804, 1.1283791
      %v1837 = vadd.f32 %v1805, 1.1283791
      %v1838 = vadd.f32 %v1806, 1.1283791
      %v1839 = vadd.f32 %v1807, 1.1283791
      %v1840 = vadd.f32 %v1808, 1.1283791
      %v1841 = vadd.f32 %v1809, 1.1283791
      %v1842 = vadd.f32 %v1810, 1.1283791
      %v1843 = vadd.f32 %v1811, 1.1283791
      %v1844 = vadd.f32 %v1812, 1.1283791
      %v1845 = vadd.f32 %v1813, 1.1283791
      %v1846 = vadd.f32 %v1814, 1.1283791
      %v1847 = vadd.f32 %v1815, 1.1283791
      %v1848 = vadd.f32 %v1816, 1.1283791
      %v1849 = vadd.f32 %v1817, 1.1283791
      %v1850 = vadd.f32 %v1818, 1.1283791
      %v1851 = vmul.f32 %v1563, -1.1791603e-07
      %v1852 = vmul.f32 %v1564, -1.1791603e-07
      %v1853 = vmul.f32 %v1565, -1.1791603e-07
      %v1854 = vmul.f32 %v1566, -1.1791603e-07
      %v1855 = vmul.f32 %v1567, -1.1791603e-07
      %v1856 = vmul.f32 %v1568, -1.1791603e-07
      %v1857 = vmul.f32 %v1569, -1.1791603e-07
      %v1858 = vmul.f32 %v1570, -1.1791603e-07
      %v1859 = vmul.f32 %v1571, -1.1791603e-07
      %v1860 = vmul.f32 %v1572, -1.1791603e-07
      %v1861 = vmul.f32 %v1573, -1.1791603e-07
      %v1862 = vmul.f32 %v1574, -1.1791603e-07
      %v1863 = vmul.f32 %v1575, -1.1791603e-07
      %v1864 = vmul.f32 %v1576, -1.1791603e-07
      %v1865 = vmul.f32 %v1577, -1.1791603e-07
      %v1866 = vmul.f32 %v1578, -1.1791603e-07
      %v1867 = vmul.f32 %v1579, -1.1791603e-07
      %v1868 = vmul.f32 %v1580, -1.1791603e-07
      %v1869 = vmul.f32 %v1581, -1.1791603e-07
      %v1870 = vmul.f32 %v1582, -1.1791603e-07
      %v1871 = vmul.f32 %v1583, -1.1791603e-07
      %v1872 = vmul.f32 %v1584, -1.1791603e-07
      %v1873 = vmul.f32 %v1585, -1.1791603e-07
      %v1874 = vmul.f32 %v1586, -1.1791603e-07
      %v1875 = vmul.f32 %v1587, -1.1791603e-07
      %v1876 = vmul.f32 %v1588, -1.1791603e-07
      %v1877 = vmul.f32 %v1589, -1.1791603e-07
      %v1878 = vmul.f32 %v1590, -1.1791603e-07
      %v1879 = vmul.f32 %v1591, -1.1791603e-07
      %v1880 = vmul.f32 %v1592, -1.1791603e-07
      %v1881 = vmul.f32 %v1593, -1.1791603e-07
      %v1882 = vmul.f32 %v1594, -1.1791603e-07
      %v1883 = vadd.f32 %v1851, 2.3547966e-05
      %v1884 = vadd.f32 %v1852, 2.3547966e-05
      %v1885 = vadd.f32 %v1853, 2.3547966e-05
      %v1886 = vadd.f32 %v1854, 2.3547966e-05
      %v1887 = vadd.f32 %v1855, 2.3547966e-05
      %v1888 = vadd.f32 %v1856, 2.3547966e-05
      %v1889 = vadd.f32 %v1857, 2.3547966e-05
      %v1890 = vadd.f32 %v1858, 2.3547966e-05
      %v1891 = vadd.f32 %v1859, 2.3547966e-05
      %v1892 = vadd.f32 %v1860, 2.3547966e-05
      %v1893 = vadd.f32 %v1861, 2.3547966e-05
      %v1894 = vadd.f32 %v1862, 2.3547966e-05
      %v1895 = vadd.f32 %v1863, 2.3547966e-05
      %v1896 = vadd.f32 %v1864, 2.3547966e-05
      %v1897 = vadd.f32 %v1865, 2.3547966e-05
      %v1898 = vadd.f32 %v1866, 2.3547966e-05
      %v1899 = vadd.f32 %v1867, 2.3547966e-05
      %v1900 = vadd.f32 %v1868, 2.3547966e-05
      %v1901 = vadd.f32 %v1869, 2.3547966e-05
      %v1902 = vadd.f32 %v1870, 2.3547966e-05
      %v1903 = vadd.f32 %v1871, 2.3547966e-05
      %v1904 = vadd.f32 %v1872, 2.3547966e-05
      %v1905 = vadd.f32 %v1873, 2.3547966e-05
      %v1906 = vadd.f32 %v1874, 2.3547966e-05
      %v1907 = vadd.f32 %v1875, 2.3547966e-05
      %v1908 = vadd.f32 %v1876, 2.3547966e-05
      %v1909 = vadd.f32 %v1877, 2.3547966e-05
      %v1910 = vadd.f32 %v1878, 2.3547966e-05
      %v1911 = vadd.f32 %v1879, 2.3547966e-05
      %v1912 = vadd.f32 %v1880, 2.3547966e-05
      %v1913 = vadd.f32 %v1881, 2.3547966e-05
      %v1914 = vadd.f32 %v1882, 2.3547966e-05
      %v1915 = vmul.f32 %v1883, %v1563
      %v1916 = vmul.f32 %v1884, %v1564
      %v1917 = vmul.f32 %v1885, %v1565
      %v1918 = vmul.f32 %v1886, %v1566
      %v1919 = vmul.f32 %v1887, %v1567
      %v1920 = vmul.f32 %v1888, %v1568
      %v1921 = vmul.f32 %v1889, %v1569
      %v1922 = vmul.f32 %v1890, %v1570
      %v1923 = vmul.f32 %v1891, %v1571
      %v1924 = vmul.f32 %v1892, %v1572
      %v1925 = vmul.f32 %v1893, %v1573
      %v1926 = vmul.f32 %v1894, %v1574
      %v1927 = vmul.f32 %v1895, %v1575
      %v1928 = vmul.f32 %v1896, %v1576
      %v1929 = vmul.f32 %v1897, %v1577
      %v1930 = vmul.f32 %v1898, %v1578
      %v1931 = vmul.f32 %v1899, %v1579
      %v1932 = vmul.f32 %v1900, %v1580
      %v1933 = vmul.f32 %v1901, %v1581
      %v1934 = vmul.f32 %v1902, %v1582
      %v1935 = vmul.f32 %v1903, %v1583
      %v1936 = vmul.f32 %v1904, %v1584
      %v1937 = vmul.f32 %v1905, %v1585
      %v1938 = vmul.f32 %v1906, %v1586
      %v1939 = vmul.f32 %v1907, %v1587
      %v1940 = vmul.f32 %v1908, %v1588
      %v1941 = vmul.f32 %v1909, %v1589
      %v1942 = vmul.f32 %v1910, %v1590
      %v1943 = vmul.f32 %v1911, %v1591
      %v1944 = vmul.f32 %v1912, %v1592
      %v1945 = vmul.f32 %v1913, %v1593
      %v1946 = vmul.f32 %v1914, %v1594
      %v1947 = vadd.f32 %v1915, 0.0010179626
      %v1948 = vadd.f32 %v1916, 0.0010179626
      %v1949 = vadd.f32 %v1917, 0.0010179626
      %v1950 = vadd.f32 %v1918, 0.0010179626
      %v1951 = vadd.f32 %v1919, 0.0010179626
      %v1952 = vadd.f32 %v1920, 0.0010179626
      %v1953 = vadd.f32 %v1921, 0.0010179626
      %v1954 = vadd.f32 %v1922, 0.0010179626
      %v1955 = vadd.f32 %v1923, 0.0010179626
      %v1956 = vadd.f32 %v1924, 0.0010179626
      %v1957 = vadd.f32 %v1925, 0.0010179626
      %v1958 = vadd.f32 %v1926, 0.0010179626
      %v1959 = vadd.f32 %v1927, 0.0010179626
      %v1960 = vadd.f32 %v1928, 0.0010179626
      %v1961 = vadd.f32 %v1929, 0.0010179626
      %v1962 = vadd.f32 %v1930, 0.0010179626
      %v1963 = vadd.f32 %v1931, 0.0010179626
      %v1964 = vadd.f32 %v1932, 0.0010179626
      %v1965 = vadd.f32 %v1933, 0.0010179626
      %v1966 = vadd.f32 %v1934, 0.0010179626
      %v1967 = vadd.f32 %v1935, 0.0010179626
      %v1968 = vadd.f32 %v1936, 0.0010179626
      %v1969 = vadd.f32 %v1937, 0.0010179626
      %v1970 = vadd.f32 %v1938, 0.0010179626
      %v1971 = vadd.f32 %v1939, 0.0010179626
      %v1972 = vadd.f32 %v1940, 0.0010179626
      %v1973 = vadd.f32 %v1941, 0.0010179626
      %v1974 = vadd.f32 %v1942, 0.0010179626
      %v1975 = vadd.f32 %v1943, 0.0010179626
      %v1976 = vadd.f32 %v1944, 0.0010179626
      %v1977 = vadd.f32 %v1945, 0.0010179626
      %v1978 = vadd.f32 %v1946, 0.0010179626
      %v1979 = vmul.f32 %v1947, %v1563
      %v1980 = vmul.f32 %v1948, %v1564
      %v1981 = vmul.f32 %v1949, %v1565
      %v1982 = vmul.f32 %v1950, %v1566
      %v1983 = vmul.f32 %v1951, %v1567
      %v1984 = vmul.f32 %v1952, %v1568
      %v1985 = vmul.f32 %v1953, %v1569
      %v1986 = vmul.f32 %v1954, %v1570
      %v1987 = vmul.f32 %v1955, %v1571
      %v1988 = vmul.f32 %v1956, %v1572
      %v1989 = vmul.f32 %v1957, %v1573
      %v1990 = vmul.f32 %v1958, %v1574
      %v1991 = vmul.f32 %v1959, %v1575
      %v1992 = vmul.f32 %v1960, %v1576
      %v1993 = vmul.f32 %v1961, %v1577
      %v1994 = vmul.f32 %v1962, %v1578
      %v1995 = vmul.f32 %v1963, %v1579
      %v1996 = vmul.f32 %v1964, %v1580
      %v1997 = vmul.f32 %v1965, %v1581
      %v1998 = vmul.f32 %v1966, %v1582
      %v1999 = vmul.f32 %v1967, %v1583
      %v2000 = vmul.f32 %v1968, %v1584
      %v2001 = vmul.f32 %v1969, %v1585
      %v2002 = vmul.f32 %v1970, %v1586
      %v2003 = vmul.f32 %v1971, %v1587
      %v2004 = vmul.f32 %v1972, %v1588
      %v2005 = vmul.f32 %v1973, %v1589
      %v2006 = vmul.f32 %v1974, %v1590
      %v2007 = vmul.f32 %v1975, %v1591
      %v2008 = vmul.f32 %v1976, %v1592
      %v2009 = vmul.f32 %v1977, %v1593
      %v2010 = vmul.f32 %v1978, %v1594
      %v2011 = vadd.f32 %v1979, 0.01407047
      %v2012 = vadd.f32 %v1980, 0.01407047
      %v2013 = vadd.f32 %v1981, 0.01407047
      %v2014 = vadd.f32 %v1982, 0.01407047
      %v2015 = vadd.f32 %v1983, 0.01407047
      %v2016 = vadd.f32 %v1984, 0.01407047
      %v2017 = vadd.f32 %v1985, 0.01407047
      %v2018 = vadd.f32 %v1986, 0.01407047
      %v2019 = vadd.f32 %v1987, 0.01407047
      %v2020 = vadd.f32 %v1988, 0.01407047
      %v2021 = vadd.f32 %v1989, 0.01407047
      %v2022 = vadd.f32 %v1990, 0.01407047
      %v2023 = vadd.f32 %v1991, 0.01407047
      %v2024 = vadd.f32 %v1992, 0.01407047
      %v2025 = vadd.f32 %v1993, 0.01407047
      %v2026 = vadd.f32 %v1994, 0.01407047
      %v2027 = vadd.f32 %v1995, 0.01407047
      %v2028 = vadd.f32 %v1996, 0.01407047
      %v2029 = vadd.f32 %v1997, 0.01407047
      %v2030 = vadd.f32 %v1998, 0.01407047
      %v2031 = vadd.f32 %v1999, 0.01407047
      %v2032 = vadd.f32 %v2000, 0.01407047
      %v2033 = vadd.f32 %v2001, 0.01407047
      %v2034 = vadd.f32 %v2002, 0.01407047
      %v2035 = vadd.f32 %v2003, 0.01407047
      %v2036 = vadd.f32 %v2004, 0.01407047
      %v2037 = vadd.f32 %v2005, 0.01407047
      %v2038 = vadd.f32 %v2006, 0.01407047
      %v2039 = vadd.f32 %v2007, 0.01407047
      %v2040 = vadd.f32 %v2008, 0.01407047
      %v2041 = vadd.f32 %v2009, 0.01407047
      %v2042 = vadd.f32 %v2010, 0.01407047
      %v2043 = vmul.f32 %v2011, %v1563
      %v2044 = vmul.f32 %v2012, %v1564
      %v2045 = vmul.f32 %v2013, %v1565
      %v2046 = vmul.f32 %v2014, %v1566
      %v2047 = vmul.f32 %v2015, %v1567
      %v2048 = vmul.f32 %v2016, %v1568
      %v2049 = vmul.f32 %v2017, %v1569
      %v2050 = vmul.f32 %v2018, %v1570
      %v2051 = vmul.f32 %v2019, %v1571
      %v2052 = vmul.f32 %v2020, %v1572
      %v2053 = vmul.f32 %v2021, %v1573
      %v2054 = vmul.f32 %v2022, %v1574
      %v2055 = vmul.f32 %v2023, %v1575
      %v2056 = vmul.f32 %v2024, %v1576
      %v2057 = vmul.f32 %v2025, %v1577
      %v2058 = vmul.f32 %v2026, %v1578
      %v2059 = vmul.f32 %v2027, %v1579
      %v2060 = vmul.f32 %v2028, %v1580
      %v2061 = vmul.f32 %v2029, %v1581
      %v2062 = vmul.f32 %v2030, %v1582
      %v2063 = vmul.f32 %v2031, %v1583
      %v2064 = vmul.f32 %v2032, %v1584
      %v2065 = vmul.f32 %v2033, %v1585
      %v2066 = vmul.f32 %v2034, %v1586
      %v2067 = vmul.f32 %v2035, %v1587
      %v2068 = vmul.f32 %v2036, %v1588
      %v2069 = vmul.f32 %v2037, %v1589
      %v2070 = vmul.f32 %v2038, %v1590
      %v2071 = vmul.f32 %v2039, %v1591
      %v2072 = vmul.f32 %v2040, %v1592
      %v2073 = vmul.f32 %v2041, %v1593
      %v2074 = vmul.f32 %v2042, %v1594
      %v2075 = vadd.f32 %v2043, 0.11098505
      %v2076 = vadd.f32 %v2044, 0.11098505
      %v2077 = vadd.f32 %v2045, 0.11098505
      %v2078 = vadd.f32 %v2046, 0.11098505
      %v2079 = vadd.f32 %v2047, 0.11098505
      %v2080 = vadd.f32 %v2048, 0.11098505
      %v2081 = vadd.f32 %v2049, 0.11098505
      %v2082 = vadd.f32 %v2050, 0.11098505
      %v2083 = vadd.f32 %v2051, 0.11098505
      %v2084 = vadd.f32 %v2052, 0.11098505
      %v2085 = vadd.f32 %v2053, 0.11098505
      %v2086 = vadd.f32 %v2054, 0.11098505
      %v2087 = vadd.f32 %v2055, 0.11098505
      %v2088 = vadd.f32 %v2056, 0.11098505
      %v2089 = vadd.f32 %v2057, 0.11098505
      %v2090 = vadd.f32 %v2058, 0.11098505
      %v2091 = vadd.f32 %v2059, 0.11098505
      %v2092 = vadd.f32 %v2060, 0.11098505
      %v2093 = vadd.f32 %v2061, 0.11098505
      %v2094 = vadd.f32 %v2062, 0.11098505
      %v2095 = vadd.f32 %v2063, 0.11098505
      %v2096 = vadd.f32 %v2064, 0.11098505
      %v2097 = vadd.f32 %v2065, 0.11098505
      %v2098 = vadd.f32 %v2066, 0.11098505
      %v2099 = vadd.f32 %v2067, 0.11098505
      %v2100 = vadd.f32 %v2068, 0.11098505
      %v2101 = vadd.f32 %v2069, 0.11098505
      %v2102 = vadd.f32 %v2070, 0.11098505
      %v2103 = vadd.f32 %v2071, 0.11098505
      %v2104 = vadd.f32 %v2072, 0.11098505
      %v2105 = vadd.f32 %v2073, 0.11098505
      %v2106 = vadd.f32 %v2074, 0.11098505
      %v2107 = vmul.f32 %v2075, %v1563
      %v2108 = vmul.f32 %v2076, %v1564
      %v2109 = vmul.f32 %v2077, %v1565
      %v2110 = vmul.f32 %v2078, %v1566
      %v2111 = vmul.f32 %v2079, %v1567
      %v2112 = vmul.f32 %v2080, %v1568
      %v2113 = vmul.f32 %v2081, %v1569
      %v2114 = vmul.f32 %v2082, %v1570
      %v2115 = vmul.f32 %v2083, %v1571
      %v2116 = vmul.f32 %v2084, %v1572
      %v2117 = vmul.f32 %v2085, %v1573
      %v2118 = vmul.f32 %v2086, %v1574
      %v2119 = vmul.f32 %v2087, %v1575
      %v2120 = vmul.f32 %v2088, %v1576
      %v2121 = vmul.f32 %v2089, %v1577
      %v2122 = vmul.f32 %v2090, %v1578
      %v2123 = vmul.f32 %v2091, %v1579
      %v2124 = vmul.f32 %v2092, %v1580
      %v2125 = vmul.f32 %v2093, %v1581
      %v2126 = vmul.f32 %v2094, %v1582
      %v2127 = vmul.f32 %v2095, %v1583
      %v2128 = vmul.f32 %v2096, %v1584
      %v2129 = vmul.f32 %v2097, %v1585
      %v2130 = vmul.f32 %v2098, %v1586
      %v2131 = vmul.f32 %v2099, %v1587
      %v2132 = vmul.f32 %v2100, %v1588
      %v2133 = vmul.f32 %v2101, %v1589
      %v2134 = vmul.f32 %v2102, %v1590
      %v2135 = vmul.f32 %v2103, %v1591
      %v2136 = vmul.f32 %v2104, %v1592
      %v2137 = vmul.f32 %v2105, %v1593
      %v2138 = vmul.f32 %v2106, %v1594
      %v2139 = vadd.f32 %v2107, 0.49746925
      %v2140 = vadd.f32 %v2108, 0.49746925
      %v2141 = vadd.f32 %v2109, 0.49746925
      %v2142 = vadd.f32 %v2110, 0.49746925
      %v2143 = vadd.f32 %v2111, 0.49746925
      %v2144 = vadd.f32 %v2112, 0.49746925
      %v2145 = vadd.f32 %v2113, 0.49746925
      %v2146 = vadd.f32 %v2114, 0.49746925
      %v2147 = vadd.f32 %v2115, 0.49746925
      %v2148 = vadd.f32 %v2116, 0.49746925
      %v2149 = vadd.f32 %v2117, 0.49746925
      %v2150 = vadd.f32 %v2118, 0.49746925
      %v2151 = vadd.f32 %v2119, 0.49746925
      %v2152 = vadd.f32 %v2120, 0.49746925
      %v2153 = vadd.f32 %v2121, 0.49746925
      %v2154 = vadd.f32 %v2122, 0.49746925
      %v2155 = vadd.f32 %v2123, 0.49746925
      %v2156 = vadd.f32 %v2124, 0.49746925
      %v2157 = vadd.f32 %v2125, 0.49746925
      %v2158 = vadd.f32 %v2126, 0.49746925
      %v2159 = vadd.f32 %v2127, 0.49746925
      %v2160 = vadd.f32 %v2128, 0.49746925
      %v2161 = vadd.f32 %v2129, 0.49746925
      %v2162 = vadd.f32 %v2130, 0.49746925
      %v2163 = vadd.f32 %v2131, 0.49746925
      %v2164 = vadd.f32 %v2132, 0.49746925
      %v2165 = vadd.f32 %v2133, 0.49746925
      %v2166 = vadd.f32 %v2134, 0.49746925
      %v2167 = vadd.f32 %v2135, 0.49746925
      %v2168 = vadd.f32 %v2136, 0.49746925
      %v2169 = vadd.f32 %v2137, 0.49746925
      %v2170 = vadd.f32 %v2138, 0.49746925
      %v2171 = vmul.f32 %v2139, %v1563
      %v2172 = vmul.f32 %v2140, %v1564
      %v2173 = vmul.f32 %v2141, %v1565
      %v2174 = vmul.f32 %v2142, %v1566
      %v2175 = vmul.f32 %v2143, %v1567
      %v2176 = vmul.f32 %v2144, %v1568
      %v2177 = vmul.f32 %v2145, %v1569
      %v2178 = vmul.f32 %v2146, %v1570
      %v2179 = vmul.f32 %v2147, %v1571
      %v2180 = vmul.f32 %v2148, %v1572
      %v2181 = vmul.f32 %v2149, %v1573
      %v2182 = vmul.f32 %v2150, %v1574
      %v2183 = vmul.f32 %v2151, %v1575
      %v2184 = vmul.f32 %v2152, %v1576
      %v2185 = vmul.f32 %v2153, %v1577
      %v2186 = vmul.f32 %v2154, %v1578
      %v2187 = vmul.f32 %v2155, %v1579
      %v2188 = vmul.f32 %v2156, %v1580
      %v2189 = vmul.f32 %v2157, %v1581
      %v2190 = vmul.f32 %v2158, %v1582
      %v2191 = vmul.f32 %v2159, %v1583
      %v2192 = vmul.f32 %v2160, %v1584
      %v2193 = vmul.f32 %v2161, %v1585
      %v2194 = vmul.f32 %v2162, %v1586
      %v2195 = vmul.f32 %v2163, %v1587
      %v2196 = vmul.f32 %v2164, %v1588
      %v2197 = vmul.f32 %v2165, %v1589
      %v2198 = vmul.f32 %v2166, %v1590
      %v2199 = vmul.f32 %v2167, %v1591
      %v2200 = vmul.f32 %v2168, %v1592
      %v2201 = vmul.f32 %v2169, %v1593
      %v2202 = vmul.f32 %v2170, %v1594
      %v2203 = vadd.f32 %v2171, 1.0
      %v2204 = vadd.f32 %v2172, 1.0
      %v2205 = vadd.f32 %v2173, 1.0
      %v2206 = vadd.f32 %v2174, 1.0
      %v2207 = vadd.f32 %v2175, 1.0
      %v2208 = vadd.f32 %v2176, 1.0
      %v2209 = vadd.f32 %v2177, 1.0
      %v2210 = vadd.f32 %v2178, 1.0
      %v2211 = vadd.f32 %v2179, 1.0
      %v2212 = vadd.f32 %v2180, 1.0
      %v2213 = vadd.f32 %v2181, 1.0
      %v2214 = vadd.f32 %v2182, 1.0
      %v2215 = vadd.f32 %v2183, 1.0
      %v2216 = vadd.f32 %v2184, 1.0
      %v2217 = vadd.f32 %v2185, 1.0
      %v2218 = vadd.f32 %v2186, 1.0
      %v2219 = vadd.f32 %v2187, 1.0
      %v2220 = vadd.f32 %v2188, 1.0
      %v2221 = vadd.f32 %v2189, 1.0
      %v2222 = vadd.f32 %v2190, 1.0
      %v2223 = vadd.f32 %v2191, 1.0
      %v2224 = vadd.f32 %v2192, 1.0
      %v2225 = vadd.f32 %v2193, 1.0
      %v2226 = vadd.f32 %v2194, 1.0
      %v2227 = vadd.f32 %v2195, 1.0
      %v2228 = vadd.f32 %v2196, 1.0
      %v2229 = vadd.f32 %v2197, 1.0
      %v2230 = vadd.f32 %v2198, 1.0
      %v2231 = vadd.f32 %v2199, 1.0
      %v2232 = vadd.f32 %v2200, 1.0
      %v2233 = vadd.f32 %v2201, 1.0
      %v2234 = vadd.f32 %v2202, 1.0
      %v2235 = vmul.f32 %v1531, %v1819
      %v2236 = vmul.f32 %v1532, %v1820
      %v2237 = vmul.f32 %v1533, %v1821
      %v2238 = vmul.f32 %v1534, %v1822
      %v2239 = vmul.f32 %v1535, %v1823
      %v2240 = vmul.f32 %v1536, %v1824
      %v2241 = vmul.f32 %v1537, %v1825
      %v2242 = vmul.f32 %v1538, %v1826
      %v2243 = vmul.f32 %v1539, %v1827
      %v2244 = vmul.f32 %v1540, %v1828
      %v2245 = vmul.f32 %v1541, %v1829
      %v2246 = vmul.f32 %v1542, %v1830
      %v2247 = vmul.f32 %v1543, %v1831
      %v2248 = vmul.f32 %v1544, %v1832
      %v2249 = vmul.f32 %v1545, %v1833
      %v2250 = vmul.f32 %v1546, %v1834
      %v2251 = vmul.f32 %v1547, %v1835
      %v2252 = vmul.f32 %v1548, %v1836
      %v2253 = vmul.f32 %v1549, %v1837
      %v2254 = vmul.f32 %v1550, %v1838
      %v2255 = vmul.f32 %v1551, %v1839
      %v2256 = vmul.f32 %v1552, %v1840
      %v2257 = vmul.f32 %v1553, %v1841
      %v2258 = vmul.f32 %v1554, %v1842
      %v2259 = vmul.f32 %v1555, %v1843
      %v2260 = vmul.f32 %v1556, %v1844
      %v2261 = vmul.f32 %v1557, %v1845
      %v2262 = vmul.f32 %v1558, %v1846
      %v2263 = vmul.f32 %v1559, %v1847
      %v2264 = vmul.f32 %v1560, %v1848
      %v2265 = vmul.f32 %v1561, %v1849
      %v2266 = vmul.f32 %v1562, %v1850
      %v2267 = vrcp.pop %v2203
      %v2268 = vrcp.pop %v2204
      %v2269 = vrcp.pop %v2205
      %v2270 = vrcp.pop %v2206
      %v2271 = vrcp.pop %v2207
      %v2272 = vrcp.pop %v2208
      %v2273 = vrcp.pop %v2209
      %v2274 = vrcp.pop %v2210
      %v2275 = vrcp.pop %v2211
      %v2276 = vrcp.pop %v2212
      %v2277 = vrcp.pop %v2213
      %v2278 = vrcp.pop %v2214
      %v2279 = vrcp.pop %v2215
      %v2280 = vrcp.pop %v2216
      %v2281 = vrcp.pop %v2217
      %v2282 = vrcp.pop %v2218
      %v2283 = vrcp.pop %v2219
      %v2284 = vrcp.pop %v2220
      %v2285 = vrcp.pop %v2221
      %v2286 = vrcp.pop %v2222
      %v2287 = vrcp.pop %v2223
      %v2288 = vrcp.pop %v2224
      %v2289 = vrcp.pop %v2225
      %v2290 = vrcp.pop %v2226
      %v2291 = vrcp.pop %v2227
      %v2292 = vrcp.pop %v2228
      %v2293 = vrcp.pop %v2229
      %v2294 = vrcp.pop %v2230
      %v2295 = vrcp.pop %v2231
      %v2296 = vrcp.pop %v2232
      %v2297 = vrcp.pop %v2233
      %v2298 = vrcp.pop %v2234
      %v2299 = vmul.f32 %v2235, %v2267
      %v2300 = vmul.f32 %v2236, %v2268
      %v2301 = vmul.f32 %v2237, %v2269
      %v2302 = vmul.f32 %v2238, %v2270
      %v2303 = vmul.f32 %v2239, %v2271
      %v2304 = vmul.f32 %v2240, %v2272
      %v2305 = vmul.f32 %v2241, %v2273
      %v2306 = vmul.f32 %v2242, %v2274
      %v2307 = vmul.f32 %v2243, %v2275
      %v2308 = vmul.f32 %v2244, %v2276
      %v2309 = vmul.f32 %v2245, %v2277
      %v2310 = vmul.f32 %v2246, %v2278
      %v2311 = vmul.f32 %v2247, %v2279
      %v2312 = vmul.f32 %v2248, %v2280
      %v2313 = vmul.f32 %v2249, %v2281
      %v2314 = vmul.f32 %v2250, %v2282
      %v2315 = vmul.f32 %v2251, %v2283
      %v2316 = vmul.f32 %v2252, %v2284
      %v2317 = vmul.f32 %v2253, %v2285
      %v2318 = vmul.f32 %v2254, %v2286
      %v2319 = vmul.f32 %v2255, %v2287
      %v2320 = vmul.f32 %v2256, %v2288
      %v2321 = vmul.f32 %v2257, %v2289
      %v2322 = vmul.f32 %v2258, %v2290
      %v2323 = vmul.f32 %v2259, %v2291
      %v2324 = vmul.f32 %v2260, %v2292
      %v2325 = vmul.f32 %v2261, %v2293
      %v2326 = vmul.f32 %v2262, %v2294
      %v2327 = vmul.f32 %v2263, %v2295
      %v2328 = vmul.f32 %v2264, %v2296
      %v2329 = vmul.f32 %v2265, %v2297
      %v2330 = vmul.f32 %v2266, %v2298
      %v2331 = vadd.f32 %v2299, 1.0
      %v2332 = vadd.f32 %v2300, 1.0
      %v2333 = vadd.f32 %v2301, 1.0
      %v2334 = vadd.f32 %v2302, 1.0
      %v2335 = vadd.f32 %v2303, 1.0
      %v2336 = vadd.f32 %v2304, 1.0
      %v2337 = vadd.f32 %v2305, 1.0
      %v2338 = vadd.f32 %v2306, 1.0
      %v2339 = vadd.f32 %v2307, 1.0
      %v2340 = vadd.f32 %v2308, 1.0
      %v2341 = vadd.f32 %v2309, 1.0
      %v2342 = vadd.f32 %v2310, 1.0
      %v2343 = vadd.f32 %v2311, 1.0
      %v2344 = vadd.f32 %v2312, 1.0
      %v2345 = vadd.f32 %v2313, 1.0
      %v2346 = vadd.f32 %v2314, 1.0
      %v2347 = vadd.f32 %v2315, 1.0
      %v2348 = vadd.f32 %v2316, 1.0
      %v2349 = vadd.f32 %v2317, 1.0
      %v2350 = vadd.f32 %v2318, 1.0
      %v2351 = vadd.f32 %v2319, 1.0
      %v2352 = vadd.f32 %v2320, 1.0
      %v2353 = vadd.f32 %v2321, 1.0
      %v2354 = vadd.f32 %v2322, 1.0
      %v2355 = vadd.f32 %v2323, 1.0
      %v2356 = vadd.f32 %v2324, 1.0
      %v2357 = vadd.f32 %v2325, 1.0
      %v2358 = vadd.f32 %v2326, 1.0
      %v2359 = vadd.f32 %v2327, 1.0
      %v2360 = vadd.f32 %v2328, 1.0
      %v2361 = vadd.f32 %v2329, 1.0
      %v2362 = vadd.f32 %v2330, 1.0
      %v2363 = vmul.f32 %v1435, %v2331
      %v2364 = vmul.f32 %v1436, %v2332
      %v2365 = vmul.f32 %v1437, %v2333
      %v2366 = vmul.f32 %v1438, %v2334
      %v2367 = vmul.f32 %v1439, %v2335
      %v2368 = vmul.f32 %v1440, %v2336
      %v2369 = vmul.f32 %v1441, %v2337
      %v2370 = vmul.f32 %v1442, %v2338
      %v2371 = vmul.f32 %v1443, %v2339
      %v2372 = vmul.f32 %v1444, %v2340
      %v2373 = vmul.f32 %v1445, %v2341
      %v2374 = vmul.f32 %v1446, %v2342
      %v2375 = vmul.f32 %v1447, %v2343
      %v2376 = vmul.f32 %v1448, %v2344
      %v2377 = vmul.f32 %v1449, %v2345
      %v2378 = vmul.f32 %v1450, %v2346
      %v2379 = vmul.f32 %v1451, %v2347
      %v2380 = vmul.f32 %v1452, %v2348
      %v2381 = vmul.f32 %v1453, %v2349
      %v2382 = vmul.f32 %v1454, %v2350
      %v2383 = vmul.f32 %v1455, %v2351
      %v2384 = vmul.f32 %v1456, %v2352
      %v2385 = vmul.f32 %v1457, %v2353
      %v2386 = vmul.f32 %v1458, %v2354
      %v2387 = vmul.f32 %v1459, %v2355
      %v2388 = vmul.f32 %v1460, %v2356
      %v2389 = vmul.f32 %v1461, %v2357
      %v2390 = vmul.f32 %v1462, %v2358
      %v2391 = vmul.f32 %v1463, %v2359
      %v2392 = vmul.f32 %v1464, %v2360
      %v2393 = vmul.f32 %v1465, %v2361
      %v2394 = vmul.f32 %v1466, %v2362
      %v2395 = vmax.f32 %v2363, %v2371
      %v2396 = vmax.f32 %v2364, %v2372
      %v2397 = vmax.f32 %v2365, %v2373
      %v2398 = vmax.f32 %v2366, %v2374
      %v2399 = vmax.f32 %v2367, %v2375
      %v2400 = vmax.f32 %v2368, %v2376
      %v2401 = vmax.f32 %v2369, %v2377
      %v2402 = vmax.f32 %v2370, %v2378
      %v2403 = vmax.f32 %v2379, %v2387
      %v2404 = vmax.f32 %v2380, %v2388
      %v2405 = vmax.f32 %v2381, %v2389
      %v2406 = vmax.f32 %v2382, %v2390
      %v2407 = vmax.f32 %v2383, %v2391
      %v2408 = vmax.f32 %v2384, %v2392
      %v2409 = vmax.f32 %v2385, %v2393
      %v2410 = vmax.f32 %v2386, %v2394
      %v2411 = vmax.f32 %v2395, %v2403
      %v2412 = vmax.f32 %v2396, %v2404
      %v2413 = vmax.f32 %v2397, %v2405
      %v2414 = vmax.f32 %v2398, %v2406
      %v2415 = vmax.f32 %v2399, %v2407
      %v2416 = vmax.f32 %v2400, %v2408
      %v2417 = vmax.f32 %v2401, %v2409
      %v2418 = vmax.f32 %v2402, %v2410
      %2419 = vst.msk [vmem:[%s266] sm:$0xff] %vm441, %v2411
      %2420 = vst.msk [vmem:[%s266 + $0x8] sm:$0xff] %vm441, %v2412
      %2421 = vst.msk [vmem:[%s266 + $0x10] sm:$0xff] %vm441, %v2413
      %2422 = vst.msk [vmem:[%s266 + $0x18] sm:$0xff] %vm441, %v2414
      %2423 = vst.msk [vmem:[%s266 + $0x20] sm:$0xff] %vm441, %v2415
      %2424 = vst.msk [vmem:[%s266 + $0x28] sm:$0xff] %vm441, %v2416
      %2425 = vst.msk [vmem:[%s266 + $0x30] sm:$0xff] %vm441, %v2417
      %2426 = vst.msk [vmem:[%s266 + $0x38] sm:$0xff] %vm441, %v2418
      %v2427 = vld [vmem:[%s3] sm:$0x1]
      %v2429 = vlaneseq
      %v2430 = vshrl.u32 %v2429, 7
      %v2431 = vsub.s32 0, %v2430
      %v2432 = vrot.slane %v2427, %v2431
      %v2434 = vmul.f32 %v2411, %v2432
      %v2435 = vmul.f32 %v2412, %v2432
      %v2436 = vmul.f32 %v2413, %v2432
      %v2437 = vmul.f32 %v2414, %v2432
      %v2438 = vmul.f32 %v2415, %v2432
      %v2439 = vmul.f32 %v2416, %v2432
      %v2440 = vmul.f32 %v2417, %v2432
      %v2441 = vmul.f32 %v2418, %v2432
      %v2442 = vsel %vm441, %v2434, 0.0
      %2443 = vadd.xlane.f32.xlu0 %v2442
      %v2444 = vpop.xlane.xlu0 %2443
      %v2445 = vsel %vm441, %v2435, 0.0
      %2446 = vadd.xlane.f32.xlu0 %v2445
      %v2447 = vpop.xlane.xlu0 %2446
      %v2448 = vsel %vm441, %v2436, 0.0
      %2449 = vadd.xlane.f32.xlu0 %v2448
      %v2450 = vpop.xlane.xlu0 %2449
      %v2451 = vsel %vm441, %v2437, 0.0
      %2452 = vadd.xlane.f32.xlu0 %v2451
      %v2453 = vpop.xlane.xlu0 %2452
      %v2454 = vsel %vm441, %v2438, 0.0
      %2455 = vadd.xlane.f32.xlu0 %v2454
      %v2456 = vpop.xlane.xlu0 %2455
      %v2457 = vsel %vm441, %v2439, 0.0
      %2458 = vadd.xlane.f32.xlu0 %v2457
      %v2459 = vpop.xlane.xlu0 %2458
      %v2460 = vsel %vm441, %v2440, 0.0
      %2461 = vadd.xlane.f32.xlu0 %v2460
      %v2462 = vpop.xlane.xlu0 %2461
      %v2463 = vsel %vm441, %v2441, 0.0
      %2464 = vadd.xlane.f32.xlu0 %v2463
      %v2465 = vpop.xlane.xlu0 %2464
      %v2466 = vadd.f32 %v2444, 0.0
      %v2467 = vadd.f32 %v2447, 0.0
      %v2468 = vadd.f32 %v2450, 0.0
      %v2469 = vadd.f32 %v2453, 0.0
      %v2470 = vadd.f32 %v2456, 0.0
      %v2471 = vadd.f32 %v2459, 0.0
      %v2472 = vadd.f32 %v2462, 0.0
      %v2473 = vadd.f32 %v2465, 0.0
      %v2474 = vmul.f32 %v2411, %v2411
      %v2475 = vmul.f32 %v2412, %v2412
      %v2476 = vmul.f32 %v2413, %v2413
      %v2477 = vmul.f32 %v2414, %v2414
      %v2478 = vmul.f32 %v2415, %v2415
      %v2479 = vmul.f32 %v2416, %v2416
      %v2480 = vmul.f32 %v2417, %v2417
      %v2481 = vmul.f32 %v2418, %v2418
      %v2482 = vmul.f32 %v2474, %v2432
      %v2483 = vmul.f32 %v2475, %v2432
      %v2484 = vmul.f32 %v2476, %v2432
      %v2485 = vmul.f32 %v2477, %v2432
      %v2486 = vmul.f32 %v2478, %v2432
      %v2487 = vmul.f32 %v2479, %v2432
      %v2488 = vmul.f32 %v2480, %v2432
      %v2489 = vmul.f32 %v2481, %v2432
      %v2490 = vsel %vm441, %v2482, 0.0
      %2491 = vadd.xlane.f32.xlu0 %v2490
      %v2492 = vpop.xlane.xlu0 %2491
      %v2493 = vsel %vm441, %v2483, 0.0
      %2494 = vadd.xlane.f32.xlu0 %v2493
      %v2495 = vpop.xlane.xlu0 %2494
      %v2496 = vsel %vm441, %v2484, 0.0
      %2497 = vadd.xlane.f32.xlu0 %v2496
      %v2498 = vpop.xlane.xlu0 %2497
      %v2499 = vsel %vm441, %v2485, 0.0
      %2500 = vadd.xlane.f32.xlu0 %v2499
      %v2501 = vpop.xlane.xlu0 %2500
      %v2502 = vsel %vm441, %v2486, 0.0
      %2503 = vadd.xlane.f32.xlu0 %v2502
      %v2504 = vpop.xlane.xlu0 %2503
      %v2505 = vsel %vm441, %v2487, 0.0
      %2506 = vadd.xlane.f32.xlu0 %v2505
      %v2507 = vpop.xlane.xlu0 %2506
      %v2508 = vsel %vm441, %v2488, 0.0
      %2509 = vadd.xlane.f32.xlu0 %v2508
      %v2510 = vpop.xlane.xlu0 %2509
      %v2511 = vsel %vm441, %v2489, 0.0
      %2512 = vadd.xlane.f32.xlu0 %v2511
      %v2513 = vpop.xlane.xlu0 %2512
      %v2514 = vadd.f32 %v2492, 0.0
      %v2515 = vadd.f32 %v2495, 0.0
      %v2516 = vadd.f32 %v2498, 0.0
      %v2517 = vadd.f32 %v2501, 0.0
      %v2518 = vadd.f32 %v2504, 0.0
      %v2519 = vadd.f32 %v2507, 0.0
      %v2520 = vadd.f32 %v2510, 0.0
      %v2521 = vadd.f32 %v2513, 0.0
      %vm2522 = vcmask 7168
      %2523 = vst.msk [vmem:[%s271] sm:$0xff] %vm2522, %v2466
      %2524 = vst.msk [vmem:[%s271 + $0x8] sm:$0xff] %vm2522, %v2467
      %2525 = vst.msk [vmem:[%s271 + $0x10] sm:$0xff] %vm2522, %v2468
      %2526 = vst.msk [vmem:[%s271 + $0x18] sm:$0xff] %vm2522, %v2469
      %2527 = vst.msk [vmem:[%s271 + $0x20] sm:$0xff] %vm2522, %v2470
      %2528 = vst.msk [vmem:[%s271 + $0x28] sm:$0xff] %vm2522, %v2471
      %2529 = vst.msk [vmem:[%s271 + $0x30] sm:$0xff] %vm2522, %v2472
      %2530 = vst.msk [vmem:[%s271 + $0x38] sm:$0xff] %vm2522, %v2473
      %2531 = vst.msk [vmem:[%s276] sm:$0xff] %vm2522, %v2514
      %2532 = vst.msk [vmem:[%s276 + $0x8] sm:$0xff] %vm2522, %v2515
      %2533 = vst.msk [vmem:[%s276 + $0x10] sm:$0xff] %vm2522, %v2516
      %2534 = vst.msk [vmem:[%s276 + $0x18] sm:$0xff] %vm2522, %v2517
      %2535 = vst.msk [vmem:[%s276 + $0x20] sm:$0xff] %vm2522, %v2518
      %2536 = vst.msk [vmem:[%s276 + $0x28] sm:$0xff] %vm2522, %v2519
      %2537 = vst.msk [vmem:[%s276 + $0x30] sm:$0xff] %vm2522, %v2520
      %2538 = vst.msk [vmem:[%s276 + $0x38] sm:$0xff] %vm2522, %v2521
      %p2539 = scmp.lt.s32.totalorder %s18, 1
      %s2540 = scalar_select %p2539, %s18, 1
      %s2541 = smul.addr %s2540, 8
      %s2542 = smul.addr %s2541, 8
      %s2543 = scalar_lea.vmem %s4, %s2542
      %p2544 = scmp.lt.s32.totalorder %s18, 1
      %s2545 = scalar_select %p2544, %s18, 1
      %s2546 = smul.addr %s2545, 8
      %s2547 = smul.addr %s2546, 8
      %s2548 = scalar_lea.vmem %s5, %s2547
      %p2549 = scmp.lt.s32.totalorder %s18, 1
      %s2550 = scalar_select %p2549, %s18, 1
      %s2551 = smul.addr %s2550, 8
      %s2552 = smul.addr %s2551, 8
      %s2553 = scalar_lea.vmem %s6, %s2552
      // Predicated region
      $region37: #{resisc45_cnn_forward.10} parent=35 // pred_check
        %p2554 = pneg %p125
      $region38: #{resisc45_cnn_forward.10} parent=35 // pred_check_branch
        %2556 = sbr.rel (%p2554) target = $region40
      $region39: #{resisc45_cnn_forward.10} parent=35 // pred_region
        _
      $region40: #{resisc45_cnn_forward.10} parent=35 // pred_fallthru
        _
      // Predicated region
      $region41: #{resisc45_cnn_forward.10} parent=35 // pred_check
        %p2557 = pneg %p151
      $region42: #{resisc45_cnn_forward.10} parent=35 // pred_check_branch
        %2559 = sbr.rel (%p2557) target = $region44
      $region43: #{resisc45_cnn_forward.10} parent=35 // pred_region
        _
      $region44: #{resisc45_cnn_forward.10} parent=35 // pred_fallthru
        _
      // Predicated region
      $region45: #{resisc45_cnn_forward.10} parent=35 // pred_check
        %p2560 = pneg %p177
      $region46: #{resisc45_cnn_forward.10} parent=35 // pred_check_branch
        %2562 = sbr.rel (%p2560) target = $region48
      $region47: #{resisc45_cnn_forward.10} parent=35 // pred_region
        _
      $region48: #{resisc45_cnn_forward.10} parent=35 // pred_fallthru
        _
    $region36: #{resisc45_cnn_forward.10} parent=5 // pred_fallthru
      _
    %p2563 = scmp.le.s32.totalorder 2, %s13
    // Predicated region
    $region49: #{resisc45_cnn_forward.10} parent=5 // pred_check
      %p2564 = pneg %p2563
    $region50: #{resisc45_cnn_forward.10} parent=5 // pred_check_branch
      %2566 = sbr.rel (%p2564) target = $region52
    $region51: #{resisc45_cnn_forward.10} parent=5 // pred_region
      %s2567 = ssub.s32 %s13, 2
      // Predicated region
      $region53: #{resisc45_cnn_forward.10} parent=51 // pred_check
        %p2568 = pneg %p131
      $region54: #{resisc45_cnn_forward.10} parent=51 // pred_check_branch
        %2570 = sbr.rel (%p2568) target = $region56
      $region55: #{resisc45_cnn_forward.10} parent=51 // pred_region
        %p2571 = scmp.lt.s32.totalorder %s19, 1
        %s2572 = scalar_select %p2571, %s19, 1
        %s2573 = smul.addr %s2572, 8
        %s2574 = smul.addr %s2573, 8
        %s2575 = scalar_lea.vmem %s4, %s2574
      $region56: #{resisc45_cnn_forward.10} parent=51 // pred_fallthru
        _
      // Predicated region
      $region57: #{resisc45_cnn_forward.10} parent=51 // pred_check
        %p2576 = pneg %p157
      $region58: #{resisc45_cnn_forward.10} parent=51 // pred_check_branch
        %2578 = sbr.rel (%p2576) target = $region60
      $region59: #{resisc45_cnn_forward.10} parent=51 // pred_region
        %p2579 = scmp.lt.s32.totalorder %s19, 1
        %s2580 = scalar_select %p2579, %s19, 1
        %s2581 = smul.addr %s2580, 8
        %s2582 = smul.addr %s2581, 8
        %s2583 = scalar_lea.vmem %s5, %s2582
      $region60: #{resisc45_cnn_forward.10} parent=51 // pred_fallthru
        _
      // Predicated region
      $region61: #{resisc45_cnn_forward.10} parent=51 // pred_check
        %p2584 = pneg %p183
      $region62: #{resisc45_cnn_forward.10} parent=51 // pred_check_branch
        %2586 = sbr.rel (%p2584) target = $region64
      $region63: #{resisc45_cnn_forward.10} parent=51 // pred_region
        %p2587 = scmp.lt.s32.totalorder %s19, 1
        %s2588 = scalar_select %p2587, %s19, 1
        %s2589 = smul.addr %s2588, 8
        %s2590 = smul.addr %s2589, 8
        %s2591 = scalar_lea.vmem %s6, %s2590
      $region64: #{resisc45_cnn_forward.10} parent=51 // pred_fallthru
        _
    $region52: #{resisc45_cnn_forward.10} parent=5 // pred_fallthru
      _
  $region6: #{resisc45_cnn_forward.10} parent=0 // loop_footer
    %s17 = sadd.s32 1, %s13
  $region7: #{resisc45_cnn_forward.10} parent=0 // loop_footer_branch
    %12 = sbr.rel target = $region3
  $region8: #{resisc45_cnn_forward.10} parent=0 // loop_exit
    _

</llo_original>
